<compile_context>
chip_gen: v6e
topology: v6e:2x2x1
jax: 0.10.0
libtpu: 0.0.40
codegen_flags: <defaults>
</compile_context>

<pallas_src>
import math

import jax
import jax.numpy as jnp
from jax.experimental import pallas as pl
from jax.experimental.pallas import tpu as pltpu  # noqa: F401  (kept for CompilerParams follow-ups)

# ---- model hyper-params ----
D = 32          # in_dim
H = 8           # num_heads
DH = D // H     # head dim
EXP = 4         # FFN expansion (scale=4)

N_VEC_ROWS = 16  # packed vector slab rows (padded to a sublane multiple)


# ------------------- parameter packing (wrapper-side, pure JAX) -------------------
def pack_params(p):
    """Pack all weights into 3 slabs; fold the attention scale into Wq/bq.

    W1  (D, 12D): [sa_wq*s | sa_wk | sa_wv | sa_wo | ca_wq*s | ca_wk | ca_wv | ca_wo | ffn_w1]
    W2  (4D, D) : ffn_w2
    V   (16, 4D): LN params + fused bias rows (see row map below).
    """
    scale = 1.0 / math.sqrt(DH)
    W1 = jnp.concatenate(
        [p["sa_wq"] * scale, p["sa_wk"], p["sa_wv"], p["sa_wo"],
         p["ca_wq"] * scale, p["ca_wk"], p["ca_wv"], p["ca_wo"],
         p["ffn_w1"]], axis=1).astype(jnp.float32)                   # (D, 12D)
    W2 = p["ffn_w2"].astype(jnp.float32)                             # (4D, D)

    V = jnp.zeros((N_VEC_ROWS, EXP * D), jnp.float32)
    V = V.at[0, :D].set(p["in_g"])
    V = V.at[1, :D].set(p["in_b"])
    V = V.at[2, :D].set(p["q_g"])
    V = V.at[3, :D].set(p["q_b"])
    V = V.at[4, :D].set(p["c_g"])
    V = V.at[5, :D].set(p["c_b"])
    V = V.at[6, :3 * D].set(jnp.concatenate([p["sa_bq"] * scale, p["sa_bk"], p["sa_bv"]]))
    V = V.at[7, :D].set(p["sa_bo"])
    V = V.at[8, :D].set(p["ca_bq"] * scale)
    V = V.at[9, :2 * D].set(jnp.concatenate([p["ca_bk"], p["ca_bv"]]))
    V = V.at[10, :D].set(p["ca_bo"])
    V = V.at[11, :].set(p["ffn_b1"])
    V = V.at[12, :D].set(p["ffn_b2"])
    return W1, W2, V


# ------------------- Pallas kernel: full forward, single invocation -------------------
def _make_kernel(B, N, Nc, need_attn):
    def kernel(x_ref, c_ref, w1_ref, w2_ref, vec_ref, out_ref, *attn_refs):
        f32 = jnp.float32
        x2 = x_ref[...].reshape(B * N, D).astype(f32)      # (B*N, D)
        c2 = c_ref[...].reshape(B * Nc, D).astype(f32)     # (B*Nc, D)

        def layernorm(t, row, eps):
            g = vec_ref[row:row + 1, :D]                   # (1, D)
            b = vec_ref[row + 1:row + 2, :D]               # (1, D)
            mu = jnp.mean(t, axis=-1, keepdims=True)
            var = jnp.mean((t - mu) ** 2, axis=-1, keepdims=True)
            return (t - mu) * jax.lax.rsqrt(var + eps) * g + b

        def attend(qh, kh, vh):
            """Head-batched attention for one batch element (scale folded into Wq/bq)."""
            s = jnp.einsum('hqd,hkd->hqk', qh, kh, preferred_element_type=f32)  # (H,Nq,Nk)
            s = s - jnp.max(s, axis=-1, keepdims=True)
            e = jnp.exp(s)
            p = e * pl.reciprocal(jnp.sum(e, axis=-1, keepdims=True))
            oh = jnp.einsum('hqk,hkd->hqd', p, vh, preferred_element_type=f32)  # (H,Nq,DH)
            return p, oh.transpose(1, 0, 2).reshape(-1, D)

        # ---------- self-attention (fused QKV projection over both batch elements) ----------
        xn = layernorm(x2, 0, 1e-6)
        qkv = (jnp.dot(xn, w1_ref[:, 0:3 * D], preferred_element_type=f32)
               + vec_ref[6:7, :3 * D])                                          # (B*N, 3D)
        sa_chunks = []
        for b in range(B):
            # one reshape+transpose for the whole Q|K|V slab of this batch element
            t = qkv[b * N:(b + 1) * N].reshape(N, 3 * H, DH).transpose(1, 0, 2)  # (3H, N, DH)
            _, o = attend(t[:H], t[H:2 * H], t[2 * H:3 * H])
            sa_chunks.append(o)
        sa = jnp.concatenate(sa_chunks, axis=0)                                  # (B*N, D)
        sa = (jnp.dot(sa, w1_ref[:, 3 * D:4 * D], preferred_element_type=f32)
              + vec_ref[7:8, :D])
        query = sa + x2                                    # dropout = identity

        # ---------- contextual cross-attention ----------
        qn = layernorm(query, 2, 1e-6)                     # query_norm, eps=1e-6
        cn = layernorm(c2, 4, 1e-5)                        # context_norm, default eps
        qc = (jnp.dot(qn, w1_ref[:, 4 * D:5 * D], preferred_element_type=f32)
              + vec_ref[8:9, :D])                                               # (B*N, D)
        kvc = (jnp.dot(cn, w1_ref[:, 5 * D:7 * D], preferred_element_type=f32)
               + vec_ref[9:10, :2 * D])                                          # (B*Nc, 2D)
        ca_chunks = []
        probs_chunks = []
        for b in range(B):
            qh = qc[b * N:(b + 1) * N].reshape(N, H, DH).transpose(1, 0, 2)      # (H, N, DH)
            t = kvc[b * Nc:(b + 1) * Nc].reshape(Nc, 2 * H, DH).transpose(1, 0, 2)
            p, o = attend(qh, t[:H], t[H:2 * H])
            ca_chunks.append(o)
            probs_chunks.append(p)
        ca = jnp.concatenate(ca_chunks, axis=0)                                  # (B*N, D)
        mid = (jnp.dot(ca, w1_ref[:, 7 * D:8 * D], preferred_element_type=f32)
               + vec_ref[10:11, :D])

        # ---------- FFN on (mid + input)  (dropout = identity) ----------
        h = (jnp.dot(mid + x2, w1_ref[:, 8 * D:12 * D], preferred_element_type=f32)
             + vec_ref[11:12, :])
        h = jax.nn.gelu(h)
        out = jnp.dot(h, w2_ref[...], preferred_element_type=f32) + vec_ref[12:13, :D]

        # Natural-shape stores (D == full array dim, no flatten relayout needed).
        out_ref[...] = out.reshape(B, N, D).astype(out_ref.dtype)
        if need_attn:
            attn_refs[0][...] = jnp.stack(probs_chunks, axis=0).astype(attn_refs[0].dtype)

    return kernel


# ------------------- wrapper -------------------
def contextual_attention(x, ctx, params, need_attn=False):
    B, N, _ = x.shape
    _, Nc, _ = ctx.shape
    W1, W2, V = pack_params(params)

    if need_attn:
        out_shape = (jax.ShapeDtypeStruct((B, N, D), jnp.float32),
                     jax.ShapeDtypeStruct((B, H, N, Nc), jnp.float32))
    else:
        out_shape = jax.ShapeDtypeStruct((B, N, D), jnp.float32)

    # No grid: a single kernel invocation; every operand lives fully in VMEM
    # (total footprint < 100 KiB, far below any scoped-VMEM limit).
    res = pl.pallas_call(
        _make_kernel(B, N, Nc, need_attn),
        out_shape=out_shape,
    )(x, ctx, W1, W2, V)

    if need_attn:
        return res[0], res[1]
    return res, None


# ------------------- pure-JAX reference -------------------
def reference(x, ctx, p):
    scale = 1.0 / math.sqrt(DH)

    def ln(t, g, b, eps):
        mu = jnp.mean(t, axis=-1, keepdims=True)
        var = jnp.mean((t - mu) ** 2, axis=-1, keepdims=True)
        return (t - mu) * jax.lax.rsqrt(var + eps) * g + b

    def mha(k_in, v_in, q_in, wq, bq, wk, bk, wv, bv, wo, bo):
        q = q_in @ wq + bq
        k = k_in @ wk + bk
        v = v_in @ wv + bv
        nq, nk = q.shape[0], k.shape[0]
        qh = q.reshape(nq, H, DH).transpose(1, 0, 2)
        kh = k.reshape(nk, H, DH).transpose(1, 0, 2)
        vh = v.reshape(nk, H, DH).transpose(1, 0, 2)
        s = jnp.einsum('hqd,hkd->hqk', qh, kh) * scale
        s = s - jnp.max(s, axis=-1, keepdims=True)
        e = jnp.exp(s)
        pr = e / jnp.sum(e, axis=-1, keepdims=True)
        oh = jnp.einsum('hqk,hkd->hqd', pr, vh)
        o = oh.transpose(1, 0, 2).reshape(nq, D)
        return o @ wo + bo, pr

    def one(xb, cb):
        xn = ln(xb, p["in_g"], p["in_b"], 1e-6)
        q1, _ = mha(xn, xn, xn,
                    p["sa_wq"], p["sa_bq"], p["sa_wk"], p["sa_bk"],
                    p["sa_wv"], p["sa_bv"], p["sa_wo"], p["sa_bo"])
        query = q1 + xb
        qn = ln(query, p["q_g"], p["q_b"], 1e-6)
        cn = ln(cb, p["c_g"], p["c_b"], 1e-5)
        mid, attn = mha(cn, cn, qn,
                        p["ca_wq"], p["ca_bq"], p["ca_wk"], p["ca_bk"],
                        p["ca_wv"], p["ca_bv"], p["ca_wo"], p["ca_bo"])
        h = jax.nn.gelu((mid + xb) @ p["ffn_w1"] + p["ffn_b1"])
        return h @ p["ffn_w2"] + p["ffn_b2"], attn

    return jax.vmap(one)(x, ctx)


# ------------------- deterministic parameter init -------------------
def make_params(key):
    keys = iter(jax.random.split(key, 32))

    def lin(din, dout):
        w = jax.random.normal(next(keys), (din, dout), jnp.float32) * 0.02
        b = jax.random.normal(next(keys), (dout,), jnp.float32) * 0.02
        return w, b

    p = {
        "in_g": jnp.ones((D,), jnp.float32), "in_b": jnp.zeros((D,), jnp.float32),
        "q_g": jnp.ones((D,), jnp.float32),  "q_b": jnp.zeros((D,), jnp.float32),
        "c_g": jnp.ones((D,), jnp.float32),  "c_b": jnp.zeros((D,), jnp.float32),
    }
    for prefix in ["sa", "ca"]:
        for proj in ["q", "k", "v", "o"]:
            w, b = lin(D, D)
            p[f"{prefix}_w{proj}"] = w
            p[f"{prefix}_b{proj}"] = b
    p["ffn_w1"], p["ffn_b1"] = lin(D, EXP * D)
    p["ffn_w2"], p["ffn_b2"] = lin(EXP * D, D)
    return p


if __name__ == "__main__":
    key = jax.random.PRNGKey(0)
    k_x, k_c, k_p = jax.random.split(key, 3)

    B, N, Nc = 2, 8, 8
    x = jax.random.normal(k_x, (B, N, D), jnp.float32)        # input   (B, N_b, CNN_DIM)
    ctx = jax.random.normal(k_c, (B, Nc, D), jnp.float32)     # context (B, N_b, hist_dim)
    params = make_params(k_p)

    # need_attn=True path (returns contextual attention probabilities)
    out, attn = contextual_attention(x, ctx, params, need_attn=True)
    out = jax.block_until_ready(out)
    attn = jax.block_until_ready(attn)

    # High-precision f32 reference; tolerance allows for MXU f32-pass differences.
    with jax.default_matmul_precision("highest"):
        out_ref, attn_ref = reference(x, ctx, params)
    out_ref = jax.block_until_ready(out_ref)

    assert out.shape == (B, N, D) and attn.shape == (B, H, N, Nc)
    assert jnp.allclose(out, out_ref, atol=1e-3, rtol=1e-3), \
        float(jnp.max(jnp.abs(out - out_ref)))
    assert jnp.allclose(attn, attn_ref, atol=1e-3, rtol=1e-3), \
        float(jnp.max(jnp.abs(attn - attn_ref)))

    # need_attn=False variant: no probability writeback compiled at all
    out2, attn2 = contextual_attention(x, ctx, params, need_attn=False)
    out2 = jax.block_until_ready(out2)
    assert attn2 is None
    assert jnp.allclose(out2, out_ref, atol=1e-3, rtol=1e-3)

    print("KERNEL_OK")
</pallas_src>

<mosaic_0001>
module attributes {stable_mosaic.version = 11 : i64} {
  func.func @kernel(%arg0: memref<2x8x32xf32, #tpu.memory_space<vmem>>, %arg1: memref<2x8x32xf32, #tpu.memory_space<vmem>>, %arg2: memref<32x384xf32, #tpu.memory_space<vmem>>, %arg3: memref<128x32xf32, #tpu.memory_space<vmem>>, %arg4: memref<16x128xf32, #tpu.memory_space<vmem>>, %arg5: memref<2x8x32xf32, #tpu.memory_space<vmem>>, %arg6: memref<2x8x8x8xf32, #tpu.memory_space<vmem>>) attributes {dimension_semantics = [], scalar_prefetch = 0 : i64, scratch_operands = 0 : i64, tpu.core_type = #tpu.core_type<tc>} {
    %c0 = arith.constant 0 : index
    %c0_0 = arith.constant 0 : index
    %c0_1 = arith.constant 0 : index
    %0 = vector.load %arg0[%c0, %c0_0, %c0_1] : memref<2x8x32xf32, #tpu.memory_space<vmem>>, vector<2x8x32xf32>
    %1 = vector.shape_cast %0 : vector<2x8x32xf32> to vector<16x32xf32>
    %c0_2 = arith.constant 0 : index
    %c0_3 = arith.constant 0 : index
    %c0_4 = arith.constant 0 : index
    %2 = vector.load %arg1[%c0_2, %c0_3, %c0_4] : memref<2x8x32xf32, #tpu.memory_space<vmem>>, vector<2x8x32xf32>
    %3 = vector.shape_cast %2 : vector<2x8x32xf32> to vector<16x32xf32>
    %c0_5 = arith.constant 0 : index
    %c0_6 = arith.constant 0 : index
    %4 = vector.load %arg4[%c0_5, %c0_6] : memref<16x128xf32, #tpu.memory_space<vmem>>, vector<1x32xf32>
    %c1 = arith.constant 1 : index
    %c0_7 = arith.constant 0 : index
    %5 = vector.load %arg4[%c1, %c0_7] : memref<16x128xf32, #tpu.memory_space<vmem>>, vector<1x32xf32>
    %cst = arith.constant dense<0.000000e+00> : vector<16xf32>
    %6 = vector.multi_reduction <add>, %1, %cst [1] : vector<16x32xf32> to vector<16xf32>
    %7 = vector.shape_cast %6 : vector<16xf32> to vector<16x1xf32>
    %cst_8 = arith.constant 3.200000e+01 : f32
    %8 = vector.broadcast %cst_8 : f32 to vector<16x1xf32>
    %9 = arith.divf %7, %8 : vector<16x1xf32>
    %10 = vector.broadcast %9 : vector<16x1xf32> to vector<16x32xf32>
    %11 = arith.subf %1, %10 : vector<16x32xf32>
    %12 = arith.mulf %11, %11 : vector<16x32xf32>
    %cst_9 = arith.constant dense<0.000000e+00> : vector<16xf32>
    %13 = vector.multi_reduction <add>, %12, %cst_9 [1] : vector<16x32xf32> to vector<16xf32>
    %14 = vector.shape_cast %13 : vector<16xf32> to vector<16x1xf32>
    %cst_10 = arith.constant 3.200000e+01 : f32
    %15 = vector.broadcast %cst_10 : f32 to vector<16x1xf32>
    %16 = arith.divf %14, %15 : vector<16x1xf32>
    %17 = vector.broadcast %9 : vector<16x1xf32> to vector<16x32xf32>
    %18 = arith.subf %1, %17 : vector<16x32xf32>
    %cst_11 = arith.constant 9.99999997E-7 : f32
    %19 = vector.broadcast %cst_11 : f32 to vector<16x1xf32>
    %20 = arith.addf %16, %19 : vector<16x1xf32>
    %21 = math.rsqrt %20 : vector<16x1xf32>
    %22 = vector.broadcast %21 : vector<16x1xf32> to vector<16x32xf32>
    %23 = arith.mulf %18, %22 : vector<16x32xf32>
    %24 = vector.broadcast %4 : vector<1x32xf32> to vector<16x32xf32>
    %25 = arith.mulf %23, %24 : vector<16x32xf32>
    %26 = vector.broadcast %5 : vector<1x32xf32> to vector<16x32xf32>
    %27 = arith.addf %25, %26 : vector<16x32xf32>
    %c0_12 = arith.constant 0 : index
    %c0_13 = arith.constant 0 : index
    %28 = vector.load %arg2[%c0_12, %c0_13] : memref<32x384xf32, #tpu.memory_space<vmem>>, vector<32x96xf32>
    %cst_14 = arith.constant dense<0.000000e+00> : vector<16x96xf32>
    %29 = tpu.matmul %27, %28, %cst_14 {dimension_numbers = #tpu.dot_dimension_numbers<[1], [0], [0], [1], [0, 0, 1, 1], [], []>} : vector<16x32xf32>, vector<32x96xf32>, vector<16x96xf32> -> vector<16x96xf32>
    %c6 = arith.constant 6 : index
    %c0_15 = arith.constant 0 : index
    %30 = vector.load %arg4[%c6, %c0_15] : memref<16x128xf32, #tpu.memory_space<vmem>>, vector<1x96xf32>
    %31 = vector.broadcast %30 : vector<1x96xf32> to vector<16x96xf32>
    %32 = arith.addf %29, %31 : vector<16x96xf32>
    %33 = vector.extract_strided_slice %32 {offsets = [0, 0], sizes = [8, 96], strides = [1, 1]} : vector<16x96xf32> to vector<8x96xf32>
    %34 = vector.shape_cast %33 : vector<8x96xf32> to vector<8x24x4xf32>
    %35 = tpu.transpose %34, [1, 0, 2] : vector<8x24x4xf32> -> vector<24x8x4xf32>
    %36 = vector.extract_strided_slice %35 {offsets = [0, 0, 0], sizes = [8, 8, 4], strides = [1, 1, 1]} : vector<24x8x4xf32> to vector<8x8x4xf32>
    %37 = vector.extract_strided_slice %35 {offsets = [8, 0, 0], sizes = [8, 8, 4], strides = [1, 1, 1]} : vector<24x8x4xf32> to vector<8x8x4xf32>
    %38 = vector.extract_strided_slice %35 {offsets = [16, 0, 0], sizes = [8, 8, 4], strides = [1, 1, 1]} : vector<24x8x4xf32> to vector<8x8x4xf32>
    "tpu.trace_start"() <{level = 10 : i32, message = "hqd,hkd->hqk"}> : () -> ()
    %cst_16 = arith.constant dense<0.000000e+00> : vector<8x8x8xf32>
    %39 = tpu.matmul %36, %37, %cst_16 {dimension_numbers = #tpu.dot_dimension_numbers<[2], [2], [1], [1], [0, 0, 0, 1, 1, 1], [0], [0]>} : vector<8x8x4xf32>, vector<8x8x4xf32>, vector<8x8x8xf32> -> vector<8x8x8xf32>
    "tpu.trace_stop"() : () -> ()
    %cst_17 = arith.constant dense<0xFF800000> : vector<8x8xf32>
    %40 = vector.multi_reduction <maximumf>, %39, %cst_17 [2] : vector<8x8x8xf32> to vector<8x8xf32>
    %41 = vector.shape_cast %40 : vector<8x8xf32> to vector<8x8x1xf32>
    %42 = vector.broadcast %41 : vector<8x8x1xf32> to vector<8x8x8xf32>
    %43 = arith.subf %39, %42 : vector<8x8x8xf32>
    %44 = math.exp %43 : vector<8x8x8xf32>
    %cst_18 = arith.constant dense<0.000000e+00> : vector<8x8xf32>
    %45 = vector.multi_reduction <add>, %44, %cst_18 [2] : vector<8x8x8xf32> to vector<8x8xf32>
    %46 = vector.shape_cast %45 : vector<8x8xf32> to vector<8x8x1xf32>
    %47 = tpu.reciprocal %46 : vector<8x8x1xf32> -> vector<8x8x1xf32>
    %48 = vector.broadcast %47 : vector<8x8x1xf32> to vector<8x8x8xf32>
    %49 = arith.mulf %44, %48 : vector<8x8x8xf32>
    "tpu.trace_start"() <{level = 10 : i32, message = "hqk,hkd->hqd"}> : () -> ()
    %cst_19 = arith.constant dense<0.000000e+00> : vector<8x8x4xf32>
    %50 = tpu.matmul %49, %38, %cst_19 {dimension_numbers = #tpu.dot_dimension_numbers<[2], [1], [1], [2], [0, 0, 0, 1, 1, 2], [0], [0]>} : vector<8x8x8xf32>, vector<8x8x4xf32>, vector<8x8x4xf32> -> vector<8x8x4xf32>
    "tpu.trace_stop"() : () -> ()
    %51 = tpu.transpose %50, [1, 0, 2] : vector<8x8x4xf32> -> vector<8x8x4xf32>
    %52 = vector.shape_cast %51 : vector<8x8x4xf32> to vector<8x32xf32>
    %53 = vector.extract_strided_slice %32 {offsets = [8, 0], sizes = [8, 96], strides = [1, 1]} : vector<16x96xf32> to vector<8x96xf32>
    %54 = vector.shape_cast %53 : vector<8x96xf32> to vector<8x24x4xf32>
    %55 = tpu.transpose %54, [1, 0, 2] : vector<8x24x4xf32> -> vector<24x8x4xf32>
    %56 = vector.extract_strided_slice %55 {offsets = [0, 0, 0], sizes = [8, 8, 4], strides = [1, 1, 1]} : vector<24x8x4xf32> to vector<8x8x4xf32>
    %57 = vector.extract_strided_slice %55 {offsets = [8, 0, 0], sizes = [8, 8, 4], strides = [1, 1, 1]} : vector<24x8x4xf32> to vector<8x8x4xf32>
    %58 = vector.extract_strided_slice %55 {offsets = [16, 0, 0], sizes = [8, 8, 4], strides = [1, 1, 1]} : vector<24x8x4xf32> to vector<8x8x4xf32>
    "tpu.trace_start"() <{level = 10 : i32, message = "hqd,hkd->hqk"}> : () -> ()
    %cst_20 = arith.constant dense<0.000000e+00> : vector<8x8x8xf32>
    %59 = tpu.matmul %56, %57, %cst_20 {dimension_numbers = #tpu.dot_dimension_numbers<[2], [2], [1], [1], [0, 0, 0, 1, 1, 1], [0], [0]>} : vector<8x8x4xf32>, vector<8x8x4xf32>, vector<8x8x8xf32> -> vector<8x8x8xf32>
    "tpu.trace_stop"() : () -> ()
    %cst_21 = arith.constant dense<0xFF800000> : vector<8x8xf32>
    %60 = vector.multi_reduction <maximumf>, %59, %cst_21 [2] : vector<8x8x8xf32> to vector<8x8xf32>
    %61 = vector.shape_cast %60 : vector<8x8xf32> to vector<8x8x1xf32>
    %62 = vector.broadcast %61 : vector<8x8x1xf32> to vector<8x8x8xf32>
    %63 = arith.subf %59, %62 : vector<8x8x8xf32>
    %64 = math.exp %63 : vector<8x8x8xf32>
    %cst_22 = arith.constant dense<0.000000e+00> : vector<8x8xf32>
    %65 = vector.multi_reduction <add>, %64, %cst_22 [2] : vector<8x8x8xf32> to vector<8x8xf32>
    %66 = vector.shape_cast %65 : vector<8x8xf32> to vector<8x8x1xf32>
    %67 = tpu.reciprocal %66 : vector<8x8x1xf32> -> vector<8x8x1xf32>
    %68 = vector.broadcast %67 : vector<8x8x1xf32> to vector<8x8x8xf32>
    %69 = arith.mulf %64, %68 : vector<8x8x8xf32>
    "tpu.trace_start"() <{level = 10 : i32, message = "hqk,hkd->hqd"}> : () -> ()
    %cst_23 = arith.constant dense<0.000000e+00> : vector<8x8x4xf32>
    %70 = tpu.matmul %69, %58, %cst_23 {dimension_numbers = #tpu.dot_dimension_numbers<[2], [1], [1], [2], [0, 0, 0, 1, 1, 2], [0], [0]>} : vector<8x8x8xf32>, vector<8x8x4xf32>, vector<8x8x4xf32> -> vector<8x8x4xf32>
    "tpu.trace_stop"() : () -> ()
    %71 = tpu.transpose %70, [1, 0, 2] : vector<8x8x4xf32> -> vector<8x8x4xf32>
    %72 = vector.shape_cast %71 : vector<8x8x4xf32> to vector<8x32xf32>
    %73 = tpu.concatenate %52, %72 in 0 : vector<8x32xf32>, vector<8x32xf32> -> vector<16x32xf32>
    %c0_24 = arith.constant 0 : index
    %c96 = arith.constant 96 : index
    %74 = vector.load %arg2[%c0_24, %c96] : memref<32x384xf32, #tpu.memory_space<vmem>>, vector<32x32xf32>
    %cst_25 = arith.constant dense<0.000000e+00> : vector<16x32xf32>
    %75 = tpu.matmul %73, %74, %cst_25 {dimension_numbers = #tpu.dot_dimension_numbers<[1], [0], [0], [1], [0, 0, 1, 1], [], []>} : vector<16x32xf32>, vector<32x32xf32>, vector<16x32xf32> -> vector<16x32xf32>
    %c7 = arith.constant 7 : index
    %c0_26 = arith.constant 0 : index
    %76 = vector.load %arg4[%c7, %c0_26] : memref<16x128xf32, #tpu.memory_space<vmem>>, vector<1x32xf32>
    %77 = vector.broadcast %76 : vector<1x32xf32> to vector<16x32xf32>
    %78 = arith.addf %75, %77 : vector<16x32xf32>
    %79 = arith.addf %78, %1 : vector<16x32xf32>
    %c2 = arith.constant 2 : index
    %c0_27 = arith.constant 0 : index
    %80 = vector.load %arg4[%c2, %c0_27] : memref<16x128xf32, #tpu.memory_space<vmem>>, vector<1x32xf32>
    %c3 = arith.constant 3 : index
    %c0_28 = arith.constant 0 : index
    %81 = vector.load %arg4[%c3, %c0_28] : memref<16x128xf32, #tpu.memory_space<vmem>>, vector<1x32xf32>
    %cst_29 = arith.constant dense<0.000000e+00> : vector<16xf32>
    %82 = vector.multi_reduction <add>, %79, %cst_29 [1] : vector<16x32xf32> to vector<16xf32>
    %83 = vector.shape_cast %82 : vector<16xf32> to vector<16x1xf32>
    %cst_30 = arith.constant 3.200000e+01 : f32
    %84 = vector.broadcast %cst_30 : f32 to vector<16x1xf32>
    %85 = arith.divf %83, %84 : vector<16x1xf32>
    %86 = vector.broadcast %85 : vector<16x1xf32> to vector<16x32xf32>
    %87 = arith.subf %79, %86 : vector<16x32xf32>
    %88 = arith.mulf %87, %87 : vector<16x32xf32>
    %cst_31 = arith.constant dense<0.000000e+00> : vector<16xf32>
    %89 = vector.multi_reduction <add>, %88, %cst_31 [1] : vector<16x32xf32> to vector<16xf32>
    %90 = vector.shape_cast %89 : vector<16xf32> to vector<16x1xf32>
    %cst_32 = arith.constant 3.200000e+01 : f32
    %91 = vector.broadcast %cst_32 : f32 to vector<16x1xf32>
    %92 = arith.divf %90, %91 : vector<16x1xf32>
    %93 = vector.broadcast %85 : vector<16x1xf32> to vector<16x32xf32>
    %94 = arith.subf %79, %93 : vector<16x32xf32>
    %cst_33 = arith.constant 9.99999997E-7 : f32
    %95 = vector.broadcast %cst_33 : f32 to vector<16x1xf32>
    %96 = arith.addf %92, %95 : vector<16x1xf32>
    %97 = math.rsqrt %96 : vector<16x1xf32>
    %98 = vector.broadcast %97 : vector<16x1xf32> to vector<16x32xf32>
    %99 = arith.mulf %94, %98 : vector<16x32xf32>
    %100 = vector.broadcast %80 : vector<1x32xf32> to vector<16x32xf32>
    %101 = arith.mulf %99, %100 : vector<16x32xf32>
    %102 = vector.broadcast %81 : vector<1x32xf32> to vector<16x32xf32>
    %103 = arith.addf %101, %102 : vector<16x32xf32>
    %c4 = arith.constant 4 : index
    %c0_34 = arith.constant 0 : index
    %104 = vector.load %arg4[%c4, %c0_34] : memref<16x128xf32, #tpu.memory_space<vmem>>, vector<1x32xf32>
    %c5 = arith.constant 5 : index
    %c0_35 = arith.constant 0 : index
    %105 = vector.load %arg4[%c5, %c0_35] : memref<16x128xf32, #tpu.memory_space<vmem>>, vector<1x32xf32>
    %cst_36 = arith.constant dense<0.000000e+00> : vector<16xf32>
    %106 = vector.multi_reduction <add>, %3, %cst_36 [1] : vector<16x32xf32> to vector<16xf32>
    %107 = vector.shape_cast %106 : vector<16xf32> to vector<16x1xf32>
    %cst_37 = arith.constant 3.200000e+01 : f32
    %108 = vector.broadcast %cst_37 : f32 to vector<16x1xf32>
    %109 = arith.divf %107, %108 : vector<16x1xf32>
    %110 = vector.broadcast %109 : vector<16x1xf32> to vector<16x32xf32>
    %111 = arith.subf %3, %110 : vector<16x32xf32>
    %112 = arith.mulf %111, %111 : vector<16x32xf32>
    %cst_38 = arith.constant dense<0.000000e+00> : vector<16xf32>
    %113 = vector.multi_reduction <add>, %112, %cst_38 [1] : vector<16x32xf32> to vector<16xf32>
    %114 = vector.shape_cast %113 : vector<16xf32> to vector<16x1xf32>
    %cst_39 = arith.constant 3.200000e+01 : f32
    %115 = vector.broadcast %cst_39 : f32 to vector<16x1xf32>
    %116 = arith.divf %114, %115 : vector<16x1xf32>
    %117 = vector.broadcast %109 : vector<16x1xf32> to vector<16x32xf32>
    %118 = arith.subf %3, %117 : vector<16x32xf32>
    %cst_40 = arith.constant 9.99999974E-6 : f32
    %119 = vector.broadcast %cst_40 : f32 to vector<16x1xf32>
    %120 = arith.addf %116, %119 : vector<16x1xf32>
    %121 = math.rsqrt %120 : vector<16x1xf32>
    %122 = vector.broadcast %121 : vector<16x1xf32> to vector<16x32xf32>
    %123 = arith.mulf %118, %122 : vector<16x32xf32>
    %124 = vector.broadcast %104 : vector<1x32xf32> to vector<16x32xf32>
    %125 = arith.mulf %123, %124 : vector<16x32xf32>
    %126 = vector.broadcast %105 : vector<1x32xf32> to vector<16x32xf32>
    %127 = arith.addf %125, %126 : vector<16x32xf32>
    %c0_41 = arith.constant 0 : index
    %c128 = arith.constant 128 : index
    %128 = vector.load %arg2[%c0_41, %c128] : memref<32x384xf32, #tpu.memory_space<vmem>>, vector<32x32xf32>
    %cst_42 = arith.constant dense<0.000000e+00> : vector<16x32xf32>
    %129 = tpu.matmul %103, %128, %cst_42 {dimension_numbers = #tpu.dot_dimension_numbers<[1], [0], [0], [1], [0, 0, 1, 1], [], []>} : vector<16x32xf32>, vector<32x32xf32>, vector<16x32xf32> -> vector<16x32xf32>
    %c8 = arith.constant 8 : index
    %c0_43 = arith.constant 0 : index
    %130 = vector.load %arg4[%c8, %c0_43] : memref<16x128xf32, #tpu.memory_space<vmem>>, vector<1x32xf32>
    %131 = vector.broadcast %130 : vector<1x32xf32> to vector<16x32xf32>
    %132 = arith.addf %129, %131 : vector<16x32xf32>
    %c0_44 = arith.constant 0 : index
    %c160 = arith.constant 160 : index
    %133 = vector.load %arg2[%c0_44, %c160] : memref<32x384xf32, #tpu.memory_space<vmem>>, vector<32x64xf32>
    %cst_45 = arith.constant dense<0.000000e+00> : vector<16x64xf32>
    %134 = tpu.matmul %127, %133, %cst_45 {dimension_numbers = #tpu.dot_dimension_numbers<[1], [0], [0], [1], [0, 0, 1, 1], [], []>} : vector<16x32xf32>, vector<32x64xf32>, vector<16x64xf32> -> vector<16x64xf32>
    %c9 = arith.constant 9 : index
    %c0_46 = arith.constant 0 : index
    %135 = vector.load %arg4[%c9, %c0_46] : memref<16x128xf32, #tpu.memory_space<vmem>>, vector<1x64xf32>
    %136 = vector.broadcast %135 : vector<1x64xf32> to vector<16x64xf32>
    %137 = arith.addf %134, %136 : vector<16x64xf32>
    %138 = vector.extract_strided_slice %132 {offsets = [0, 0], sizes = [8, 32], strides = [1, 1]} : vector<16x32xf32> to vector<8x32xf32>
    %139 = vector.shape_cast %138 : vector<8x32xf32> to vector<8x8x4xf32>
    %140 = tpu.transpose %139, [1, 0, 2] : vector<8x8x4xf32> -> vector<8x8x4xf32>
    %141 = vector.extract_strided_slice %137 {offsets = [0, 0], sizes = [8, 64], strides = [1, 1]} : vector<16x64xf32> to vector<8x64xf32>
    %142 = vector.shape_cast %141 : vector<8x64xf32> to vector<8x16x4xf32>
    %143 = tpu.transpose %142, [1, 0, 2] : vector<8x16x4xf32> -> vector<16x8x4xf32>
    %144 = vector.extract_strided_slice %143 {offsets = [0, 0, 0], sizes = [8, 8, 4], strides = [1, 1, 1]} : vector<16x8x4xf32> to vector<8x8x4xf32>
    %145 = vector.extract_strided_slice %143 {offsets = [8, 0, 0], sizes = [8, 8, 4], strides = [1, 1, 1]} : vector<16x8x4xf32> to vector<8x8x4xf32>
    "tpu.trace_start"() <{level = 10 : i32, message = "hqd,hkd->hqk"}> : () -> ()
    %cst_47 = arith.constant dense<0.000000e+00> : vector<8x8x8xf32>
    %146 = tpu.matmul %140, %144, %cst_47 {dimension_numbers = #tpu.dot_dimension_numbers<[2], [2], [1], [1], [0, 0, 0, 1, 1, 1], [0], [0]>} : vector<8x8x4xf32>, vector<8x8x4xf32>, vector<8x8x8xf32> -> vector<8x8x8xf32>
    "tpu.trace_stop"() : () -> ()
    %cst_48 = arith.constant dense<0xFF800000> : vector<8x8xf32>
    %147 = vector.multi_reduction <maximumf>, %146, %cst_48 [2] : vector<8x8x8xf32> to vector<8x8xf32>
    %148 = vector.shape_cast %147 : vector<8x8xf32> to vector<8x8x1xf32>
    %149 = vector.broadcast %148 : vector<8x8x1xf32> to vector<8x8x8xf32>
    %150 = arith.subf %146, %149 : vector<8x8x8xf32>
    %151 = math.exp %150 : vector<8x8x8xf32>
    %cst_49 = arith.constant dense<0.000000e+00> : vector<8x8xf32>
    %152 = vector.multi_reduction <add>, %151, %cst_49 [2] : vector<8x8x8xf32> to vector<8x8xf32>
    %153 = vector.shape_cast %152 : vector<8x8xf32> to vector<8x8x1xf32>
    %154 = tpu.reciprocal %153 : vector<8x8x1xf32> -> vector<8x8x1xf32>
    %155 = vector.broadcast %154 : vector<8x8x1xf32> to vector<8x8x8xf32>
    %156 = arith.mulf %151, %155 : vector<8x8x8xf32>
    "tpu.trace_start"() <{level = 10 : i32, message = "hqk,hkd->hqd"}> : () -> ()
    %cst_50 = arith.constant dense<0.000000e+00> : vector<8x8x4xf32>
    %157 = tpu.matmul %156, %145, %cst_50 {dimension_numbers = #tpu.dot_dimension_numbers<[2], [1], [1], [2], [0, 0, 0, 1, 1, 2], [0], [0]>} : vector<8x8x8xf32>, vector<8x8x4xf32>, vector<8x8x4xf32> -> vector<8x8x4xf32>
    "tpu.trace_stop"() : () -> ()
    %158 = tpu.transpose %157, [1, 0, 2] : vector<8x8x4xf32> -> vector<8x8x4xf32>
    %159 = vector.shape_cast %158 : vector<8x8x4xf32> to vector<8x32xf32>
    %160 = vector.extract_strided_slice %132 {offsets = [8, 0], sizes = [8, 32], strides = [1, 1]} : vector<16x32xf32> to vector<8x32xf32>
    %161 = vector.shape_cast %160 : vector<8x32xf32> to vector<8x8x4xf32>
    %162 = tpu.transpose %161, [1, 0, 2] : vector<8x8x4xf32> -> vector<8x8x4xf32>
    %163 = vector.extract_strided_slice %137 {offsets = [8, 0], sizes = [8, 64], strides = [1, 1]} : vector<16x64xf32> to vector<8x64xf32>
    %164 = vector.shape_cast %163 : vector<8x64xf32> to vector<8x16x4xf32>
    %165 = tpu.transpose %164, [1, 0, 2] : vector<8x16x4xf32> -> vector<16x8x4xf32>
    %166 = vector.extract_strided_slice %165 {offsets = [0, 0, 0], sizes = [8, 8, 4], strides = [1, 1, 1]} : vector<16x8x4xf32> to vector<8x8x4xf32>
    %167 = vector.extract_strided_slice %165 {offsets = [8, 0, 0], sizes = [8, 8, 4], strides = [1, 1, 1]} : vector<16x8x4xf32> to vector<8x8x4xf32>
    "tpu.trace_start"() <{level = 10 : i32, message = "hqd,hkd->hqk"}> : () -> ()
    %cst_51 = arith.constant dense<0.000000e+00> : vector<8x8x8xf32>
    %168 = tpu.matmul %162, %166, %cst_51 {dimension_numbers = #tpu.dot_dimension_numbers<[2], [2], [1], [1], [0, 0, 0, 1, 1, 1], [0], [0]>} : vector<8x8x4xf32>, vector<8x8x4xf32>, vector<8x8x8xf32> -> vector<8x8x8xf32>
    "tpu.trace_stop"() : () -> ()
    %cst_52 = arith.constant dense<0xFF800000> : vector<8x8xf32>
    %169 = vector.multi_reduction <maximumf>, %168, %cst_52 [2] : vector<8x8x8xf32> to vector<8x8xf32>
    %170 = vector.shape_cast %169 : vector<8x8xf32> to vector<8x8x1xf32>
    %171 = vector.broadcast %170 : vector<8x8x1xf32> to vector<8x8x8xf32>
    %172 = arith.subf %168, %171 : vector<8x8x8xf32>
    %173 = math.exp %172 : vector<8x8x8xf32>
    %cst_53 = arith.constant dense<0.000000e+00> : vector<8x8xf32>
    %174 = vector.multi_reduction <add>, %173, %cst_53 [2] : vector<8x8x8xf32> to vector<8x8xf32>
    %175 = vector.shape_cast %174 : vector<8x8xf32> to vector<8x8x1xf32>
    %176 = tpu.reciprocal %175 : vector<8x8x1xf32> -> vector<8x8x1xf32>
    %177 = vector.broadcast %176 : vector<8x8x1xf32> to vector<8x8x8xf32>
    %178 = arith.mulf %173, %177 : vector<8x8x8xf32>
    "tpu.trace_start"() <{level = 10 : i32, message = "hqk,hkd->hqd"}> : () -> ()
    %cst_54 = arith.constant dense<0.000000e+00> : vector<8x8x4xf32>
    %179 = tpu.matmul %178, %167, %cst_54 {dimension_numbers = #tpu.dot_dimension_numbers<[2], [1], [1], [2], [0, 0, 0, 1, 1, 2], [0], [0]>} : vector<8x8x8xf32>, vector<8x8x4xf32>, vector<8x8x4xf32> -> vector<8x8x4xf32>
    "tpu.trace_stop"() : () -> ()
    %180 = tpu.transpose %179, [1, 0, 2] : vector<8x8x4xf32> -> vector<8x8x4xf32>
    %181 = vector.shape_cast %180 : vector<8x8x4xf32> to vector<8x32xf32>
    %182 = tpu.concatenate %159, %181 in 0 : vector<8x32xf32>, vector<8x32xf32> -> vector<16x32xf32>
    %c0_55 = arith.constant 0 : index
    %c224 = arith.constant 224 : index
    %183 = vector.load %arg2[%c0_55, %c224] : memref<32x384xf32, #tpu.memory_space<vmem>>, vector<32x32xf32>
    %cst_56 = arith.constant dense<0.000000e+00> : vector<16x32xf32>
    %184 = tpu.matmul %182, %183, %cst_56 {dimension_numbers = #tpu.dot_dimension_numbers<[1], [0], [0], [1], [0, 0, 1, 1], [], []>} : vector<16x32xf32>, vector<32x32xf32>, vector<16x32xf32> -> vector<16x32xf32>
    %c10 = arith.constant 10 : index
    %c0_57 = arith.constant 0 : index
    %185 = vector.load %arg4[%c10, %c0_57] : memref<16x128xf32, #tpu.memory_space<vmem>>, vector<1x32xf32>
    %186 = vector.broadcast %185 : vector<1x32xf32> to vector<16x32xf32>
    %187 = arith.addf %184, %186 : vector<16x32xf32>
    %188 = arith.addf %187, %1 : vector<16x32xf32>
    %c0_58 = arith.constant 0 : index
    %c256 = arith.constant 256 : index
    %189 = vector.load %arg2[%c0_58, %c256] : memref<32x384xf32, #tpu.memory_space<vmem>>, vector<32x128xf32>
    %cst_59 = arith.constant dense<0.000000e+00> : vector<16x128xf32>
    %190 = tpu.matmul %188, %189, %cst_59 {dimension_numbers = #tpu.dot_dimension_numbers<[1], [0], [0], [1], [0, 0, 1, 1], [], []>} : vector<16x32xf32>, vector<32x128xf32>, vector<16x128xf32> -> vector<16x128xf32>
    %c11 = arith.constant 11 : index
    %c0_60 = arith.constant 0 : index
    %191 = vector.load %arg4[%c11, %c0_60] : memref<16x128xf32, #tpu.memory_space<vmem>>, vector<1x128xf32>
    %192 = vector.broadcast %191 : vector<1x128xf32> to vector<16x128xf32>
    %193 = arith.addf %190, %192 : vector<16x128xf32>
    %194 = arith.mulf %193, %193 : vector<16x128xf32>
    %195 = arith.mulf %193, %194 : vector<16x128xf32>
    %cst_61 = arith.constant 4.471500e-02 : f32
    %196 = vector.broadcast %cst_61 : f32 to vector<16x128xf32>
    %197 = arith.mulf %196, %195 : vector<16x128xf32>
    %198 = arith.addf %193, %197 : vector<16x128xf32>
    %cst_62 = arith.constant 0.797884583 : f32
    %199 = vector.broadcast %cst_62 : f32 to vector<16x128xf32>
    %200 = arith.mulf %199, %198 : vector<16x128xf32>
    %201 = math.tanh %200 : vector<16x128xf32>
    %cst_63 = arith.constant 1.000000e+00 : f32
    %202 = vector.broadcast %cst_63 : f32 to vector<16x128xf32>
    %203 = arith.addf %202, %201 : vector<16x128xf32>
    %cst_64 = arith.constant 5.000000e-01 : f32
    %204 = vector.broadcast %cst_64 : f32 to vector<16x128xf32>
    %205 = arith.mulf %204, %203 : vector<16x128xf32>
    %206 = arith.mulf %193, %205 : vector<16x128xf32>
    %c0_65 = arith.constant 0 : index
    %c0_66 = arith.constant 0 : index
    %207 = vector.load %arg3[%c0_65, %c0_66] : memref<128x32xf32, #tpu.memory_space<vmem>>, vector<128x32xf32>
    %cst_67 = arith.constant dense<0.000000e+00> : vector<16x32xf32>
    %208 = tpu.matmul %206, %207, %cst_67 {dimension_numbers = #tpu.dot_dimension_numbers<[1], [0], [0], [1], [0, 0, 1, 1], [], []>} : vector<16x128xf32>, vector<128x32xf32>, vector<16x32xf32> -> vector<16x32xf32>
    %c12 = arith.constant 12 : index
    %c0_68 = arith.constant 0 : index
    %209 = vector.load %arg4[%c12, %c0_68] : memref<16x128xf32, #tpu.memory_space<vmem>>, vector<1x32xf32>
    %210 = vector.broadcast %209 : vector<1x32xf32> to vector<16x32xf32>
    %211 = arith.addf %208, %210 : vector<16x32xf32>
    %212 = vector.shape_cast %211 : vector<16x32xf32> to vector<2x8x32xf32>
    %c0_69 = arith.constant 0 : index
    %c0_70 = arith.constant 0 : index
    %c0_71 = arith.constant 0 : index
    %213 = vector.load %arg5[%c0_69, %c0_70, %c0_71] : memref<2x8x32xf32, #tpu.memory_space<vmem>>, vector<2x8x32xf32>
    tpu.vector_store %arg5[%c0_69, %c0_70, %c0_71], %212 {strides = array<i32>} : memref<2x8x32xf32, #tpu.memory_space<vmem>>, vector<2x8x32xf32>,
    %214 = vector.shape_cast %156 : vector<8x8x8xf32> to vector<1x8x8x8xf32>
    %215 = vector.shape_cast %178 : vector<8x8x8xf32> to vector<1x8x8x8xf32>
    %216 = tpu.concatenate %214, %215 in 0 : vector<1x8x8x8xf32>, vector<1x8x8x8xf32> -> vector<2x8x8x8xf32>
    %c0_72 = arith.constant 0 : index
    %c0_73 = arith.constant 0 : index
    %c0_74 = arith.constant 0 : index
    %c0_75 = arith.constant 0 : index
    %217 = vector.load %arg6[%c0_72, %c0_73, %c0_74, %c0_75] : memref<2x8x8x8xf32, #tpu.memory_space<vmem>>, vector<2x8x8x8xf32>
    tpu.vector_store %arg6[%c0_72, %c0_73, %c0_74, %c0_75], %216 {strides = array<i32>} : memref<2x8x8x8xf32, #tpu.memory_space<vmem>>, vector<2x8x8x8xf32>,
    return
  }
}

</mosaic_0001>

<llo_original>
// kernel: tpu_custom_call.1
$region0: #{tpu_custom_call.1}
  #allocation0 [shape = 'u32[]', space=smem, size = 0x4, offset = 0x4, fixed_abs, tag = 'smem constant byte address 0x4 - core index']
  #allocation1 [shape = 'u32[144,128]{1,0:T(1,128)}', space=vmem, size = 0x12000, scoped, tag = 'internal scratch']
  %s0 = inlined_call_operand.vmem [shape: f32[2,8,32], index: 0, kind: input, shape index: {}]
  %s1 = inlined_call_operand.vmem [shape: f32[2,8,32], index: 1, kind: input, shape index: {}]
  %s2 = inlined_call_operand.vmem [shape: f32[32,384], index: 2, kind: input, shape index: {}]
  %s3 = inlined_call_operand.vmem [shape: f32[128,32], index: 3, kind: input, shape index: {}]
  %s4 = inlined_call_operand.vmem [shape: f32[16,128], index: 4, kind: input, shape index: {}]
  %s5 = inlined_call_operand.hbm [shape: f32[2,8,32], index: 5, kind: output, shape index: {0}]
  %s6 = inlined_call_operand.hbm [shape: f32[2,8,8,8], index: 6, kind: output, shape index: {1}]
  %7 = xla_tuple %s5, %s6
  %s8 = sld [smem:[#allocation0]]
  $region38: #{tpu_custom_call.1} parent=0
    _
  %s10 = ssub.s32 1, %s8
  %s11 = scalar_select 0, %s10, %s8
  $region1: #{tpu_custom_call.1} parent=0
    #allocation2 [shape = 'u8[8192]{0}', space=vmem, size = 0x2000, scoped, tag = 'output window, operand 0, single buffered']
    #allocation3 [shape = 's32[1]{0}', space=sflag, size = 0x4, scoped, tag = 'scoped memory for tpu_custom_call.1']
    #allocation4 [shape = 'u8[65536]{0}', space=vmem, size = 0x10000, scoped, tag = 'output window, operand 1, single buffered']
    #allocation5 [shape = 's32[1]{0}', space=sflag, size = 0x4, scoped, tag = 'scoped memory for tpu_custom_call.1']
    %12 = vsyncpa [#allocation3], 0
    %13 = vsyncpa [#allocation5], 0
    // Predicated region
    $region2: #{tpu_custom_call.1} parent=1 // pred_check
      _
    $region3: #{tpu_custom_call.1} parent=1 // pred_check_branch
      %15 = sbr.rel (0) target = $region5
    $region4: #{tpu_custom_call.1} parent=1 // pred_region
      _
    $region5: #{tpu_custom_call.1} parent=1 // pred_fallthru
      _
    // Predicated region
    $region6: #{tpu_custom_call.1} parent=1 // pred_check
      _
    $region7: #{tpu_custom_call.1} parent=1 // pred_check_branch
      %17 = sbr.rel (0) target = $region9
    $region8: #{tpu_custom_call.1} parent=1 // pred_region
      _
    $region9: #{tpu_custom_call.1} parent=1 // pred_fallthru
      _
    // Predicated region
    $region10: #{tpu_custom_call.1} parent=1 // pred_check
      _
    $region11: #{tpu_custom_call.1} parent=1 // pred_check_branch
      %19 = sbr.rel (0) target = $region13
    $region12: #{tpu_custom_call.1} parent=1 // pred_region
      _
    $region13: #{tpu_custom_call.1} parent=1 // pred_fallthru
      _
    // Predicated region
    $region14: #{tpu_custom_call.1} parent=1 // pred_check
      _
    $region15: #{tpu_custom_call.1} parent=1 // pred_check_branch
      %21 = sbr.rel (0) target = $region17
    $region16: #{tpu_custom_call.1} parent=1 // pred_region
      _
    $region17: #{tpu_custom_call.1} parent=1 // pred_fallthru
      _
    // Predicated region
    $region18: #{tpu_custom_call.1} parent=1 // pred_check
      _
    $region19: #{tpu_custom_call.1} parent=1 // pred_check_branch
      %23 = sbr.rel (0) target = $region21
    $region20: #{tpu_custom_call.1} parent=1 // pred_region
      _
    $region21: #{tpu_custom_call.1} parent=1 // pred_fallthru
      _
    %v24 = vld [vmem:[%s0] sm:$0xff]
    %v25 = vld [vmem:[%s0 + $0x8] sm:$0xff]
    %v26 = vld [vmem:[%s1] sm:$0xff]
    %v27 = vld [vmem:[%s1 + $0x8] sm:$0xff]
    %v28 = vld [vmem:[%s4] sm:$0x1]
    %v29 = vld [vmem:[%s4 + $0x1] sm:$0x1]
    %vm30 = vcmask 261120
    %v31 = vsel %vm30, %v24, 0.0
    %32 = vadd.xlane.f32.xlu0 %v31
    %v33 = vpop.xlane.xlu0 %32
    %v34 = vsel %vm30, %v25, 0.0
    %35 = vadd.xlane.f32.xlu0 %v34
    %v36 = vpop.xlane.xlu0 %35
    %v37 = vrcp.pop 32.0
    %v38 = vmul.f32 %v33, %v37
    %v39 = vmul.f32 %v36, %v37
    %v40 = vsub.f32 %v24, %v38
    %v41 = vsub.f32 %v25, %v39
    %v42 = vmul.f32 %v40, %v40
    %v43 = vmul.f32 %v41, %v41
    %v44 = vsel %vm30, %v42, 0.0
    %45 = vadd.xlane.f32.xlu0 %v44
    %v46 = vpop.xlane.xlu0 %45
    %v47 = vsel %vm30, %v43, 0.0
    %48 = vadd.xlane.f32.xlu0 %v47
    %v49 = vpop.xlane.xlu0 %48
    %v50 = vmul.f32 %v46, %v37
    %v51 = vmul.f32 %v49, %v37
    %v52 = vadd.f32 %v50, 1e-06
    %v53 = vadd.f32 %v51, 1e-06
    %v54 = vrsqrt.pop %v52
    %v55 = vrsqrt.pop %v53
    %v56 = vmul.f32 %v40, %v54
    %v57 = vmul.f32 %v41, %v55
    %v58 = vlaneseq
    %v59 = vshrl.u32 %v58, 7
    %v60 = vsub.s32 0, %v59
    %v61 = vrot.slane %v28, %v60
    %v62 = vmul.f32 %v56, %v61
    %v63 = vmul.f32 %v57, %v61
    %v64 = vlaneseq
    %v65 = vshrl.u32 %v64, 7
    %v66 = vsub.s32 0, %v65
    %v67 = vrot.slane %v29, %v66
    %v68 = vadd.f32 %v62, %v67
    %v69 = vadd.f32 %v63, %v67
    %v70 = vld [vmem:[%s2] sm:$0xff]
    %v71 = vld [vmem:[%s2 + $0x18] sm:$0xff]
    %v72 = vld [vmem:[%s2 + $0x30] sm:$0xff]
    %v73 = vld [vmem:[%s2 + $0x48] sm:$0xff]
    %v74 = vld [vmem:[%s4 + $0x6] sm:$0x1]
    %v75 = vlaneseq
    %v76 = vshrl.u32 %v75, 7
    %v77 = vsub.s32 0, %v76
    %v78 = vrot.slane %v74, %v77
    %v80 = vsel %vm30, %v68, 0
    %v83 = vsel %vm30, %v69, 0
    %85 = vmatprep.subr.mxu0 0.0
    %86 = vmatpush1.msra.mxu0 0.0
    %87 = vmatprep.subr.mxu0 0.0
    %88 = vmatpush1.msra.mxu0 0.0
    %89 = vmatprep.subr.mxu0 0.0
    %90 = vmatpush1.msra.mxu0 0.0
    %91 = vmatprep.subr.mxu0 0.0
    %92 = vmatpush1.msra.mxu0 0.0
    %93 = vmatprep.subr.mxu0 0.0
    %94 = vmatpush1.msra.mxu0 0.0
    %95 = vmatprep.subr.mxu0 0.0
    %96 = vmatpush1.msra.mxu0 0.0
    %97 = vmatprep.subr.mxu0 0.0
    %98 = vmatpush1.msra.mxu0 0.0
    %99 = vmatprep.subr.mxu0 0.0
    %100 = vmatpush1.msra.mxu0 0.0
    %101 = vmatprep.subr.mxu0 0.0
    %102 = vmatpush1.msra.mxu0 0.0
    %103 = vmatprep.subr.mxu0 0.0
    %104 = vmatpush1.msra.mxu0 0.0
    %105 = vmatprep.subr.mxu0 0.0
    %106 = vmatpush1.msra.mxu0 0.0
    %107 = vmatprep.subr.mxu0 0.0
    %108 = vmatpush1.msra.mxu0 0.0
    %109 = vmatprep.subr.mxu0 0.0
    %110 = vmatpush1.msra.mxu0 %v73
    %111 = vmatprep.subr.mxu0 0.0
    %112 = vmatpush1.msra.mxu0 %v72
    %113 = vmatprep.subr.mxu0 0.0
    %114 = vmatpush1.msra.mxu0 %v71
    %115 = vmatprep.subr.mxu0 0.0
    %116 = vmatpush1.msra.mxu0 %v70
    %117 = vmatprep.subr.mxu0 0.0
    %118 = vmatpush2.msra.mxu0 0.0
    %119 = vmatprep.subr.mxu0 0.0
    %120 = vmatpush2.msra.mxu0 0.0
    %121 = vmatprep.subr.mxu0 0.0
    %122 = vmatpush2.msra.mxu0 0.0
    %123 = vmatprep.subr.mxu0 0.0
    %124 = vmatpush2.msra.mxu0 0.0
    %125 = vmatprep.subr.mxu0 0.0
    %126 = vmatpush2.msra.mxu0 0.0
    %127 = vmatprep.subr.mxu0 0.0
    %128 = vmatpush2.msra.mxu0 0.0
    %129 = vmatprep.subr.mxu0 0.0
    %130 = vmatpush2.msra.mxu0 0.0
    %131 = vmatprep.subr.mxu0 0.0
    %132 = vmatpush2.msra.mxu0 0.0
    %133 = vmatprep.subr.mxu0 0.0
    %134 = vmatpush2.msra.mxu0 0.0
    %135 = vmatprep.subr.mxu0 0.0
    %136 = vmatpush2.msra.mxu0 0.0
    %137 = vmatprep.subr.mxu0 0.0
    %138 = vmatpush2.msra.mxu0 0.0
    %139 = vmatprep.subr.mxu0 0.0
    %140 = vmatpush2.msra.mxu0 0.0
    %141 = vmatprep.subr.mxu0 0.0
    %142 = vmatpush2.msra.mxu0 0.0
    %143 = vmatprep.subr.mxu0 0.0
    %144 = vmatpush2.msra.mxu0 0.0
    %145 = vmatprep.subr.mxu0 0.0
    %146 = vmatpush2.msra.mxu0 0.0
    %147 = vmatprep.subr.mxu0 0.0
    %148 = vmatpush2.msra.mxu0 0.0
    %149 = vmatprep.mubr.f32.mxu0 0.0
    %150 = vmatmul.mubr.f32.gmra.mxu0 %v80
    %v151 = vpop.f32.mrf.mxu0
    %v152 = vadd.f32 %v78, %v151
    %v153 = vpop.f32.mrf.mxu0
    %154 = vmatprep.mubr.f32.mxu0 0.0
    %155 = vmatmul.mubr.f32.gmra.mxu0 %v83
    %v156 = vpop.f32.mrf.mxu0
    %v157 = vadd.f32 %v78, %v156
    %v158 = vpop.f32.mrf.mxu0
    %159 = vdwg.mxu0
    %161 = vrot.lane.b32.xlu0 %v152, 124
    %v162 = vpop.permute.xlu0 %161
    %164 = vrot.lane.b32.xlu0 %v152, 120
    %v165 = vpop.permute.xlu0 %164
    %167 = vrot.lane.b32.xlu0 %v152, 116
    %v168 = vpop.permute.xlu0 %167
    %170 = vrot.lane.b32.xlu0 %v152, 112
    %v171 = vpop.permute.xlu0 %170
    %173 = vrot.lane.b32.xlu0 %v152, 108
    %v174 = vpop.permute.xlu0 %173
    %176 = vrot.lane.b32.xlu0 %v152, 104
    %v177 = vpop.permute.xlu0 %176
    %179 = vrot.lane.b32.xlu0 %v152, 100
    %v180 = vpop.permute.xlu0 %179
    %182 = vrot.lane.b32.xlu0 %v152, 96
    %v183 = vpop.permute.xlu0 %182
    %185 = vrot.lane.b32.xlu0 %v152, 92
    %v186 = vpop.permute.xlu0 %185
    %188 = vrot.lane.b32.xlu0 %v152, 88
    %v189 = vpop.permute.xlu0 %188
    %191 = vrot.lane.b32.xlu0 %v152, 84
    %v192 = vpop.permute.xlu0 %191
    %194 = vrot.lane.b32.xlu0 %v152, 80
    %v195 = vpop.permute.xlu0 %194
    %197 = vrot.lane.b32.xlu0 %v152, 76
    %v198 = vpop.permute.xlu0 %197
    %200 = vrot.lane.b32.xlu0 %v152, 72
    %v201 = vpop.permute.xlu0 %200
    %203 = vrot.lane.b32.xlu0 %v152, 68
    %v204 = vpop.permute.xlu0 %203
    %206 = vrot.lane.b32.xlu0 %v152, 64
    %v207 = vpop.permute.xlu0 %206
    %209 = vrot.lane.b32.xlu0 %v152, 60
    %v210 = vpop.permute.xlu0 %209
    %212 = vrot.lane.b32.xlu0 %v152, 56
    %v213 = vpop.permute.xlu0 %212
    %215 = vrot.lane.b32.xlu0 %v152, 52
    %v216 = vpop.permute.xlu0 %215
    %218 = vrot.lane.b32.xlu0 %v152, 48
    %v219 = vpop.permute.xlu0 %218
    %221 = vrot.lane.b32.xlu0 %v152, 44
    %v222 = vpop.permute.xlu0 %221
    %224 = vrot.lane.b32.xlu0 %v152, 40
    %v225 = vpop.permute.xlu0 %224
    %227 = vrot.lane.b32.xlu0 %v152, 36
    %v228 = vpop.permute.xlu0 %227
    %v230 = vcombine.low %v152, %v165
    %v231 = vcombine.high %v152, %v165
    %v233 = vunpack.c.l.s4 1983009808
    %v234 = vunpack.c.0.s8 %v233
    %v235 = vlaneseq
    %v236 = vshrl.u32 %v235, 7
    %v237 = vsub.s32 %v234, %v236
    %v238 = vrot.slane %v230, %v237
    %v240 = vunpack.c.l.s4 1983009808
    %v241 = vunpack.c.0.s8 %v240
    %v242 = vlaneseq
    %v243 = vshrl.u32 %v242, 7
    %v244 = vsub.s32 %v241, %v243
    %v245 = vrot.slane %v231, %v244
    %v246 = vcombine.low %v162, %v168
    %v247 = vcombine.high %v162, %v168
    %v249 = vunpack.c.l.s4 1983009808
    %v250 = vunpack.c.0.s8 %v249
    %v251 = vlaneseq
    %v252 = vshrl.u32 %v251, 7
    %v253 = vsub.s32 %v250, %v252
    %v254 = vrot.slane %v246, %v253
    %v256 = vunpack.c.l.s4 1983009808
    %v257 = vunpack.c.0.s8 %v256
    %v258 = vlaneseq
    %v259 = vshrl.u32 %v258, 7
    %v260 = vsub.s32 %v257, %v259
    %v261 = vrot.slane %v247, %v260
    %v262 = vcombine.low %v171, %v177
    %v263 = vcombine.high %v171, %v177
    %v265 = vunpack.c.l.s4 1983009808
    %v266 = vunpack.c.0.s8 %v265
    %v267 = vlaneseq
    %v268 = vshrl.u32 %v267, 7
    %v269 = vsub.s32 %v266, %v268
    %v270 = vrot.slane %v262, %v269
    %v272 = vunpack.c.l.s4 1983009808
    %v273 = vunpack.c.0.s8 %v272
    %v274 = vlaneseq
    %v275 = vshrl.u32 %v274, 7
    %v276 = vsub.s32 %v273, %v275
    %v277 = vrot.slane %v263, %v276
    %v278 = vcombine.low %v174, %v180
    %v279 = vcombine.high %v174, %v180
    %v281 = vunpack.c.l.s4 1983009808
    %v282 = vunpack.c.0.s8 %v281
    %v283 = vlaneseq
    %v284 = vshrl.u32 %v283, 7
    %v285 = vsub.s32 %v282, %v284
    %v286 = vrot.slane %v278, %v285
    %v288 = vunpack.c.l.s4 1983009808
    %v289 = vunpack.c.0.s8 %v288
    %v290 = vlaneseq
    %v291 = vshrl.u32 %v290, 7
    %v292 = vsub.s32 %v289, %v291
    %v293 = vrot.slane %v279, %v292
    %v294 = vcombine.low %v238, %v254
    %v295 = vcombine.high %v238, %v254
    %v297 = vunpack.c.l.s4 1934713408
    %v298 = vunpack.c.0.s8 %v297
    %v299 = vlaneseq
    %v300 = vshrl.u32 %v299, 7
    %v301 = vsub.s32 %v298, %v300
    %v302 = vrot.slane %v294, %v301
    %v304 = vunpack.c.l.s4 1934713408
    %v305 = vunpack.c.0.s8 %v304
    %v306 = vlaneseq
    %v307 = vshrl.u32 %v306, 7
    %v308 = vsub.s32 %v305, %v307
    %v309 = vrot.slane %v295, %v308
    %v310 = vcombine.low %v245, %v261
    %v311 = vcombine.high %v245, %v261
    %v313 = vunpack.c.l.s4 1934713408
    %v314 = vunpack.c.0.s8 %v313
    %v315 = vlaneseq
    %v316 = vshrl.u32 %v315, 7
    %v317 = vsub.s32 %v314, %v316
    %v318 = vrot.slane %v310, %v317
    %v320 = vunpack.c.l.s4 1934713408
    %v321 = vunpack.c.0.s8 %v320
    %v322 = vlaneseq
    %v323 = vshrl.u32 %v322, 7
    %v324 = vsub.s32 %v321, %v323
    %v325 = vrot.slane %v311, %v324
    %v326 = vcombine.low %v270, %v286
    %v327 = vcombine.high %v270, %v286
    %v329 = vunpack.c.l.s4 1934713408
    %v330 = vunpack.c.0.s8 %v329
    %v331 = vlaneseq
    %v332 = vshrl.u32 %v331, 7
    %v333 = vsub.s32 %v330, %v332
    %v334 = vrot.slane %v326, %v333
    %v336 = vunpack.c.l.s4 1934713408
    %v337 = vunpack.c.0.s8 %v336
    %v338 = vlaneseq
    %v339 = vshrl.u32 %v338, 7
    %v340 = vsub.s32 %v337, %v339
    %v341 = vrot.slane %v327, %v340
    %v342 = vcombine.low %v277, %v293
    %v343 = vcombine.high %v277, %v293
    %v345 = vunpack.c.l.s4 1934713408
    %v346 = vunpack.c.0.s8 %v345
    %v347 = vlaneseq
    %v348 = vshrl.u32 %v347, 7
    %v349 = vsub.s32 %v346, %v348
    %v350 = vrot.slane %v342, %v349
    %v352 = vunpack.c.l.s4 1934713408
    %v353 = vunpack.c.0.s8 %v352
    %v354 = vlaneseq
    %v355 = vshrl.u32 %v354, 7
    %v356 = vsub.s32 %v353, %v355
    %v357 = vrot.slane %v343, %v356
    %v358 = vcombine.low %v302, %v334
    %v359 = vcombine.high %v302, %v334
    %v360 = vcombine.low %v309, %v341
    %v361 = vcombine.high %v309, %v341
    %v362 = vcombine.low %v318, %v350
    %v363 = vcombine.high %v318, %v350
    %v364 = vcombine.low %v325, %v357
    %v365 = vcombine.high %v325, %v357
    %v366 = vcombine.low %v183, %v189
    %v367 = vcombine.high %v183, %v189
    %v369 = vunpack.c.l.s4 1983009808
    %v370 = vunpack.c.0.s8 %v369
    %v371 = vlaneseq
    %v372 = vshrl.u32 %v371, 7
    %v373 = vsub.s32 %v370, %v372
    %v374 = vrot.slane %v366, %v373
    %v376 = vunpack.c.l.s4 1983009808
    %v377 = vunpack.c.0.s8 %v376
    %v378 = vlaneseq
    %v379 = vshrl.u32 %v378, 7
    %v380 = vsub.s32 %v377, %v379
    %v381 = vrot.slane %v367, %v380
    %v382 = vcombine.low %v186, %v192
    %v383 = vcombine.high %v186, %v192
    %v385 = vunpack.c.l.s4 1983009808
    %v386 = vunpack.c.0.s8 %v385
    %v387 = vlaneseq
    %v388 = vshrl.u32 %v387, 7
    %v389 = vsub.s32 %v386, %v388
    %v390 = vrot.slane %v382, %v389
    %v392 = vunpack.c.l.s4 1983009808
    %v393 = vunpack.c.0.s8 %v392
    %v394 = vlaneseq
    %v395 = vshrl.u32 %v394, 7
    %v396 = vsub.s32 %v393, %v395
    %v397 = vrot.slane %v383, %v396
    %v398 = vcombine.low %v195, %v201
    %v399 = vcombine.high %v195, %v201
    %v401 = vunpack.c.l.s4 1983009808
    %v402 = vunpack.c.0.s8 %v401
    %v403 = vlaneseq
    %v404 = vshrl.u32 %v403, 7
    %v405 = vsub.s32 %v402, %v404
    %v406 = vrot.slane %v398, %v405
    %v408 = vunpack.c.l.s4 1983009808
    %v409 = vunpack.c.0.s8 %v408
    %v410 = vlaneseq
    %v411 = vshrl.u32 %v410, 7
    %v412 = vsub.s32 %v409, %v411
    %v413 = vrot.slane %v399, %v412
    %v414 = vcombine.low %v198, %v204
    %v415 = vcombine.high %v198, %v204
    %v417 = vunpack.c.l.s4 1983009808
    %v418 = vunpack.c.0.s8 %v417
    %v419 = vlaneseq
    %v420 = vshrl.u32 %v419, 7
    %v421 = vsub.s32 %v418, %v420
    %v422 = vrot.slane %v414, %v421
    %v424 = vunpack.c.l.s4 1983009808
    %v425 = vunpack.c.0.s8 %v424
    %v426 = vlaneseq
    %v427 = vshrl.u32 %v426, 7
    %v428 = vsub.s32 %v425, %v427
    %v429 = vrot.slane %v415, %v428
    %v430 = vcombine.low %v374, %v390
    %v431 = vcombine.high %v374, %v390
    %v433 = vunpack.c.l.s4 1934713408
    %v434 = vunpack.c.0.s8 %v433
    %v435 = vlaneseq
    %v436 = vshrl.u32 %v435, 7
    %v437 = vsub.s32 %v434, %v436
    %v438 = vrot.slane %v430, %v437
    %v440 = vunpack.c.l.s4 1934713408
    %v441 = vunpack.c.0.s8 %v440
    %v442 = vlaneseq
    %v443 = vshrl.u32 %v442, 7
    %v444 = vsub.s32 %v441, %v443
    %v445 = vrot.slane %v431, %v444
    %v446 = vcombine.low %v381, %v397
    %v447 = vcombine.high %v381, %v397
    %v449 = vunpack.c.l.s4 1934713408
    %v450 = vunpack.c.0.s8 %v449
    %v451 = vlaneseq
    %v452 = vshrl.u32 %v451, 7
    %v453 = vsub.s32 %v450, %v452
    %v454 = vrot.slane %v446, %v453
    %v456 = vunpack.c.l.s4 1934713408
    %v457 = vunpack.c.0.s8 %v456
    %v458 = vlaneseq
    %v459 = vshrl.u32 %v458, 7
    %v460 = vsub.s32 %v457, %v459
    %v461 = vrot.slane %v447, %v460
    %v462 = vcombine.low %v406, %v422
    %v463 = vcombine.high %v406, %v422
    %v465 = vunpack.c.l.s4 1934713408
    %v466 = vunpack.c.0.s8 %v465
    %v467 = vlaneseq
    %v468 = vshrl.u32 %v467, 7
    %v469 = vsub.s32 %v466, %v468
    %v470 = vrot.slane %v462, %v469
    %v472 = vunpack.c.l.s4 1934713408
    %v473 = vunpack.c.0.s8 %v472
    %v474 = vlaneseq
    %v475 = vshrl.u32 %v474, 7
    %v476 = vsub.s32 %v473, %v475
    %v477 = vrot.slane %v463, %v476
    %v478 = vcombine.low %v413, %v429
    %v479 = vcombine.high %v413, %v429
    %v481 = vunpack.c.l.s4 1934713408
    %v482 = vunpack.c.0.s8 %v481
    %v483 = vlaneseq
    %v484 = vshrl.u32 %v483, 7
    %v485 = vsub.s32 %v482, %v484
    %v486 = vrot.slane %v478, %v485
    %v488 = vunpack.c.l.s4 1934713408
    %v489 = vunpack.c.0.s8 %v488
    %v490 = vlaneseq
    %v491 = vshrl.u32 %v490, 7
    %v492 = vsub.s32 %v489, %v491
    %v493 = vrot.slane %v479, %v492
    %v494 = vcombine.low %v438, %v470
    %v495 = vcombine.high %v438, %v470
    %v496 = vcombine.low %v445, %v477
    %v497 = vcombine.high %v445, %v477
    %v498 = vcombine.low %v454, %v486
    %v499 = vcombine.high %v454, %v486
    %v500 = vcombine.low %v461, %v493
    %v501 = vcombine.high %v461, %v493
    %v502 = vcombine.low %v207, %v213
    %v503 = vcombine.high %v207, %v213
    %v505 = vunpack.c.l.s4 1983009808
    %v506 = vunpack.c.0.s8 %v505
    %v507 = vlaneseq
    %v508 = vshrl.u32 %v507, 7
    %v509 = vsub.s32 %v506, %v508
    %v510 = vrot.slane %v502, %v509
    %v512 = vunpack.c.l.s4 1983009808
    %v513 = vunpack.c.0.s8 %v512
    %v514 = vlaneseq
    %v515 = vshrl.u32 %v514, 7
    %v516 = vsub.s32 %v513, %v515
    %v517 = vrot.slane %v503, %v516
    %v518 = vcombine.low %v210, %v216
    %v519 = vcombine.high %v210, %v216
    %v521 = vunpack.c.l.s4 1983009808
    %v522 = vunpack.c.0.s8 %v521
    %v523 = vlaneseq
    %v524 = vshrl.u32 %v523, 7
    %v525 = vsub.s32 %v522, %v524
    %v526 = vrot.slane %v518, %v525
    %v528 = vunpack.c.l.s4 1983009808
    %v529 = vunpack.c.0.s8 %v528
    %v530 = vlaneseq
    %v531 = vshrl.u32 %v530, 7
    %v532 = vsub.s32 %v529, %v531
    %v533 = vrot.slane %v519, %v532
    %v534 = vcombine.low %v219, %v225
    %v535 = vcombine.high %v219, %v225
    %v537 = vunpack.c.l.s4 1983009808
    %v538 = vunpack.c.0.s8 %v537
    %v539 = vlaneseq
    %v540 = vshrl.u32 %v539, 7
    %v541 = vsub.s32 %v538, %v540
    %v542 = vrot.slane %v534, %v541
    %v544 = vunpack.c.l.s4 1983009808
    %v545 = vunpack.c.0.s8 %v544
    %v546 = vlaneseq
    %v547 = vshrl.u32 %v546, 7
    %v548 = vsub.s32 %v545, %v547
    %v549 = vrot.slane %v535, %v548
    %v550 = vcombine.low %v222, %v228
    %v551 = vcombine.high %v222, %v228
    %v553 = vunpack.c.l.s4 1983009808
    %v554 = vunpack.c.0.s8 %v553
    %v555 = vlaneseq
    %v556 = vshrl.u32 %v555, 7
    %v557 = vsub.s32 %v554, %v556
    %v558 = vrot.slane %v550, %v557
    %v560 = vunpack.c.l.s4 1983009808
    %v561 = vunpack.c.0.s8 %v560
    %v562 = vlaneseq
    %v563 = vshrl.u32 %v562, 7
    %v564 = vsub.s32 %v561, %v563
    %v565 = vrot.slane %v551, %v564
    %v566 = vcombine.low %v510, %v526
    %v567 = vcombine.high %v510, %v526
    %v569 = vunpack.c.l.s4 1934713408
    %v570 = vunpack.c.0.s8 %v569
    %v571 = vlaneseq
    %v572 = vshrl.u32 %v571, 7
    %v573 = vsub.s32 %v570, %v572
    %v574 = vrot.slane %v566, %v573
    %v576 = vunpack.c.l.s4 1934713408
    %v577 = vunpack.c.0.s8 %v576
    %v578 = vlaneseq
    %v579 = vshrl.u32 %v578, 7
    %v580 = vsub.s32 %v577, %v579
    %v581 = vrot.slane %v567, %v580
    %v582 = vcombine.low %v517, %v533
    %v583 = vcombine.high %v517, %v533
    %v585 = vunpack.c.l.s4 1934713408
    %v586 = vunpack.c.0.s8 %v585
    %v587 = vlaneseq
    %v588 = vshrl.u32 %v587, 7
    %v589 = vsub.s32 %v586, %v588
    %v590 = vrot.slane %v582, %v589
    %v592 = vunpack.c.l.s4 1934713408
    %v593 = vunpack.c.0.s8 %v592
    %v594 = vlaneseq
    %v595 = vshrl.u32 %v594, 7
    %v596 = vsub.s32 %v593, %v595
    %v597 = vrot.slane %v583, %v596
    %v598 = vcombine.low %v542, %v558
    %v599 = vcombine.high %v542, %v558
    %v601 = vunpack.c.l.s4 1934713408
    %v602 = vunpack.c.0.s8 %v601
    %v603 = vlaneseq
    %v604 = vshrl.u32 %v603, 7
    %v605 = vsub.s32 %v602, %v604
    %v606 = vrot.slane %v598, %v605
    %v608 = vunpack.c.l.s4 1934713408
    %v609 = vunpack.c.0.s8 %v608
    %v610 = vlaneseq
    %v611 = vshrl.u32 %v610, 7
    %v612 = vsub.s32 %v609, %v611
    %v613 = vrot.slane %v599, %v612
    %v614 = vcombine.low %v549, %v565
    %v615 = vcombine.high %v549, %v565
    %v617 = vunpack.c.l.s4 1934713408
    %v618 = vunpack.c.0.s8 %v617
    %v619 = vlaneseq
    %v620 = vshrl.u32 %v619, 7
    %v621 = vsub.s32 %v618, %v620
    %v622 = vrot.slane %v614, %v621
    %v624 = vunpack.c.l.s4 1934713408
    %v625 = vunpack.c.0.s8 %v624
    %v626 = vlaneseq
    %v627 = vshrl.u32 %v626, 7
    %v628 = vsub.s32 %v625, %v627
    %v629 = vrot.slane %v615, %v628
    %v630 = vcombine.low %v574, %v606
    %v631 = vcombine.high %v574, %v606
    %v632 = vcombine.low %v581, %v613
    %v633 = vcombine.high %v581, %v613
    %v634 = vcombine.low %v590, %v622
    %v635 = vcombine.high %v590, %v622
    %v636 = vcombine.low %v597, %v629
    %v637 = vcombine.high %v597, %v629
    %v638 = vcombine.low %v358, %v360
    %v639 = vcombine.high %v358, %v360
    %v641 = vunpack.c.l.s4 1983009808
    %v642 = vunpack.c.0.s8 %v641
    %v643 = vlaneseq
    %v644 = vshrl.u32 %v643, 7
    %v645 = vsub.s32 %v642, %v644
    %v646 = vrot.slane %v638, %v645
    %v648 = vunpack.c.l.s4 1983009808
    %v649 = vunpack.c.0.s8 %v648
    %v650 = vlaneseq
    %v651 = vshrl.u32 %v650, 7
    %v652 = vsub.s32 %v649, %v651
    %v653 = vrot.slane %v639, %v652
    %v654 = vcombine.low %v359, %v361
    %v655 = vcombine.high %v359, %v361
    %v657 = vunpack.c.l.s4 1983009808
    %v658 = vunpack.c.0.s8 %v657
    %v659 = vlaneseq
    %v660 = vshrl.u32 %v659, 7
    %v661 = vsub.s32 %v658, %v660
    %v662 = vrot.slane %v654, %v661
    %v664 = vunpack.c.l.s4 1983009808
    %v665 = vunpack.c.0.s8 %v664
    %v666 = vlaneseq
    %v667 = vshrl.u32 %v666, 7
    %v668 = vsub.s32 %v665, %v667
    %v669 = vrot.slane %v655, %v668
    %v670 = vcombine.low %v362, %v364
    %v671 = vcombine.high %v362, %v364
    %v673 = vunpack.c.l.s4 1983009808
    %v674 = vunpack.c.0.s8 %v673
    %v675 = vlaneseq
    %v676 = vshrl.u32 %v675, 7
    %v677 = vsub.s32 %v674, %v676
    %v678 = vrot.slane %v670, %v677
    %v680 = vunpack.c.l.s4 1983009808
    %v681 = vunpack.c.0.s8 %v680
    %v682 = vlaneseq
    %v683 = vshrl.u32 %v682, 7
    %v684 = vsub.s32 %v681, %v683
    %v685 = vrot.slane %v671, %v684
    %v686 = vcombine.low %v363, %v365
    %v687 = vcombine.high %v363, %v365
    %v689 = vunpack.c.l.s4 1983009808
    %v690 = vunpack.c.0.s8 %v689
    %v691 = vlaneseq
    %v692 = vshrl.u32 %v691, 7
    %v693 = vsub.s32 %v690, %v692
    %v694 = vrot.slane %v686, %v693
    %v696 = vunpack.c.l.s4 1983009808
    %v697 = vunpack.c.0.s8 %v696
    %v698 = vlaneseq
    %v699 = vshrl.u32 %v698, 7
    %v700 = vsub.s32 %v697, %v699
    %v701 = vrot.slane %v687, %v700
    %v702 = vcombine.low %v646, %v662
    %v703 = vcombine.high %v646, %v662
    %v705 = vunpack.c.l.s4 1934713408
    %v706 = vunpack.c.0.s8 %v705
    %v707 = vlaneseq
    %v708 = vshrl.u32 %v707, 7
    %v709 = vsub.s32 %v706, %v708
    %v710 = vrot.slane %v702, %v709
    %v712 = vunpack.c.l.s4 1934713408
    %v713 = vunpack.c.0.s8 %v712
    %v714 = vlaneseq
    %v715 = vshrl.u32 %v714, 7
    %v716 = vsub.s32 %v713, %v715
    %v717 = vrot.slane %v703, %v716
    %v718 = vcombine.low %v653, %v669
    %v719 = vcombine.high %v653, %v669
    %v721 = vunpack.c.l.s4 1934713408
    %v722 = vunpack.c.0.s8 %v721
    %v723 = vlaneseq
    %v724 = vshrl.u32 %v723, 7
    %v725 = vsub.s32 %v722, %v724
    %v726 = vrot.slane %v718, %v725
    %v728 = vunpack.c.l.s4 1934713408
    %v729 = vunpack.c.0.s8 %v728
    %v730 = vlaneseq
    %v731 = vshrl.u32 %v730, 7
    %v732 = vsub.s32 %v729, %v731
    %v733 = vrot.slane %v719, %v732
    %v734 = vcombine.low %v678, %v694
    %v735 = vcombine.high %v678, %v694
    %v737 = vunpack.c.l.s4 1934713408
    %v738 = vunpack.c.0.s8 %v737
    %v739 = vlaneseq
    %v740 = vshrl.u32 %v739, 7
    %v741 = vsub.s32 %v738, %v740
    %v742 = vrot.slane %v734, %v741
    %v744 = vunpack.c.l.s4 1934713408
    %v745 = vunpack.c.0.s8 %v744
    %v746 = vlaneseq
    %v747 = vshrl.u32 %v746, 7
    %v748 = vsub.s32 %v745, %v747
    %v749 = vrot.slane %v735, %v748
    %v750 = vcombine.low %v685, %v701
    %v751 = vcombine.high %v685, %v701
    %v753 = vunpack.c.l.s4 1934713408
    %v754 = vunpack.c.0.s8 %v753
    %v755 = vlaneseq
    %v756 = vshrl.u32 %v755, 7
    %v757 = vsub.s32 %v754, %v756
    %v758 = vrot.slane %v750, %v757
    %v760 = vunpack.c.l.s4 1934713408
    %v761 = vunpack.c.0.s8 %v760
    %v762 = vlaneseq
    %v763 = vshrl.u32 %v762, 7
    %v764 = vsub.s32 %v761, %v763
    %v765 = vrot.slane %v751, %v764
    %v766 = vcombine.low %v710, %v742
    %v767 = vcombine.high %v710, %v742
    %v768 = vcombine.low %v717, %v749
    %v769 = vcombine.high %v717, %v749
    %v770 = vcombine.low %v726, %v758
    %v771 = vcombine.high %v726, %v758
    %v772 = vcombine.low %v733, %v765
    %v773 = vcombine.high %v733, %v765
    %v774 = vcombine.low %v494, %v496
    %v775 = vcombine.high %v494, %v496
    %v777 = vunpack.c.l.s4 1983009808
    %v778 = vunpack.c.0.s8 %v777
    %v779 = vlaneseq
    %v780 = vshrl.u32 %v779, 7
    %v781 = vsub.s32 %v778, %v780
    %v782 = vrot.slane %v774, %v781
    %v784 = vunpack.c.l.s4 1983009808
    %v785 = vunpack.c.0.s8 %v784
    %v786 = vlaneseq
    %v787 = vshrl.u32 %v786, 7
    %v788 = vsub.s32 %v785, %v787
    %v789 = vrot.slane %v775, %v788
    %v790 = vcombine.low %v495, %v497
    %v791 = vcombine.high %v495, %v497
    %v793 = vunpack.c.l.s4 1983009808
    %v794 = vunpack.c.0.s8 %v793
    %v795 = vlaneseq
    %v796 = vshrl.u32 %v795, 7
    %v797 = vsub.s32 %v794, %v796
    %v798 = vrot.slane %v790, %v797
    %v800 = vunpack.c.l.s4 1983009808
    %v801 = vunpack.c.0.s8 %v800
    %v802 = vlaneseq
    %v803 = vshrl.u32 %v802, 7
    %v804 = vsub.s32 %v801, %v803
    %v805 = vrot.slane %v791, %v804
    %v806 = vcombine.low %v498, %v500
    %v807 = vcombine.high %v498, %v500
    %v809 = vunpack.c.l.s4 1983009808
    %v810 = vunpack.c.0.s8 %v809
    %v811 = vlaneseq
    %v812 = vshrl.u32 %v811, 7
    %v813 = vsub.s32 %v810, %v812
    %v814 = vrot.slane %v806, %v813
    %v816 = vunpack.c.l.s4 1983009808
    %v817 = vunpack.c.0.s8 %v816
    %v818 = vlaneseq
    %v819 = vshrl.u32 %v818, 7
    %v820 = vsub.s32 %v817, %v819
    %v821 = vrot.slane %v807, %v820
    %v822 = vcombine.low %v499, %v501
    %v823 = vcombine.high %v499, %v501
    %v825 = vunpack.c.l.s4 1983009808
    %v826 = vunpack.c.0.s8 %v825
    %v827 = vlaneseq
    %v828 = vshrl.u32 %v827, 7
    %v829 = vsub.s32 %v826, %v828
    %v830 = vrot.slane %v822, %v829
    %v832 = vunpack.c.l.s4 1983009808
    %v833 = vunpack.c.0.s8 %v832
    %v834 = vlaneseq
    %v835 = vshrl.u32 %v834, 7
    %v836 = vsub.s32 %v833, %v835
    %v837 = vrot.slane %v823, %v836
    %v838 = vcombine.low %v782, %v798
    %v839 = vcombine.high %v782, %v798
    %v841 = vunpack.c.l.s4 1934713408
    %v842 = vunpack.c.0.s8 %v841
    %v843 = vlaneseq
    %v844 = vshrl.u32 %v843, 7
    %v845 = vsub.s32 %v842, %v844
    %v846 = vrot.slane %v838, %v845
    %v848 = vunpack.c.l.s4 1934713408
    %v849 = vunpack.c.0.s8 %v848
    %v850 = vlaneseq
    %v851 = vshrl.u32 %v850, 7
    %v852 = vsub.s32 %v849, %v851
    %v853 = vrot.slane %v839, %v852
    %v854 = vcombine.low %v789, %v805
    %v855 = vcombine.high %v789, %v805
    %v857 = vunpack.c.l.s4 1934713408
    %v858 = vunpack.c.0.s8 %v857
    %v859 = vlaneseq
    %v860 = vshrl.u32 %v859, 7
    %v861 = vsub.s32 %v858, %v860
    %v862 = vrot.slane %v854, %v861
    %v864 = vunpack.c.l.s4 1934713408
    %v865 = vunpack.c.0.s8 %v864
    %v866 = vlaneseq
    %v867 = vshrl.u32 %v866, 7
    %v868 = vsub.s32 %v865, %v867
    %v869 = vrot.slane %v855, %v868
    %v870 = vcombine.low %v814, %v830
    %v871 = vcombine.high %v814, %v830
    %v873 = vunpack.c.l.s4 1934713408
    %v874 = vunpack.c.0.s8 %v873
    %v875 = vlaneseq
    %v876 = vshrl.u32 %v875, 7
    %v877 = vsub.s32 %v874, %v876
    %v878 = vrot.slane %v870, %v877
    %v880 = vunpack.c.l.s4 1934713408
    %v881 = vunpack.c.0.s8 %v880
    %v882 = vlaneseq
    %v883 = vshrl.u32 %v882, 7
    %v884 = vsub.s32 %v881, %v883
    %v885 = vrot.slane %v871, %v884
    %v886 = vcombine.low %v821, %v837
    %v887 = vcombine.high %v821, %v837
    %v889 = vunpack.c.l.s4 1934713408
    %v890 = vunpack.c.0.s8 %v889
    %v891 = vlaneseq
    %v892 = vshrl.u32 %v891, 7
    %v893 = vsub.s32 %v890, %v892
    %v894 = vrot.slane %v886, %v893
    %v896 = vunpack.c.l.s4 1934713408
    %v897 = vunpack.c.0.s8 %v896
    %v898 = vlaneseq
    %v899 = vshrl.u32 %v898, 7
    %v900 = vsub.s32 %v897, %v899
    %v901 = vrot.slane %v887, %v900
    %v902 = vcombine.low %v846, %v878
    %v903 = vcombine.high %v846, %v878
    %v904 = vcombine.low %v853, %v885
    %v905 = vcombine.high %v853, %v885
    %v906 = vcombine.low %v862, %v894
    %v907 = vcombine.high %v862, %v894
    %v908 = vcombine.low %v869, %v901
    %v909 = vcombine.high %v869, %v901
    %v910 = vcombine.low %v630, %v632
    %v911 = vcombine.high %v630, %v632
    %v913 = vunpack.c.l.s4 1983009808
    %v914 = vunpack.c.0.s8 %v913
    %v915 = vlaneseq
    %v916 = vshrl.u32 %v915, 7
    %v917 = vsub.s32 %v914, %v916
    %v918 = vrot.slane %v910, %v917
    %v920 = vunpack.c.l.s4 1983009808
    %v921 = vunpack.c.0.s8 %v920
    %v922 = vlaneseq
    %v923 = vshrl.u32 %v922, 7
    %v924 = vsub.s32 %v921, %v923
    %v925 = vrot.slane %v911, %v924
    %v926 = vcombine.low %v631, %v633
    %v927 = vcombine.high %v631, %v633
    %v929 = vunpack.c.l.s4 1983009808
    %v930 = vunpack.c.0.s8 %v929
    %v931 = vlaneseq
    %v932 = vshrl.u32 %v931, 7
    %v933 = vsub.s32 %v930, %v932
    %v934 = vrot.slane %v926, %v933
    %v936 = vunpack.c.l.s4 1983009808
    %v937 = vunpack.c.0.s8 %v936
    %v938 = vlaneseq
    %v939 = vshrl.u32 %v938, 7
    %v940 = vsub.s32 %v937, %v939
    %v941 = vrot.slane %v927, %v940
    %v942 = vcombine.low %v634, %v636
    %v943 = vcombine.high %v634, %v636
    %v945 = vunpack.c.l.s4 1983009808
    %v946 = vunpack.c.0.s8 %v945
    %v947 = vlaneseq
    %v948 = vshrl.u32 %v947, 7
    %v949 = vsub.s32 %v946, %v948
    %v950 = vrot.slane %v942, %v949
    %v952 = vunpack.c.l.s4 1983009808
    %v953 = vunpack.c.0.s8 %v952
    %v954 = vlaneseq
    %v955 = vshrl.u32 %v954, 7
    %v956 = vsub.s32 %v953, %v955
    %v957 = vrot.slane %v943, %v956
    %v958 = vcombine.low %v635, %v637
    %v959 = vcombine.high %v635, %v637
    %v961 = vunpack.c.l.s4 1983009808
    %v962 = vunpack.c.0.s8 %v961
    %v963 = vlaneseq
    %v964 = vshrl.u32 %v963, 7
    %v965 = vsub.s32 %v962, %v964
    %v966 = vrot.slane %v958, %v965
    %v968 = vunpack.c.l.s4 1983009808
    %v969 = vunpack.c.0.s8 %v968
    %v970 = vlaneseq
    %v971 = vshrl.u32 %v970, 7
    %v972 = vsub.s32 %v969, %v971
    %v973 = vrot.slane %v959, %v972
    %v974 = vcombine.low %v918, %v934
    %v975 = vcombine.high %v918, %v934
    %v977 = vunpack.c.l.s4 1934713408
    %v978 = vunpack.c.0.s8 %v977
    %v979 = vlaneseq
    %v980 = vshrl.u32 %v979, 7
    %v981 = vsub.s32 %v978, %v980
    %v982 = vrot.slane %v974, %v981
    %v984 = vunpack.c.l.s4 1934713408
    %v985 = vunpack.c.0.s8 %v984
    %v986 = vlaneseq
    %v987 = vshrl.u32 %v986, 7
    %v988 = vsub.s32 %v985, %v987
    %v989 = vrot.slane %v975, %v988
    %v990 = vcombine.low %v925, %v941
    %v991 = vcombine.high %v925, %v941
    %v993 = vunpack.c.l.s4 1934713408
    %v994 = vunpack.c.0.s8 %v993
    %v995 = vlaneseq
    %v996 = vshrl.u32 %v995, 7
    %v997 = vsub.s32 %v994, %v996
    %v998 = vrot.slane %v990, %v997
    %v1000 = vunpack.c.l.s4 1934713408
    %v1001 = vunpack.c.0.s8 %v1000
    %v1002 = vlaneseq
    %v1003 = vshrl.u32 %v1002, 7
    %v1004 = vsub.s32 %v1001, %v1003
    %v1005 = vrot.slane %v991, %v1004
    %v1006 = vcombine.low %v950, %v966
    %v1007 = vcombine.high %v950, %v966
    %v1009 = vunpack.c.l.s4 1934713408
    %v1010 = vunpack.c.0.s8 %v1009
    %v1011 = vlaneseq
    %v1012 = vshrl.u32 %v1011, 7
    %v1013 = vsub.s32 %v1010, %v1012
    %v1014 = vrot.slane %v1006, %v1013
    %v1016 = vunpack.c.l.s4 1934713408
    %v1017 = vunpack.c.0.s8 %v1016
    %v1018 = vlaneseq
    %v1019 = vshrl.u32 %v1018, 7
    %v1020 = vsub.s32 %v1017, %v1019
    %v1021 = vrot.slane %v1007, %v1020
    %v1022 = vcombine.low %v957, %v973
    %v1023 = vcombine.high %v957, %v973
    %v1025 = vunpack.c.l.s4 1934713408
    %v1026 = vunpack.c.0.s8 %v1025
    %v1027 = vlaneseq
    %v1028 = vshrl.u32 %v1027, 7
    %v1029 = vsub.s32 %v1026, %v1028
    %v1030 = vrot.slane %v1022, %v1029
    %v1032 = vunpack.c.l.s4 1934713408
    %v1033 = vunpack.c.0.s8 %v1032
    %v1034 = vlaneseq
    %v1035 = vshrl.u32 %v1034, 7
    %v1036 = vsub.s32 %v1033, %v1035
    %v1037 = vrot.slane %v1023, %v1036
    %v1038 = vcombine.low %v982, %v1014
    %v1039 = vcombine.high %v982, %v1014
    %v1040 = vcombine.low %v989, %v1021
    %v1041 = vcombine.high %v989, %v1021
    %v1042 = vcombine.low %v998, %v1030
    %v1043 = vcombine.high %v998, %v1030
    %v1044 = vcombine.low %v1005, %v1037
    %v1045 = vcombine.high %v1005, %v1037
    %vm1046 = vcmask 31744
    %v1048 = vsel %vm1046, %v766, 0
    %v1051 = vsel %vm1046, %v902, 0
    %1053 = vmatprep.subr.mxu0 0.0
    %1054 = vmatpush1.xpose.msra.mxu0 0.0
    %1055 = vmatprep.subr.mxu0 0.0
    %1056 = vmatpush1.xpose.msra.mxu0 0.0
    %1057 = vmatprep.subr.mxu0 0.0
    %1058 = vmatpush1.xpose.msra.mxu0 0.0
    %1059 = vmatprep.subr.mxu0 0.0
    %1060 = vmatpush1.xpose.msra.mxu0 0.0
    %1061 = vmatprep.subr.mxu0 0.0
    %1062 = vmatpush1.xpose.msra.mxu0 0.0
    %1063 = vmatprep.subr.mxu0 0.0
    %1064 = vmatpush1.xpose.msra.mxu0 0.0
    %1065 = vmatprep.subr.mxu0 0.0
    %1066 = vmatpush1.xpose.msra.mxu0 0.0
    %1067 = vmatprep.subr.mxu0 0.0
    %1068 = vmatpush1.xpose.msra.mxu0 0.0
    %1069 = vmatprep.subr.mxu0 0.0
    %1070 = vmatpush1.xpose.msra.mxu0 0.0
    %1071 = vmatprep.subr.mxu0 0.0
    %1072 = vmatpush1.xpose.msra.mxu0 0.0
    %1073 = vmatprep.subr.mxu0 0.0
    %1074 = vmatpush1.xpose.msra.mxu0 0.0
    %1075 = vmatprep.subr.mxu0 0.0
    %1076 = vmatpush1.xpose.msra.mxu0 0.0
    %1077 = vmatprep.subr.mxu0 0.0
    %1078 = vmatpush1.xpose.msra.mxu0 0.0
    %1079 = vmatprep.subr.mxu0 0.0
    %1080 = vmatpush1.xpose.msra.mxu0 0.0
    %1081 = vmatprep.subr.mxu0 0.0
    %1082 = vmatpush1.xpose.msra.mxu0 0.0
    %1083 = vmatprep.subr.mxu0 0.0
    %1084 = vmatpush1.xpose.msra.mxu0 %v1051
    %1085 = vmatprep.subr.mxu0 0.0
    %1086 = vmatpush2.xpose.msra.mxu0 0.0
    %1087 = vmatprep.subr.mxu0 0.0
    %1088 = vmatpush2.xpose.msra.mxu0 0.0
    %1089 = vmatprep.subr.mxu0 0.0
    %1090 = vmatpush2.xpose.msra.mxu0 0.0
    %1091 = vmatprep.subr.mxu0 0.0
    %1092 = vmatpush2.xpose.msra.mxu0 0.0
    %1093 = vmatprep.subr.mxu0 0.0
    %1094 = vmatpush2.xpose.msra.mxu0 0.0
    %1095 = vmatprep.subr.mxu0 0.0
    %1096 = vmatpush2.xpose.msra.mxu0 0.0
    %1097 = vmatprep.subr.mxu0 0.0
    %1098 = vmatpush2.xpose.msra.mxu0 0.0
    %1099 = vmatprep.subr.mxu0 0.0
    %1100 = vmatpush2.xpose.msra.mxu0 0.0
    %1101 = vmatprep.subr.mxu0 0.0
    %1102 = vmatpush2.xpose.msra.mxu0 0.0
    %1103 = vmatprep.subr.mxu0 0.0
    %1104 = vmatpush2.xpose.msra.mxu0 0.0
    %1105 = vmatprep.subr.mxu0 0.0
    %1106 = vmatpush2.xpose.msra.mxu0 0.0
    %1107 = vmatprep.subr.mxu0 0.0
    %1108 = vmatpush2.xpose.msra.mxu0 0.0
    %1109 = vmatprep.subr.mxu0 0.0
    %1110 = vmatpush2.xpose.msra.mxu0 0.0
    %1111 = vmatprep.subr.mxu0 0.0
    %1112 = vmatpush2.xpose.msra.mxu0 0.0
    %1113 = vmatprep.subr.mxu0 0.0
    %1114 = vmatpush2.xpose.msra.mxu0 0.0
    %1115 = vmatprep.subr.mxu0 0.0
    %1116 = vmatpush2.xpose.msra.mxu0 0.0
    %1117 = vmatprep.mubr.f32.mxu0 0.0
    %1118 = vmatmul.mubr.f32.gmra.mxu0 %v1048
    %v1119 = vpop.f32.mrf.mxu0
    %v1120 = vadd.f32 0.0, %v1119
    %v1121 = vpop.f32.mrf.mxu0
    %1122 = vdwg.mxu0
    %v1124 = vsel %vm1046, %v767, 0
    %v1127 = vsel %vm1046, %v903, 0
    %1129 = vmatprep.subr.mxu0 0.0
    %1130 = vmatpush1.xpose.msra.mxu0 0.0
    %1131 = vmatprep.subr.mxu0 0.0
    %1132 = vmatpush1.xpose.msra.mxu0 0.0
    %1133 = vmatprep.subr.mxu0 0.0
    %1134 = vmatpush1.xpose.msra.mxu0 0.0
    %1135 = vmatprep.subr.mxu0 0.0
    %1136 = vmatpush1.xpose.msra.mxu0 0.0
    %1137 = vmatprep.subr.mxu0 0.0
    %1138 = vmatpush1.xpose.msra.mxu0 0.0
    %1139 = vmatprep.subr.mxu0 0.0
    %1140 = vmatpush1.xpose.msra.mxu0 0.0
    %1141 = vmatprep.subr.mxu0 0.0
    %1142 = vmatpush1.xpose.msra.mxu0 0.0
    %1143 = vmatprep.subr.mxu0 0.0
    %1144 = vmatpush1.xpose.msra.mxu0 0.0
    %1145 = vmatprep.subr.mxu0 0.0
    %1146 = vmatpush1.xpose.msra.mxu0 0.0
    %1147 = vmatprep.subr.mxu0 0.0
    %1148 = vmatpush1.xpose.msra.mxu0 0.0
    %1149 = vmatprep.subr.mxu0 0.0
    %1150 = vmatpush1.xpose.msra.mxu0 0.0
    %1151 = vmatprep.subr.mxu0 0.0
    %1152 = vmatpush1.xpose.msra.mxu0 0.0
    %1153 = vmatprep.subr.mxu0 0.0
    %1154 = vmatpush1.xpose.msra.mxu0 0.0
    %1155 = vmatprep.subr.mxu0 0.0
    %1156 = vmatpush1.xpose.msra.mxu0 0.0
    %1157 = vmatprep.subr.mxu0 0.0
    %1158 = vmatpush1.xpose.msra.mxu0 0.0
    %1159 = vmatprep.subr.mxu0 0.0
    %1160 = vmatpush1.xpose.msra.mxu0 %v1127
    %1161 = vmatprep.subr.mxu0 0.0
    %1162 = vmatpush2.xpose.msra.mxu0 0.0
    %1163 = vmatprep.subr.mxu0 0.0
    %1164 = vmatpush2.xpose.msra.mxu0 0.0
    %1165 = vmatprep.subr.mxu0 0.0
    %1166 = vmatpush2.xpose.msra.mxu0 0.0
    %1167 = vmatprep.subr.mxu0 0.0
    %1168 = vmatpush2.xpose.msra.mxu0 0.0
    %1169 = vmatprep.subr.mxu0 0.0
    %1170 = vmatpush2.xpose.msra.mxu0 0.0
    %1171 = vmatprep.subr.mxu0 0.0
    %1172 = vmatpush2.xpose.msra.mxu0 0.0
    %1173 = vmatprep.subr.mxu0 0.0
    %1174 = vmatpush2.xpose.msra.mxu0 0.0
    %1175 = vmatprep.subr.mxu0 0.0
    %1176 = vmatpush2.xpose.msra.mxu0 0.0
    %1177 = vmatprep.subr.mxu0 0.0
    %1178 = vmatpush2.xpose.msra.mxu0 0.0
    %1179 = vmatprep.subr.mxu0 0.0
    %1180 = vmatpush2.xpose.msra.mxu0 0.0
    %1181 = vmatprep.subr.mxu0 0.0
    %1182 = vmatpush2.xpose.msra.mxu0 0.0
    %1183 = vmatprep.subr.mxu0 0.0
    %1184 = vmatpush2.xpose.msra.mxu0 0.0
    %1185 = vmatprep.subr.mxu0 0.0
    %1186 = vmatpush2.xpose.msra.mxu0 0.0
    %1187 = vmatprep.subr.mxu0 0.0
    %1188 = vmatpush2.xpose.msra.mxu0 0.0
    %1189 = vmatprep.subr.mxu0 0.0
    %1190 = vmatpush2.xpose.msra.mxu0 0.0
    %1191 = vmatprep.subr.mxu0 0.0
    %1192 = vmatpush2.xpose.msra.mxu0 0.0
    %1193 = vmatprep.mubr.f32.mxu0 0.0
    %1194 = vmatmul.mubr.f32.gmra.mxu0 %v1124
    %v1195 = vpop.f32.mrf.mxu0
    %v1196 = vadd.f32 0.0, %v1195
    %v1197 = vpop.f32.mrf.mxu0
    %1198 = vdwg.mxu0
    %v1200 = vsel %vm1046, %v768, 0
    %v1203 = vsel %vm1046, %v904, 0
    %1205 = vmatprep.subr.mxu0 0.0
    %1206 = vmatpush1.xpose.msra.mxu0 0.0
    %1207 = vmatprep.subr.mxu0 0.0
    %1208 = vmatpush1.xpose.msra.mxu0 0.0
    %1209 = vmatprep.subr.mxu0 0.0
    %1210 = vmatpush1.xpose.msra.mxu0 0.0
    %1211 = vmatprep.subr.mxu0 0.0
    %1212 = vmatpush1.xpose.msra.mxu0 0.0
    %1213 = vmatprep.subr.mxu0 0.0
    %1214 = vmatpush1.xpose.msra.mxu0 0.0
    %1215 = vmatprep.subr.mxu0 0.0
    %1216 = vmatpush1.xpose.msra.mxu0 0.0
    %1217 = vmatprep.subr.mxu0 0.0
    %1218 = vmatpush1.xpose.msra.mxu0 0.0
    %1219 = vmatprep.subr.mxu0 0.0
    %1220 = vmatpush1.xpose.msra.mxu0 0.0
    %1221 = vmatprep.subr.mxu0 0.0
    %1222 = vmatpush1.xpose.msra.mxu0 0.0
    %1223 = vmatprep.subr.mxu0 0.0
    %1224 = vmatpush1.xpose.msra.mxu0 0.0
    %1225 = vmatprep.subr.mxu0 0.0
    %1226 = vmatpush1.xpose.msra.mxu0 0.0
    %1227 = vmatprep.subr.mxu0 0.0
    %1228 = vmatpush1.xpose.msra.mxu0 0.0
    %1229 = vmatprep.subr.mxu0 0.0
    %1230 = vmatpush1.xpose.msra.mxu0 0.0
    %1231 = vmatprep.subr.mxu0 0.0
    %1232 = vmatpush1.xpose.msra.mxu0 0.0
    %1233 = vmatprep.subr.mxu0 0.0
    %1234 = vmatpush1.xpose.msra.mxu0 0.0
    %1235 = vmatprep.subr.mxu0 0.0
    %1236 = vmatpush1.xpose.msra.mxu0 %v1203
    %1237 = vmatprep.subr.mxu0 0.0
    %1238 = vmatpush2.xpose.msra.mxu0 0.0
    %1239 = vmatprep.subr.mxu0 0.0
    %1240 = vmatpush2.xpose.msra.mxu0 0.0
    %1241 = vmatprep.subr.mxu0 0.0
    %1242 = vmatpush2.xpose.msra.mxu0 0.0
    %1243 = vmatprep.subr.mxu0 0.0
    %1244 = vmatpush2.xpose.msra.mxu0 0.0
    %1245 = vmatprep.subr.mxu0 0.0
    %1246 = vmatpush2.xpose.msra.mxu0 0.0
    %1247 = vmatprep.subr.mxu0 0.0
    %1248 = vmatpush2.xpose.msra.mxu0 0.0
    %1249 = vmatprep.subr.mxu0 0.0
    %1250 = vmatpush2.xpose.msra.mxu0 0.0
    %1251 = vmatprep.subr.mxu0 0.0
    %1252 = vmatpush2.xpose.msra.mxu0 0.0
    %1253 = vmatprep.subr.mxu0 0.0
    %1254 = vmatpush2.xpose.msra.mxu0 0.0
    %1255 = vmatprep.subr.mxu0 0.0
    %1256 = vmatpush2.xpose.msra.mxu0 0.0
    %1257 = vmatprep.subr.mxu0 0.0
    %1258 = vmatpush2.xpose.msra.mxu0 0.0
    %1259 = vmatprep.subr.mxu0 0.0
    %1260 = vmatpush2.xpose.msra.mxu0 0.0
    %1261 = vmatprep.subr.mxu0 0.0
    %1262 = vmatpush2.xpose.msra.mxu0 0.0
    %1263 = vmatprep.subr.mxu0 0.0
    %1264 = vmatpush2.xpose.msra.mxu0 0.0
    %1265 = vmatprep.subr.mxu0 0.0
    %1266 = vmatpush2.xpose.msra.mxu0 0.0
    %1267 = vmatprep.subr.mxu0 0.0
    %1268 = vmatpush2.xpose.msra.mxu0 0.0
    %1269 = vmatprep.mubr.f32.mxu0 0.0
    %1270 = vmatmul.mubr.f32.gmra.mxu0 %v1200
    %v1271 = vpop.f32.mrf.mxu0
    %v1272 = vadd.f32 0.0, %v1271
    %v1273 = vpop.f32.mrf.mxu0
    %1274 = vdwg.mxu0
    %v1276 = vsel %vm1046, %v769, 0
    %v1279 = vsel %vm1046, %v905, 0
    %1281 = vmatprep.subr.mxu0 0.0
    %1282 = vmatpush1.xpose.msra.mxu0 0.0
    %1283 = vmatprep.subr.mxu0 0.0
    %1284 = vmatpush1.xpose.msra.mxu0 0.0
    %1285 = vmatprep.subr.mxu0 0.0
    %1286 = vmatpush1.xpose.msra.mxu0 0.0
    %1287 = vmatprep.subr.mxu0 0.0
    %1288 = vmatpush1.xpose.msra.mxu0 0.0
    %1289 = vmatprep.subr.mxu0 0.0
    %1290 = vmatpush1.xpose.msra.mxu0 0.0
    %1291 = vmatprep.subr.mxu0 0.0
    %1292 = vmatpush1.xpose.msra.mxu0 0.0
    %1293 = vmatprep.subr.mxu0 0.0
    %1294 = vmatpush1.xpose.msra.mxu0 0.0
    %1295 = vmatprep.subr.mxu0 0.0
    %1296 = vmatpush1.xpose.msra.mxu0 0.0
    %1297 = vmatprep.subr.mxu0 0.0
    %1298 = vmatpush1.xpose.msra.mxu0 0.0
    %1299 = vmatprep.subr.mxu0 0.0
    %1300 = vmatpush1.xpose.msra.mxu0 0.0
    %1301 = vmatprep.subr.mxu0 0.0
    %1302 = vmatpush1.xpose.msra.mxu0 0.0
    %1303 = vmatprep.subr.mxu0 0.0
    %1304 = vmatpush1.xpose.msra.mxu0 0.0
    %1305 = vmatprep.subr.mxu0 0.0
    %1306 = vmatpush1.xpose.msra.mxu0 0.0
    %1307 = vmatprep.subr.mxu0 0.0
    %1308 = vmatpush1.xpose.msra.mxu0 0.0
    %1309 = vmatprep.subr.mxu0 0.0
    %1310 = vmatpush1.xpose.msra.mxu0 0.0
    %1311 = vmatprep.subr.mxu0 0.0
    %1312 = vmatpush1.xpose.msra.mxu0 %v1279
    %1313 = vmatprep.subr.mxu0 0.0
    %1314 = vmatpush2.xpose.msra.mxu0 0.0
    %1315 = vmatprep.subr.mxu0 0.0
    %1316 = vmatpush2.xpose.msra.mxu0 0.0
    %1317 = vmatprep.subr.mxu0 0.0
    %1318 = vmatpush2.xpose.msra.mxu0 0.0
    %1319 = vmatprep.subr.mxu0 0.0
    %1320 = vmatpush2.xpose.msra.mxu0 0.0
    %1321 = vmatprep.subr.mxu0 0.0
    %1322 = vmatpush2.xpose.msra.mxu0 0.0
    %1323 = vmatprep.subr.mxu0 0.0
    %1324 = vmatpush2.xpose.msra.mxu0 0.0
    %1325 = vmatprep.subr.mxu0 0.0
    %1326 = vmatpush2.xpose.msra.mxu0 0.0
    %1327 = vmatprep.subr.mxu0 0.0
    %1328 = vmatpush2.xpose.msra.mxu0 0.0
    %1329 = vmatprep.subr.mxu0 0.0
    %1330 = vmatpush2.xpose.msra.mxu0 0.0
    %1331 = vmatprep.subr.mxu0 0.0
    %1332 = vmatpush2.xpose.msra.mxu0 0.0
    %1333 = vmatprep.subr.mxu0 0.0
    %1334 = vmatpush2.xpose.msra.mxu0 0.0
    %1335 = vmatprep.subr.mxu0 0.0
    %1336 = vmatpush2.xpose.msra.mxu0 0.0
    %1337 = vmatprep.subr.mxu0 0.0
    %1338 = vmatpush2.xpose.msra.mxu0 0.0
    %1339 = vmatprep.subr.mxu0 0.0
    %1340 = vmatpush2.xpose.msra.mxu0 0.0
    %1341 = vmatprep.subr.mxu0 0.0
    %1342 = vmatpush2.xpose.msra.mxu0 0.0
    %1343 = vmatprep.subr.mxu0 0.0
    %1344 = vmatpush2.xpose.msra.mxu0 0.0
    %1345 = vmatprep.mubr.f32.mxu0 0.0
    %1346 = vmatmul.mubr.f32.gmra.mxu0 %v1276
    %v1347 = vpop.f32.mrf.mxu0
    %v1348 = vadd.f32 0.0, %v1347
    %v1349 = vpop.f32.mrf.mxu0
    %1350 = vdwg.mxu0
    %v1352 = vsel %vm1046, %v770, 0
    %v1355 = vsel %vm1046, %v906, 0
    %1357 = vmatprep.subr.mxu0 0.0
    %1358 = vmatpush1.xpose.msra.mxu0 0.0
    %1359 = vmatprep.subr.mxu0 0.0
    %1360 = vmatpush1.xpose.msra.mxu0 0.0
    %1361 = vmatprep.subr.mxu0 0.0
    %1362 = vmatpush1.xpose.msra.mxu0 0.0
    %1363 = vmatprep.subr.mxu0 0.0
    %1364 = vmatpush1.xpose.msra.mxu0 0.0
    %1365 = vmatprep.subr.mxu0 0.0
    %1366 = vmatpush1.xpose.msra.mxu0 0.0
    %1367 = vmatprep.subr.mxu0 0.0
    %1368 = vmatpush1.xpose.msra.mxu0 0.0
    %1369 = vmatprep.subr.mxu0 0.0
    %1370 = vmatpush1.xpose.msra.mxu0 0.0
    %1371 = vmatprep.subr.mxu0 0.0
    %1372 = vmatpush1.xpose.msra.mxu0 0.0
    %1373 = vmatprep.subr.mxu0 0.0
    %1374 = vmatpush1.xpose.msra.mxu0 0.0
    %1375 = vmatprep.subr.mxu0 0.0
    %1376 = vmatpush1.xpose.msra.mxu0 0.0
    %1377 = vmatprep.subr.mxu0 0.0
    %1378 = vmatpush1.xpose.msra.mxu0 0.0
    %1379 = vmatprep.subr.mxu0 0.0
    %1380 = vmatpush1.xpose.msra.mxu0 0.0
    %1381 = vmatprep.subr.mxu0 0.0
    %1382 = vmatpush1.xpose.msra.mxu0 0.0
    %1383 = vmatprep.subr.mxu0 0.0
    %1384 = vmatpush1.xpose.msra.mxu0 0.0
    %1385 = vmatprep.subr.mxu0 0.0
    %1386 = vmatpush1.xpose.msra.mxu0 0.0
    %1387 = vmatprep.subr.mxu0 0.0
    %1388 = vmatpush1.xpose.msra.mxu0 %v1355
    %1389 = vmatprep.subr.mxu0 0.0
    %1390 = vmatpush2.xpose.msra.mxu0 0.0
    %1391 = vmatprep.subr.mxu0 0.0
    %1392 = vmatpush2.xpose.msra.mxu0 0.0
    %1393 = vmatprep.subr.mxu0 0.0
    %1394 = vmatpush2.xpose.msra.mxu0 0.0
    %1395 = vmatprep.subr.mxu0 0.0
    %1396 = vmatpush2.xpose.msra.mxu0 0.0
    %1397 = vmatprep.subr.mxu0 0.0
    %1398 = vmatpush2.xpose.msra.mxu0 0.0
    %1399 = vmatprep.subr.mxu0 0.0
    %1400 = vmatpush2.xpose.msra.mxu0 0.0
    %1401 = vmatprep.subr.mxu0 0.0
    %1402 = vmatpush2.xpose.msra.mxu0 0.0
    %1403 = vmatprep.subr.mxu0 0.0
    %1404 = vmatpush2.xpose.msra.mxu0 0.0
    %1405 = vmatprep.subr.mxu0 0.0
    %1406 = vmatpush2.xpose.msra.mxu0 0.0
    %1407 = vmatprep.subr.mxu0 0.0
    %1408 = vmatpush2.xpose.msra.mxu0 0.0
    %1409 = vmatprep.subr.mxu0 0.0
    %1410 = vmatpush2.xpose.msra.mxu0 0.0
    %1411 = vmatprep.subr.mxu0 0.0
    %1412 = vmatpush2.xpose.msra.mxu0 0.0
    %1413 = vmatprep.subr.mxu0 0.0
    %1414 = vmatpush2.xpose.msra.mxu0 0.0
    %1415 = vmatprep.subr.mxu0 0.0
    %1416 = vmatpush2.xpose.msra.mxu0 0.0
    %1417 = vmatprep.subr.mxu0 0.0
    %1418 = vmatpush2.xpose.msra.mxu0 0.0
    %1419 = vmatprep.subr.mxu0 0.0
    %1420 = vmatpush2.xpose.msra.mxu0 0.0
    %1421 = vmatprep.mubr.f32.mxu0 0.0
    %1422 = vmatmul.mubr.f32.gmra.mxu0 %v1352
    %v1423 = vpop.f32.mrf.mxu0
    %v1424 = vadd.f32 0.0, %v1423
    %v1425 = vpop.f32.mrf.mxu0
    %1426 = vdwg.mxu0
    %v1428 = vsel %vm1046, %v771, 0
    %v1431 = vsel %vm1046, %v907, 0
    %1433 = vmatprep.subr.mxu0 0.0
    %1434 = vmatpush1.xpose.msra.mxu0 0.0
    %1435 = vmatprep.subr.mxu0 0.0
    %1436 = vmatpush1.xpose.msra.mxu0 0.0
    %1437 = vmatprep.subr.mxu0 0.0
    %1438 = vmatpush1.xpose.msra.mxu0 0.0
    %1439 = vmatprep.subr.mxu0 0.0
    %1440 = vmatpush1.xpose.msra.mxu0 0.0
    %1441 = vmatprep.subr.mxu0 0.0
    %1442 = vmatpush1.xpose.msra.mxu0 0.0
    %1443 = vmatprep.subr.mxu0 0.0
    %1444 = vmatpush1.xpose.msra.mxu0 0.0
    %1445 = vmatprep.subr.mxu0 0.0
    %1446 = vmatpush1.xpose.msra.mxu0 0.0
    %1447 = vmatprep.subr.mxu0 0.0
    %1448 = vmatpush1.xpose.msra.mxu0 0.0
    %1449 = vmatprep.subr.mxu0 0.0
    %1450 = vmatpush1.xpose.msra.mxu0 0.0
    %1451 = vmatprep.subr.mxu0 0.0
    %1452 = vmatpush1.xpose.msra.mxu0 0.0
    %1453 = vmatprep.subr.mxu0 0.0
    %1454 = vmatpush1.xpose.msra.mxu0 0.0
    %1455 = vmatprep.subr.mxu0 0.0
    %1456 = vmatpush1.xpose.msra.mxu0 0.0
    %1457 = vmatprep.subr.mxu0 0.0
    %1458 = vmatpush1.xpose.msra.mxu0 0.0
    %1459 = vmatprep.subr.mxu0 0.0
    %1460 = vmatpush1.xpose.msra.mxu0 0.0
    %1461 = vmatprep.subr.mxu0 0.0
    %1462 = vmatpush1.xpose.msra.mxu0 0.0
    %1463 = vmatprep.subr.mxu0 0.0
    %1464 = vmatpush1.xpose.msra.mxu0 %v1431
    %1465 = vmatprep.subr.mxu0 0.0
    %1466 = vmatpush2.xpose.msra.mxu0 0.0
    %1467 = vmatprep.subr.mxu0 0.0
    %1468 = vmatpush2.xpose.msra.mxu0 0.0
    %1469 = vmatprep.subr.mxu0 0.0
    %1470 = vmatpush2.xpose.msra.mxu0 0.0
    %1471 = vmatprep.subr.mxu0 0.0
    %1472 = vmatpush2.xpose.msra.mxu0 0.0
    %1473 = vmatprep.subr.mxu0 0.0
    %1474 = vmatpush2.xpose.msra.mxu0 0.0
    %1475 = vmatprep.subr.mxu0 0.0
    %1476 = vmatpush2.xpose.msra.mxu0 0.0
    %1477 = vmatprep.subr.mxu0 0.0
    %1478 = vmatpush2.xpose.msra.mxu0 0.0
    %1479 = vmatprep.subr.mxu0 0.0
    %1480 = vmatpush2.xpose.msra.mxu0 0.0
    %1481 = vmatprep.subr.mxu0 0.0
    %1482 = vmatpush2.xpose.msra.mxu0 0.0
    %1483 = vmatprep.subr.mxu0 0.0
    %1484 = vmatpush2.xpose.msra.mxu0 0.0
    %1485 = vmatprep.subr.mxu0 0.0
    %1486 = vmatpush2.xpose.msra.mxu0 0.0
    %1487 = vmatprep.subr.mxu0 0.0
    %1488 = vmatpush2.xpose.msra.mxu0 0.0
    %1489 = vmatprep.subr.mxu0 0.0
    %1490 = vmatpush2.xpose.msra.mxu0 0.0
    %1491 = vmatprep.subr.mxu0 0.0
    %1492 = vmatpush2.xpose.msra.mxu0 0.0
    %1493 = vmatprep.subr.mxu0 0.0
    %1494 = vmatpush2.xpose.msra.mxu0 0.0
    %1495 = vmatprep.subr.mxu0 0.0
    %1496 = vmatpush2.xpose.msra.mxu0 0.0
    %1497 = vmatprep.mubr.f32.mxu0 0.0
    %1498 = vmatmul.mubr.f32.gmra.mxu0 %v1428
    %v1499 = vpop.f32.mrf.mxu0
    %v1500 = vadd.f32 0.0, %v1499
    %v1501 = vpop.f32.mrf.mxu0
    %1502 = vdwg.mxu0
    %v1504 = vsel %vm1046, %v772, 0
    %v1507 = vsel %vm1046, %v908, 0
    %1509 = vmatprep.subr.mxu0 0.0
    %1510 = vmatpush1.xpose.msra.mxu0 0.0
    %1511 = vmatprep.subr.mxu0 0.0
    %1512 = vmatpush1.xpose.msra.mxu0 0.0
    %1513 = vmatprep.subr.mxu0 0.0
    %1514 = vmatpush1.xpose.msra.mxu0 0.0
    %1515 = vmatprep.subr.mxu0 0.0
    %1516 = vmatpush1.xpose.msra.mxu0 0.0
    %1517 = vmatprep.subr.mxu0 0.0
    %1518 = vmatpush1.xpose.msra.mxu0 0.0
    %1519 = vmatprep.subr.mxu0 0.0
    %1520 = vmatpush1.xpose.msra.mxu0 0.0
    %1521 = vmatprep.subr.mxu0 0.0
    %1522 = vmatpush1.xpose.msra.mxu0 0.0
    %1523 = vmatprep.subr.mxu0 0.0
    %1524 = vmatpush1.xpose.msra.mxu0 0.0
    %1525 = vmatprep.subr.mxu0 0.0
    %1526 = vmatpush1.xpose.msra.mxu0 0.0
    %1527 = vmatprep.subr.mxu0 0.0
    %1528 = vmatpush1.xpose.msra.mxu0 0.0
    %1529 = vmatprep.subr.mxu0 0.0
    %1530 = vmatpush1.xpose.msra.mxu0 0.0
    %1531 = vmatprep.subr.mxu0 0.0
    %1532 = vmatpush1.xpose.msra.mxu0 0.0
    %1533 = vmatprep.subr.mxu0 0.0
    %1534 = vmatpush1.xpose.msra.mxu0 0.0
    %1535 = vmatprep.subr.mxu0 0.0
    %1536 = vmatpush1.xpose.msra.mxu0 0.0
    %1537 = vmatprep.subr.mxu0 0.0
    %1538 = vmatpush1.xpose.msra.mxu0 0.0
    %1539 = vmatprep.subr.mxu0 0.0
    %1540 = vmatpush1.xpose.msra.mxu0 %v1507
    %1541 = vmatprep.subr.mxu0 0.0
    %1542 = vmatpush2.xpose.msra.mxu0 0.0
    %1543 = vmatprep.subr.mxu0 0.0
    %1544 = vmatpush2.xpose.msra.mxu0 0.0
    %1545 = vmatprep.subr.mxu0 0.0
    %1546 = vmatpush2.xpose.msra.mxu0 0.0
    %1547 = vmatprep.subr.mxu0 0.0
    %1548 = vmatpush2.xpose.msra.mxu0 0.0
    %1549 = vmatprep.subr.mxu0 0.0
    %1550 = vmatpush2.xpose.msra.mxu0 0.0
    %1551 = vmatprep.subr.mxu0 0.0
    %1552 = vmatpush2.xpose.msra.mxu0 0.0
    %1553 = vmatprep.subr.mxu0 0.0
    %1554 = vmatpush2.xpose.msra.mxu0 0.0
    %1555 = vmatprep.subr.mxu0 0.0
    %1556 = vmatpush2.xpose.msra.mxu0 0.0
    %1557 = vmatprep.subr.mxu0 0.0
    %1558 = vmatpush2.xpose.msra.mxu0 0.0
    %1559 = vmatprep.subr.mxu0 0.0
    %1560 = vmatpush2.xpose.msra.mxu0 0.0
    %1561 = vmatprep.subr.mxu0 0.0
    %1562 = vmatpush2.xpose.msra.mxu0 0.0
    %1563 = vmatprep.subr.mxu0 0.0
    %1564 = vmatpush2.xpose.msra.mxu0 0.0
    %1565 = vmatprep.subr.mxu0 0.0
    %1566 = vmatpush2.xpose.msra.mxu0 0.0
    %1567 = vmatprep.subr.mxu0 0.0
    %1568 = vmatpush2.xpose.msra.mxu0 0.0
    %1569 = vmatprep.subr.mxu0 0.0
    %1570 = vmatpush2.xpose.msra.mxu0 0.0
    %1571 = vmatprep.subr.mxu0 0.0
    %1572 = vmatpush2.xpose.msra.mxu0 0.0
    %1573 = vmatprep.mubr.f32.mxu0 0.0
    %1574 = vmatmul.mubr.f32.gmra.mxu0 %v1504
    %v1575 = vpop.f32.mrf.mxu0
    %v1576 = vadd.f32 0.0, %v1575
    %v1577 = vpop.f32.mrf.mxu0
    %1578 = vdwg.mxu0
    %v1580 = vsel %vm1046, %v773, 0
    %v1583 = vsel %vm1046, %v909, 0
    %1585 = vmatprep.subr.mxu0 0.0
    %1586 = vmatpush1.xpose.msra.mxu0 0.0
    %1587 = vmatprep.subr.mxu0 0.0
    %1588 = vmatpush1.xpose.msra.mxu0 0.0
    %1589 = vmatprep.subr.mxu0 0.0
    %1590 = vmatpush1.xpose.msra.mxu0 0.0
    %1591 = vmatprep.subr.mxu0 0.0
    %1592 = vmatpush1.xpose.msra.mxu0 0.0
    %1593 = vmatprep.subr.mxu0 0.0
    %1594 = vmatpush1.xpose.msra.mxu0 0.0
    %1595 = vmatprep.subr.mxu0 0.0
    %1596 = vmatpush1.xpose.msra.mxu0 0.0
    %1597 = vmatprep.subr.mxu0 0.0
    %1598 = vmatpush1.xpose.msra.mxu0 0.0
    %1599 = vmatprep.subr.mxu0 0.0
    %1600 = vmatpush1.xpose.msra.mxu0 0.0
    %1601 = vmatprep.subr.mxu0 0.0
    %1602 = vmatpush1.xpose.msra.mxu0 0.0
    %1603 = vmatprep.subr.mxu0 0.0
    %1604 = vmatpush1.xpose.msra.mxu0 0.0
    %1605 = vmatprep.subr.mxu0 0.0
    %1606 = vmatpush1.xpose.msra.mxu0 0.0
    %1607 = vmatprep.subr.mxu0 0.0
    %1608 = vmatpush1.xpose.msra.mxu0 0.0
    %1609 = vmatprep.subr.mxu0 0.0
    %1610 = vmatpush1.xpose.msra.mxu0 0.0
    %1611 = vmatprep.subr.mxu0 0.0
    %1612 = vmatpush1.xpose.msra.mxu0 0.0
    %1613 = vmatprep.subr.mxu0 0.0
    %1614 = vmatpush1.xpose.msra.mxu0 0.0
    %1615 = vmatprep.subr.mxu0 0.0
    %1616 = vmatpush1.xpose.msra.mxu0 %v1583
    %1617 = vmatprep.subr.mxu0 0.0
    %1618 = vmatpush2.xpose.msra.mxu0 0.0
    %1619 = vmatprep.subr.mxu0 0.0
    %1620 = vmatpush2.xpose.msra.mxu0 0.0
    %1621 = vmatprep.subr.mxu0 0.0
    %1622 = vmatpush2.xpose.msra.mxu0 0.0
    %1623 = vmatprep.subr.mxu0 0.0
    %1624 = vmatpush2.xpose.msra.mxu0 0.0
    %1625 = vmatprep.subr.mxu0 0.0
    %1626 = vmatpush2.xpose.msra.mxu0 0.0
    %1627 = vmatprep.subr.mxu0 0.0
    %1628 = vmatpush2.xpose.msra.mxu0 0.0
    %1629 = vmatprep.subr.mxu0 0.0
    %1630 = vmatpush2.xpose.msra.mxu0 0.0
    %1631 = vmatprep.subr.mxu0 0.0
    %1632 = vmatpush2.xpose.msra.mxu0 0.0
    %1633 = vmatprep.subr.mxu0 0.0
    %1634 = vmatpush2.xpose.msra.mxu0 0.0
    %1635 = vmatprep.subr.mxu0 0.0
    %1636 = vmatpush2.xpose.msra.mxu0 0.0
    %1637 = vmatprep.subr.mxu0 0.0
    %1638 = vmatpush2.xpose.msra.mxu0 0.0
    %1639 = vmatprep.subr.mxu0 0.0
    %1640 = vmatpush2.xpose.msra.mxu0 0.0
    %1641 = vmatprep.subr.mxu0 0.0
    %1642 = vmatpush2.xpose.msra.mxu0 0.0
    %1643 = vmatprep.subr.mxu0 0.0
    %1644 = vmatpush2.xpose.msra.mxu0 0.0
    %1645 = vmatprep.subr.mxu0 0.0
    %1646 = vmatpush2.xpose.msra.mxu0 0.0
    %1647 = vmatprep.subr.mxu0 0.0
    %1648 = vmatpush2.xpose.msra.mxu0 0.0
    %1649 = vmatprep.mubr.f32.mxu0 0.0
    %1650 = vmatmul.mubr.f32.gmra.mxu0 %v1580
    %v1651 = vpop.f32.mrf.mxu0
    %v1652 = vadd.f32 0.0, %v1651
    %v1653 = vpop.f32.mrf.mxu0
    %1654 = vdwg.mxu0
    %vm1655 = vcmask 64512
    %v1656 = vsel %vm1655, %v1120, -inf
    %1657 = vmax.xlane.f32.xlu0 %v1656
    %v1658 = vpop.xlane.xlu0 %1657
    %v1659 = vsel %vm1655, %v1196, -inf
    %1660 = vmax.xlane.f32.xlu0 %v1659
    %v1661 = vpop.xlane.xlu0 %1660
    %v1662 = vsel %vm1655, %v1272, -inf
    %1663 = vmax.xlane.f32.xlu0 %v1662
    %v1664 = vpop.xlane.xlu0 %1663
    %v1665 = vsel %vm1655, %v1348, -inf
    %1666 = vmax.xlane.f32.xlu0 %v1665
    %v1667 = vpop.xlane.xlu0 %1666
    %v1668 = vsel %vm1655, %v1424, -inf
    %1669 = vmax.xlane.f32.xlu0 %v1668
    %v1670 = vpop.xlane.xlu0 %1669
    %v1671 = vsel %vm1655, %v1500, -inf
    %1672 = vmax.xlane.f32.xlu0 %v1671
    %v1673 = vpop.xlane.xlu0 %1672
    %v1674 = vsel %vm1655, %v1576, -inf
    %1675 = vmax.xlane.f32.xlu0 %v1674
    %v1676 = vpop.xlane.xlu0 %1675
    %v1677 = vsel %vm1655, %v1652, -inf
    %1678 = vmax.xlane.f32.xlu0 %v1677
    %v1679 = vpop.xlane.xlu0 %1678
    %v1680 = vsub.f32 %v1120, %v1658
    %v1681 = vsub.f32 %v1196, %v1661
    %v1682 = vsub.f32 %v1272, %v1664
    %v1683 = vsub.f32 %v1348, %v1667
    %v1684 = vsub.f32 %v1424, %v1670
    %v1685 = vsub.f32 %v1500, %v1673
    %v1686 = vsub.f32 %v1576, %v1676
    %v1687 = vsub.f32 %v1652, %v1679
    %v1688 = vmul.f32 %v1680, 1.442695
    %v1689 = vpow.pop %v1688
    %v1690 = vmul.f32 %v1681, 1.442695
    %v1691 = vpow.pop %v1690
    %v1692 = vmul.f32 %v1682, 1.442695
    %v1693 = vpow.pop %v1692
    %v1694 = vmul.f32 %v1683, 1.442695
    %v1695 = vpow.pop %v1694
    %v1696 = vmul.f32 %v1684, 1.442695
    %v1697 = vpow.pop %v1696
    %v1698 = vmul.f32 %v1685, 1.442695
    %v1699 = vpow.pop %v1698
    %v1700 = vmul.f32 %v1686, 1.442695
    %v1701 = vpow.pop %v1700
    %v1702 = vmul.f32 %v1687, 1.442695
    %v1703 = vpow.pop %v1702
    %v1704 = vsel %vm1655, %v1689, 0.0
    %1705 = vadd.xlane.f32.xlu0 %v1704
    %v1706 = vpop.xlane.xlu0 %1705
    %v1707 = vsel %vm1655, %v1691, 0.0
    %1708 = vadd.xlane.f32.xlu0 %v1707
    %v1709 = vpop.xlane.xlu0 %1708
    %v1710 = vsel %vm1655, %v1693, 0.0
    %1711 = vadd.xlane.f32.xlu0 %v1710
    %v1712 = vpop.xlane.xlu0 %1711
    %v1713 = vsel %vm1655, %v1695, 0.0
    %1714 = vadd.xlane.f32.xlu0 %v1713
    %v1715 = vpop.xlane.xlu0 %1714
    %v1716 = vsel %vm1655, %v1697, 0.0
    %1717 = vadd.xlane.f32.xlu0 %v1716
    %v1718 = vpop.xlane.xlu0 %1717
    %v1719 = vsel %vm1655, %v1699, 0.0
    %1720 = vadd.xlane.f32.xlu0 %v1719
    %v1721 = vpop.xlane.xlu0 %1720
    %v1722 = vsel %vm1655, %v1701, 0.0
    %1723 = vadd.xlane.f32.xlu0 %v1722
    %v1724 = vpop.xlane.xlu0 %1723
    %v1725 = vsel %vm1655, %v1703, 0.0
    %1726 = vadd.xlane.f32.xlu0 %v1725
    %v1727 = vpop.xlane.xlu0 %1726
    %v1728 = vrcp.pop %v1706
    %v1729 = vrcp.pop %v1709
    %v1730 = vrcp.pop %v1712
    %v1731 = vrcp.pop %v1715
    %v1732 = vrcp.pop %v1718
    %v1733 = vrcp.pop %v1721
    %v1734 = vrcp.pop %v1724
    %v1735 = vrcp.pop %v1727
    %v1736 = vmul.f32 %v1689, %v1728
    %v1737 = vmul.f32 %v1691, %v1729
    %v1738 = vmul.f32 %v1693, %v1730
    %v1739 = vmul.f32 %v1695, %v1731
    %v1740 = vmul.f32 %v1697, %v1732
    %v1741 = vmul.f32 %v1699, %v1733
    %v1742 = vmul.f32 %v1701, %v1734
    %v1743 = vmul.f32 %v1703, %v1735
    %v1745 = vsel %vm1655, %v1736, 0
    %1747 = vmatprep.subr.mxu0 0.0
    %1748 = vmatpush1.msra.mxu0 0.0
    %1749 = vmatprep.subr.mxu0 0.0
    %1750 = vmatpush1.msra.mxu0 0.0
    %1751 = vmatprep.subr.mxu0 0.0
    %1752 = vmatpush1.msra.mxu0 0.0
    %1753 = vmatprep.subr.mxu0 0.0
    %1754 = vmatpush1.msra.mxu0 0.0
    %1755 = vmatprep.subr.mxu0 0.0
    %1756 = vmatpush1.msra.mxu0 0.0
    %1757 = vmatprep.subr.mxu0 0.0
    %1758 = vmatpush1.msra.mxu0 0.0
    %1759 = vmatprep.subr.mxu0 0.0
    %1760 = vmatpush1.msra.mxu0 0.0
    %1761 = vmatprep.subr.mxu0 0.0
    %1762 = vmatpush1.msra.mxu0 0.0
    %1763 = vmatprep.subr.mxu0 0.0
    %1764 = vmatpush1.msra.mxu0 0.0
    %1765 = vmatprep.subr.mxu0 0.0
    %1766 = vmatpush1.msra.mxu0 0.0
    %1767 = vmatprep.subr.mxu0 0.0
    %1768 = vmatpush1.msra.mxu0 0.0
    %1769 = vmatprep.subr.mxu0 0.0
    %1770 = vmatpush1.msra.mxu0 0.0
    %1771 = vmatprep.subr.mxu0 0.0
    %1772 = vmatpush1.msra.mxu0 0.0
    %1773 = vmatprep.subr.mxu0 0.0
    %1774 = vmatpush1.msra.mxu0 0.0
    %1775 = vmatprep.subr.mxu0 0.0
    %1776 = vmatpush1.msra.mxu0 0.0
    %1777 = vmatprep.subr.mxu0 0.0
    %1778 = vmatpush1.msra.mxu0 %v1038
    %1779 = vmatprep.subr.mxu0 0.0
    %1780 = vmatpush2.msra.mxu0 0.0
    %1781 = vmatprep.subr.mxu0 0.0
    %1782 = vmatpush2.msra.mxu0 0.0
    %1783 = vmatprep.subr.mxu0 0.0
    %1784 = vmatpush2.msra.mxu0 0.0
    %1785 = vmatprep.subr.mxu0 0.0
    %1786 = vmatpush2.msra.mxu0 0.0
    %1787 = vmatprep.subr.mxu0 0.0
    %1788 = vmatpush2.msra.mxu0 0.0
    %1789 = vmatprep.subr.mxu0 0.0
    %1790 = vmatpush2.msra.mxu0 0.0
    %1791 = vmatprep.subr.mxu0 0.0
    %1792 = vmatpush2.msra.mxu0 0.0
    %1793 = vmatprep.subr.mxu0 0.0
    %1794 = vmatpush2.msra.mxu0 0.0
    %1795 = vmatprep.subr.mxu0 0.0
    %1796 = vmatpush2.msra.mxu0 0.0
    %1797 = vmatprep.subr.mxu0 0.0
    %1798 = vmatpush2.msra.mxu0 0.0
    %1799 = vmatprep.subr.mxu0 0.0
    %1800 = vmatpush2.msra.mxu0 0.0
    %1801 = vmatprep.subr.mxu0 0.0
    %1802 = vmatpush2.msra.mxu0 0.0
    %1803 = vmatprep.subr.mxu0 0.0
    %1804 = vmatpush2.msra.mxu0 0.0
    %1805 = vmatprep.subr.mxu0 0.0
    %1806 = vmatpush2.msra.mxu0 0.0
    %1807 = vmatprep.subr.mxu0 0.0
    %1808 = vmatpush2.msra.mxu0 0.0
    %1809 = vmatprep.subr.mxu0 0.0
    %1810 = vmatpush2.msra.mxu0 0.0
    %1811 = vmatprep.mubr.f32.mxu0 0.0
    %1812 = vmatmul.mubr.f32.gmra.mxu0 %v1745
    %v1813 = vpop.f32.mrf.mxu0
    %v1814 = vadd.f32 0.0, %v1813
    %v1815 = vpop.f32.mrf.mxu0
    %1816 = vdwg.mxu0
    %v1818 = vsel %vm1655, %v1737, 0
    %1820 = vmatprep.subr.mxu0 0.0
    %1821 = vmatpush1.msra.mxu0 0.0
    %1822 = vmatprep.subr.mxu0 0.0
    %1823 = vmatpush1.msra.mxu0 0.0
    %1824 = vmatprep.subr.mxu0 0.0
    %1825 = vmatpush1.msra.mxu0 0.0
    %1826 = vmatprep.subr.mxu0 0.0
    %1827 = vmatpush1.msra.mxu0 0.0
    %1828 = vmatprep.subr.mxu0 0.0
    %1829 = vmatpush1.msra.mxu0 0.0
    %1830 = vmatprep.subr.mxu0 0.0
    %1831 = vmatpush1.msra.mxu0 0.0
    %1832 = vmatprep.subr.mxu0 0.0
    %1833 = vmatpush1.msra.mxu0 0.0
    %1834 = vmatprep.subr.mxu0 0.0
    %1835 = vmatpush1.msra.mxu0 0.0
    %1836 = vmatprep.subr.mxu0 0.0
    %1837 = vmatpush1.msra.mxu0 0.0
    %1838 = vmatprep.subr.mxu0 0.0
    %1839 = vmatpush1.msra.mxu0 0.0
    %1840 = vmatprep.subr.mxu0 0.0
    %1841 = vmatpush1.msra.mxu0 0.0
    %1842 = vmatprep.subr.mxu0 0.0
    %1843 = vmatpush1.msra.mxu0 0.0
    %1844 = vmatprep.subr.mxu0 0.0
    %1845 = vmatpush1.msra.mxu0 0.0
    %1846 = vmatprep.subr.mxu0 0.0
    %1847 = vmatpush1.msra.mxu0 0.0
    %1848 = vmatprep.subr.mxu0 0.0
    %1849 = vmatpush1.msra.mxu0 0.0
    %1850 = vmatprep.subr.mxu0 0.0
    %1851 = vmatpush1.msra.mxu0 %v1039
    %1852 = vmatprep.subr.mxu0 0.0
    %1853 = vmatpush2.msra.mxu0 0.0
    %1854 = vmatprep.subr.mxu0 0.0
    %1855 = vmatpush2.msra.mxu0 0.0
    %1856 = vmatprep.subr.mxu0 0.0
    %1857 = vmatpush2.msra.mxu0 0.0
    %1858 = vmatprep.subr.mxu0 0.0
    %1859 = vmatpush2.msra.mxu0 0.0
    %1860 = vmatprep.subr.mxu0 0.0
    %1861 = vmatpush2.msra.mxu0 0.0
    %1862 = vmatprep.subr.mxu0 0.0
    %1863 = vmatpush2.msra.mxu0 0.0
    %1864 = vmatprep.subr.mxu0 0.0
    %1865 = vmatpush2.msra.mxu0 0.0
    %1866 = vmatprep.subr.mxu0 0.0
    %1867 = vmatpush2.msra.mxu0 0.0
    %1868 = vmatprep.subr.mxu0 0.0
    %1869 = vmatpush2.msra.mxu0 0.0
    %1870 = vmatprep.subr.mxu0 0.0
    %1871 = vmatpush2.msra.mxu0 0.0
    %1872 = vmatprep.subr.mxu0 0.0
    %1873 = vmatpush2.msra.mxu0 0.0
    %1874 = vmatprep.subr.mxu0 0.0
    %1875 = vmatpush2.msra.mxu0 0.0
    %1876 = vmatprep.subr.mxu0 0.0
    %1877 = vmatpush2.msra.mxu0 0.0
    %1878 = vmatprep.subr.mxu0 0.0
    %1879 = vmatpush2.msra.mxu0 0.0
    %1880 = vmatprep.subr.mxu0 0.0
    %1881 = vmatpush2.msra.mxu0 0.0
    %1882 = vmatprep.subr.mxu0 0.0
    %1883 = vmatpush2.msra.mxu0 0.0
    %1884 = vmatprep.mubr.f32.mxu0 0.0
    %1885 = vmatmul.mubr.f32.gmra.mxu0 %v1818
    %v1886 = vpop.f32.mrf.mxu0
    %v1887 = vadd.f32 0.0, %v1886
    %v1888 = vpop.f32.mrf.mxu0
    %1889 = vdwg.mxu0
    %v1891 = vsel %vm1655, %v1738, 0
    %1893 = vmatprep.subr.mxu0 0.0
    %1894 = vmatpush1.msra.mxu0 0.0
    %1895 = vmatprep.subr.mxu0 0.0
    %1896 = vmatpush1.msra.mxu0 0.0
    %1897 = vmatprep.subr.mxu0 0.0
    %1898 = vmatpush1.msra.mxu0 0.0
    %1899 = vmatprep.subr.mxu0 0.0
    %1900 = vmatpush1.msra.mxu0 0.0
    %1901 = vmatprep.subr.mxu0 0.0
    %1902 = vmatpush1.msra.mxu0 0.0
    %1903 = vmatprep.subr.mxu0 0.0
    %1904 = vmatpush1.msra.mxu0 0.0
    %1905 = vmatprep.subr.mxu0 0.0
    %1906 = vmatpush1.msra.mxu0 0.0
    %1907 = vmatprep.subr.mxu0 0.0
    %1908 = vmatpush1.msra.mxu0 0.0
    %1909 = vmatprep.subr.mxu0 0.0
    %1910 = vmatpush1.msra.mxu0 0.0
    %1911 = vmatprep.subr.mxu0 0.0
    %1912 = vmatpush1.msra.mxu0 0.0
    %1913 = vmatprep.subr.mxu0 0.0
    %1914 = vmatpush1.msra.mxu0 0.0
    %1915 = vmatprep.subr.mxu0 0.0
    %1916 = vmatpush1.msra.mxu0 0.0
    %1917 = vmatprep.subr.mxu0 0.0
    %1918 = vmatpush1.msra.mxu0 0.0
    %1919 = vmatprep.subr.mxu0 0.0
    %1920 = vmatpush1.msra.mxu0 0.0
    %1921 = vmatprep.subr.mxu0 0.0
    %1922 = vmatpush1.msra.mxu0 0.0
    %1923 = vmatprep.subr.mxu0 0.0
    %1924 = vmatpush1.msra.mxu0 %v1040
    %1925 = vmatprep.subr.mxu0 0.0
    %1926 = vmatpush2.msra.mxu0 0.0
    %1927 = vmatprep.subr.mxu0 0.0
    %1928 = vmatpush2.msra.mxu0 0.0
    %1929 = vmatprep.subr.mxu0 0.0
    %1930 = vmatpush2.msra.mxu0 0.0
    %1931 = vmatprep.subr.mxu0 0.0
    %1932 = vmatpush2.msra.mxu0 0.0
    %1933 = vmatprep.subr.mxu0 0.0
    %1934 = vmatpush2.msra.mxu0 0.0
    %1935 = vmatprep.subr.mxu0 0.0
    %1936 = vmatpush2.msra.mxu0 0.0
    %1937 = vmatprep.subr.mxu0 0.0
    %1938 = vmatpush2.msra.mxu0 0.0
    %1939 = vmatprep.subr.mxu0 0.0
    %1940 = vmatpush2.msra.mxu0 0.0
    %1941 = vmatprep.subr.mxu0 0.0
    %1942 = vmatpush2.msra.mxu0 0.0
    %1943 = vmatprep.subr.mxu0 0.0
    %1944 = vmatpush2.msra.mxu0 0.0
    %1945 = vmatprep.subr.mxu0 0.0
    %1946 = vmatpush2.msra.mxu0 0.0
    %1947 = vmatprep.subr.mxu0 0.0
    %1948 = vmatpush2.msra.mxu0 0.0
    %1949 = vmatprep.subr.mxu0 0.0
    %1950 = vmatpush2.msra.mxu0 0.0
    %1951 = vmatprep.subr.mxu0 0.0
    %1952 = vmatpush2.msra.mxu0 0.0
    %1953 = vmatprep.subr.mxu0 0.0
    %1954 = vmatpush2.msra.mxu0 0.0
    %1955 = vmatprep.subr.mxu0 0.0
    %1956 = vmatpush2.msra.mxu0 0.0
    %1957 = vmatprep.mubr.f32.mxu0 0.0
    %1958 = vmatmul.mubr.f32.gmra.mxu0 %v1891
    %v1959 = vpop.f32.mrf.mxu0
    %v1960 = vadd.f32 0.0, %v1959
    %v1961 = vpop.f32.mrf.mxu0
    %1962 = vdwg.mxu0
    %v1964 = vsel %vm1655, %v1739, 0
    %1966 = vmatprep.subr.mxu0 0.0
    %1967 = vmatpush1.msra.mxu0 0.0
    %1968 = vmatprep.subr.mxu0 0.0
    %1969 = vmatpush1.msra.mxu0 0.0
    %1970 = vmatprep.subr.mxu0 0.0
    %1971 = vmatpush1.msra.mxu0 0.0
    %1972 = vmatprep.subr.mxu0 0.0
    %1973 = vmatpush1.msra.mxu0 0.0
    %1974 = vmatprep.subr.mxu0 0.0
    %1975 = vmatpush1.msra.mxu0 0.0
    %1976 = vmatprep.subr.mxu0 0.0
    %1977 = vmatpush1.msra.mxu0 0.0
    %1978 = vmatprep.subr.mxu0 0.0
    %1979 = vmatpush1.msra.mxu0 0.0
    %1980 = vmatprep.subr.mxu0 0.0
    %1981 = vmatpush1.msra.mxu0 0.0
    %1982 = vmatprep.subr.mxu0 0.0
    %1983 = vmatpush1.msra.mxu0 0.0
    %1984 = vmatprep.subr.mxu0 0.0
    %1985 = vmatpush1.msra.mxu0 0.0
    %1986 = vmatprep.subr.mxu0 0.0
    %1987 = vmatpush1.msra.mxu0 0.0
    %1988 = vmatprep.subr.mxu0 0.0
    %1989 = vmatpush1.msra.mxu0 0.0
    %1990 = vmatprep.subr.mxu0 0.0
    %1991 = vmatpush1.msra.mxu0 0.0
    %1992 = vmatprep.subr.mxu0 0.0
    %1993 = vmatpush1.msra.mxu0 0.0
    %1994 = vmatprep.subr.mxu0 0.0
    %1995 = vmatpush1.msra.mxu0 0.0
    %1996 = vmatprep.subr.mxu0 0.0
    %1997 = vmatpush1.msra.mxu0 %v1041
    %1998 = vmatprep.subr.mxu0 0.0
    %1999 = vmatpush2.msra.mxu0 0.0
    %2000 = vmatprep.subr.mxu0 0.0
    %2001 = vmatpush2.msra.mxu0 0.0
    %2002 = vmatprep.subr.mxu0 0.0
    %2003 = vmatpush2.msra.mxu0 0.0
    %2004 = vmatprep.subr.mxu0 0.0
    %2005 = vmatpush2.msra.mxu0 0.0
    %2006 = vmatprep.subr.mxu0 0.0
    %2007 = vmatpush2.msra.mxu0 0.0
    %2008 = vmatprep.subr.mxu0 0.0
    %2009 = vmatpush2.msra.mxu0 0.0
    %2010 = vmatprep.subr.mxu0 0.0
    %2011 = vmatpush2.msra.mxu0 0.0
    %2012 = vmatprep.subr.mxu0 0.0
    %2013 = vmatpush2.msra.mxu0 0.0
    %2014 = vmatprep.subr.mxu0 0.0
    %2015 = vmatpush2.msra.mxu0 0.0
    %2016 = vmatprep.subr.mxu0 0.0
    %2017 = vmatpush2.msra.mxu0 0.0
    %2018 = vmatprep.subr.mxu0 0.0
    %2019 = vmatpush2.msra.mxu0 0.0
    %2020 = vmatprep.subr.mxu0 0.0
    %2021 = vmatpush2.msra.mxu0 0.0
    %2022 = vmatprep.subr.mxu0 0.0
    %2023 = vmatpush2.msra.mxu0 0.0
    %2024 = vmatprep.subr.mxu0 0.0
    %2025 = vmatpush2.msra.mxu0 0.0
    %2026 = vmatprep.subr.mxu0 0.0
    %2027 = vmatpush2.msra.mxu0 0.0
    %2028 = vmatprep.subr.mxu0 0.0
    %2029 = vmatpush2.msra.mxu0 0.0
    %2030 = vmatprep.mubr.f32.mxu0 0.0
    %2031 = vmatmul.mubr.f32.gmra.mxu0 %v1964
    %v2032 = vpop.f32.mrf.mxu0
    %v2033 = vadd.f32 0.0, %v2032
    %v2034 = vpop.f32.mrf.mxu0
    %2035 = vdwg.mxu0
    %v2037 = vsel %vm1655, %v1740, 0
    %2039 = vmatprep.subr.mxu0 0.0
    %2040 = vmatpush1.msra.mxu0 0.0
    %2041 = vmatprep.subr.mxu0 0.0
    %2042 = vmatpush1.msra.mxu0 0.0
    %2043 = vmatprep.subr.mxu0 0.0
    %2044 = vmatpush1.msra.mxu0 0.0
    %2045 = vmatprep.subr.mxu0 0.0
    %2046 = vmatpush1.msra.mxu0 0.0
    %2047 = vmatprep.subr.mxu0 0.0
    %2048 = vmatpush1.msra.mxu0 0.0
    %2049 = vmatprep.subr.mxu0 0.0
    %2050 = vmatpush1.msra.mxu0 0.0
    %2051 = vmatprep.subr.mxu0 0.0
    %2052 = vmatpush1.msra.mxu0 0.0
    %2053 = vmatprep.subr.mxu0 0.0
    %2054 = vmatpush1.msra.mxu0 0.0
    %2055 = vmatprep.subr.mxu0 0.0
    %2056 = vmatpush1.msra.mxu0 0.0
    %2057 = vmatprep.subr.mxu0 0.0
    %2058 = vmatpush1.msra.mxu0 0.0
    %2059 = vmatprep.subr.mxu0 0.0
    %2060 = vmatpush1.msra.mxu0 0.0
    %2061 = vmatprep.subr.mxu0 0.0
    %2062 = vmatpush1.msra.mxu0 0.0
    %2063 = vmatprep.subr.mxu0 0.0
    %2064 = vmatpush1.msra.mxu0 0.0
    %2065 = vmatprep.subr.mxu0 0.0
    %2066 = vmatpush1.msra.mxu0 0.0
    %2067 = vmatprep.subr.mxu0 0.0
    %2068 = vmatpush1.msra.mxu0 0.0
    %2069 = vmatprep.subr.mxu0 0.0
    %2070 = vmatpush1.msra.mxu0 %v1042
    %2071 = vmatprep.subr.mxu0 0.0
    %2072 = vmatpush2.msra.mxu0 0.0
    %2073 = vmatprep.subr.mxu0 0.0
    %2074 = vmatpush2.msra.mxu0 0.0
    %2075 = vmatprep.subr.mxu0 0.0
    %2076 = vmatpush2.msra.mxu0 0.0
    %2077 = vmatprep.subr.mxu0 0.0
    %2078 = vmatpush2.msra.mxu0 0.0
    %2079 = vmatprep.subr.mxu0 0.0
    %2080 = vmatpush2.msra.mxu0 0.0
    %2081 = vmatprep.subr.mxu0 0.0
    %2082 = vmatpush2.msra.mxu0 0.0
    %2083 = vmatprep.subr.mxu0 0.0
    %2084 = vmatpush2.msra.mxu0 0.0
    %2085 = vmatprep.subr.mxu0 0.0
    %2086 = vmatpush2.msra.mxu0 0.0
    %2087 = vmatprep.subr.mxu0 0.0
    %2088 = vmatpush2.msra.mxu0 0.0
    %2089 = vmatprep.subr.mxu0 0.0
    %2090 = vmatpush2.msra.mxu0 0.0
    %2091 = vmatprep.subr.mxu0 0.0
    %2092 = vmatpush2.msra.mxu0 0.0
    %2093 = vmatprep.subr.mxu0 0.0
    %2094 = vmatpush2.msra.mxu0 0.0
    %2095 = vmatprep.subr.mxu0 0.0
    %2096 = vmatpush2.msra.mxu0 0.0
    %2097 = vmatprep.subr.mxu0 0.0
    %2098 = vmatpush2.msra.mxu0 0.0
    %2099 = vmatprep.subr.mxu0 0.0
    %2100 = vmatpush2.msra.mxu0 0.0
    %2101 = vmatprep.subr.mxu0 0.0
    %2102 = vmatpush2.msra.mxu0 0.0
    %2103 = vmatprep.mubr.f32.mxu0 0.0
    %2104 = vmatmul.mubr.f32.gmra.mxu0 %v2037
    %v2105 = vpop.f32.mrf.mxu0
    %v2106 = vadd.f32 0.0, %v2105
    %v2107 = vpop.f32.mrf.mxu0
    %2108 = vdwg.mxu0
    %v2110 = vsel %vm1655, %v1741, 0
    %2112 = vmatprep.subr.mxu0 0.0
    %2113 = vmatpush1.msra.mxu0 0.0
    %2114 = vmatprep.subr.mxu0 0.0
    %2115 = vmatpush1.msra.mxu0 0.0
    %2116 = vmatprep.subr.mxu0 0.0
    %2117 = vmatpush1.msra.mxu0 0.0
    %2118 = vmatprep.subr.mxu0 0.0
    %2119 = vmatpush1.msra.mxu0 0.0
    %2120 = vmatprep.subr.mxu0 0.0
    %2121 = vmatpush1.msra.mxu0 0.0
    %2122 = vmatprep.subr.mxu0 0.0
    %2123 = vmatpush1.msra.mxu0 0.0
    %2124 = vmatprep.subr.mxu0 0.0
    %2125 = vmatpush1.msra.mxu0 0.0
    %2126 = vmatprep.subr.mxu0 0.0
    %2127 = vmatpush1.msra.mxu0 0.0
    %2128 = vmatprep.subr.mxu0 0.0
    %2129 = vmatpush1.msra.mxu0 0.0
    %2130 = vmatprep.subr.mxu0 0.0
    %2131 = vmatpush1.msra.mxu0 0.0
    %2132 = vmatprep.subr.mxu0 0.0
    %2133 = vmatpush1.msra.mxu0 0.0
    %2134 = vmatprep.subr.mxu0 0.0
    %2135 = vmatpush1.msra.mxu0 0.0
    %2136 = vmatprep.subr.mxu0 0.0
    %2137 = vmatpush1.msra.mxu0 0.0
    %2138 = vmatprep.subr.mxu0 0.0
    %2139 = vmatpush1.msra.mxu0 0.0
    %2140 = vmatprep.subr.mxu0 0.0
    %2141 = vmatpush1.msra.mxu0 0.0
    %2142 = vmatprep.subr.mxu0 0.0
    %2143 = vmatpush1.msra.mxu0 %v1043
    %2144 = vmatprep.subr.mxu0 0.0
    %2145 = vmatpush2.msra.mxu0 0.0
    %2146 = vmatprep.subr.mxu0 0.0
    %2147 = vmatpush2.msra.mxu0 0.0
    %2148 = vmatprep.subr.mxu0 0.0
    %2149 = vmatpush2.msra.mxu0 0.0
    %2150 = vmatprep.subr.mxu0 0.0
    %2151 = vmatpush2.msra.mxu0 0.0
    %2152 = vmatprep.subr.mxu0 0.0
    %2153 = vmatpush2.msra.mxu0 0.0
    %2154 = vmatprep.subr.mxu0 0.0
    %2155 = vmatpush2.msra.mxu0 0.0
    %2156 = vmatprep.subr.mxu0 0.0
    %2157 = vmatpush2.msra.mxu0 0.0
    %2158 = vmatprep.subr.mxu0 0.0
    %2159 = vmatpush2.msra.mxu0 0.0
    %2160 = vmatprep.subr.mxu0 0.0
    %2161 = vmatpush2.msra.mxu0 0.0
    %2162 = vmatprep.subr.mxu0 0.0
    %2163 = vmatpush2.msra.mxu0 0.0
    %2164 = vmatprep.subr.mxu0 0.0
    %2165 = vmatpush2.msra.mxu0 0.0
    %2166 = vmatprep.subr.mxu0 0.0
    %2167 = vmatpush2.msra.mxu0 0.0
    %2168 = vmatprep.subr.mxu0 0.0
    %2169 = vmatpush2.msra.mxu0 0.0
    %2170 = vmatprep.subr.mxu0 0.0
    %2171 = vmatpush2.msra.mxu0 0.0
    %2172 = vmatprep.subr.mxu0 0.0
    %2173 = vmatpush2.msra.mxu0 0.0
    %2174 = vmatprep.subr.mxu0 0.0
    %2175 = vmatpush2.msra.mxu0 0.0
    %2176 = vmatprep.mubr.f32.mxu0 0.0
    %2177 = vmatmul.mubr.f32.gmra.mxu0 %v2110
    %v2178 = vpop.f32.mrf.mxu0
    %v2179 = vadd.f32 0.0, %v2178
    %v2180 = vpop.f32.mrf.mxu0
    %2181 = vdwg.mxu0
    %v2183 = vsel %vm1655, %v1742, 0
    %2185 = vmatprep.subr.mxu0 0.0
    %2186 = vmatpush1.msra.mxu0 0.0
    %2187 = vmatprep.subr.mxu0 0.0
    %2188 = vmatpush1.msra.mxu0 0.0
    %2189 = vmatprep.subr.mxu0 0.0
    %2190 = vmatpush1.msra.mxu0 0.0
    %2191 = vmatprep.subr.mxu0 0.0
    %2192 = vmatpush1.msra.mxu0 0.0
    %2193 = vmatprep.subr.mxu0 0.0
    %2194 = vmatpush1.msra.mxu0 0.0
    %2195 = vmatprep.subr.mxu0 0.0
    %2196 = vmatpush1.msra.mxu0 0.0
    %2197 = vmatprep.subr.mxu0 0.0
    %2198 = vmatpush1.msra.mxu0 0.0
    %2199 = vmatprep.subr.mxu0 0.0
    %2200 = vmatpush1.msra.mxu0 0.0
    %2201 = vmatprep.subr.mxu0 0.0
    %2202 = vmatpush1.msra.mxu0 0.0
    %2203 = vmatprep.subr.mxu0 0.0
    %2204 = vmatpush1.msra.mxu0 0.0
    %2205 = vmatprep.subr.mxu0 0.0
    %2206 = vmatpush1.msra.mxu0 0.0
    %2207 = vmatprep.subr.mxu0 0.0
    %2208 = vmatpush1.msra.mxu0 0.0
    %2209 = vmatprep.subr.mxu0 0.0
    %2210 = vmatpush1.msra.mxu0 0.0
    %2211 = vmatprep.subr.mxu0 0.0
    %2212 = vmatpush1.msra.mxu0 0.0
    %2213 = vmatprep.subr.mxu0 0.0
    %2214 = vmatpush1.msra.mxu0 0.0
    %2215 = vmatprep.subr.mxu0 0.0
    %2216 = vmatpush1.msra.mxu0 %v1044
    %2217 = vmatprep.subr.mxu0 0.0
    %2218 = vmatpush2.msra.mxu0 0.0
    %2219 = vmatprep.subr.mxu0 0.0
    %2220 = vmatpush2.msra.mxu0 0.0
    %2221 = vmatprep.subr.mxu0 0.0
    %2222 = vmatpush2.msra.mxu0 0.0
    %2223 = vmatprep.subr.mxu0 0.0
    %2224 = vmatpush2.msra.mxu0 0.0
    %2225 = vmatprep.subr.mxu0 0.0
    %2226 = vmatpush2.msra.mxu0 0.0
    %2227 = vmatprep.subr.mxu0 0.0
    %2228 = vmatpush2.msra.mxu0 0.0
    %2229 = vmatprep.subr.mxu0 0.0
    %2230 = vmatpush2.msra.mxu0 0.0
    %2231 = vmatprep.subr.mxu0 0.0
    %2232 = vmatpush2.msra.mxu0 0.0
    %2233 = vmatprep.subr.mxu0 0.0
    %2234 = vmatpush2.msra.mxu0 0.0
    %2235 = vmatprep.subr.mxu0 0.0
    %2236 = vmatpush2.msra.mxu0 0.0
    %2237 = vmatprep.subr.mxu0 0.0
    %2238 = vmatpush2.msra.mxu0 0.0
    %2239 = vmatprep.subr.mxu0 0.0
    %2240 = vmatpush2.msra.mxu0 0.0
    %2241 = vmatprep.subr.mxu0 0.0
    %2242 = vmatpush2.msra.mxu0 0.0
    %2243 = vmatprep.subr.mxu0 0.0
    %2244 = vmatpush2.msra.mxu0 0.0
    %2245 = vmatprep.subr.mxu0 0.0
    %2246 = vmatpush2.msra.mxu0 0.0
    %2247 = vmatprep.subr.mxu0 0.0
    %2248 = vmatpush2.msra.mxu0 0.0
    %2249 = vmatprep.mubr.f32.mxu0 0.0
    %2250 = vmatmul.mubr.f32.gmra.mxu0 %v2183
    %v2251 = vpop.f32.mrf.mxu0
    %v2252 = vadd.f32 0.0, %v2251
    %v2253 = vpop.f32.mrf.mxu0
    %2254 = vdwg.mxu0
    %v2256 = vsel %vm1655, %v1743, 0
    %2258 = vmatprep.subr.mxu0 0.0
    %2259 = vmatpush1.msra.mxu0 0.0
    %2260 = vmatprep.subr.mxu0 0.0
    %2261 = vmatpush1.msra.mxu0 0.0
    %2262 = vmatprep.subr.mxu0 0.0
    %2263 = vmatpush1.msra.mxu0 0.0
    %2264 = vmatprep.subr.mxu0 0.0
    %2265 = vmatpush1.msra.mxu0 0.0
    %2266 = vmatprep.subr.mxu0 0.0
    %2267 = vmatpush1.msra.mxu0 0.0
    %2268 = vmatprep.subr.mxu0 0.0
    %2269 = vmatpush1.msra.mxu0 0.0
    %2270 = vmatprep.subr.mxu0 0.0
    %2271 = vmatpush1.msra.mxu0 0.0
    %2272 = vmatprep.subr.mxu0 0.0
    %2273 = vmatpush1.msra.mxu0 0.0
    %2274 = vmatprep.subr.mxu0 0.0
    %2275 = vmatpush1.msra.mxu0 0.0
    %2276 = vmatprep.subr.mxu0 0.0
    %2277 = vmatpush1.msra.mxu0 0.0
    %2278 = vmatprep.subr.mxu0 0.0
    %2279 = vmatpush1.msra.mxu0 0.0
    %2280 = vmatprep.subr.mxu0 0.0
    %2281 = vmatpush1.msra.mxu0 0.0
    %2282 = vmatprep.subr.mxu0 0.0
    %2283 = vmatpush1.msra.mxu0 0.0
    %2284 = vmatprep.subr.mxu0 0.0
    %2285 = vmatpush1.msra.mxu0 0.0
    %2286 = vmatprep.subr.mxu0 0.0
    %2287 = vmatpush1.msra.mxu0 0.0
    %2288 = vmatprep.subr.mxu0 0.0
    %2289 = vmatpush1.msra.mxu0 %v1045
    %2290 = vmatprep.subr.mxu0 0.0
    %2291 = vmatpush2.msra.mxu0 0.0
    %2292 = vmatprep.subr.mxu0 0.0
    %2293 = vmatpush2.msra.mxu0 0.0
    %2294 = vmatprep.subr.mxu0 0.0
    %2295 = vmatpush2.msra.mxu0 0.0
    %2296 = vmatprep.subr.mxu0 0.0
    %2297 = vmatpush2.msra.mxu0 0.0
    %2298 = vmatprep.subr.mxu0 0.0
    %2299 = vmatpush2.msra.mxu0 0.0
    %2300 = vmatprep.subr.mxu0 0.0
    %2301 = vmatpush2.msra.mxu0 0.0
    %2302 = vmatprep.subr.mxu0 0.0
    %2303 = vmatpush2.msra.mxu0 0.0
    %2304 = vmatprep.subr.mxu0 0.0
    %2305 = vmatpush2.msra.mxu0 0.0
    %2306 = vmatprep.subr.mxu0 0.0
    %2307 = vmatpush2.msra.mxu0 0.0
    %2308 = vmatprep.subr.mxu0 0.0
    %2309 = vmatpush2.msra.mxu0 0.0
    %2310 = vmatprep.subr.mxu0 0.0
    %2311 = vmatpush2.msra.mxu0 0.0
    %2312 = vmatprep.subr.mxu0 0.0
    %2313 = vmatpush2.msra.mxu0 0.0
    %2314 = vmatprep.subr.mxu0 0.0
    %2315 = vmatpush2.msra.mxu0 0.0
    %2316 = vmatprep.subr.mxu0 0.0
    %2317 = vmatpush2.msra.mxu0 0.0
    %2318 = vmatprep.subr.mxu0 0.0
    %2319 = vmatpush2.msra.mxu0 0.0
    %2320 = vmatprep.subr.mxu0 0.0
    %2321 = vmatpush2.msra.mxu0 0.0
    %2322 = vmatprep.mubr.f32.mxu0 0.0
    %2323 = vmatmul.mubr.f32.gmra.mxu0 %v2256
    %v2324 = vpop.f32.mrf.mxu0
    %v2325 = vadd.f32 0.0, %v2324
    %v2326 = vpop.f32.mrf.mxu0
    %2327 = vdwg.mxu0
    %v2328 = vcombine.low %v1814, %v1960
    %v2329 = vcombine.high %v1814, %v1960
    %v2331 = vunpack.c.l.s4 1983009808
    %v2332 = vunpack.c.0.s8 %v2331
    %v2333 = vlaneseq
    %v2334 = vshrl.u32 %v2333, 7
    %v2335 = vsub.s32 %v2332, %v2334
    %v2336 = vrot.slane %v2328, %v2335
    %v2338 = vunpack.c.l.s4 1983009808
    %v2339 = vunpack.c.0.s8 %v2338
    %v2340 = vlaneseq
    %v2341 = vshrl.u32 %v2340, 7
    %v2342 = vsub.s32 %v2339, %v2341
    %v2343 = vrot.slane %v2329, %v2342
    %v2344 = vcombine.low %v1887, %v2033
    %v2345 = vcombine.high %v1887, %v2033
    %v2347 = vunpack.c.l.s4 1983009808
    %v2348 = vunpack.c.0.s8 %v2347
    %v2349 = vlaneseq
    %v2350 = vshrl.u32 %v2349, 7
    %v2351 = vsub.s32 %v2348, %v2350
    %v2352 = vrot.slane %v2344, %v2351
    %v2354 = vunpack.c.l.s4 1983009808
    %v2355 = vunpack.c.0.s8 %v2354
    %v2356 = vlaneseq
    %v2357 = vshrl.u32 %v2356, 7
    %v2358 = vsub.s32 %v2355, %v2357
    %v2359 = vrot.slane %v2345, %v2358
    %v2360 = vcombine.low %v2106, %v2252
    %v2361 = vcombine.high %v2106, %v2252
    %v2363 = vunpack.c.l.s4 1983009808
    %v2364 = vunpack.c.0.s8 %v2363
    %v2365 = vlaneseq
    %v2366 = vshrl.u32 %v2365, 7
    %v2367 = vsub.s32 %v2364, %v2366
    %v2368 = vrot.slane %v2360, %v2367
    %v2370 = vunpack.c.l.s4 1983009808
    %v2371 = vunpack.c.0.s8 %v2370
    %v2372 = vlaneseq
    %v2373 = vshrl.u32 %v2372, 7
    %v2374 = vsub.s32 %v2371, %v2373
    %v2375 = vrot.slane %v2361, %v2374
    %v2376 = vcombine.low %v2179, %v2325
    %v2377 = vcombine.high %v2179, %v2325
    %v2379 = vunpack.c.l.s4 1983009808
    %v2380 = vunpack.c.0.s8 %v2379
    %v2381 = vlaneseq
    %v2382 = vshrl.u32 %v2381, 7
    %v2383 = vsub.s32 %v2380, %v2382
    %v2384 = vrot.slane %v2376, %v2383
    %v2386 = vunpack.c.l.s4 1983009808
    %v2387 = vunpack.c.0.s8 %v2386
    %v2388 = vlaneseq
    %v2389 = vshrl.u32 %v2388, 7
    %v2390 = vsub.s32 %v2387, %v2389
    %v2391 = vrot.slane %v2377, %v2390
    %v2392 = vcombine.low %v2336, %v2352
    %v2393 = vcombine.high %v2336, %v2352
    %v2395 = vunpack.c.l.s4 1934713408
    %v2396 = vunpack.c.0.s8 %v2395
    %v2397 = vlaneseq
    %v2398 = vshrl.u32 %v2397, 7
    %v2399 = vsub.s32 %v2396, %v2398
    %v2400 = vrot.slane %v2392, %v2399
    %v2402 = vunpack.c.l.s4 1934713408
    %v2403 = vunpack.c.0.s8 %v2402
    %v2404 = vlaneseq
    %v2405 = vshrl.u32 %v2404, 7
    %v2406 = vsub.s32 %v2403, %v2405
    %v2407 = vrot.slane %v2393, %v2406
    %v2408 = vcombine.low %v2343, %v2359
    %v2409 = vcombine.high %v2343, %v2359
    %v2411 = vunpack.c.l.s4 1934713408
    %v2412 = vunpack.c.0.s8 %v2411
    %v2413 = vlaneseq
    %v2414 = vshrl.u32 %v2413, 7
    %v2415 = vsub.s32 %v2412, %v2414
    %v2416 = vrot.slane %v2408, %v2415
    %v2418 = vunpack.c.l.s4 1934713408
    %v2419 = vunpack.c.0.s8 %v2418
    %v2420 = vlaneseq
    %v2421 = vshrl.u32 %v2420, 7
    %v2422 = vsub.s32 %v2419, %v2421
    %v2423 = vrot.slane %v2409, %v2422
    %v2424 = vcombine.low %v2368, %v2384
    %v2425 = vcombine.high %v2368, %v2384
    %v2427 = vunpack.c.l.s4 1934713408
    %v2428 = vunpack.c.0.s8 %v2427
    %v2429 = vlaneseq
    %v2430 = vshrl.u32 %v2429, 7
    %v2431 = vsub.s32 %v2428, %v2430
    %v2432 = vrot.slane %v2424, %v2431
    %v2434 = vunpack.c.l.s4 1934713408
    %v2435 = vunpack.c.0.s8 %v2434
    %v2436 = vlaneseq
    %v2437 = vshrl.u32 %v2436, 7
    %v2438 = vsub.s32 %v2435, %v2437
    %v2439 = vrot.slane %v2425, %v2438
    %v2440 = vcombine.low %v2375, %v2391
    %v2441 = vcombine.high %v2375, %v2391
    %v2443 = vunpack.c.l.s4 1934713408
    %v2444 = vunpack.c.0.s8 %v2443
    %v2445 = vlaneseq
    %v2446 = vshrl.u32 %v2445, 7
    %v2447 = vsub.s32 %v2444, %v2446
    %v2448 = vrot.slane %v2440, %v2447
    %v2450 = vunpack.c.l.s4 1934713408
    %v2451 = vunpack.c.0.s8 %v2450
    %v2452 = vlaneseq
    %v2453 = vshrl.u32 %v2452, 7
    %v2454 = vsub.s32 %v2451, %v2453
    %v2455 = vrot.slane %v2441, %v2454
    %v2456 = vcombine.low %v2400, %v2432
    %v2457 = vcombine.high %v2400, %v2432
    %v2458 = vcombine.low %v2407, %v2439
    %v2459 = vcombine.high %v2407, %v2439
    %v2460 = vcombine.low %v2416, %v2448
    %v2461 = vcombine.high %v2416, %v2448
    %v2462 = vcombine.low %v2423, %v2455
    %v2463 = vcombine.high %v2423, %v2455
    %v2464 = vcombine.low %v2456, %v2458
    %v2465 = vcombine.high %v2456, %v2458
    %v2467 = vunpack.c.l.s4 1983009808
    %v2468 = vunpack.c.0.s8 %v2467
    %v2469 = vlaneseq
    %v2470 = vshrl.u32 %v2469, 7
    %v2471 = vsub.s32 %v2468, %v2470
    %v2472 = vrot.slane %v2464, %v2471
    %v2474 = vunpack.c.l.s4 1983009808
    %v2475 = vunpack.c.0.s8 %v2474
    %v2476 = vlaneseq
    %v2477 = vshrl.u32 %v2476, 7
    %v2478 = vsub.s32 %v2475, %v2477
    %v2479 = vrot.slane %v2465, %v2478
    %v2480 = vcombine.low %v2457, %v2459
    %v2481 = vcombine.high %v2457, %v2459
    %v2483 = vunpack.c.l.s4 1983009808
    %v2484 = vunpack.c.0.s8 %v2483
    %v2485 = vlaneseq
    %v2486 = vshrl.u32 %v2485, 7
    %v2487 = vsub.s32 %v2484, %v2486
    %v2488 = vrot.slane %v2480, %v2487
    %v2490 = vunpack.c.l.s4 1983009808
    %v2491 = vunpack.c.0.s8 %v2490
    %v2492 = vlaneseq
    %v2493 = vshrl.u32 %v2492, 7
    %v2494 = vsub.s32 %v2491, %v2493
    %v2495 = vrot.slane %v2481, %v2494
    %v2496 = vcombine.low %v2460, %v2462
    %v2497 = vcombine.high %v2460, %v2462
    %v2499 = vunpack.c.l.s4 1983009808
    %v2500 = vunpack.c.0.s8 %v2499
    %v2501 = vlaneseq
    %v2502 = vshrl.u32 %v2501, 7
    %v2503 = vsub.s32 %v2500, %v2502
    %v2504 = vrot.slane %v2496, %v2503
    %v2506 = vunpack.c.l.s4 1983009808
    %v2507 = vunpack.c.0.s8 %v2506
    %v2508 = vlaneseq
    %v2509 = vshrl.u32 %v2508, 7
    %v2510 = vsub.s32 %v2507, %v2509
    %v2511 = vrot.slane %v2497, %v2510
    %v2512 = vcombine.low %v2461, %v2463
    %v2513 = vcombine.high %v2461, %v2463
    %v2515 = vunpack.c.l.s4 1983009808
    %v2516 = vunpack.c.0.s8 %v2515
    %v2517 = vlaneseq
    %v2518 = vshrl.u32 %v2517, 7
    %v2519 = vsub.s32 %v2516, %v2518
    %v2520 = vrot.slane %v2512, %v2519
    %v2522 = vunpack.c.l.s4 1983009808
    %v2523 = vunpack.c.0.s8 %v2522
    %v2524 = vlaneseq
    %v2525 = vshrl.u32 %v2524, 7
    %v2526 = vsub.s32 %v2523, %v2525
    %v2527 = vrot.slane %v2513, %v2526
    %v2528 = vcombine.low %v2472, %v2488
    %v2529 = vcombine.high %v2472, %v2488
    %v2531 = vunpack.c.l.s4 1934713408
    %v2532 = vunpack.c.0.s8 %v2531
    %v2533 = vlaneseq
    %v2534 = vshrl.u32 %v2533, 7
    %v2535 = vsub.s32 %v2532, %v2534
    %v2536 = vrot.slane %v2528, %v2535
    %v2538 = vunpack.c.l.s4 1934713408
    %v2539 = vunpack.c.0.s8 %v2538
    %v2540 = vlaneseq
    %v2541 = vshrl.u32 %v2540, 7
    %v2542 = vsub.s32 %v2539, %v2541
    %v2543 = vrot.slane %v2529, %v2542
    %v2544 = vcombine.low %v2479, %v2495
    %v2545 = vcombine.high %v2479, %v2495
    %v2547 = vunpack.c.l.s4 1934713408
    %v2548 = vunpack.c.0.s8 %v2547
    %v2549 = vlaneseq
    %v2550 = vshrl.u32 %v2549, 7
    %v2551 = vsub.s32 %v2548, %v2550
    %v2552 = vrot.slane %v2544, %v2551
    %v2554 = vunpack.c.l.s4 1934713408
    %v2555 = vunpack.c.0.s8 %v2554
    %v2556 = vlaneseq
    %v2557 = vshrl.u32 %v2556, 7
    %v2558 = vsub.s32 %v2555, %v2557
    %v2559 = vrot.slane %v2545, %v2558
    %v2560 = vcombine.low %v2504, %v2520
    %v2561 = vcombine.high %v2504, %v2520
    %v2563 = vunpack.c.l.s4 1934713408
    %v2564 = vunpack.c.0.s8 %v2563
    %v2565 = vlaneseq
    %v2566 = vshrl.u32 %v2565, 7
    %v2567 = vsub.s32 %v2564, %v2566
    %v2568 = vrot.slane %v2560, %v2567
    %v2570 = vunpack.c.l.s4 1934713408
    %v2571 = vunpack.c.0.s8 %v2570
    %v2572 = vlaneseq
    %v2573 = vshrl.u32 %v2572, 7
    %v2574 = vsub.s32 %v2571, %v2573
    %v2575 = vrot.slane %v2561, %v2574
    %v2576 = vcombine.low %v2511, %v2527
    %v2577 = vcombine.high %v2511, %v2527
    %v2579 = vunpack.c.l.s4 1934713408
    %v2580 = vunpack.c.0.s8 %v2579
    %v2581 = vlaneseq
    %v2582 = vshrl.u32 %v2581, 7
    %v2583 = vsub.s32 %v2580, %v2582
    %v2584 = vrot.slane %v2576, %v2583
    %v2586 = vunpack.c.l.s4 1934713408
    %v2587 = vunpack.c.0.s8 %v2586
    %v2588 = vlaneseq
    %v2589 = vshrl.u32 %v2588, 7
    %v2590 = vsub.s32 %v2587, %v2589
    %v2591 = vrot.slane %v2577, %v2590
    %v2592 = vcombine.low %v2536, %v2568
    %v2593 = vcombine.high %v2536, %v2568
    %v2594 = vcombine.low %v2543, %v2575
    %v2595 = vcombine.high %v2543, %v2575
    %v2596 = vcombine.low %v2552, %v2584
    %v2597 = vcombine.high %v2552, %v2584
    %v2598 = vcombine.low %v2559, %v2591
    %v2599 = vcombine.high %v2559, %v2591
    %2601 = vrot.lane.b32.xlu0 %v2593, 4
    %v2602 = vpop.permute.xlu0 %2601
    %2605 = vrot.lane.b32.xlu0 %v2594, 8
    %v2606 = vpop.permute.xlu0 %2605
    %2609 = vrot.lane.b32.xlu0 %v2595, 12
    %v2610 = vpop.permute.xlu0 %2609
    %2613 = vrot.lane.b32.xlu0 %v2596, 16
    %v2614 = vpop.permute.xlu0 %2613
    %2617 = vrot.lane.b32.xlu0 %v2597, 20
    %v2618 = vpop.permute.xlu0 %2617
    %2621 = vrot.lane.b32.xlu0 %v2598, 24
    %v2622 = vpop.permute.xlu0 %2621
    %2625 = vrot.lane.b32.xlu0 %v2599, 28
    %v2626 = vpop.permute.xlu0 %2625
    %v2628 = vsel %vm1046, %v2592, %v2602
    %v2629 = vsel %vm1655, %v2628, %v2606
    %vm2630 = vcmask 97280
    %v2631 = vsel %vm2630, %v2629, %v2610
    %vm2632 = vcmask 130048
    %v2633 = vsel %vm2632, %v2631, %v2614
    %vm2634 = vcmask 162816
    %v2635 = vsel %vm2634, %v2633, %v2618
    %vm2636 = vcmask 195584
    %v2637 = vsel %vm2636, %v2635, %v2622
    %vm2638 = vcmask 228352
    %v2639 = vsel %vm2638, %v2637, %v2626
    %2641 = vrot.lane.b32.xlu0 %v157, 124
    %v2642 = vpop.permute.xlu0 %2641
    %2644 = vrot.lane.b32.xlu0 %v157, 120
    %v2645 = vpop.permute.xlu0 %2644
    %2647 = vrot.lane.b32.xlu0 %v157, 116
    %v2648 = vpop.permute.xlu0 %2647
    %2650 = vrot.lane.b32.xlu0 %v157, 112
    %v2651 = vpop.permute.xlu0 %2650
    %2653 = vrot.lane.b32.xlu0 %v157, 108
    %v2654 = vpop.permute.xlu0 %2653
    %2656 = vrot.lane.b32.xlu0 %v157, 104
    %v2657 = vpop.permute.xlu0 %2656
    %2659 = vrot.lane.b32.xlu0 %v157, 100
    %v2660 = vpop.permute.xlu0 %2659
    %2662 = vrot.lane.b32.xlu0 %v157, 96
    %v2663 = vpop.permute.xlu0 %2662
    %2665 = vrot.lane.b32.xlu0 %v157, 92
    %v2666 = vpop.permute.xlu0 %2665
    %2668 = vrot.lane.b32.xlu0 %v157, 88
    %v2669 = vpop.permute.xlu0 %2668
    %2671 = vrot.lane.b32.xlu0 %v157, 84
    %v2672 = vpop.permute.xlu0 %2671
    %2674 = vrot.lane.b32.xlu0 %v157, 80
    %v2675 = vpop.permute.xlu0 %2674
    %2677 = vrot.lane.b32.xlu0 %v157, 76
    %v2678 = vpop.permute.xlu0 %2677
    %2680 = vrot.lane.b32.xlu0 %v157, 72
    %v2681 = vpop.permute.xlu0 %2680
    %2683 = vrot.lane.b32.xlu0 %v157, 68
    %v2684 = vpop.permute.xlu0 %2683
    %2686 = vrot.lane.b32.xlu0 %v157, 64
    %v2687 = vpop.permute.xlu0 %2686
    %2689 = vrot.lane.b32.xlu0 %v157, 60
    %v2690 = vpop.permute.xlu0 %2689
    %2692 = vrot.lane.b32.xlu0 %v157, 56
    %v2693 = vpop.permute.xlu0 %2692
    %2695 = vrot.lane.b32.xlu0 %v157, 52
    %v2696 = vpop.permute.xlu0 %2695
    %2698 = vrot.lane.b32.xlu0 %v157, 48
    %v2699 = vpop.permute.xlu0 %2698
    %2701 = vrot.lane.b32.xlu0 %v157, 44
    %v2702 = vpop.permute.xlu0 %2701
    %2704 = vrot.lane.b32.xlu0 %v157, 40
    %v2705 = vpop.permute.xlu0 %2704
    %2707 = vrot.lane.b32.xlu0 %v157, 36
    %v2708 = vpop.permute.xlu0 %2707
    %v2710 = vcombine.low %v157, %v2645
    %v2711 = vcombine.high %v157, %v2645
    %v2713 = vunpack.c.l.s4 1983009808
    %v2714 = vunpack.c.0.s8 %v2713
    %v2715 = vlaneseq
    %v2716 = vshrl.u32 %v2715, 7
    %v2717 = vsub.s32 %v2714, %v2716
    %v2718 = vrot.slane %v2710, %v2717
    %v2720 = vunpack.c.l.s4 1983009808
    %v2721 = vunpack.c.0.s8 %v2720
    %v2722 = vlaneseq
    %v2723 = vshrl.u32 %v2722, 7
    %v2724 = vsub.s32 %v2721, %v2723
    %v2725 = vrot.slane %v2711, %v2724
    %v2726 = vcombine.low %v2642, %v2648
    %v2727 = vcombine.high %v2642, %v2648
    %v2729 = vunpack.c.l.s4 1983009808
    %v2730 = vunpack.c.0.s8 %v2729
    %v2731 = vlaneseq
    %v2732 = vshrl.u32 %v2731, 7
    %v2733 = vsub.s32 %v2730, %v2732
    %v2734 = vrot.slane %v2726, %v2733
    %v2736 = vunpack.c.l.s4 1983009808
    %v2737 = vunpack.c.0.s8 %v2736
    %v2738 = vlaneseq
    %v2739 = vshrl.u32 %v2738, 7
    %v2740 = vsub.s32 %v2737, %v2739
    %v2741 = vrot.slane %v2727, %v2740
    %v2742 = vcombine.low %v2651, %v2657
    %v2743 = vcombine.high %v2651, %v2657
    %v2745 = vunpack.c.l.s4 1983009808
    %v2746 = vunpack.c.0.s8 %v2745
    %v2747 = vlaneseq
    %v2748 = vshrl.u32 %v2747, 7
    %v2749 = vsub.s32 %v2746, %v2748
    %v2750 = vrot.slane %v2742, %v2749
    %v2752 = vunpack.c.l.s4 1983009808
    %v2753 = vunpack.c.0.s8 %v2752
    %v2754 = vlaneseq
    %v2755 = vshrl.u32 %v2754, 7
    %v2756 = vsub.s32 %v2753, %v2755
    %v2757 = vrot.slane %v2743, %v2756
    %v2758 = vcombine.low %v2654, %v2660
    %v2759 = vcombine.high %v2654, %v2660
    %v2761 = vunpack.c.l.s4 1983009808
    %v2762 = vunpack.c.0.s8 %v2761
    %v2763 = vlaneseq
    %v2764 = vshrl.u32 %v2763, 7
    %v2765 = vsub.s32 %v2762, %v2764
    %v2766 = vrot.slane %v2758, %v2765
    %v2768 = vunpack.c.l.s4 1983009808
    %v2769 = vunpack.c.0.s8 %v2768
    %v2770 = vlaneseq
    %v2771 = vshrl.u32 %v2770, 7
    %v2772 = vsub.s32 %v2769, %v2771
    %v2773 = vrot.slane %v2759, %v2772
    %v2774 = vcombine.low %v2718, %v2734
    %v2775 = vcombine.high %v2718, %v2734
    %v2777 = vunpack.c.l.s4 1934713408
    %v2778 = vunpack.c.0.s8 %v2777
    %v2779 = vlaneseq
    %v2780 = vshrl.u32 %v2779, 7
    %v2781 = vsub.s32 %v2778, %v2780
    %v2782 = vrot.slane %v2774, %v2781
    %v2784 = vunpack.c.l.s4 1934713408
    %v2785 = vunpack.c.0.s8 %v2784
    %v2786 = vlaneseq
    %v2787 = vshrl.u32 %v2786, 7
    %v2788 = vsub.s32 %v2785, %v2787
    %v2789 = vrot.slane %v2775, %v2788
    %v2790 = vcombine.low %v2725, %v2741
    %v2791 = vcombine.high %v2725, %v2741
    %v2793 = vunpack.c.l.s4 1934713408
    %v2794 = vunpack.c.0.s8 %v2793
    %v2795 = vlaneseq
    %v2796 = vshrl.u32 %v2795, 7
    %v2797 = vsub.s32 %v2794, %v2796
    %v2798 = vrot.slane %v2790, %v2797
    %v2800 = vunpack.c.l.s4 1934713408
    %v2801 = vunpack.c.0.s8 %v2800
    %v2802 = vlaneseq
    %v2803 = vshrl.u32 %v2802, 7
    %v2804 = vsub.s32 %v2801, %v2803
    %v2805 = vrot.slane %v2791, %v2804
    %v2806 = vcombine.low %v2750, %v2766
    %v2807 = vcombine.high %v2750, %v2766
    %v2809 = vunpack.c.l.s4 1934713408
    %v2810 = vunpack.c.0.s8 %v2809
    %v2811 = vlaneseq
    %v2812 = vshrl.u32 %v2811, 7
    %v2813 = vsub.s32 %v2810, %v2812
    %v2814 = vrot.slane %v2806, %v2813
    %v2816 = vunpack.c.l.s4 1934713408
    %v2817 = vunpack.c.0.s8 %v2816
    %v2818 = vlaneseq
    %v2819 = vshrl.u32 %v2818, 7
    %v2820 = vsub.s32 %v2817, %v2819
    %v2821 = vrot.slane %v2807, %v2820
    %v2822 = vcombine.low %v2757, %v2773
    %v2823 = vcombine.high %v2757, %v2773
    %v2825 = vunpack.c.l.s4 1934713408
    %v2826 = vunpack.c.0.s8 %v2825
    %v2827 = vlaneseq
    %v2828 = vshrl.u32 %v2827, 7
    %v2829 = vsub.s32 %v2826, %v2828
    %v2830 = vrot.slane %v2822, %v2829
    %v2832 = vunpack.c.l.s4 1934713408
    %v2833 = vunpack.c.0.s8 %v2832
    %v2834 = vlaneseq
    %v2835 = vshrl.u32 %v2834, 7
    %v2836 = vsub.s32 %v2833, %v2835
    %v2837 = vrot.slane %v2823, %v2836
    %v2838 = vcombine.low %v2782, %v2814
    %v2839 = vcombine.high %v2782, %v2814
    %v2840 = vcombine.low %v2789, %v2821
    %v2841 = vcombine.high %v2789, %v2821
    %v2842 = vcombine.low %v2798, %v2830
    %v2843 = vcombine.high %v2798, %v2830
    %v2844 = vcombine.low %v2805, %v2837
    %v2845 = vcombine.high %v2805, %v2837
    %v2846 = vcombine.low %v2663, %v2669
    %v2847 = vcombine.high %v2663, %v2669
    %v2849 = vunpack.c.l.s4 1983009808
    %v2850 = vunpack.c.0.s8 %v2849
    %v2851 = vlaneseq
    %v2852 = vshrl.u32 %v2851, 7
    %v2853 = vsub.s32 %v2850, %v2852
    %v2854 = vrot.slane %v2846, %v2853
    %v2856 = vunpack.c.l.s4 1983009808
    %v2857 = vunpack.c.0.s8 %v2856
    %v2858 = vlaneseq
    %v2859 = vshrl.u32 %v2858, 7
    %v2860 = vsub.s32 %v2857, %v2859
    %v2861 = vrot.slane %v2847, %v2860
    %v2862 = vcombine.low %v2666, %v2672
    %v2863 = vcombine.high %v2666, %v2672
    %v2865 = vunpack.c.l.s4 1983009808
    %v2866 = vunpack.c.0.s8 %v2865
    %v2867 = vlaneseq
    %v2868 = vshrl.u32 %v2867, 7
    %v2869 = vsub.s32 %v2866, %v2868
    %v2870 = vrot.slane %v2862, %v2869
    %v2872 = vunpack.c.l.s4 1983009808
    %v2873 = vunpack.c.0.s8 %v2872
    %v2874 = vlaneseq
    %v2875 = vshrl.u32 %v2874, 7
    %v2876 = vsub.s32 %v2873, %v2875
    %v2877 = vrot.slane %v2863, %v2876
    %v2878 = vcombine.low %v2675, %v2681
    %v2879 = vcombine.high %v2675, %v2681
    %v2881 = vunpack.c.l.s4 1983009808
    %v2882 = vunpack.c.0.s8 %v2881
    %v2883 = vlaneseq
    %v2884 = vshrl.u32 %v2883, 7
    %v2885 = vsub.s32 %v2882, %v2884
    %v2886 = vrot.slane %v2878, %v2885
    %v2888 = vunpack.c.l.s4 1983009808
    %v2889 = vunpack.c.0.s8 %v2888
    %v2890 = vlaneseq
    %v2891 = vshrl.u32 %v2890, 7
    %v2892 = vsub.s32 %v2889, %v2891
    %v2893 = vrot.slane %v2879, %v2892
    %v2894 = vcombine.low %v2678, %v2684
    %v2895 = vcombine.high %v2678, %v2684
    %v2897 = vunpack.c.l.s4 1983009808
    %v2898 = vunpack.c.0.s8 %v2897
    %v2899 = vlaneseq
    %v2900 = vshrl.u32 %v2899, 7
    %v2901 = vsub.s32 %v2898, %v2900
    %v2902 = vrot.slane %v2894, %v2901
    %v2904 = vunpack.c.l.s4 1983009808
    %v2905 = vunpack.c.0.s8 %v2904
    %v2906 = vlaneseq
    %v2907 = vshrl.u32 %v2906, 7
    %v2908 = vsub.s32 %v2905, %v2907
    %v2909 = vrot.slane %v2895, %v2908
    %v2910 = vcombine.low %v2854, %v2870
    %v2911 = vcombine.high %v2854, %v2870
    %v2913 = vunpack.c.l.s4 1934713408
    %v2914 = vunpack.c.0.s8 %v2913
    %v2915 = vlaneseq
    %v2916 = vshrl.u32 %v2915, 7
    %v2917 = vsub.s32 %v2914, %v2916
    %v2918 = vrot.slane %v2910, %v2917
    %v2920 = vunpack.c.l.s4 1934713408
    %v2921 = vunpack.c.0.s8 %v2920
    %v2922 = vlaneseq
    %v2923 = vshrl.u32 %v2922, 7
    %v2924 = vsub.s32 %v2921, %v2923
    %v2925 = vrot.slane %v2911, %v2924
    %v2926 = vcombine.low %v2861, %v2877
    %v2927 = vcombine.high %v2861, %v2877
    %v2929 = vunpack.c.l.s4 1934713408
    %v2930 = vunpack.c.0.s8 %v2929
    %v2931 = vlaneseq
    %v2932 = vshrl.u32 %v2931, 7
    %v2933 = vsub.s32 %v2930, %v2932
    %v2934 = vrot.slane %v2926, %v2933
    %v2936 = vunpack.c.l.s4 1934713408
    %v2937 = vunpack.c.0.s8 %v2936
    %v2938 = vlaneseq
    %v2939 = vshrl.u32 %v2938, 7
    %v2940 = vsub.s32 %v2937, %v2939
    %v2941 = vrot.slane %v2927, %v2940
    %v2942 = vcombine.low %v2886, %v2902
    %v2943 = vcombine.high %v2886, %v2902
    %v2945 = vunpack.c.l.s4 1934713408
    %v2946 = vunpack.c.0.s8 %v2945
    %v2947 = vlaneseq
    %v2948 = vshrl.u32 %v2947, 7
    %v2949 = vsub.s32 %v2946, %v2948
    %v2950 = vrot.slane %v2942, %v2949
    %v2952 = vunpack.c.l.s4 1934713408
    %v2953 = vunpack.c.0.s8 %v2952
    %v2954 = vlaneseq
    %v2955 = vshrl.u32 %v2954, 7
    %v2956 = vsub.s32 %v2953, %v2955
    %v2957 = vrot.slane %v2943, %v2956
    %v2958 = vcombine.low %v2893, %v2909
    %v2959 = vcombine.high %v2893, %v2909
    %v2961 = vunpack.c.l.s4 1934713408
    %v2962 = vunpack.c.0.s8 %v2961
    %v2963 = vlaneseq
    %v2964 = vshrl.u32 %v2963, 7
    %v2965 = vsub.s32 %v2962, %v2964
    %v2966 = vrot.slane %v2958, %v2965
    %v2968 = vunpack.c.l.s4 1934713408
    %v2969 = vunpack.c.0.s8 %v2968
    %v2970 = vlaneseq
    %v2971 = vshrl.u32 %v2970, 7
    %v2972 = vsub.s32 %v2969, %v2971
    %v2973 = vrot.slane %v2959, %v2972
    %v2974 = vcombine.low %v2918, %v2950
    %v2975 = vcombine.high %v2918, %v2950
    %v2976 = vcombine.low %v2925, %v2957
    %v2977 = vcombine.high %v2925, %v2957
    %v2978 = vcombine.low %v2934, %v2966
    %v2979 = vcombine.high %v2934, %v2966
    %v2980 = vcombine.low %v2941, %v2973
    %v2981 = vcombine.high %v2941, %v2973
    %v2982 = vcombine.low %v2687, %v2693
    %v2983 = vcombine.high %v2687, %v2693
    %v2985 = vunpack.c.l.s4 1983009808
    %v2986 = vunpack.c.0.s8 %v2985
    %v2987 = vlaneseq
    %v2988 = vshrl.u32 %v2987, 7
    %v2989 = vsub.s32 %v2986, %v2988
    %v2990 = vrot.slane %v2982, %v2989
    %v2992 = vunpack.c.l.s4 1983009808
    %v2993 = vunpack.c.0.s8 %v2992
    %v2994 = vlaneseq
    %v2995 = vshrl.u32 %v2994, 7
    %v2996 = vsub.s32 %v2993, %v2995
    %v2997 = vrot.slane %v2983, %v2996
    %v2998 = vcombine.low %v2690, %v2696
    %v2999 = vcombine.high %v2690, %v2696
    %v3001 = vunpack.c.l.s4 1983009808
    %v3002 = vunpack.c.0.s8 %v3001
    %v3003 = vlaneseq
    %v3004 = vshrl.u32 %v3003, 7
    %v3005 = vsub.s32 %v3002, %v3004
    %v3006 = vrot.slane %v2998, %v3005
    %v3008 = vunpack.c.l.s4 1983009808
    %v3009 = vunpack.c.0.s8 %v3008
    %v3010 = vlaneseq
    %v3011 = vshrl.u32 %v3010, 7
    %v3012 = vsub.s32 %v3009, %v3011
    %v3013 = vrot.slane %v2999, %v3012
    %v3014 = vcombine.low %v2699, %v2705
    %v3015 = vcombine.high %v2699, %v2705
    %v3017 = vunpack.c.l.s4 1983009808
    %v3018 = vunpack.c.0.s8 %v3017
    %v3019 = vlaneseq
    %v3020 = vshrl.u32 %v3019, 7
    %v3021 = vsub.s32 %v3018, %v3020
    %v3022 = vrot.slane %v3014, %v3021
    %v3024 = vunpack.c.l.s4 1983009808
    %v3025 = vunpack.c.0.s8 %v3024
    %v3026 = vlaneseq
    %v3027 = vshrl.u32 %v3026, 7
    %v3028 = vsub.s32 %v3025, %v3027
    %v3029 = vrot.slane %v3015, %v3028
    %v3030 = vcombine.low %v2702, %v2708
    %v3031 = vcombine.high %v2702, %v2708
    %v3033 = vunpack.c.l.s4 1983009808
    %v3034 = vunpack.c.0.s8 %v3033
    %v3035 = vlaneseq
    %v3036 = vshrl.u32 %v3035, 7
    %v3037 = vsub.s32 %v3034, %v3036
    %v3038 = vrot.slane %v3030, %v3037
    %v3040 = vunpack.c.l.s4 1983009808
    %v3041 = vunpack.c.0.s8 %v3040
    %v3042 = vlaneseq
    %v3043 = vshrl.u32 %v3042, 7
    %v3044 = vsub.s32 %v3041, %v3043
    %v3045 = vrot.slane %v3031, %v3044
    %v3046 = vcombine.low %v2990, %v3006
    %v3047 = vcombine.high %v2990, %v3006
    %v3049 = vunpack.c.l.s4 1934713408
    %v3050 = vunpack.c.0.s8 %v3049
    %v3051 = vlaneseq
    %v3052 = vshrl.u32 %v3051, 7
    %v3053 = vsub.s32 %v3050, %v3052
    %v3054 = vrot.slane %v3046, %v3053
    %v3056 = vunpack.c.l.s4 1934713408
    %v3057 = vunpack.c.0.s8 %v3056
    %v3058 = vlaneseq
    %v3059 = vshrl.u32 %v3058, 7
    %v3060 = vsub.s32 %v3057, %v3059
    %v3061 = vrot.slane %v3047, %v3060
    %v3062 = vcombine.low %v2997, %v3013
    %v3063 = vcombine.high %v2997, %v3013
    %v3065 = vunpack.c.l.s4 1934713408
    %v3066 = vunpack.c.0.s8 %v3065
    %v3067 = vlaneseq
    %v3068 = vshrl.u32 %v3067, 7
    %v3069 = vsub.s32 %v3066, %v3068
    %v3070 = vrot.slane %v3062, %v3069
    %v3072 = vunpack.c.l.s4 1934713408
    %v3073 = vunpack.c.0.s8 %v3072
    %v3074 = vlaneseq
    %v3075 = vshrl.u32 %v3074, 7
    %v3076 = vsub.s32 %v3073, %v3075
    %v3077 = vrot.slane %v3063, %v3076
    %v3078 = vcombine.low %v3022, %v3038
    %v3079 = vcombine.high %v3022, %v3038
    %v3081 = vunpack.c.l.s4 1934713408
    %v3082 = vunpack.c.0.s8 %v3081
    %v3083 = vlaneseq
    %v3084 = vshrl.u32 %v3083, 7
    %v3085 = vsub.s32 %v3082, %v3084
    %v3086 = vrot.slane %v3078, %v3085
    %v3088 = vunpack.c.l.s4 1934713408
    %v3089 = vunpack.c.0.s8 %v3088
    %v3090 = vlaneseq
    %v3091 = vshrl.u32 %v3090, 7
    %v3092 = vsub.s32 %v3089, %v3091
    %v3093 = vrot.slane %v3079, %v3092
    %v3094 = vcombine.low %v3029, %v3045
    %v3095 = vcombine.high %v3029, %v3045
    %v3097 = vunpack.c.l.s4 1934713408
    %v3098 = vunpack.c.0.s8 %v3097
    %v3099 = vlaneseq
    %v3100 = vshrl.u32 %v3099, 7
    %v3101 = vsub.s32 %v3098, %v3100
    %v3102 = vrot.slane %v3094, %v3101
    %v3104 = vunpack.c.l.s4 1934713408
    %v3105 = vunpack.c.0.s8 %v3104
    %v3106 = vlaneseq
    %v3107 = vshrl.u32 %v3106, 7
    %v3108 = vsub.s32 %v3105, %v3107
    %v3109 = vrot.slane %v3095, %v3108
    %v3110 = vcombine.low %v3054, %v3086
    %v3111 = vcombine.high %v3054, %v3086
    %v3112 = vcombine.low %v3061, %v3093
    %v3113 = vcombine.high %v3061, %v3093
    %v3114 = vcombine.low %v3070, %v3102
    %v3115 = vcombine.high %v3070, %v3102
    %v3116 = vcombine.low %v3077, %v3109
    %v3117 = vcombine.high %v3077, %v3109
    %v3118 = vcombine.low %v2838, %v2840
    %v3119 = vcombine.high %v2838, %v2840
    %v3121 = vunpack.c.l.s4 1983009808
    %v3122 = vunpack.c.0.s8 %v3121
    %v3123 = vlaneseq
    %v3124 = vshrl.u32 %v3123, 7
    %v3125 = vsub.s32 %v3122, %v3124
    %v3126 = vrot.slane %v3118, %v3125
    %v3128 = vunpack.c.l.s4 1983009808
    %v3129 = vunpack.c.0.s8 %v3128
    %v3130 = vlaneseq
    %v3131 = vshrl.u32 %v3130, 7
    %v3132 = vsub.s32 %v3129, %v3131
    %v3133 = vrot.slane %v3119, %v3132
    %v3134 = vcombine.low %v2839, %v2841
    %v3135 = vcombine.high %v2839, %v2841
    %v3137 = vunpack.c.l.s4 1983009808
    %v3138 = vunpack.c.0.s8 %v3137
    %v3139 = vlaneseq
    %v3140 = vshrl.u32 %v3139, 7
    %v3141 = vsub.s32 %v3138, %v3140
    %v3142 = vrot.slane %v3134, %v3141
    %v3144 = vunpack.c.l.s4 1983009808
    %v3145 = vunpack.c.0.s8 %v3144
    %v3146 = vlaneseq
    %v3147 = vshrl.u32 %v3146, 7
    %v3148 = vsub.s32 %v3145, %v3147
    %v3149 = vrot.slane %v3135, %v3148
    %v3150 = vcombine.low %v2842, %v2844
    %v3151 = vcombine.high %v2842, %v2844
    %v3153 = vunpack.c.l.s4 1983009808
    %v3154 = vunpack.c.0.s8 %v3153
    %v3155 = vlaneseq
    %v3156 = vshrl.u32 %v3155, 7
    %v3157 = vsub.s32 %v3154, %v3156
    %v3158 = vrot.slane %v3150, %v3157
    %v3160 = vunpack.c.l.s4 1983009808
    %v3161 = vunpack.c.0.s8 %v3160
    %v3162 = vlaneseq
    %v3163 = vshrl.u32 %v3162, 7
    %v3164 = vsub.s32 %v3161, %v3163
    %v3165 = vrot.slane %v3151, %v3164
    %v3166 = vcombine.low %v2843, %v2845
    %v3167 = vcombine.high %v2843, %v2845
    %v3169 = vunpack.c.l.s4 1983009808
    %v3170 = vunpack.c.0.s8 %v3169
    %v3171 = vlaneseq
    %v3172 = vshrl.u32 %v3171, 7
    %v3173 = vsub.s32 %v3170, %v3172
    %v3174 = vrot.slane %v3166, %v3173
    %v3176 = vunpack.c.l.s4 1983009808
    %v3177 = vunpack.c.0.s8 %v3176
    %v3178 = vlaneseq
    %v3179 = vshrl.u32 %v3178, 7
    %v3180 = vsub.s32 %v3177, %v3179
    %v3181 = vrot.slane %v3167, %v3180
    %v3182 = vcombine.low %v3126, %v3142
    %v3183 = vcombine.high %v3126, %v3142
    %v3185 = vunpack.c.l.s4 1934713408
    %v3186 = vunpack.c.0.s8 %v3185
    %v3187 = vlaneseq
    %v3188 = vshrl.u32 %v3187, 7
    %v3189 = vsub.s32 %v3186, %v3188
    %v3190 = vrot.slane %v3182, %v3189
    %v3192 = vunpack.c.l.s4 1934713408
    %v3193 = vunpack.c.0.s8 %v3192
    %v3194 = vlaneseq
    %v3195 = vshrl.u32 %v3194, 7
    %v3196 = vsub.s32 %v3193, %v3195
    %v3197 = vrot.slane %v3183, %v3196
    %v3198 = vcombine.low %v3133, %v3149
    %v3199 = vcombine.high %v3133, %v3149
    %v3201 = vunpack.c.l.s4 1934713408
    %v3202 = vunpack.c.0.s8 %v3201
    %v3203 = vlaneseq
    %v3204 = vshrl.u32 %v3203, 7
    %v3205 = vsub.s32 %v3202, %v3204
    %v3206 = vrot.slane %v3198, %v3205
    %v3208 = vunpack.c.l.s4 1934713408
    %v3209 = vunpack.c.0.s8 %v3208
    %v3210 = vlaneseq
    %v3211 = vshrl.u32 %v3210, 7
    %v3212 = vsub.s32 %v3209, %v3211
    %v3213 = vrot.slane %v3199, %v3212
    %v3214 = vcombine.low %v3158, %v3174
    %v3215 = vcombine.high %v3158, %v3174
    %v3217 = vunpack.c.l.s4 1934713408
    %v3218 = vunpack.c.0.s8 %v3217
    %v3219 = vlaneseq
    %v3220 = vshrl.u32 %v3219, 7
    %v3221 = vsub.s32 %v3218, %v3220
    %v3222 = vrot.slane %v3214, %v3221
    %v3224 = vunpack.c.l.s4 1934713408
    %v3225 = vunpack.c.0.s8 %v3224
    %v3226 = vlaneseq
    %v3227 = vshrl.u32 %v3226, 7
    %v3228 = vsub.s32 %v3225, %v3227
    %v3229 = vrot.slane %v3215, %v3228
    %v3230 = vcombine.low %v3165, %v3181
    %v3231 = vcombine.high %v3165, %v3181
    %v3233 = vunpack.c.l.s4 1934713408
    %v3234 = vunpack.c.0.s8 %v3233
    %v3235 = vlaneseq
    %v3236 = vshrl.u32 %v3235, 7
    %v3237 = vsub.s32 %v3234, %v3236
    %v3238 = vrot.slane %v3230, %v3237
    %v3240 = vunpack.c.l.s4 1934713408
    %v3241 = vunpack.c.0.s8 %v3240
    %v3242 = vlaneseq
    %v3243 = vshrl.u32 %v3242, 7
    %v3244 = vsub.s32 %v3241, %v3243
    %v3245 = vrot.slane %v3231, %v3244
    %v3246 = vcombine.low %v3190, %v3222
    %v3247 = vcombine.high %v3190, %v3222
    %v3248 = vcombine.low %v3197, %v3229
    %v3249 = vcombine.high %v3197, %v3229
    %v3250 = vcombine.low %v3206, %v3238
    %v3251 = vcombine.high %v3206, %v3238
    %v3252 = vcombine.low %v3213, %v3245
    %v3253 = vcombine.high %v3213, %v3245
    %v3254 = vcombine.low %v2974, %v2976
    %v3255 = vcombine.high %v2974, %v2976
    %v3257 = vunpack.c.l.s4 1983009808
    %v3258 = vunpack.c.0.s8 %v3257
    %v3259 = vlaneseq
    %v3260 = vshrl.u32 %v3259, 7
    %v3261 = vsub.s32 %v3258, %v3260
    %v3262 = vrot.slane %v3254, %v3261
    %v3264 = vunpack.c.l.s4 1983009808
    %v3265 = vunpack.c.0.s8 %v3264
    %v3266 = vlaneseq
    %v3267 = vshrl.u32 %v3266, 7
    %v3268 = vsub.s32 %v3265, %v3267
    %v3269 = vrot.slane %v3255, %v3268
    %v3270 = vcombine.low %v2975, %v2977
    %v3271 = vcombine.high %v2975, %v2977
    %v3273 = vunpack.c.l.s4 1983009808
    %v3274 = vunpack.c.0.s8 %v3273
    %v3275 = vlaneseq
    %v3276 = vshrl.u32 %v3275, 7
    %v3277 = vsub.s32 %v3274, %v3276
    %v3278 = vrot.slane %v3270, %v3277
    %v3280 = vunpack.c.l.s4 1983009808
    %v3281 = vunpack.c.0.s8 %v3280
    %v3282 = vlaneseq
    %v3283 = vshrl.u32 %v3282, 7
    %v3284 = vsub.s32 %v3281, %v3283
    %v3285 = vrot.slane %v3271, %v3284
    %v3286 = vcombine.low %v2978, %v2980
    %v3287 = vcombine.high %v2978, %v2980
    %v3289 = vunpack.c.l.s4 1983009808
    %v3290 = vunpack.c.0.s8 %v3289
    %v3291 = vlaneseq
    %v3292 = vshrl.u32 %v3291, 7
    %v3293 = vsub.s32 %v3290, %v3292
    %v3294 = vrot.slane %v3286, %v3293
    %v3296 = vunpack.c.l.s4 1983009808
    %v3297 = vunpack.c.0.s8 %v3296
    %v3298 = vlaneseq
    %v3299 = vshrl.u32 %v3298, 7
    %v3300 = vsub.s32 %v3297, %v3299
    %v3301 = vrot.slane %v3287, %v3300
    %v3302 = vcombine.low %v2979, %v2981
    %v3303 = vcombine.high %v2979, %v2981
    %v3305 = vunpack.c.l.s4 1983009808
    %v3306 = vunpack.c.0.s8 %v3305
    %v3307 = vlaneseq
    %v3308 = vshrl.u32 %v3307, 7
    %v3309 = vsub.s32 %v3306, %v3308
    %v3310 = vrot.slane %v3302, %v3309
    %v3312 = vunpack.c.l.s4 1983009808
    %v3313 = vunpack.c.0.s8 %v3312
    %v3314 = vlaneseq
    %v3315 = vshrl.u32 %v3314, 7
    %v3316 = vsub.s32 %v3313, %v3315
    %v3317 = vrot.slane %v3303, %v3316
    %v3318 = vcombine.low %v3262, %v3278
    %v3319 = vcombine.high %v3262, %v3278
    %v3321 = vunpack.c.l.s4 1934713408
    %v3322 = vunpack.c.0.s8 %v3321
    %v3323 = vlaneseq
    %v3324 = vshrl.u32 %v3323, 7
    %v3325 = vsub.s32 %v3322, %v3324
    %v3326 = vrot.slane %v3318, %v3325
    %v3328 = vunpack.c.l.s4 1934713408
    %v3329 = vunpack.c.0.s8 %v3328
    %v3330 = vlaneseq
    %v3331 = vshrl.u32 %v3330, 7
    %v3332 = vsub.s32 %v3329, %v3331
    %v3333 = vrot.slane %v3319, %v3332
    %v3334 = vcombine.low %v3269, %v3285
    %v3335 = vcombine.high %v3269, %v3285
    %v3337 = vunpack.c.l.s4 1934713408
    %v3338 = vunpack.c.0.s8 %v3337
    %v3339 = vlaneseq
    %v3340 = vshrl.u32 %v3339, 7
    %v3341 = vsub.s32 %v3338, %v3340
    %v3342 = vrot.slane %v3334, %v3341
    %v3344 = vunpack.c.l.s4 1934713408
    %v3345 = vunpack.c.0.s8 %v3344
    %v3346 = vlaneseq
    %v3347 = vshrl.u32 %v3346, 7
    %v3348 = vsub.s32 %v3345, %v3347
    %v3349 = vrot.slane %v3335, %v3348
    %v3350 = vcombine.low %v3294, %v3310
    %v3351 = vcombine.high %v3294, %v3310
    %v3353 = vunpack.c.l.s4 1934713408
    %v3354 = vunpack.c.0.s8 %v3353
    %v3355 = vlaneseq
    %v3356 = vshrl.u32 %v3355, 7
    %v3357 = vsub.s32 %v3354, %v3356
    %v3358 = vrot.slane %v3350, %v3357
    %v3360 = vunpack.c.l.s4 1934713408
    %v3361 = vunpack.c.0.s8 %v3360
    %v3362 = vlaneseq
    %v3363 = vshrl.u32 %v3362, 7
    %v3364 = vsub.s32 %v3361, %v3363
    %v3365 = vrot.slane %v3351, %v3364
    %v3366 = vcombine.low %v3301, %v3317
    %v3367 = vcombine.high %v3301, %v3317
    %v3369 = vunpack.c.l.s4 1934713408
    %v3370 = vunpack.c.0.s8 %v3369
    %v3371 = vlaneseq
    %v3372 = vshrl.u32 %v3371, 7
    %v3373 = vsub.s32 %v3370, %v3372
    %v3374 = vrot.slane %v3366, %v3373
    %v3376 = vunpack.c.l.s4 1934713408
    %v3377 = vunpack.c.0.s8 %v3376
    %v3378 = vlaneseq
    %v3379 = vshrl.u32 %v3378, 7
    %v3380 = vsub.s32 %v3377, %v3379
    %v3381 = vrot.slane %v3367, %v3380
    %v3382 = vcombine.low %v3326, %v3358
    %v3383 = vcombine.high %v3326, %v3358
    %v3384 = vcombine.low %v3333, %v3365
    %v3385 = vcombine.high %v3333, %v3365
    %v3386 = vcombine.low %v3342, %v3374
    %v3387 = vcombine.high %v3342, %v3374
    %v3388 = vcombine.low %v3349, %v3381
    %v3389 = vcombine.high %v3349, %v3381
    %v3390 = vcombine.low %v3110, %v3112
    %v3391 = vcombine.high %v3110, %v3112
    %v3393 = vunpack.c.l.s4 1983009808
    %v3394 = vunpack.c.0.s8 %v3393
    %v3395 = vlaneseq
    %v3396 = vshrl.u32 %v3395, 7
    %v3397 = vsub.s32 %v3394, %v3396
    %v3398 = vrot.slane %v3390, %v3397
    %v3400 = vunpack.c.l.s4 1983009808
    %v3401 = vunpack.c.0.s8 %v3400
    %v3402 = vlaneseq
    %v3403 = vshrl.u32 %v3402, 7
    %v3404 = vsub.s32 %v3401, %v3403
    %v3405 = vrot.slane %v3391, %v3404
    %v3406 = vcombine.low %v3111, %v3113
    %v3407 = vcombine.high %v3111, %v3113
    %v3409 = vunpack.c.l.s4 1983009808
    %v3410 = vunpack.c.0.s8 %v3409
    %v3411 = vlaneseq
    %v3412 = vshrl.u32 %v3411, 7
    %v3413 = vsub.s32 %v3410, %v3412
    %v3414 = vrot.slane %v3406, %v3413
    %v3416 = vunpack.c.l.s4 1983009808
    %v3417 = vunpack.c.0.s8 %v3416
    %v3418 = vlaneseq
    %v3419 = vshrl.u32 %v3418, 7
    %v3420 = vsub.s32 %v3417, %v3419
    %v3421 = vrot.slane %v3407, %v3420
    %v3422 = vcombine.low %v3114, %v3116
    %v3423 = vcombine.high %v3114, %v3116
    %v3425 = vunpack.c.l.s4 1983009808
    %v3426 = vunpack.c.0.s8 %v3425
    %v3427 = vlaneseq
    %v3428 = vshrl.u32 %v3427, 7
    %v3429 = vsub.s32 %v3426, %v3428
    %v3430 = vrot.slane %v3422, %v3429
    %v3432 = vunpack.c.l.s4 1983009808
    %v3433 = vunpack.c.0.s8 %v3432
    %v3434 = vlaneseq
    %v3435 = vshrl.u32 %v3434, 7
    %v3436 = vsub.s32 %v3433, %v3435
    %v3437 = vrot.slane %v3423, %v3436
    %v3438 = vcombine.low %v3115, %v3117
    %v3439 = vcombine.high %v3115, %v3117
    %v3441 = vunpack.c.l.s4 1983009808
    %v3442 = vunpack.c.0.s8 %v3441
    %v3443 = vlaneseq
    %v3444 = vshrl.u32 %v3443, 7
    %v3445 = vsub.s32 %v3442, %v3444
    %v3446 = vrot.slane %v3438, %v3445
    %v3448 = vunpack.c.l.s4 1983009808
    %v3449 = vunpack.c.0.s8 %v3448
    %v3450 = vlaneseq
    %v3451 = vshrl.u32 %v3450, 7
    %v3452 = vsub.s32 %v3449, %v3451
    %v3453 = vrot.slane %v3439, %v3452
    %v3454 = vcombine.low %v3398, %v3414
    %v3455 = vcombine.high %v3398, %v3414
    %v3457 = vunpack.c.l.s4 1934713408
    %v3458 = vunpack.c.0.s8 %v3457
    %v3459 = vlaneseq
    %v3460 = vshrl.u32 %v3459, 7
    %v3461 = vsub.s32 %v3458, %v3460
    %v3462 = vrot.slane %v3454, %v3461
    %v3464 = vunpack.c.l.s4 1934713408
    %v3465 = vunpack.c.0.s8 %v3464
    %v3466 = vlaneseq
    %v3467 = vshrl.u32 %v3466, 7
    %v3468 = vsub.s32 %v3465, %v3467
    %v3469 = vrot.slane %v3455, %v3468
    %v3470 = vcombine.low %v3405, %v3421
    %v3471 = vcombine.high %v3405, %v3421
    %v3473 = vunpack.c.l.s4 1934713408
    %v3474 = vunpack.c.0.s8 %v3473
    %v3475 = vlaneseq
    %v3476 = vshrl.u32 %v3475, 7
    %v3477 = vsub.s32 %v3474, %v3476
    %v3478 = vrot.slane %v3470, %v3477
    %v3480 = vunpack.c.l.s4 1934713408
    %v3481 = vunpack.c.0.s8 %v3480
    %v3482 = vlaneseq
    %v3483 = vshrl.u32 %v3482, 7
    %v3484 = vsub.s32 %v3481, %v3483
    %v3485 = vrot.slane %v3471, %v3484
    %v3486 = vcombine.low %v3430, %v3446
    %v3487 = vcombine.high %v3430, %v3446
    %v3489 = vunpack.c.l.s4 1934713408
    %v3490 = vunpack.c.0.s8 %v3489
    %v3491 = vlaneseq
    %v3492 = vshrl.u32 %v3491, 7
    %v3493 = vsub.s32 %v3490, %v3492
    %v3494 = vrot.slane %v3486, %v3493
    %v3496 = vunpack.c.l.s4 1934713408
    %v3497 = vunpack.c.0.s8 %v3496
    %v3498 = vlaneseq
    %v3499 = vshrl.u32 %v3498, 7
    %v3500 = vsub.s32 %v3497, %v3499
    %v3501 = vrot.slane %v3487, %v3500
    %v3502 = vcombine.low %v3437, %v3453
    %v3503 = vcombine.high %v3437, %v3453
    %v3505 = vunpack.c.l.s4 1934713408
    %v3506 = vunpack.c.0.s8 %v3505
    %v3507 = vlaneseq
    %v3508 = vshrl.u32 %v3507, 7
    %v3509 = vsub.s32 %v3506, %v3508
    %v3510 = vrot.slane %v3502, %v3509
    %v3512 = vunpack.c.l.s4 1934713408
    %v3513 = vunpack.c.0.s8 %v3512
    %v3514 = vlaneseq
    %v3515 = vshrl.u32 %v3514, 7
    %v3516 = vsub.s32 %v3513, %v3515
    %v3517 = vrot.slane %v3503, %v3516
    %v3518 = vcombine.low %v3462, %v3494
    %v3519 = vcombine.high %v3462, %v3494
    %v3520 = vcombine.low %v3469, %v3501
    %v3521 = vcombine.high %v3469, %v3501
    %v3522 = vcombine.low %v3478, %v3510
    %v3523 = vcombine.high %v3478, %v3510
    %v3524 = vcombine.low %v3485, %v3517
    %v3525 = vcombine.high %v3485, %v3517
    %v3527 = vsel %vm1046, %v3246, 0
    %v3530 = vsel %vm1046, %v3382, 0
    %3532 = vmatprep.subr.mxu0 0.0
    %3533 = vmatpush1.xpose.msra.mxu0 0.0
    %3534 = vmatprep.subr.mxu0 0.0
    %3535 = vmatpush1.xpose.msra.mxu0 0.0
    %3536 = vmatprep.subr.mxu0 0.0
    %3537 = vmatpush1.xpose.msra.mxu0 0.0
    %3538 = vmatprep.subr.mxu0 0.0
    %3539 = vmatpush1.xpose.msra.mxu0 0.0
    %3540 = vmatprep.subr.mxu0 0.0
    %3541 = vmatpush1.xpose.msra.mxu0 0.0
    %3542 = vmatprep.subr.mxu0 0.0
    %3543 = vmatpush1.xpose.msra.mxu0 0.0
    %3544 = vmatprep.subr.mxu0 0.0
    %3545 = vmatpush1.xpose.msra.mxu0 0.0
    %3546 = vmatprep.subr.mxu0 0.0
    %3547 = vmatpush1.xpose.msra.mxu0 0.0
    %3548 = vmatprep.subr.mxu0 0.0
    %3549 = vmatpush1.xpose.msra.mxu0 0.0
    %3550 = vmatprep.subr.mxu0 0.0
    %3551 = vmatpush1.xpose.msra.mxu0 0.0
    %3552 = vmatprep.subr.mxu0 0.0
    %3553 = vmatpush1.xpose.msra.mxu0 0.0
    %3554 = vmatprep.subr.mxu0 0.0
    %3555 = vmatpush1.xpose.msra.mxu0 0.0
    %3556 = vmatprep.subr.mxu0 0.0
    %3557 = vmatpush1.xpose.msra.mxu0 0.0
    %3558 = vmatprep.subr.mxu0 0.0
    %3559 = vmatpush1.xpose.msra.mxu0 0.0
    %3560 = vmatprep.subr.mxu0 0.0
    %3561 = vmatpush1.xpose.msra.mxu0 0.0
    %3562 = vmatprep.subr.mxu0 0.0
    %3563 = vmatpush1.xpose.msra.mxu0 %v3530
    %3564 = vmatprep.subr.mxu0 0.0
    %3565 = vmatpush2.xpose.msra.mxu0 0.0
    %3566 = vmatprep.subr.mxu0 0.0
    %3567 = vmatpush2.xpose.msra.mxu0 0.0
    %3568 = vmatprep.subr.mxu0 0.0
    %3569 = vmatpush2.xpose.msra.mxu0 0.0
    %3570 = vmatprep.subr.mxu0 0.0
    %3571 = vmatpush2.xpose.msra.mxu0 0.0
    %3572 = vmatprep.subr.mxu0 0.0
    %3573 = vmatpush2.xpose.msra.mxu0 0.0
    %3574 = vmatprep.subr.mxu0 0.0
    %3575 = vmatpush2.xpose.msra.mxu0 0.0
    %3576 = vmatprep.subr.mxu0 0.0
    %3577 = vmatpush2.xpose.msra.mxu0 0.0
    %3578 = vmatprep.subr.mxu0 0.0
    %3579 = vmatpush2.xpose.msra.mxu0 0.0
    %3580 = vmatprep.subr.mxu0 0.0
    %3581 = vmatpush2.xpose.msra.mxu0 0.0
    %3582 = vmatprep.subr.mxu0 0.0
    %3583 = vmatpush2.xpose.msra.mxu0 0.0
    %3584 = vmatprep.subr.mxu0 0.0
    %3585 = vmatpush2.xpose.msra.mxu0 0.0
    %3586 = vmatprep.subr.mxu0 0.0
    %3587 = vmatpush2.xpose.msra.mxu0 0.0
    %3588 = vmatprep.subr.mxu0 0.0
    %3589 = vmatpush2.xpose.msra.mxu0 0.0
    %3590 = vmatprep.subr.mxu0 0.0
    %3591 = vmatpush2.xpose.msra.mxu0 0.0
    %3592 = vmatprep.subr.mxu0 0.0
    %3593 = vmatpush2.xpose.msra.mxu0 0.0
    %3594 = vmatprep.subr.mxu0 0.0
    %3595 = vmatpush2.xpose.msra.mxu0 0.0
    %3596 = vmatprep.mubr.f32.mxu0 0.0
    %3597 = vmatmul.mubr.f32.gmra.mxu0 %v3527
    %v3598 = vpop.f32.mrf.mxu0
    %v3599 = vadd.f32 0.0, %v3598
    %v3600 = vpop.f32.mrf.mxu0
    %3601 = vdwg.mxu0
    %v3603 = vsel %vm1046, %v3247, 0
    %v3606 = vsel %vm1046, %v3383, 0
    %3608 = vmatprep.subr.mxu0 0.0
    %3609 = vmatpush1.xpose.msra.mxu0 0.0
    %3610 = vmatprep.subr.mxu0 0.0
    %3611 = vmatpush1.xpose.msra.mxu0 0.0
    %3612 = vmatprep.subr.mxu0 0.0
    %3613 = vmatpush1.xpose.msra.mxu0 0.0
    %3614 = vmatprep.subr.mxu0 0.0
    %3615 = vmatpush1.xpose.msra.mxu0 0.0
    %3616 = vmatprep.subr.mxu0 0.0
    %3617 = vmatpush1.xpose.msra.mxu0 0.0
    %3618 = vmatprep.subr.mxu0 0.0
    %3619 = vmatpush1.xpose.msra.mxu0 0.0
    %3620 = vmatprep.subr.mxu0 0.0
    %3621 = vmatpush1.xpose.msra.mxu0 0.0
    %3622 = vmatprep.subr.mxu0 0.0
    %3623 = vmatpush1.xpose.msra.mxu0 0.0
    %3624 = vmatprep.subr.mxu0 0.0
    %3625 = vmatpush1.xpose.msra.mxu0 0.0
    %3626 = vmatprep.subr.mxu0 0.0
    %3627 = vmatpush1.xpose.msra.mxu0 0.0
    %3628 = vmatprep.subr.mxu0 0.0
    %3629 = vmatpush1.xpose.msra.mxu0 0.0
    %3630 = vmatprep.subr.mxu0 0.0
    %3631 = vmatpush1.xpose.msra.mxu0 0.0
    %3632 = vmatprep.subr.mxu0 0.0
    %3633 = vmatpush1.xpose.msra.mxu0 0.0
    %3634 = vmatprep.subr.mxu0 0.0
    %3635 = vmatpush1.xpose.msra.mxu0 0.0
    %3636 = vmatprep.subr.mxu0 0.0
    %3637 = vmatpush1.xpose.msra.mxu0 0.0
    %3638 = vmatprep.subr.mxu0 0.0
    %3639 = vmatpush1.xpose.msra.mxu0 %v3606
    %3640 = vmatprep.subr.mxu0 0.0
    %3641 = vmatpush2.xpose.msra.mxu0 0.0
    %3642 = vmatprep.subr.mxu0 0.0
    %3643 = vmatpush2.xpose.msra.mxu0 0.0
    %3644 = vmatprep.subr.mxu0 0.0
    %3645 = vmatpush2.xpose.msra.mxu0 0.0
    %3646 = vmatprep.subr.mxu0 0.0
    %3647 = vmatpush2.xpose.msra.mxu0 0.0
    %3648 = vmatprep.subr.mxu0 0.0
    %3649 = vmatpush2.xpose.msra.mxu0 0.0
    %3650 = vmatprep.subr.mxu0 0.0
    %3651 = vmatpush2.xpose.msra.mxu0 0.0
    %3652 = vmatprep.subr.mxu0 0.0
    %3653 = vmatpush2.xpose.msra.mxu0 0.0
    %3654 = vmatprep.subr.mxu0 0.0
    %3655 = vmatpush2.xpose.msra.mxu0 0.0
    %3656 = vmatprep.subr.mxu0 0.0
    %3657 = vmatpush2.xpose.msra.mxu0 0.0
    %3658 = vmatprep.subr.mxu0 0.0
    %3659 = vmatpush2.xpose.msra.mxu0 0.0
    %3660 = vmatprep.subr.mxu0 0.0
    %3661 = vmatpush2.xpose.msra.mxu0 0.0
    %3662 = vmatprep.subr.mxu0 0.0
    %3663 = vmatpush2.xpose.msra.mxu0 0.0
    %3664 = vmatprep.subr.mxu0 0.0
    %3665 = vmatpush2.xpose.msra.mxu0 0.0
    %3666 = vmatprep.subr.mxu0 0.0
    %3667 = vmatpush2.xpose.msra.mxu0 0.0
    %3668 = vmatprep.subr.mxu0 0.0
    %3669 = vmatpush2.xpose.msra.mxu0 0.0
    %3670 = vmatprep.subr.mxu0 0.0
    %3671 = vmatpush2.xpose.msra.mxu0 0.0
    %3672 = vmatprep.mubr.f32.mxu0 0.0
    %3673 = vmatmul.mubr.f32.gmra.mxu0 %v3603
    %v3674 = vpop.f32.mrf.mxu0
    %v3675 = vadd.f32 0.0, %v3674
    %v3676 = vpop.f32.mrf.mxu0
    %3677 = vdwg.mxu0
    %v3679 = vsel %vm1046, %v3248, 0
    %v3682 = vsel %vm1046, %v3384, 0
    %3684 = vmatprep.subr.mxu0 0.0
    %3685 = vmatpush1.xpose.msra.mxu0 0.0
    %3686 = vmatprep.subr.mxu0 0.0
    %3687 = vmatpush1.xpose.msra.mxu0 0.0
    %3688 = vmatprep.subr.mxu0 0.0
    %3689 = vmatpush1.xpose.msra.mxu0 0.0
    %3690 = vmatprep.subr.mxu0 0.0
    %3691 = vmatpush1.xpose.msra.mxu0 0.0
    %3692 = vmatprep.subr.mxu0 0.0
    %3693 = vmatpush1.xpose.msra.mxu0 0.0
    %3694 = vmatprep.subr.mxu0 0.0
    %3695 = vmatpush1.xpose.msra.mxu0 0.0
    %3696 = vmatprep.subr.mxu0 0.0
    %3697 = vmatpush1.xpose.msra.mxu0 0.0
    %3698 = vmatprep.subr.mxu0 0.0
    %3699 = vmatpush1.xpose.msra.mxu0 0.0
    %3700 = vmatprep.subr.mxu0 0.0
    %3701 = vmatpush1.xpose.msra.mxu0 0.0
    %3702 = vmatprep.subr.mxu0 0.0
    %3703 = vmatpush1.xpose.msra.mxu0 0.0
    %3704 = vmatprep.subr.mxu0 0.0
    %3705 = vmatpush1.xpose.msra.mxu0 0.0
    %3706 = vmatprep.subr.mxu0 0.0
    %3707 = vmatpush1.xpose.msra.mxu0 0.0
    %3708 = vmatprep.subr.mxu0 0.0
    %3709 = vmatpush1.xpose.msra.mxu0 0.0
    %3710 = vmatprep.subr.mxu0 0.0
    %3711 = vmatpush1.xpose.msra.mxu0 0.0
    %3712 = vmatprep.subr.mxu0 0.0
    %3713 = vmatpush1.xpose.msra.mxu0 0.0
    %3714 = vmatprep.subr.mxu0 0.0
    %3715 = vmatpush1.xpose.msra.mxu0 %v3682
    %3716 = vmatprep.subr.mxu0 0.0
    %3717 = vmatpush2.xpose.msra.mxu0 0.0
    %3718 = vmatprep.subr.mxu0 0.0
    %3719 = vmatpush2.xpose.msra.mxu0 0.0
    %3720 = vmatprep.subr.mxu0 0.0
    %3721 = vmatpush2.xpose.msra.mxu0 0.0
    %3722 = vmatprep.subr.mxu0 0.0
    %3723 = vmatpush2.xpose.msra.mxu0 0.0
    %3724 = vmatprep.subr.mxu0 0.0
    %3725 = vmatpush2.xpose.msra.mxu0 0.0
    %3726 = vmatprep.subr.mxu0 0.0
    %3727 = vmatpush2.xpose.msra.mxu0 0.0
    %3728 = vmatprep.subr.mxu0 0.0
    %3729 = vmatpush2.xpose.msra.mxu0 0.0
    %3730 = vmatprep.subr.mxu0 0.0
    %3731 = vmatpush2.xpose.msra.mxu0 0.0
    %3732 = vmatprep.subr.mxu0 0.0
    %3733 = vmatpush2.xpose.msra.mxu0 0.0
    %3734 = vmatprep.subr.mxu0 0.0
    %3735 = vmatpush2.xpose.msra.mxu0 0.0
    %3736 = vmatprep.subr.mxu0 0.0
    %3737 = vmatpush2.xpose.msra.mxu0 0.0
    %3738 = vmatprep.subr.mxu0 0.0
    %3739 = vmatpush2.xpose.msra.mxu0 0.0
    %3740 = vmatprep.subr.mxu0 0.0
    %3741 = vmatpush2.xpose.msra.mxu0 0.0
    %3742 = vmatprep.subr.mxu0 0.0
    %3743 = vmatpush2.xpose.msra.mxu0 0.0
    %3744 = vmatprep.subr.mxu0 0.0
    %3745 = vmatpush2.xpose.msra.mxu0 0.0
    %3746 = vmatprep.subr.mxu0 0.0
    %3747 = vmatpush2.xpose.msra.mxu0 0.0
    %3748 = vmatprep.mubr.f32.mxu0 0.0
    %3749 = vmatmul.mubr.f32.gmra.mxu0 %v3679
    %v3750 = vpop.f32.mrf.mxu0
    %v3751 = vadd.f32 0.0, %v3750
    %v3752 = vpop.f32.mrf.mxu0
    %3753 = vdwg.mxu0
    %v3755 = vsel %vm1046, %v3249, 0
    %v3758 = vsel %vm1046, %v3385, 0
    %3760 = vmatprep.subr.mxu0 0.0
    %3761 = vmatpush1.xpose.msra.mxu0 0.0
    %3762 = vmatprep.subr.mxu0 0.0
    %3763 = vmatpush1.xpose.msra.mxu0 0.0
    %3764 = vmatprep.subr.mxu0 0.0
    %3765 = vmatpush1.xpose.msra.mxu0 0.0
    %3766 = vmatprep.subr.mxu0 0.0
    %3767 = vmatpush1.xpose.msra.mxu0 0.0
    %3768 = vmatprep.subr.mxu0 0.0
    %3769 = vmatpush1.xpose.msra.mxu0 0.0
    %3770 = vmatprep.subr.mxu0 0.0
    %3771 = vmatpush1.xpose.msra.mxu0 0.0
    %3772 = vmatprep.subr.mxu0 0.0
    %3773 = vmatpush1.xpose.msra.mxu0 0.0
    %3774 = vmatprep.subr.mxu0 0.0
    %3775 = vmatpush1.xpose.msra.mxu0 0.0
    %3776 = vmatprep.subr.mxu0 0.0
    %3777 = vmatpush1.xpose.msra.mxu0 0.0
    %3778 = vmatprep.subr.mxu0 0.0
    %3779 = vmatpush1.xpose.msra.mxu0 0.0
    %3780 = vmatprep.subr.mxu0 0.0
    %3781 = vmatpush1.xpose.msra.mxu0 0.0
    %3782 = vmatprep.subr.mxu0 0.0
    %3783 = vmatpush1.xpose.msra.mxu0 0.0
    %3784 = vmatprep.subr.mxu0 0.0
    %3785 = vmatpush1.xpose.msra.mxu0 0.0
    %3786 = vmatprep.subr.mxu0 0.0
    %3787 = vmatpush1.xpose.msra.mxu0 0.0
    %3788 = vmatprep.subr.mxu0 0.0
    %3789 = vmatpush1.xpose.msra.mxu0 0.0
    %3790 = vmatprep.subr.mxu0 0.0
    %3791 = vmatpush1.xpose.msra.mxu0 %v3758
    %3792 = vmatprep.subr.mxu0 0.0
    %3793 = vmatpush2.xpose.msra.mxu0 0.0
    %3794 = vmatprep.subr.mxu0 0.0
    %3795 = vmatpush2.xpose.msra.mxu0 0.0
    %3796 = vmatprep.subr.mxu0 0.0
    %3797 = vmatpush2.xpose.msra.mxu0 0.0
    %3798 = vmatprep.subr.mxu0 0.0
    %3799 = vmatpush2.xpose.msra.mxu0 0.0
    %3800 = vmatprep.subr.mxu0 0.0
    %3801 = vmatpush2.xpose.msra.mxu0 0.0
    %3802 = vmatprep.subr.mxu0 0.0
    %3803 = vmatpush2.xpose.msra.mxu0 0.0
    %3804 = vmatprep.subr.mxu0 0.0
    %3805 = vmatpush2.xpose.msra.mxu0 0.0
    %3806 = vmatprep.subr.mxu0 0.0
    %3807 = vmatpush2.xpose.msra.mxu0 0.0
    %3808 = vmatprep.subr.mxu0 0.0
    %3809 = vmatpush2.xpose.msra.mxu0 0.0
    %3810 = vmatprep.subr.mxu0 0.0
    %3811 = vmatpush2.xpose.msra.mxu0 0.0
    %3812 = vmatprep.subr.mxu0 0.0
    %3813 = vmatpush2.xpose.msra.mxu0 0.0
    %3814 = vmatprep.subr.mxu0 0.0
    %3815 = vmatpush2.xpose.msra.mxu0 0.0
    %3816 = vmatprep.subr.mxu0 0.0
    %3817 = vmatpush2.xpose.msra.mxu0 0.0
    %3818 = vmatprep.subr.mxu0 0.0
    %3819 = vmatpush2.xpose.msra.mxu0 0.0
    %3820 = vmatprep.subr.mxu0 0.0
    %3821 = vmatpush2.xpose.msra.mxu0 0.0
    %3822 = vmatprep.subr.mxu0 0.0
    %3823 = vmatpush2.xpose.msra.mxu0 0.0
    %3824 = vmatprep.mubr.f32.mxu0 0.0
    %3825 = vmatmul.mubr.f32.gmra.mxu0 %v3755
    %v3826 = vpop.f32.mrf.mxu0
    %v3827 = vadd.f32 0.0, %v3826
    %v3828 = vpop.f32.mrf.mxu0
    %3829 = vdwg.mxu0
    %v3831 = vsel %vm1046, %v3250, 0
    %v3834 = vsel %vm1046, %v3386, 0
    %3836 = vmatprep.subr.mxu0 0.0
    %3837 = vmatpush1.xpose.msra.mxu0 0.0
    %3838 = vmatprep.subr.mxu0 0.0
    %3839 = vmatpush1.xpose.msra.mxu0 0.0
    %3840 = vmatprep.subr.mxu0 0.0
    %3841 = vmatpush1.xpose.msra.mxu0 0.0
    %3842 = vmatprep.subr.mxu0 0.0
    %3843 = vmatpush1.xpose.msra.mxu0 0.0
    %3844 = vmatprep.subr.mxu0 0.0
    %3845 = vmatpush1.xpose.msra.mxu0 0.0
    %3846 = vmatprep.subr.mxu0 0.0
    %3847 = vmatpush1.xpose.msra.mxu0 0.0
    %3848 = vmatprep.subr.mxu0 0.0
    %3849 = vmatpush1.xpose.msra.mxu0 0.0
    %3850 = vmatprep.subr.mxu0 0.0
    %3851 = vmatpush1.xpose.msra.mxu0 0.0
    %3852 = vmatprep.subr.mxu0 0.0
    %3853 = vmatpush1.xpose.msra.mxu0 0.0
    %3854 = vmatprep.subr.mxu0 0.0
    %3855 = vmatpush1.xpose.msra.mxu0 0.0
    %3856 = vmatprep.subr.mxu0 0.0
    %3857 = vmatpush1.xpose.msra.mxu0 0.0
    %3858 = vmatprep.subr.mxu0 0.0
    %3859 = vmatpush1.xpose.msra.mxu0 0.0
    %3860 = vmatprep.subr.mxu0 0.0
    %3861 = vmatpush1.xpose.msra.mxu0 0.0
    %3862 = vmatprep.subr.mxu0 0.0
    %3863 = vmatpush1.xpose.msra.mxu0 0.0
    %3864 = vmatprep.subr.mxu0 0.0
    %3865 = vmatpush1.xpose.msra.mxu0 0.0
    %3866 = vmatprep.subr.mxu0 0.0
    %3867 = vmatpush1.xpose.msra.mxu0 %v3834
    %3868 = vmatprep.subr.mxu0 0.0
    %3869 = vmatpush2.xpose.msra.mxu0 0.0
    %3870 = vmatprep.subr.mxu0 0.0
    %3871 = vmatpush2.xpose.msra.mxu0 0.0
    %3872 = vmatprep.subr.mxu0 0.0
    %3873 = vmatpush2.xpose.msra.mxu0 0.0
    %3874 = vmatprep.subr.mxu0 0.0
    %3875 = vmatpush2.xpose.msra.mxu0 0.0
    %3876 = vmatprep.subr.mxu0 0.0
    %3877 = vmatpush2.xpose.msra.mxu0 0.0
    %3878 = vmatprep.subr.mxu0 0.0
    %3879 = vmatpush2.xpose.msra.mxu0 0.0
    %3880 = vmatprep.subr.mxu0 0.0
    %3881 = vmatpush2.xpose.msra.mxu0 0.0
    %3882 = vmatprep.subr.mxu0 0.0
    %3883 = vmatpush2.xpose.msra.mxu0 0.0
    %3884 = vmatprep.subr.mxu0 0.0
    %3885 = vmatpush2.xpose.msra.mxu0 0.0
    %3886 = vmatprep.subr.mxu0 0.0
    %3887 = vmatpush2.xpose.msra.mxu0 0.0
    %3888 = vmatprep.subr.mxu0 0.0
    %3889 = vmatpush2.xpose.msra.mxu0 0.0
    %3890 = vmatprep.subr.mxu0 0.0
    %3891 = vmatpush2.xpose.msra.mxu0 0.0
    %3892 = vmatprep.subr.mxu0 0.0
    %3893 = vmatpush2.xpose.msra.mxu0 0.0
    %3894 = vmatprep.subr.mxu0 0.0
    %3895 = vmatpush2.xpose.msra.mxu0 0.0
    %3896 = vmatprep.subr.mxu0 0.0
    %3897 = vmatpush2.xpose.msra.mxu0 0.0
    %3898 = vmatprep.subr.mxu0 0.0
    %3899 = vmatpush2.xpose.msra.mxu0 0.0
    %3900 = vmatprep.mubr.f32.mxu0 0.0
    %3901 = vmatmul.mubr.f32.gmra.mxu0 %v3831
    %v3902 = vpop.f32.mrf.mxu0
    %v3903 = vadd.f32 0.0, %v3902
    %v3904 = vpop.f32.mrf.mxu0
    %3905 = vdwg.mxu0
    %v3907 = vsel %vm1046, %v3251, 0
    %v3910 = vsel %vm1046, %v3387, 0
    %3912 = vmatprep.subr.mxu0 0.0
    %3913 = vmatpush1.xpose.msra.mxu0 0.0
    %3914 = vmatprep.subr.mxu0 0.0
    %3915 = vmatpush1.xpose.msra.mxu0 0.0
    %3916 = vmatprep.subr.mxu0 0.0
    %3917 = vmatpush1.xpose.msra.mxu0 0.0
    %3918 = vmatprep.subr.mxu0 0.0
    %3919 = vmatpush1.xpose.msra.mxu0 0.0
    %3920 = vmatprep.subr.mxu0 0.0
    %3921 = vmatpush1.xpose.msra.mxu0 0.0
    %3922 = vmatprep.subr.mxu0 0.0
    %3923 = vmatpush1.xpose.msra.mxu0 0.0
    %3924 = vmatprep.subr.mxu0 0.0
    %3925 = vmatpush1.xpose.msra.mxu0 0.0
    %3926 = vmatprep.subr.mxu0 0.0
    %3927 = vmatpush1.xpose.msra.mxu0 0.0
    %3928 = vmatprep.subr.mxu0 0.0
    %3929 = vmatpush1.xpose.msra.mxu0 0.0
    %3930 = vmatprep.subr.mxu0 0.0
    %3931 = vmatpush1.xpose.msra.mxu0 0.0
    %3932 = vmatprep.subr.mxu0 0.0
    %3933 = vmatpush1.xpose.msra.mxu0 0.0
    %3934 = vmatprep.subr.mxu0 0.0
    %3935 = vmatpush1.xpose.msra.mxu0 0.0
    %3936 = vmatprep.subr.mxu0 0.0
    %3937 = vmatpush1.xpose.msra.mxu0 0.0
    %3938 = vmatprep.subr.mxu0 0.0
    %3939 = vmatpush1.xpose.msra.mxu0 0.0
    %3940 = vmatprep.subr.mxu0 0.0
    %3941 = vmatpush1.xpose.msra.mxu0 0.0
    %3942 = vmatprep.subr.mxu0 0.0
    %3943 = vmatpush1.xpose.msra.mxu0 %v3910
    %3944 = vmatprep.subr.mxu0 0.0
    %3945 = vmatpush2.xpose.msra.mxu0 0.0
    %3946 = vmatprep.subr.mxu0 0.0
    %3947 = vmatpush2.xpose.msra.mxu0 0.0
    %3948 = vmatprep.subr.mxu0 0.0
    %3949 = vmatpush2.xpose.msra.mxu0 0.0
    %3950 = vmatprep.subr.mxu0 0.0
    %3951 = vmatpush2.xpose.msra.mxu0 0.0
    %3952 = vmatprep.subr.mxu0 0.0
    %3953 = vmatpush2.xpose.msra.mxu0 0.0
    %3954 = vmatprep.subr.mxu0 0.0
    %3955 = vmatpush2.xpose.msra.mxu0 0.0
    %3956 = vmatprep.subr.mxu0 0.0
    %3957 = vmatpush2.xpose.msra.mxu0 0.0
    %3958 = vmatprep.subr.mxu0 0.0
    %3959 = vmatpush2.xpose.msra.mxu0 0.0
    %3960 = vmatprep.subr.mxu0 0.0
    %3961 = vmatpush2.xpose.msra.mxu0 0.0
    %3962 = vmatprep.subr.mxu0 0.0
    %3963 = vmatpush2.xpose.msra.mxu0 0.0
    %3964 = vmatprep.subr.mxu0 0.0
    %3965 = vmatpush2.xpose.msra.mxu0 0.0
    %3966 = vmatprep.subr.mxu0 0.0
    %3967 = vmatpush2.xpose.msra.mxu0 0.0
    %3968 = vmatprep.subr.mxu0 0.0
    %3969 = vmatpush2.xpose.msra.mxu0 0.0
    %3970 = vmatprep.subr.mxu0 0.0
    %3971 = vmatpush2.xpose.msra.mxu0 0.0
    %3972 = vmatprep.subr.mxu0 0.0
    %3973 = vmatpush2.xpose.msra.mxu0 0.0
    %3974 = vmatprep.subr.mxu0 0.0
    %3975 = vmatpush2.xpose.msra.mxu0 0.0
    %3976 = vmatprep.mubr.f32.mxu0 0.0
    %3977 = vmatmul.mubr.f32.gmra.mxu0 %v3907
    %v3978 = vpop.f32.mrf.mxu0
    %v3979 = vadd.f32 0.0, %v3978
    %v3980 = vpop.f32.mrf.mxu0
    %3981 = vdwg.mxu0
    %v3983 = vsel %vm1046, %v3252, 0
    %v3986 = vsel %vm1046, %v3388, 0
    %3988 = vmatprep.subr.mxu0 0.0
    %3989 = vmatpush1.xpose.msra.mxu0 0.0
    %3990 = vmatprep.subr.mxu0 0.0
    %3991 = vmatpush1.xpose.msra.mxu0 0.0
    %3992 = vmatprep.subr.mxu0 0.0
    %3993 = vmatpush1.xpose.msra.mxu0 0.0
    %3994 = vmatprep.subr.mxu0 0.0
    %3995 = vmatpush1.xpose.msra.mxu0 0.0
    %3996 = vmatprep.subr.mxu0 0.0
    %3997 = vmatpush1.xpose.msra.mxu0 0.0
    %3998 = vmatprep.subr.mxu0 0.0
    %3999 = vmatpush1.xpose.msra.mxu0 0.0
    %4000 = vmatprep.subr.mxu0 0.0
    %4001 = vmatpush1.xpose.msra.mxu0 0.0
    %4002 = vmatprep.subr.mxu0 0.0
    %4003 = vmatpush1.xpose.msra.mxu0 0.0
    %4004 = vmatprep.subr.mxu0 0.0
    %4005 = vmatpush1.xpose.msra.mxu0 0.0
    %4006 = vmatprep.subr.mxu0 0.0
    %4007 = vmatpush1.xpose.msra.mxu0 0.0
    %4008 = vmatprep.subr.mxu0 0.0
    %4009 = vmatpush1.xpose.msra.mxu0 0.0
    %4010 = vmatprep.subr.mxu0 0.0
    %4011 = vmatpush1.xpose.msra.mxu0 0.0
    %4012 = vmatprep.subr.mxu0 0.0
    %4013 = vmatpush1.xpose.msra.mxu0 0.0
    %4014 = vmatprep.subr.mxu0 0.0
    %4015 = vmatpush1.xpose.msra.mxu0 0.0
    %4016 = vmatprep.subr.mxu0 0.0
    %4017 = vmatpush1.xpose.msra.mxu0 0.0
    %4018 = vmatprep.subr.mxu0 0.0
    %4019 = vmatpush1.xpose.msra.mxu0 %v3986
    %4020 = vmatprep.subr.mxu0 0.0
    %4021 = vmatpush2.xpose.msra.mxu0 0.0
    %4022 = vmatprep.subr.mxu0 0.0
    %4023 = vmatpush2.xpose.msra.mxu0 0.0
    %4024 = vmatprep.subr.mxu0 0.0
    %4025 = vmatpush2.xpose.msra.mxu0 0.0
    %4026 = vmatprep.subr.mxu0 0.0
    %4027 = vmatpush2.xpose.msra.mxu0 0.0
    %4028 = vmatprep.subr.mxu0 0.0
    %4029 = vmatpush2.xpose.msra.mxu0 0.0
    %4030 = vmatprep.subr.mxu0 0.0
    %4031 = vmatpush2.xpose.msra.mxu0 0.0
    %4032 = vmatprep.subr.mxu0 0.0
    %4033 = vmatpush2.xpose.msra.mxu0 0.0
    %4034 = vmatprep.subr.mxu0 0.0
    %4035 = vmatpush2.xpose.msra.mxu0 0.0
    %4036 = vmatprep.subr.mxu0 0.0
    %4037 = vmatpush2.xpose.msra.mxu0 0.0
    %4038 = vmatprep.subr.mxu0 0.0
    %4039 = vmatpush2.xpose.msra.mxu0 0.0
    %4040 = vmatprep.subr.mxu0 0.0
    %4041 = vmatpush2.xpose.msra.mxu0 0.0
    %4042 = vmatprep.subr.mxu0 0.0
    %4043 = vmatpush2.xpose.msra.mxu0 0.0
    %4044 = vmatprep.subr.mxu0 0.0
    %4045 = vmatpush2.xpose.msra.mxu0 0.0
    %4046 = vmatprep.subr.mxu0 0.0
    %4047 = vmatpush2.xpose.msra.mxu0 0.0
    %4048 = vmatprep.subr.mxu0 0.0
    %4049 = vmatpush2.xpose.msra.mxu0 0.0
    %4050 = vmatprep.subr.mxu0 0.0
    %4051 = vmatpush2.xpose.msra.mxu0 0.0
    %4052 = vmatprep.mubr.f32.mxu0 0.0
    %4053 = vmatmul.mubr.f32.gmra.mxu0 %v3983
    %v4054 = vpop.f32.mrf.mxu0
    %v4055 = vadd.f32 0.0, %v4054
    %v4056 = vpop.f32.mrf.mxu0
    %4057 = vdwg.mxu0
    %v4059 = vsel %vm1046, %v3253, 0
    %v4062 = vsel %vm1046, %v3389, 0
    %4064 = vmatprep.subr.mxu0 0.0
    %4065 = vmatpush1.xpose.msra.mxu0 0.0
    %4066 = vmatprep.subr.mxu0 0.0
    %4067 = vmatpush1.xpose.msra.mxu0 0.0
    %4068 = vmatprep.subr.mxu0 0.0
    %4069 = vmatpush1.xpose.msra.mxu0 0.0
    %4070 = vmatprep.subr.mxu0 0.0
    %4071 = vmatpush1.xpose.msra.mxu0 0.0
    %4072 = vmatprep.subr.mxu0 0.0
    %4073 = vmatpush1.xpose.msra.mxu0 0.0
    %4074 = vmatprep.subr.mxu0 0.0
    %4075 = vmatpush1.xpose.msra.mxu0 0.0
    %4076 = vmatprep.subr.mxu0 0.0
    %4077 = vmatpush1.xpose.msra.mxu0 0.0
    %4078 = vmatprep.subr.mxu0 0.0
    %4079 = vmatpush1.xpose.msra.mxu0 0.0
    %4080 = vmatprep.subr.mxu0 0.0
    %4081 = vmatpush1.xpose.msra.mxu0 0.0
    %4082 = vmatprep.subr.mxu0 0.0
    %4083 = vmatpush1.xpose.msra.mxu0 0.0
    %4084 = vmatprep.subr.mxu0 0.0
    %4085 = vmatpush1.xpose.msra.mxu0 0.0
    %4086 = vmatprep.subr.mxu0 0.0
    %4087 = vmatpush1.xpose.msra.mxu0 0.0
    %4088 = vmatprep.subr.mxu0 0.0
    %4089 = vmatpush1.xpose.msra.mxu0 0.0
    %4090 = vmatprep.subr.mxu0 0.0
    %4091 = vmatpush1.xpose.msra.mxu0 0.0
    %4092 = vmatprep.subr.mxu0 0.0
    %4093 = vmatpush1.xpose.msra.mxu0 0.0
    %4094 = vmatprep.subr.mxu0 0.0
    %4095 = vmatpush1.xpose.msra.mxu0 %v4062
    %4096 = vmatprep.subr.mxu0 0.0
    %4097 = vmatpush2.xpose.msra.mxu0 0.0
    %4098 = vmatprep.subr.mxu0 0.0
    %4099 = vmatpush2.xpose.msra.mxu0 0.0
    %4100 = vmatprep.subr.mxu0 0.0
    %4101 = vmatpush2.xpose.msra.mxu0 0.0
    %4102 = vmatprep.subr.mxu0 0.0
    %4103 = vmatpush2.xpose.msra.mxu0 0.0
    %4104 = vmatprep.subr.mxu0 0.0
    %4105 = vmatpush2.xpose.msra.mxu0 0.0
    %4106 = vmatprep.subr.mxu0 0.0
    %4107 = vmatpush2.xpose.msra.mxu0 0.0
    %4108 = vmatprep.subr.mxu0 0.0
    %4109 = vmatpush2.xpose.msra.mxu0 0.0
    %4110 = vmatprep.subr.mxu0 0.0
    %4111 = vmatpush2.xpose.msra.mxu0 0.0
    %4112 = vmatprep.subr.mxu0 0.0
    %4113 = vmatpush2.xpose.msra.mxu0 0.0
    %4114 = vmatprep.subr.mxu0 0.0
    %4115 = vmatpush2.xpose.msra.mxu0 0.0
    %4116 = vmatprep.subr.mxu0 0.0
    %4117 = vmatpush2.xpose.msra.mxu0 0.0
    %4118 = vmatprep.subr.mxu0 0.0
    %4119 = vmatpush2.xpose.msra.mxu0 0.0
    %4120 = vmatprep.subr.mxu0 0.0
    %4121 = vmatpush2.xpose.msra.mxu0 0.0
    %4122 = vmatprep.subr.mxu0 0.0
    %4123 = vmatpush2.xpose.msra.mxu0 0.0
    %4124 = vmatprep.subr.mxu0 0.0
    %4125 = vmatpush2.xpose.msra.mxu0 0.0
    %4126 = vmatprep.subr.mxu0 0.0
    %4127 = vmatpush2.xpose.msra.mxu0 0.0
    %4128 = vmatprep.mubr.f32.mxu0 0.0
    %4129 = vmatmul.mubr.f32.gmra.mxu0 %v4059
    %v4130 = vpop.f32.mrf.mxu0
    %v4131 = vadd.f32 0.0, %v4130
    %v4132 = vpop.f32.mrf.mxu0
    %4133 = vdwg.mxu0
    %v4134 = vsel %vm1655, %v3599, -inf
    %4135 = vmax.xlane.f32.xlu0 %v4134
    %v4136 = vpop.xlane.xlu0 %4135
    %v4137 = vsel %vm1655, %v3675, -inf
    %4138 = vmax.xlane.f32.xlu0 %v4137
    %v4139 = vpop.xlane.xlu0 %4138
    %v4140 = vsel %vm1655, %v3751, -inf
    %4141 = vmax.xlane.f32.xlu0 %v4140
    %v4142 = vpop.xlane.xlu0 %4141
    %v4143 = vsel %vm1655, %v3827, -inf
    %4144 = vmax.xlane.f32.xlu0 %v4143
    %v4145 = vpop.xlane.xlu0 %4144
    %v4146 = vsel %vm1655, %v3903, -inf
    %4147 = vmax.xlane.f32.xlu0 %v4146
    %v4148 = vpop.xlane.xlu0 %4147
    %v4149 = vsel %vm1655, %v3979, -inf
    %4150 = vmax.xlane.f32.xlu0 %v4149
    %v4151 = vpop.xlane.xlu0 %4150
    %v4152 = vsel %vm1655, %v4055, -inf
    %4153 = vmax.xlane.f32.xlu0 %v4152
    %v4154 = vpop.xlane.xlu0 %4153
    %v4155 = vsel %vm1655, %v4131, -inf
    %4156 = vmax.xlane.f32.xlu0 %v4155
    %v4157 = vpop.xlane.xlu0 %4156
    %v4158 = vsub.f32 %v3599, %v4136
    %v4159 = vsub.f32 %v3675, %v4139
    %v4160 = vsub.f32 %v3751, %v4142
    %v4161 = vsub.f32 %v3827, %v4145
    %v4162 = vsub.f32 %v3903, %v4148
    %v4163 = vsub.f32 %v3979, %v4151
    %v4164 = vsub.f32 %v4055, %v4154
    %v4165 = vsub.f32 %v4131, %v4157
    %v4166 = vmul.f32 %v4158, 1.442695
    %v4167 = vpow.pop %v4166
    %v4168 = vmul.f32 %v4159, 1.442695
    %v4169 = vpow.pop %v4168
    %v4170 = vmul.f32 %v4160, 1.442695
    %v4171 = vpow.pop %v4170
    %v4172 = vmul.f32 %v4161, 1.442695
    %v4173 = vpow.pop %v4172
    %v4174 = vmul.f32 %v4162, 1.442695
    %v4175 = vpow.pop %v4174
    %v4176 = vmul.f32 %v4163, 1.442695
    %v4177 = vpow.pop %v4176
    %v4178 = vmul.f32 %v4164, 1.442695
    %v4179 = vpow.pop %v4178
    %v4180 = vmul.f32 %v4165, 1.442695
    %v4181 = vpow.pop %v4180
    %v4182 = vsel %vm1655, %v4167, 0.0
    %4183 = vadd.xlane.f32.xlu0 %v4182
    %v4184 = vpop.xlane.xlu0 %4183
    %v4185 = vsel %vm1655, %v4169, 0.0
    %4186 = vadd.xlane.f32.xlu0 %v4185
    %v4187 = vpop.xlane.xlu0 %4186
    %v4188 = vsel %vm1655, %v4171, 0.0
    %4189 = vadd.xlane.f32.xlu0 %v4188
    %v4190 = vpop.xlane.xlu0 %4189
    %v4191 = vsel %vm1655, %v4173, 0.0
    %4192 = vadd.xlane.f32.xlu0 %v4191
    %v4193 = vpop.xlane.xlu0 %4192
    %v4194 = vsel %vm1655, %v4175, 0.0
    %4195 = vadd.xlane.f32.xlu0 %v4194
    %v4196 = vpop.xlane.xlu0 %4195
    %v4197 = vsel %vm1655, %v4177, 0.0
    %4198 = vadd.xlane.f32.xlu0 %v4197
    %v4199 = vpop.xlane.xlu0 %4198
    %v4200 = vsel %vm1655, %v4179, 0.0
    %4201 = vadd.xlane.f32.xlu0 %v4200
    %v4202 = vpop.xlane.xlu0 %4201
    %v4203 = vsel %vm1655, %v4181, 0.0
    %4204 = vadd.xlane.f32.xlu0 %v4203
    %v4205 = vpop.xlane.xlu0 %4204
    %v4206 = vrcp.pop %v4184
    %v4207 = vrcp.pop %v4187
    %v4208 = vrcp.pop %v4190
    %v4209 = vrcp.pop %v4193
    %v4210 = vrcp.pop %v4196
    %v4211 = vrcp.pop %v4199
    %v4212 = vrcp.pop %v4202
    %v4213 = vrcp.pop %v4205
    %v4214 = vmul.f32 %v4167, %v4206
    %v4215 = vmul.f32 %v4169, %v4207
    %v4216 = vmul.f32 %v4171, %v4208
    %v4217 = vmul.f32 %v4173, %v4209
    %v4218 = vmul.f32 %v4175, %v4210
    %v4219 = vmul.f32 %v4177, %v4211
    %v4220 = vmul.f32 %v4179, %v4212
    %v4221 = vmul.f32 %v4181, %v4213
    %v4223 = vsel %vm1655, %v4214, 0
    %4225 = vmatprep.subr.mxu0 0.0
    %4226 = vmatpush1.msra.mxu0 0.0
    %4227 = vmatprep.subr.mxu0 0.0
    %4228 = vmatpush1.msra.mxu0 0.0
    %4229 = vmatprep.subr.mxu0 0.0
    %4230 = vmatpush1.msra.mxu0 0.0
    %4231 = vmatprep.subr.mxu0 0.0
    %4232 = vmatpush1.msra.mxu0 0.0
    %4233 = vmatprep.subr.mxu0 0.0
    %4234 = vmatpush1.msra.mxu0 0.0
    %4235 = vmatprep.subr.mxu0 0.0
    %4236 = vmatpush1.msra.mxu0 0.0
    %4237 = vmatprep.subr.mxu0 0.0
    %4238 = vmatpush1.msra.mxu0 0.0
    %4239 = vmatprep.subr.mxu0 0.0
    %4240 = vmatpush1.msra.mxu0 0.0
    %4241 = vmatprep.subr.mxu0 0.0
    %4242 = vmatpush1.msra.mxu0 0.0
    %4243 = vmatprep.subr.mxu0 0.0
    %4244 = vmatpush1.msra.mxu0 0.0
    %4245 = vmatprep.subr.mxu0 0.0
    %4246 = vmatpush1.msra.mxu0 0.0
    %4247 = vmatprep.subr.mxu0 0.0
    %4248 = vmatpush1.msra.mxu0 0.0
    %4249 = vmatprep.subr.mxu0 0.0
    %4250 = vmatpush1.msra.mxu0 0.0
    %4251 = vmatprep.subr.mxu0 0.0
    %4252 = vmatpush1.msra.mxu0 0.0
    %4253 = vmatprep.subr.mxu0 0.0
    %4254 = vmatpush1.msra.mxu0 0.0
    %4255 = vmatprep.subr.mxu0 0.0
    %4256 = vmatpush1.msra.mxu0 %v3518
    %4257 = vmatprep.subr.mxu0 0.0
    %4258 = vmatpush2.msra.mxu0 0.0
    %4259 = vmatprep.subr.mxu0 0.0
    %4260 = vmatpush2.msra.mxu0 0.0
    %4261 = vmatprep.subr.mxu0 0.0
    %4262 = vmatpush2.msra.mxu0 0.0
    %4263 = vmatprep.subr.mxu0 0.0
    %4264 = vmatpush2.msra.mxu0 0.0
    %4265 = vmatprep.subr.mxu0 0.0
    %4266 = vmatpush2.msra.mxu0 0.0
    %4267 = vmatprep.subr.mxu0 0.0
    %4268 = vmatpush2.msra.mxu0 0.0
    %4269 = vmatprep.subr.mxu0 0.0
    %4270 = vmatpush2.msra.mxu0 0.0
    %4271 = vmatprep.subr.mxu0 0.0
    %4272 = vmatpush2.msra.mxu0 0.0
    %4273 = vmatprep.subr.mxu0 0.0
    %4274 = vmatpush2.msra.mxu0 0.0
    %4275 = vmatprep.subr.mxu0 0.0
    %4276 = vmatpush2.msra.mxu0 0.0
    %4277 = vmatprep.subr.mxu0 0.0
    %4278 = vmatpush2.msra.mxu0 0.0
    %4279 = vmatprep.subr.mxu0 0.0
    %4280 = vmatpush2.msra.mxu0 0.0
    %4281 = vmatprep.subr.mxu0 0.0
    %4282 = vmatpush2.msra.mxu0 0.0
    %4283 = vmatprep.subr.mxu0 0.0
    %4284 = vmatpush2.msra.mxu0 0.0
    %4285 = vmatprep.subr.mxu0 0.0
    %4286 = vmatpush2.msra.mxu0 0.0
    %4287 = vmatprep.subr.mxu0 0.0
    %4288 = vmatpush2.msra.mxu0 0.0
    %4289 = vmatprep.mubr.f32.mxu0 0.0
    %4290 = vmatmul.mubr.f32.gmra.mxu0 %v4223
    %v4291 = vpop.f32.mrf.mxu0
    %v4292 = vadd.f32 0.0, %v4291
    %v4293 = vpop.f32.mrf.mxu0
    %4294 = vdwg.mxu0
    %v4296 = vsel %vm1655, %v4215, 0
    %4298 = vmatprep.subr.mxu0 0.0
    %4299 = vmatpush1.msra.mxu0 0.0
    %4300 = vmatprep.subr.mxu0 0.0
    %4301 = vmatpush1.msra.mxu0 0.0
    %4302 = vmatprep.subr.mxu0 0.0
    %4303 = vmatpush1.msra.mxu0 0.0
    %4304 = vmatprep.subr.mxu0 0.0
    %4305 = vmatpush1.msra.mxu0 0.0
    %4306 = vmatprep.subr.mxu0 0.0
    %4307 = vmatpush1.msra.mxu0 0.0
    %4308 = vmatprep.subr.mxu0 0.0
    %4309 = vmatpush1.msra.mxu0 0.0
    %4310 = vmatprep.subr.mxu0 0.0
    %4311 = vmatpush1.msra.mxu0 0.0
    %4312 = vmatprep.subr.mxu0 0.0
    %4313 = vmatpush1.msra.mxu0 0.0
    %4314 = vmatprep.subr.mxu0 0.0
    %4315 = vmatpush1.msra.mxu0 0.0
    %4316 = vmatprep.subr.mxu0 0.0
    %4317 = vmatpush1.msra.mxu0 0.0
    %4318 = vmatprep.subr.mxu0 0.0
    %4319 = vmatpush1.msra.mxu0 0.0
    %4320 = vmatprep.subr.mxu0 0.0
    %4321 = vmatpush1.msra.mxu0 0.0
    %4322 = vmatprep.subr.mxu0 0.0
    %4323 = vmatpush1.msra.mxu0 0.0
    %4324 = vmatprep.subr.mxu0 0.0
    %4325 = vmatpush1.msra.mxu0 0.0
    %4326 = vmatprep.subr.mxu0 0.0
    %4327 = vmatpush1.msra.mxu0 0.0
    %4328 = vmatprep.subr.mxu0 0.0
    %4329 = vmatpush1.msra.mxu0 %v3519
    %4330 = vmatprep.subr.mxu0 0.0
    %4331 = vmatpush2.msra.mxu0 0.0
    %4332 = vmatprep.subr.mxu0 0.0
    %4333 = vmatpush2.msra.mxu0 0.0
    %4334 = vmatprep.subr.mxu0 0.0
    %4335 = vmatpush2.msra.mxu0 0.0
    %4336 = vmatprep.subr.mxu0 0.0
    %4337 = vmatpush2.msra.mxu0 0.0
    %4338 = vmatprep.subr.mxu0 0.0
    %4339 = vmatpush2.msra.mxu0 0.0
    %4340 = vmatprep.subr.mxu0 0.0
    %4341 = vmatpush2.msra.mxu0 0.0
    %4342 = vmatprep.subr.mxu0 0.0
    %4343 = vmatpush2.msra.mxu0 0.0
    %4344 = vmatprep.subr.mxu0 0.0
    %4345 = vmatpush2.msra.mxu0 0.0
    %4346 = vmatprep.subr.mxu0 0.0
    %4347 = vmatpush2.msra.mxu0 0.0
    %4348 = vmatprep.subr.mxu0 0.0
    %4349 = vmatpush2.msra.mxu0 0.0
    %4350 = vmatprep.subr.mxu0 0.0
    %4351 = vmatpush2.msra.mxu0 0.0
    %4352 = vmatprep.subr.mxu0 0.0
    %4353 = vmatpush2.msra.mxu0 0.0
    %4354 = vmatprep.subr.mxu0 0.0
    %4355 = vmatpush2.msra.mxu0 0.0
    %4356 = vmatprep.subr.mxu0 0.0
    %4357 = vmatpush2.msra.mxu0 0.0
    %4358 = vmatprep.subr.mxu0 0.0
    %4359 = vmatpush2.msra.mxu0 0.0
    %4360 = vmatprep.subr.mxu0 0.0
    %4361 = vmatpush2.msra.mxu0 0.0
    %4362 = vmatprep.mubr.f32.mxu0 0.0
    %4363 = vmatmul.mubr.f32.gmra.mxu0 %v4296
    %v4364 = vpop.f32.mrf.mxu0
    %v4365 = vadd.f32 0.0, %v4364
    %v4366 = vpop.f32.mrf.mxu0
    %4367 = vdwg.mxu0
    %v4369 = vsel %vm1655, %v4216, 0
    %4371 = vmatprep.subr.mxu0 0.0
    %4372 = vmatpush1.msra.mxu0 0.0
    %4373 = vmatprep.subr.mxu0 0.0
    %4374 = vmatpush1.msra.mxu0 0.0
    %4375 = vmatprep.subr.mxu0 0.0
    %4376 = vmatpush1.msra.mxu0 0.0
    %4377 = vmatprep.subr.mxu0 0.0
    %4378 = vmatpush1.msra.mxu0 0.0
    %4379 = vmatprep.subr.mxu0 0.0
    %4380 = vmatpush1.msra.mxu0 0.0
    %4381 = vmatprep.subr.mxu0 0.0
    %4382 = vmatpush1.msra.mxu0 0.0
    %4383 = vmatprep.subr.mxu0 0.0
    %4384 = vmatpush1.msra.mxu0 0.0
    %4385 = vmatprep.subr.mxu0 0.0
    %4386 = vmatpush1.msra.mxu0 0.0
    %4387 = vmatprep.subr.mxu0 0.0
    %4388 = vmatpush1.msra.mxu0 0.0
    %4389 = vmatprep.subr.mxu0 0.0
    %4390 = vmatpush1.msra.mxu0 0.0
    %4391 = vmatprep.subr.mxu0 0.0
    %4392 = vmatpush1.msra.mxu0 0.0
    %4393 = vmatprep.subr.mxu0 0.0
    %4394 = vmatpush1.msra.mxu0 0.0
    %4395 = vmatprep.subr.mxu0 0.0
    %4396 = vmatpush1.msra.mxu0 0.0
    %4397 = vmatprep.subr.mxu0 0.0
    %4398 = vmatpush1.msra.mxu0 0.0
    %4399 = vmatprep.subr.mxu0 0.0
    %4400 = vmatpush1.msra.mxu0 0.0
    %4401 = vmatprep.subr.mxu0 0.0
    %4402 = vmatpush1.msra.mxu0 %v3520
    %4403 = vmatprep.subr.mxu0 0.0
    %4404 = vmatpush2.msra.mxu0 0.0
    %4405 = vmatprep.subr.mxu0 0.0
    %4406 = vmatpush2.msra.mxu0 0.0
    %4407 = vmatprep.subr.mxu0 0.0
    %4408 = vmatpush2.msra.mxu0 0.0
    %4409 = vmatprep.subr.mxu0 0.0
    %4410 = vmatpush2.msra.mxu0 0.0
    %4411 = vmatprep.subr.mxu0 0.0
    %4412 = vmatpush2.msra.mxu0 0.0
    %4413 = vmatprep.subr.mxu0 0.0
    %4414 = vmatpush2.msra.mxu0 0.0
    %4415 = vmatprep.subr.mxu0 0.0
    %4416 = vmatpush2.msra.mxu0 0.0
    %4417 = vmatprep.subr.mxu0 0.0
    %4418 = vmatpush2.msra.mxu0 0.0
    %4419 = vmatprep.subr.mxu0 0.0
    %4420 = vmatpush2.msra.mxu0 0.0
    %4421 = vmatprep.subr.mxu0 0.0
    %4422 = vmatpush2.msra.mxu0 0.0
    %4423 = vmatprep.subr.mxu0 0.0
    %4424 = vmatpush2.msra.mxu0 0.0
    %4425 = vmatprep.subr.mxu0 0.0
    %4426 = vmatpush2.msra.mxu0 0.0
    %4427 = vmatprep.subr.mxu0 0.0
    %4428 = vmatpush2.msra.mxu0 0.0
    %4429 = vmatprep.subr.mxu0 0.0
    %4430 = vmatpush2.msra.mxu0 0.0
    %4431 = vmatprep.subr.mxu0 0.0
    %4432 = vmatpush2.msra.mxu0 0.0
    %4433 = vmatprep.subr.mxu0 0.0
    %4434 = vmatpush2.msra.mxu0 0.0
    %4435 = vmatprep.mubr.f32.mxu0 0.0
    %4436 = vmatmul.mubr.f32.gmra.mxu0 %v4369
    %v4437 = vpop.f32.mrf.mxu0
    %v4438 = vadd.f32 0.0, %v4437
    %v4439 = vpop.f32.mrf.mxu0
    %4440 = vdwg.mxu0
    %v4442 = vsel %vm1655, %v4217, 0
    %4444 = vmatprep.subr.mxu0 0.0
    %4445 = vmatpush1.msra.mxu0 0.0
    %4446 = vmatprep.subr.mxu0 0.0
    %4447 = vmatpush1.msra.mxu0 0.0
    %4448 = vmatprep.subr.mxu0 0.0
    %4449 = vmatpush1.msra.mxu0 0.0
    %4450 = vmatprep.subr.mxu0 0.0
    %4451 = vmatpush1.msra.mxu0 0.0
    %4452 = vmatprep.subr.mxu0 0.0
    %4453 = vmatpush1.msra.mxu0 0.0
    %4454 = vmatprep.subr.mxu0 0.0
    %4455 = vmatpush1.msra.mxu0 0.0
    %4456 = vmatprep.subr.mxu0 0.0
    %4457 = vmatpush1.msra.mxu0 0.0
    %4458 = vmatprep.subr.mxu0 0.0
    %4459 = vmatpush1.msra.mxu0 0.0
    %4460 = vmatprep.subr.mxu0 0.0
    %4461 = vmatpush1.msra.mxu0 0.0
    %4462 = vmatprep.subr.mxu0 0.0
    %4463 = vmatpush1.msra.mxu0 0.0
    %4464 = vmatprep.subr.mxu0 0.0
    %4465 = vmatpush1.msra.mxu0 0.0
    %4466 = vmatprep.subr.mxu0 0.0
    %4467 = vmatpush1.msra.mxu0 0.0
    %4468 = vmatprep.subr.mxu0 0.0
    %4469 = vmatpush1.msra.mxu0 0.0
    %4470 = vmatprep.subr.mxu0 0.0
    %4471 = vmatpush1.msra.mxu0 0.0
    %4472 = vmatprep.subr.mxu0 0.0
    %4473 = vmatpush1.msra.mxu0 0.0
    %4474 = vmatprep.subr.mxu0 0.0
    %4475 = vmatpush1.msra.mxu0 %v3521
    %4476 = vmatprep.subr.mxu0 0.0
    %4477 = vmatpush2.msra.mxu0 0.0
    %4478 = vmatprep.subr.mxu0 0.0
    %4479 = vmatpush2.msra.mxu0 0.0
    %4480 = vmatprep.subr.mxu0 0.0
    %4481 = vmatpush2.msra.mxu0 0.0
    %4482 = vmatprep.subr.mxu0 0.0
    %4483 = vmatpush2.msra.mxu0 0.0
    %4484 = vmatprep.subr.mxu0 0.0
    %4485 = vmatpush2.msra.mxu0 0.0
    %4486 = vmatprep.subr.mxu0 0.0
    %4487 = vmatpush2.msra.mxu0 0.0
    %4488 = vmatprep.subr.mxu0 0.0
    %4489 = vmatpush2.msra.mxu0 0.0
    %4490 = vmatprep.subr.mxu0 0.0
    %4491 = vmatpush2.msra.mxu0 0.0
    %4492 = vmatprep.subr.mxu0 0.0
    %4493 = vmatpush2.msra.mxu0 0.0
    %4494 = vmatprep.subr.mxu0 0.0
    %4495 = vmatpush2.msra.mxu0 0.0
    %4496 = vmatprep.subr.mxu0 0.0
    %4497 = vmatpush2.msra.mxu0 0.0
    %4498 = vmatprep.subr.mxu0 0.0
    %4499 = vmatpush2.msra.mxu0 0.0
    %4500 = vmatprep.subr.mxu0 0.0
    %4501 = vmatpush2.msra.mxu0 0.0
    %4502 = vmatprep.subr.mxu0 0.0
    %4503 = vmatpush2.msra.mxu0 0.0
    %4504 = vmatprep.subr.mxu0 0.0
    %4505 = vmatpush2.msra.mxu0 0.0
    %4506 = vmatprep.subr.mxu0 0.0
    %4507 = vmatpush2.msra.mxu0 0.0
    %4508 = vmatprep.mubr.f32.mxu0 0.0
    %4509 = vmatmul.mubr.f32.gmra.mxu0 %v4442
    %v4510 = vpop.f32.mrf.mxu0
    %v4511 = vadd.f32 0.0, %v4510
    %v4512 = vpop.f32.mrf.mxu0
    %4513 = vdwg.mxu0
    %v4515 = vsel %vm1655, %v4218, 0
    %4517 = vmatprep.subr.mxu0 0.0
    %4518 = vmatpush1.msra.mxu0 0.0
    %4519 = vmatprep.subr.mxu0 0.0
    %4520 = vmatpush1.msra.mxu0 0.0
    %4521 = vmatprep.subr.mxu0 0.0
    %4522 = vmatpush1.msra.mxu0 0.0
    %4523 = vmatprep.subr.mxu0 0.0
    %4524 = vmatpush1.msra.mxu0 0.0
    %4525 = vmatprep.subr.mxu0 0.0
    %4526 = vmatpush1.msra.mxu0 0.0
    %4527 = vmatprep.subr.mxu0 0.0
    %4528 = vmatpush1.msra.mxu0 0.0
    %4529 = vmatprep.subr.mxu0 0.0
    %4530 = vmatpush1.msra.mxu0 0.0
    %4531 = vmatprep.subr.mxu0 0.0
    %4532 = vmatpush1.msra.mxu0 0.0
    %4533 = vmatprep.subr.mxu0 0.0
    %4534 = vmatpush1.msra.mxu0 0.0
    %4535 = vmatprep.subr.mxu0 0.0
    %4536 = vmatpush1.msra.mxu0 0.0
    %4537 = vmatprep.subr.mxu0 0.0
    %4538 = vmatpush1.msra.mxu0 0.0
    %4539 = vmatprep.subr.mxu0 0.0
    %4540 = vmatpush1.msra.mxu0 0.0
    %4541 = vmatprep.subr.mxu0 0.0
    %4542 = vmatpush1.msra.mxu0 0.0
    %4543 = vmatprep.subr.mxu0 0.0
    %4544 = vmatpush1.msra.mxu0 0.0
    %4545 = vmatprep.subr.mxu0 0.0
    %4546 = vmatpush1.msra.mxu0 0.0
    %4547 = vmatprep.subr.mxu0 0.0
    %4548 = vmatpush1.msra.mxu0 %v3522
    %4549 = vmatprep.subr.mxu0 0.0
    %4550 = vmatpush2.msra.mxu0 0.0
    %4551 = vmatprep.subr.mxu0 0.0
    %4552 = vmatpush2.msra.mxu0 0.0
    %4553 = vmatprep.subr.mxu0 0.0
    %4554 = vmatpush2.msra.mxu0 0.0
    %4555 = vmatprep.subr.mxu0 0.0
    %4556 = vmatpush2.msra.mxu0 0.0
    %4557 = vmatprep.subr.mxu0 0.0
    %4558 = vmatpush2.msra.mxu0 0.0
    %4559 = vmatprep.subr.mxu0 0.0
    %4560 = vmatpush2.msra.mxu0 0.0
    %4561 = vmatprep.subr.mxu0 0.0
    %4562 = vmatpush2.msra.mxu0 0.0
    %4563 = vmatprep.subr.mxu0 0.0
    %4564 = vmatpush2.msra.mxu0 0.0
    %4565 = vmatprep.subr.mxu0 0.0
    %4566 = vmatpush2.msra.mxu0 0.0
    %4567 = vmatprep.subr.mxu0 0.0
    %4568 = vmatpush2.msra.mxu0 0.0
    %4569 = vmatprep.subr.mxu0 0.0
    %4570 = vmatpush2.msra.mxu0 0.0
    %4571 = vmatprep.subr.mxu0 0.0
    %4572 = vmatpush2.msra.mxu0 0.0
    %4573 = vmatprep.subr.mxu0 0.0
    %4574 = vmatpush2.msra.mxu0 0.0
    %4575 = vmatprep.subr.mxu0 0.0
    %4576 = vmatpush2.msra.mxu0 0.0
    %4577 = vmatprep.subr.mxu0 0.0
    %4578 = vmatpush2.msra.mxu0 0.0
    %4579 = vmatprep.subr.mxu0 0.0
    %4580 = vmatpush2.msra.mxu0 0.0
    %4581 = vmatprep.mubr.f32.mxu0 0.0
    %4582 = vmatmul.mubr.f32.gmra.mxu0 %v4515
    %v4583 = vpop.f32.mrf.mxu0
    %v4584 = vadd.f32 0.0, %v4583
    %v4585 = vpop.f32.mrf.mxu0
    %4586 = vdwg.mxu0
    %v4588 = vsel %vm1655, %v4219, 0
    %4590 = vmatprep.subr.mxu0 0.0
    %4591 = vmatpush1.msra.mxu0 0.0
    %4592 = vmatprep.subr.mxu0 0.0
    %4593 = vmatpush1.msra.mxu0 0.0
    %4594 = vmatprep.subr.mxu0 0.0
    %4595 = vmatpush1.msra.mxu0 0.0
    %4596 = vmatprep.subr.mxu0 0.0
    %4597 = vmatpush1.msra.mxu0 0.0
    %4598 = vmatprep.subr.mxu0 0.0
    %4599 = vmatpush1.msra.mxu0 0.0
    %4600 = vmatprep.subr.mxu0 0.0
    %4601 = vmatpush1.msra.mxu0 0.0
    %4602 = vmatprep.subr.mxu0 0.0
    %4603 = vmatpush1.msra.mxu0 0.0
    %4604 = vmatprep.subr.mxu0 0.0
    %4605 = vmatpush1.msra.mxu0 0.0
    %4606 = vmatprep.subr.mxu0 0.0
    %4607 = vmatpush1.msra.mxu0 0.0
    %4608 = vmatprep.subr.mxu0 0.0
    %4609 = vmatpush1.msra.mxu0 0.0
    %4610 = vmatprep.subr.mxu0 0.0
    %4611 = vmatpush1.msra.mxu0 0.0
    %4612 = vmatprep.subr.mxu0 0.0
    %4613 = vmatpush1.msra.mxu0 0.0
    %4614 = vmatprep.subr.mxu0 0.0
    %4615 = vmatpush1.msra.mxu0 0.0
    %4616 = vmatprep.subr.mxu0 0.0
    %4617 = vmatpush1.msra.mxu0 0.0
    %4618 = vmatprep.subr.mxu0 0.0
    %4619 = vmatpush1.msra.mxu0 0.0
    %4620 = vmatprep.subr.mxu0 0.0
    %4621 = vmatpush1.msra.mxu0 %v3523
    %4622 = vmatprep.subr.mxu0 0.0
    %4623 = vmatpush2.msra.mxu0 0.0
    %4624 = vmatprep.subr.mxu0 0.0
    %4625 = vmatpush2.msra.mxu0 0.0
    %4626 = vmatprep.subr.mxu0 0.0
    %4627 = vmatpush2.msra.mxu0 0.0
    %4628 = vmatprep.subr.mxu0 0.0
    %4629 = vmatpush2.msra.mxu0 0.0
    %4630 = vmatprep.subr.mxu0 0.0
    %4631 = vmatpush2.msra.mxu0 0.0
    %4632 = vmatprep.subr.mxu0 0.0
    %4633 = vmatpush2.msra.mxu0 0.0
    %4634 = vmatprep.subr.mxu0 0.0
    %4635 = vmatpush2.msra.mxu0 0.0
    %4636 = vmatprep.subr.mxu0 0.0
    %4637 = vmatpush2.msra.mxu0 0.0
    %4638 = vmatprep.subr.mxu0 0.0
    %4639 = vmatpush2.msra.mxu0 0.0
    %4640 = vmatprep.subr.mxu0 0.0
    %4641 = vmatpush2.msra.mxu0 0.0
    %4642 = vmatprep.subr.mxu0 0.0
    %4643 = vmatpush2.msra.mxu0 0.0
    %4644 = vmatprep.subr.mxu0 0.0
    %4645 = vmatpush2.msra.mxu0 0.0
    %4646 = vmatprep.subr.mxu0 0.0
    %4647 = vmatpush2.msra.mxu0 0.0
    %4648 = vmatprep.subr.mxu0 0.0
    %4649 = vmatpush2.msra.mxu0 0.0
    %4650 = vmatprep.subr.mxu0 0.0
    %4651 = vmatpush2.msra.mxu0 0.0
    %4652 = vmatprep.subr.mxu0 0.0
    %4653 = vmatpush2.msra.mxu0 0.0
    %4654 = vmatprep.mubr.f32.mxu0 0.0
    %4655 = vmatmul.mubr.f32.gmra.mxu0 %v4588
    %v4656 = vpop.f32.mrf.mxu0
    %v4657 = vadd.f32 0.0, %v4656
    %v4658 = vpop.f32.mrf.mxu0
    %4659 = vdwg.mxu0
    %v4661 = vsel %vm1655, %v4220, 0
    %4663 = vmatprep.subr.mxu0 0.0
    %4664 = vmatpush1.msra.mxu0 0.0
    %4665 = vmatprep.subr.mxu0 0.0
    %4666 = vmatpush1.msra.mxu0 0.0
    %4667 = vmatprep.subr.mxu0 0.0
    %4668 = vmatpush1.msra.mxu0 0.0
    %4669 = vmatprep.subr.mxu0 0.0
    %4670 = vmatpush1.msra.mxu0 0.0
    %4671 = vmatprep.subr.mxu0 0.0
    %4672 = vmatpush1.msra.mxu0 0.0
    %4673 = vmatprep.subr.mxu0 0.0
    %4674 = vmatpush1.msra.mxu0 0.0
    %4675 = vmatprep.subr.mxu0 0.0
    %4676 = vmatpush1.msra.mxu0 0.0
    %4677 = vmatprep.subr.mxu0 0.0
    %4678 = vmatpush1.msra.mxu0 0.0
    %4679 = vmatprep.subr.mxu0 0.0
    %4680 = vmatpush1.msra.mxu0 0.0
    %4681 = vmatprep.subr.mxu0 0.0
    %4682 = vmatpush1.msra.mxu0 0.0
    %4683 = vmatprep.subr.mxu0 0.0
    %4684 = vmatpush1.msra.mxu0 0.0
    %4685 = vmatprep.subr.mxu0 0.0
    %4686 = vmatpush1.msra.mxu0 0.0
    %4687 = vmatprep.subr.mxu0 0.0
    %4688 = vmatpush1.msra.mxu0 0.0
    %4689 = vmatprep.subr.mxu0 0.0
    %4690 = vmatpush1.msra.mxu0 0.0
    %4691 = vmatprep.subr.mxu0 0.0
    %4692 = vmatpush1.msra.mxu0 0.0
    %4693 = vmatprep.subr.mxu0 0.0
    %4694 = vmatpush1.msra.mxu0 %v3524
    %4695 = vmatprep.subr.mxu0 0.0
    %4696 = vmatpush2.msra.mxu0 0.0
    %4697 = vmatprep.subr.mxu0 0.0
    %4698 = vmatpush2.msra.mxu0 0.0
    %4699 = vmatprep.subr.mxu0 0.0
    %4700 = vmatpush2.msra.mxu0 0.0
    %4701 = vmatprep.subr.mxu0 0.0
    %4702 = vmatpush2.msra.mxu0 0.0
    %4703 = vmatprep.subr.mxu0 0.0
    %4704 = vmatpush2.msra.mxu0 0.0
    %4705 = vmatprep.subr.mxu0 0.0
    %4706 = vmatpush2.msra.mxu0 0.0
    %4707 = vmatprep.subr.mxu0 0.0
    %4708 = vmatpush2.msra.mxu0 0.0
    %4709 = vmatprep.subr.mxu0 0.0
    %4710 = vmatpush2.msra.mxu0 0.0
    %4711 = vmatprep.subr.mxu0 0.0
    %4712 = vmatpush2.msra.mxu0 0.0
    %4713 = vmatprep.subr.mxu0 0.0
    %4714 = vmatpush2.msra.mxu0 0.0
    %4715 = vmatprep.subr.mxu0 0.0
    %4716 = vmatpush2.msra.mxu0 0.0
    %4717 = vmatprep.subr.mxu0 0.0
    %4718 = vmatpush2.msra.mxu0 0.0
    %4719 = vmatprep.subr.mxu0 0.0
    %4720 = vmatpush2.msra.mxu0 0.0
    %4721 = vmatprep.subr.mxu0 0.0
    %4722 = vmatpush2.msra.mxu0 0.0
    %4723 = vmatprep.subr.mxu0 0.0
    %4724 = vmatpush2.msra.mxu0 0.0
    %4725 = vmatprep.subr.mxu0 0.0
    %4726 = vmatpush2.msra.mxu0 0.0
    %4727 = vmatprep.mubr.f32.mxu0 0.0
    %4728 = vmatmul.mubr.f32.gmra.mxu0 %v4661
    %v4729 = vpop.f32.mrf.mxu0
    %v4730 = vadd.f32 0.0, %v4729
    %v4731 = vpop.f32.mrf.mxu0
    %4732 = vdwg.mxu0
    %v4734 = vsel %vm1655, %v4221, 0
    %4736 = vmatprep.subr.mxu0 0.0
    %4737 = vmatpush1.msra.mxu0 0.0
    %4738 = vmatprep.subr.mxu0 0.0
    %4739 = vmatpush1.msra.mxu0 0.0
    %4740 = vmatprep.subr.mxu0 0.0
    %4741 = vmatpush1.msra.mxu0 0.0
    %4742 = vmatprep.subr.mxu0 0.0
    %4743 = vmatpush1.msra.mxu0 0.0
    %4744 = vmatprep.subr.mxu0 0.0
    %4745 = vmatpush1.msra.mxu0 0.0
    %4746 = vmatprep.subr.mxu0 0.0
    %4747 = vmatpush1.msra.mxu0 0.0
    %4748 = vmatprep.subr.mxu0 0.0
    %4749 = vmatpush1.msra.mxu0 0.0
    %4750 = vmatprep.subr.mxu0 0.0
    %4751 = vmatpush1.msra.mxu0 0.0
    %4752 = vmatprep.subr.mxu0 0.0
    %4753 = vmatpush1.msra.mxu0 0.0
    %4754 = vmatprep.subr.mxu0 0.0
    %4755 = vmatpush1.msra.mxu0 0.0
    %4756 = vmatprep.subr.mxu0 0.0
    %4757 = vmatpush1.msra.mxu0 0.0
    %4758 = vmatprep.subr.mxu0 0.0
    %4759 = vmatpush1.msra.mxu0 0.0
    %4760 = vmatprep.subr.mxu0 0.0
    %4761 = vmatpush1.msra.mxu0 0.0
    %4762 = vmatprep.subr.mxu0 0.0
    %4763 = vmatpush1.msra.mxu0 0.0
    %4764 = vmatprep.subr.mxu0 0.0
    %4765 = vmatpush1.msra.mxu0 0.0
    %4766 = vmatprep.subr.mxu0 0.0
    %4767 = vmatpush1.msra.mxu0 %v3525
    %4768 = vmatprep.subr.mxu0 0.0
    %4769 = vmatpush2.msra.mxu0 0.0
    %4770 = vmatprep.subr.mxu0 0.0
    %4771 = vmatpush2.msra.mxu0 0.0
    %4772 = vmatprep.subr.mxu0 0.0
    %4773 = vmatpush2.msra.mxu0 0.0
    %4774 = vmatprep.subr.mxu0 0.0
    %4775 = vmatpush2.msra.mxu0 0.0
    %4776 = vmatprep.subr.mxu0 0.0
    %4777 = vmatpush2.msra.mxu0 0.0
    %4778 = vmatprep.subr.mxu0 0.0
    %4779 = vmatpush2.msra.mxu0 0.0
    %4780 = vmatprep.subr.mxu0 0.0
    %4781 = vmatpush2.msra.mxu0 0.0
    %4782 = vmatprep.subr.mxu0 0.0
    %4783 = vmatpush2.msra.mxu0 0.0
    %4784 = vmatprep.subr.mxu0 0.0
    %4785 = vmatpush2.msra.mxu0 0.0
    %4786 = vmatprep.subr.mxu0 0.0
    %4787 = vmatpush2.msra.mxu0 0.0
    %4788 = vmatprep.subr.mxu0 0.0
    %4789 = vmatpush2.msra.mxu0 0.0
    %4790 = vmatprep.subr.mxu0 0.0
    %4791 = vmatpush2.msra.mxu0 0.0
    %4792 = vmatprep.subr.mxu0 0.0
    %4793 = vmatpush2.msra.mxu0 0.0
    %4794 = vmatprep.subr.mxu0 0.0
    %4795 = vmatpush2.msra.mxu0 0.0
    %4796 = vmatprep.subr.mxu0 0.0
    %4797 = vmatpush2.msra.mxu0 0.0
    %4798 = vmatprep.subr.mxu0 0.0
    %4799 = vmatpush2.msra.mxu0 0.0
    %4800 = vmatprep.mubr.f32.mxu0 0.0
    %4801 = vmatmul.mubr.f32.gmra.mxu0 %v4734
    %v4802 = vpop.f32.mrf.mxu0
    %v4803 = vadd.f32 0.0, %v4802
    %v4804 = vpop.f32.mrf.mxu0
    %4805 = vdwg.mxu0
    %v4806 = vcombine.low %v4292, %v4438
    %v4807 = vcombine.high %v4292, %v4438
    %v4809 = vunpack.c.l.s4 1983009808
    %v4810 = vunpack.c.0.s8 %v4809
    %v4811 = vlaneseq
    %v4812 = vshrl.u32 %v4811, 7
    %v4813 = vsub.s32 %v4810, %v4812
    %v4814 = vrot.slane %v4806, %v4813
    %v4816 = vunpack.c.l.s4 1983009808
    %v4817 = vunpack.c.0.s8 %v4816
    %v4818 = vlaneseq
    %v4819 = vshrl.u32 %v4818, 7
    %v4820 = vsub.s32 %v4817, %v4819
    %v4821 = vrot.slane %v4807, %v4820
    %v4822 = vcombine.low %v4365, %v4511
    %v4823 = vcombine.high %v4365, %v4511
    %v4825 = vunpack.c.l.s4 1983009808
    %v4826 = vunpack.c.0.s8 %v4825
    %v4827 = vlaneseq
    %v4828 = vshrl.u32 %v4827, 7
    %v4829 = vsub.s32 %v4826, %v4828
    %v4830 = vrot.slane %v4822, %v4829
    %v4832 = vunpack.c.l.s4 1983009808
    %v4833 = vunpack.c.0.s8 %v4832
    %v4834 = vlaneseq
    %v4835 = vshrl.u32 %v4834, 7
    %v4836 = vsub.s32 %v4833, %v4835
    %v4837 = vrot.slane %v4823, %v4836
    %v4838 = vcombine.low %v4584, %v4730
    %v4839 = vcombine.high %v4584, %v4730
    %v4841 = vunpack.c.l.s4 1983009808
    %v4842 = vunpack.c.0.s8 %v4841
    %v4843 = vlaneseq
    %v4844 = vshrl.u32 %v4843, 7
    %v4845 = vsub.s32 %v4842, %v4844
    %v4846 = vrot.slane %v4838, %v4845
    %v4848 = vunpack.c.l.s4 1983009808
    %v4849 = vunpack.c.0.s8 %v4848
    %v4850 = vlaneseq
    %v4851 = vshrl.u32 %v4850, 7
    %v4852 = vsub.s32 %v4849, %v4851
    %v4853 = vrot.slane %v4839, %v4852
    %v4854 = vcombine.low %v4657, %v4803
    %v4855 = vcombine.high %v4657, %v4803
    %v4857 = vunpack.c.l.s4 1983009808
    %v4858 = vunpack.c.0.s8 %v4857
    %v4859 = vlaneseq
    %v4860 = vshrl.u32 %v4859, 7
    %v4861 = vsub.s32 %v4858, %v4860
    %v4862 = vrot.slane %v4854, %v4861
    %v4864 = vunpack.c.l.s4 1983009808
    %v4865 = vunpack.c.0.s8 %v4864
    %v4866 = vlaneseq
    %v4867 = vshrl.u32 %v4866, 7
    %v4868 = vsub.s32 %v4865, %v4867
    %v4869 = vrot.slane %v4855, %v4868
    %v4870 = vcombine.low %v4814, %v4830
    %v4871 = vcombine.high %v4814, %v4830
    %v4873 = vunpack.c.l.s4 1934713408
    %v4874 = vunpack.c.0.s8 %v4873
    %v4875 = vlaneseq
    %v4876 = vshrl.u32 %v4875, 7
    %v4877 = vsub.s32 %v4874, %v4876
    %v4878 = vrot.slane %v4870, %v4877
    %v4880 = vunpack.c.l.s4 1934713408
    %v4881 = vunpack.c.0.s8 %v4880
    %v4882 = vlaneseq
    %v4883 = vshrl.u32 %v4882, 7
    %v4884 = vsub.s32 %v4881, %v4883
    %v4885 = vrot.slane %v4871, %v4884
    %v4886 = vcombine.low %v4821, %v4837
    %v4887 = vcombine.high %v4821, %v4837
    %v4889 = vunpack.c.l.s4 1934713408
    %v4890 = vunpack.c.0.s8 %v4889
    %v4891 = vlaneseq
    %v4892 = vshrl.u32 %v4891, 7
    %v4893 = vsub.s32 %v4890, %v4892
    %v4894 = vrot.slane %v4886, %v4893
    %v4896 = vunpack.c.l.s4 1934713408
    %v4897 = vunpack.c.0.s8 %v4896
    %v4898 = vlaneseq
    %v4899 = vshrl.u32 %v4898, 7
    %v4900 = vsub.s32 %v4897, %v4899
    %v4901 = vrot.slane %v4887, %v4900
    %v4902 = vcombine.low %v4846, %v4862
    %v4903 = vcombine.high %v4846, %v4862
    %v4905 = vunpack.c.l.s4 1934713408
    %v4906 = vunpack.c.0.s8 %v4905
    %v4907 = vlaneseq
    %v4908 = vshrl.u32 %v4907, 7
    %v4909 = vsub.s32 %v4906, %v4908
    %v4910 = vrot.slane %v4902, %v4909
    %v4912 = vunpack.c.l.s4 1934713408
    %v4913 = vunpack.c.0.s8 %v4912
    %v4914 = vlaneseq
    %v4915 = vshrl.u32 %v4914, 7
    %v4916 = vsub.s32 %v4913, %v4915
    %v4917 = vrot.slane %v4903, %v4916
    %v4918 = vcombine.low %v4853, %v4869
    %v4919 = vcombine.high %v4853, %v4869
    %v4921 = vunpack.c.l.s4 1934713408
    %v4922 = vunpack.c.0.s8 %v4921
    %v4923 = vlaneseq
    %v4924 = vshrl.u32 %v4923, 7
    %v4925 = vsub.s32 %v4922, %v4924
    %v4926 = vrot.slane %v4918, %v4925
    %v4928 = vunpack.c.l.s4 1934713408
    %v4929 = vunpack.c.0.s8 %v4928
    %v4930 = vlaneseq
    %v4931 = vshrl.u32 %v4930, 7
    %v4932 = vsub.s32 %v4929, %v4931
    %v4933 = vrot.slane %v4919, %v4932
    %v4934 = vcombine.low %v4878, %v4910
    %v4935 = vcombine.high %v4878, %v4910
    %v4936 = vcombine.low %v4885, %v4917
    %v4937 = vcombine.high %v4885, %v4917
    %v4938 = vcombine.low %v4894, %v4926
    %v4939 = vcombine.high %v4894, %v4926
    %v4940 = vcombine.low %v4901, %v4933
    %v4941 = vcombine.high %v4901, %v4933
    %v4942 = vcombine.low %v4934, %v4936
    %v4943 = vcombine.high %v4934, %v4936
    %v4945 = vunpack.c.l.s4 1983009808
    %v4946 = vunpack.c.0.s8 %v4945
    %v4947 = vlaneseq
    %v4948 = vshrl.u32 %v4947, 7
    %v4949 = vsub.s32 %v4946, %v4948
    %v4950 = vrot.slane %v4942, %v4949
    %v4952 = vunpack.c.l.s4 1983009808
    %v4953 = vunpack.c.0.s8 %v4952
    %v4954 = vlaneseq
    %v4955 = vshrl.u32 %v4954, 7
    %v4956 = vsub.s32 %v4953, %v4955
    %v4957 = vrot.slane %v4943, %v4956
    %v4958 = vcombine.low %v4935, %v4937
    %v4959 = vcombine.high %v4935, %v4937
    %v4961 = vunpack.c.l.s4 1983009808
    %v4962 = vunpack.c.0.s8 %v4961
    %v4963 = vlaneseq
    %v4964 = vshrl.u32 %v4963, 7
    %v4965 = vsub.s32 %v4962, %v4964
    %v4966 = vrot.slane %v4958, %v4965
    %v4968 = vunpack.c.l.s4 1983009808
    %v4969 = vunpack.c.0.s8 %v4968
    %v4970 = vlaneseq
    %v4971 = vshrl.u32 %v4970, 7
    %v4972 = vsub.s32 %v4969, %v4971
    %v4973 = vrot.slane %v4959, %v4972
    %v4974 = vcombine.low %v4938, %v4940
    %v4975 = vcombine.high %v4938, %v4940
    %v4977 = vunpack.c.l.s4 1983009808
    %v4978 = vunpack.c.0.s8 %v4977
    %v4979 = vlaneseq
    %v4980 = vshrl.u32 %v4979, 7
    %v4981 = vsub.s32 %v4978, %v4980
    %v4982 = vrot.slane %v4974, %v4981
    %v4984 = vunpack.c.l.s4 1983009808
    %v4985 = vunpack.c.0.s8 %v4984
    %v4986 = vlaneseq
    %v4987 = vshrl.u32 %v4986, 7
    %v4988 = vsub.s32 %v4985, %v4987
    %v4989 = vrot.slane %v4975, %v4988
    %v4990 = vcombine.low %v4939, %v4941
    %v4991 = vcombine.high %v4939, %v4941
    %v4993 = vunpack.c.l.s4 1983009808
    %v4994 = vunpack.c.0.s8 %v4993
    %v4995 = vlaneseq
    %v4996 = vshrl.u32 %v4995, 7
    %v4997 = vsub.s32 %v4994, %v4996
    %v4998 = vrot.slane %v4990, %v4997
    %v5000 = vunpack.c.l.s4 1983009808
    %v5001 = vunpack.c.0.s8 %v5000
    %v5002 = vlaneseq
    %v5003 = vshrl.u32 %v5002, 7
    %v5004 = vsub.s32 %v5001, %v5003
    %v5005 = vrot.slane %v4991, %v5004
    %v5006 = vcombine.low %v4950, %v4966
    %v5007 = vcombine.high %v4950, %v4966
    %v5009 = vunpack.c.l.s4 1934713408
    %v5010 = vunpack.c.0.s8 %v5009
    %v5011 = vlaneseq
    %v5012 = vshrl.u32 %v5011, 7
    %v5013 = vsub.s32 %v5010, %v5012
    %v5014 = vrot.slane %v5006, %v5013
    %v5016 = vunpack.c.l.s4 1934713408
    %v5017 = vunpack.c.0.s8 %v5016
    %v5018 = vlaneseq
    %v5019 = vshrl.u32 %v5018, 7
    %v5020 = vsub.s32 %v5017, %v5019
    %v5021 = vrot.slane %v5007, %v5020
    %v5022 = vcombine.low %v4957, %v4973
    %v5023 = vcombine.high %v4957, %v4973
    %v5025 = vunpack.c.l.s4 1934713408
    %v5026 = vunpack.c.0.s8 %v5025
    %v5027 = vlaneseq
    %v5028 = vshrl.u32 %v5027, 7
    %v5029 = vsub.s32 %v5026, %v5028
    %v5030 = vrot.slane %v5022, %v5029
    %v5032 = vunpack.c.l.s4 1934713408
    %v5033 = vunpack.c.0.s8 %v5032
    %v5034 = vlaneseq
    %v5035 = vshrl.u32 %v5034, 7
    %v5036 = vsub.s32 %v5033, %v5035
    %v5037 = vrot.slane %v5023, %v5036
    %v5038 = vcombine.low %v4982, %v4998
    %v5039 = vcombine.high %v4982, %v4998
    %v5041 = vunpack.c.l.s4 1934713408
    %v5042 = vunpack.c.0.s8 %v5041
    %v5043 = vlaneseq
    %v5044 = vshrl.u32 %v5043, 7
    %v5045 = vsub.s32 %v5042, %v5044
    %v5046 = vrot.slane %v5038, %v5045
    %v5048 = vunpack.c.l.s4 1934713408
    %v5049 = vunpack.c.0.s8 %v5048
    %v5050 = vlaneseq
    %v5051 = vshrl.u32 %v5050, 7
    %v5052 = vsub.s32 %v5049, %v5051
    %v5053 = vrot.slane %v5039, %v5052
    %v5054 = vcombine.low %v4989, %v5005
    %v5055 = vcombine.high %v4989, %v5005
    %v5057 = vunpack.c.l.s4 1934713408
    %v5058 = vunpack.c.0.s8 %v5057
    %v5059 = vlaneseq
    %v5060 = vshrl.u32 %v5059, 7
    %v5061 = vsub.s32 %v5058, %v5060
    %v5062 = vrot.slane %v5054, %v5061
    %v5064 = vunpack.c.l.s4 1934713408
    %v5065 = vunpack.c.0.s8 %v5064
    %v5066 = vlaneseq
    %v5067 = vshrl.u32 %v5066, 7
    %v5068 = vsub.s32 %v5065, %v5067
    %v5069 = vrot.slane %v5055, %v5068
    %v5070 = vcombine.low %v5014, %v5046
    %v5071 = vcombine.high %v5014, %v5046
    %v5072 = vcombine.low %v5021, %v5053
    %v5073 = vcombine.high %v5021, %v5053
    %v5074 = vcombine.low %v5030, %v5062
    %v5075 = vcombine.high %v5030, %v5062
    %v5076 = vcombine.low %v5037, %v5069
    %v5077 = vcombine.high %v5037, %v5069
    %5079 = vrot.lane.b32.xlu0 %v5071, 4
    %v5080 = vpop.permute.xlu0 %5079
    %5083 = vrot.lane.b32.xlu0 %v5072, 8
    %v5084 = vpop.permute.xlu0 %5083
    %5087 = vrot.lane.b32.xlu0 %v5073, 12
    %v5088 = vpop.permute.xlu0 %5087
    %5091 = vrot.lane.b32.xlu0 %v5074, 16
    %v5092 = vpop.permute.xlu0 %5091
    %5095 = vrot.lane.b32.xlu0 %v5075, 20
    %v5096 = vpop.permute.xlu0 %5095
    %5099 = vrot.lane.b32.xlu0 %v5076, 24
    %v5100 = vpop.permute.xlu0 %5099
    %5103 = vrot.lane.b32.xlu0 %v5077, 28
    %v5104 = vpop.permute.xlu0 %5103
    %v5106 = vsel %vm1046, %v5070, %v5080
    %v5107 = vsel %vm1655, %v5106, %v5084
    %v5108 = vsel %vm2630, %v5107, %v5088
    %v5109 = vsel %vm2632, %v5108, %v5092
    %v5110 = vsel %vm2634, %v5109, %v5096
    %v5111 = vsel %vm2636, %v5110, %v5100
    %v5112 = vsel %vm2638, %v5111, %v5104
    %v5113 = vld [vmem:[%s2] sm:$0xff]
    %v5114 = vld [vmem:[%s2 + $0x18] sm:$0xff]
    %v5115 = vld [vmem:[%s2 + $0x30] sm:$0xff]
    %v5116 = vld [vmem:[%s2 + $0x48] sm:$0xff]
    %v5117 = vld [vmem:[%s4 + $0x7] sm:$0x1]
    %v5118 = vlaneseq
    %v5119 = vshrl.u32 %v5118, 7
    %v5120 = vsub.s32 0, %v5119
    %v5121 = vrot.slane %v5117, %v5120
    %5126 = vrot.lane.b32.xlu0 %v5113, 32
    %v5127 = vpop.permute.xlu0 %5126
    %5128 = vrot.lane.b32.xlu0 %v5114, 32
    %v5129 = vpop.permute.xlu0 %5128
    %5130 = vrot.lane.b32.xlu0 %v5115, 32
    %v5131 = vpop.permute.xlu0 %5130
    %5132 = vrot.lane.b32.xlu0 %v5116, 32
    %v5133 = vpop.permute.xlu0 %5132
    %v5139 = vsel %vm30, %v2639, 0
    %v5142 = vsel %vm30, %v5112, 0
    %5144 = vmatprep.subr.mxu0 0.0
    %5145 = vmatpush1.msra.mxu0 0.0
    %5146 = vmatprep.subr.mxu0 0.0
    %5147 = vmatpush1.msra.mxu0 0.0
    %5148 = vmatprep.subr.mxu0 0.0
    %5149 = vmatpush1.msra.mxu0 0.0
    %5150 = vmatprep.subr.mxu0 0.0
    %5151 = vmatpush1.msra.mxu0 0.0
    %5152 = vmatprep.subr.mxu0 0.0
    %5153 = vmatpush1.msra.mxu0 0.0
    %5154 = vmatprep.subr.mxu0 0.0
    %5155 = vmatpush1.msra.mxu0 0.0
    %5156 = vmatprep.subr.mxu0 0.0
    %5157 = vmatpush1.msra.mxu0 0.0
    %5158 = vmatprep.subr.mxu0 0.0
    %5159 = vmatpush1.msra.mxu0 0.0
    %5160 = vmatprep.subr.mxu0 0.0
    %5161 = vmatpush1.msra.mxu0 0.0
    %5162 = vmatprep.subr.mxu0 0.0
    %5163 = vmatpush1.msra.mxu0 0.0
    %5164 = vmatprep.subr.mxu0 0.0
    %5165 = vmatpush1.msra.mxu0 0.0
    %5166 = vmatprep.subr.mxu0 0.0
    %5167 = vmatpush1.msra.mxu0 0.0
    %5168 = vmatprep.subr.mxu0 0.0
    %5169 = vmatpush1.msra.mxu0 %v5133
    %5170 = vmatprep.subr.mxu0 0.0
    %5171 = vmatpush1.msra.mxu0 %v5131
    %5172 = vmatprep.subr.mxu0 0.0
    %5173 = vmatpush1.msra.mxu0 %v5129
    %5174 = vmatprep.subr.mxu0 0.0
    %5175 = vmatpush1.msra.mxu0 %v5127
    %5176 = vmatprep.subr.mxu0 0.0
    %5177 = vmatpush2.msra.mxu0 0.0
    %5178 = vmatprep.subr.mxu0 0.0
    %5179 = vmatpush2.msra.mxu0 0.0
    %5180 = vmatprep.subr.mxu0 0.0
    %5181 = vmatpush2.msra.mxu0 0.0
    %5182 = vmatprep.subr.mxu0 0.0
    %5183 = vmatpush2.msra.mxu0 0.0
    %5184 = vmatprep.subr.mxu0 0.0
    %5185 = vmatpush2.msra.mxu0 0.0
    %5186 = vmatprep.subr.mxu0 0.0
    %5187 = vmatpush2.msra.mxu0 0.0
    %5188 = vmatprep.subr.mxu0 0.0
    %5189 = vmatpush2.msra.mxu0 0.0
    %5190 = vmatprep.subr.mxu0 0.0
    %5191 = vmatpush2.msra.mxu0 0.0
    %5192 = vmatprep.subr.mxu0 0.0
    %5193 = vmatpush2.msra.mxu0 0.0
    %5194 = vmatprep.subr.mxu0 0.0
    %5195 = vmatpush2.msra.mxu0 0.0
    %5196 = vmatprep.subr.mxu0 0.0
    %5197 = vmatpush2.msra.mxu0 0.0
    %5198 = vmatprep.subr.mxu0 0.0
    %5199 = vmatpush2.msra.mxu0 0.0
    %5200 = vmatprep.subr.mxu0 0.0
    %5201 = vmatpush2.msra.mxu0 0.0
    %5202 = vmatprep.subr.mxu0 0.0
    %5203 = vmatpush2.msra.mxu0 0.0
    %5204 = vmatprep.subr.mxu0 0.0
    %5205 = vmatpush2.msra.mxu0 0.0
    %5206 = vmatprep.subr.mxu0 0.0
    %5207 = vmatpush2.msra.mxu0 0.0
    %5208 = vmatprep.mubr.f32.mxu0 0.0
    %5209 = vmatmul.mubr.f32.gmra.mxu0 %v5139
    %v5210 = vpop.f32.mrf.mxu0
    %v5211 = vadd.f32 %v5121, %v5210
    %v5212 = vpop.f32.mrf.mxu0
    %5213 = vmatprep.mubr.f32.mxu0 0.0
    %5214 = vmatmul.mubr.f32.gmra.mxu0 %v5142
    %v5215 = vpop.f32.mrf.mxu0
    %v5216 = vadd.f32 %v5121, %v5215
    %v5217 = vpop.f32.mrf.mxu0
    %5218 = vdwg.mxu0
    %v5219 = vadd.f32 %v5211, %v24
    %v5220 = vadd.f32 %v5216, %v25
    %v5221 = vld [vmem:[%s4 + $0x2] sm:$0x1]
    %v5222 = vld [vmem:[%s4 + $0x3] sm:$0x1]
    %v5223 = vsel %vm30, %v5219, 0.0
    %5224 = vadd.xlane.f32.xlu0 %v5223
    %v5225 = vpop.xlane.xlu0 %5224
    %v5226 = vsel %vm30, %v5220, 0.0
    %5227 = vadd.xlane.f32.xlu0 %v5226
    %v5228 = vpop.xlane.xlu0 %5227
    %v5229 = vmul.f32 %v5225, %v37
    %v5230 = vmul.f32 %v5228, %v37
    %v5231 = vsub.f32 %v5219, %v5229
    %v5232 = vsub.f32 %v5220, %v5230
    %v5233 = vmul.f32 %v5231, %v5231
    %v5234 = vmul.f32 %v5232, %v5232
    %v5235 = vsel %vm30, %v5233, 0.0
    %5236 = vadd.xlane.f32.xlu0 %v5235
    %v5237 = vpop.xlane.xlu0 %5236
    %v5238 = vsel %vm30, %v5234, 0.0
    %5239 = vadd.xlane.f32.xlu0 %v5238
    %v5240 = vpop.xlane.xlu0 %5239
    %v5241 = vmul.f32 %v5237, %v37
    %v5242 = vmul.f32 %v5240, %v37
    %v5243 = vadd.f32 %v5241, 1e-06
    %v5244 = vadd.f32 %v5242, 1e-06
    %v5245 = vrsqrt.pop %v5243
    %v5246 = vrsqrt.pop %v5244
    %v5247 = vmul.f32 %v5231, %v5245
    %v5248 = vmul.f32 %v5232, %v5246
    %v5249 = vlaneseq
    %v5250 = vshrl.u32 %v5249, 7
    %v5251 = vsub.s32 0, %v5250
    %v5252 = vrot.slane %v5221, %v5251
    %v5253 = vmul.f32 %v5247, %v5252
    %v5254 = vmul.f32 %v5248, %v5252
    %v5255 = vlaneseq
    %v5256 = vshrl.u32 %v5255, 7
    %v5257 = vsub.s32 0, %v5256
    %v5258 = vrot.slane %v5222, %v5257
    %v5259 = vadd.f32 %v5253, %v5258
    %v5260 = vadd.f32 %v5254, %v5258
    %v5261 = vld [vmem:[%s4 + $0x4] sm:$0x1]
    %v5262 = vld [vmem:[%s4 + $0x5] sm:$0x1]
    %v5263 = vsel %vm30, %v26, 0.0
    %5264 = vadd.xlane.f32.xlu0 %v5263
    %v5265 = vpop.xlane.xlu0 %5264
    %v5266 = vsel %vm30, %v27, 0.0
    %5267 = vadd.xlane.f32.xlu0 %v5266
    %v5268 = vpop.xlane.xlu0 %5267
    %v5269 = vmul.f32 %v5265, %v37
    %v5270 = vmul.f32 %v5268, %v37
    %v5271 = vsub.f32 %v26, %v5269
    %v5272 = vsub.f32 %v27, %v5270
    %v5273 = vmul.f32 %v5271, %v5271
    %v5274 = vmul.f32 %v5272, %v5272
    %v5275 = vsel %vm30, %v5273, 0.0
    %5276 = vadd.xlane.f32.xlu0 %v5275
    %v5277 = vpop.xlane.xlu0 %5276
    %v5278 = vsel %vm30, %v5274, 0.0
    %5279 = vadd.xlane.f32.xlu0 %v5278
    %v5280 = vpop.xlane.xlu0 %5279
    %v5281 = vmul.f32 %v5277, %v37
    %v5282 = vmul.f32 %v5280, %v37
    %v5283 = vadd.f32 %v5281, 1e-05
    %v5284 = vadd.f32 %v5282, 1e-05
    %v5285 = vrsqrt.pop %v5283
    %v5286 = vrsqrt.pop %v5284
    %v5287 = vmul.f32 %v5271, %v5285
    %v5288 = vmul.f32 %v5272, %v5286
    %v5289 = vlaneseq
    %v5290 = vshrl.u32 %v5289, 7
    %v5291 = vsub.s32 0, %v5290
    %v5292 = vrot.slane %v5261, %v5291
    %v5293 = vmul.f32 %v5287, %v5292
    %v5294 = vmul.f32 %v5288, %v5292
    %v5295 = vlaneseq
    %v5296 = vshrl.u32 %v5295, 7
    %v5297 = vsub.s32 0, %v5296
    %v5298 = vrot.slane %v5262, %v5297
    %v5299 = vadd.f32 %v5293, %v5298
    %v5300 = vadd.f32 %v5294, %v5298
    %v5301 = vld [vmem:[%s2 + $0x8] sm:$0xff]
    %v5302 = vld [vmem:[%s2 + $0x20] sm:$0xff]
    %v5303 = vld [vmem:[%s2 + $0x38] sm:$0xff]
    %v5304 = vld [vmem:[%s2 + $0x50] sm:$0xff]
    %v5305 = vld [vmem:[%s4 + $0x8] sm:$0x1]
    %v5306 = vlaneseq
    %v5307 = vshrl.u32 %v5306, 7
    %v5308 = vsub.s32 0, %v5307
    %v5309 = vrot.slane %v5305, %v5308
    %v5311 = vsel %vm30, %v5259, 0
    %v5314 = vsel %vm30, %v5260, 0
    %5316 = vmatprep.subr.mxu0 0.0
    %5317 = vmatpush1.msra.mxu0 0.0
    %5318 = vmatprep.subr.mxu0 0.0
    %5319 = vmatpush1.msra.mxu0 0.0
    %5320 = vmatprep.subr.mxu0 0.0
    %5321 = vmatpush1.msra.mxu0 0.0
    %5322 = vmatprep.subr.mxu0 0.0
    %5323 = vmatpush1.msra.mxu0 0.0
    %5324 = vmatprep.subr.mxu0 0.0
    %5325 = vmatpush1.msra.mxu0 0.0
    %5326 = vmatprep.subr.mxu0 0.0
    %5327 = vmatpush1.msra.mxu0 0.0
    %5328 = vmatprep.subr.mxu0 0.0
    %5329 = vmatpush1.msra.mxu0 0.0
    %5330 = vmatprep.subr.mxu0 0.0
    %5331 = vmatpush1.msra.mxu0 0.0
    %5332 = vmatprep.subr.mxu0 0.0
    %5333 = vmatpush1.msra.mxu0 0.0
    %5334 = vmatprep.subr.mxu0 0.0
    %5335 = vmatpush1.msra.mxu0 0.0
    %5336 = vmatprep.subr.mxu0 0.0
    %5337 = vmatpush1.msra.mxu0 0.0
    %5338 = vmatprep.subr.mxu0 0.0
    %5339 = vmatpush1.msra.mxu0 0.0
    %5340 = vmatprep.subr.mxu0 0.0
    %5341 = vmatpush1.msra.mxu0 %v5304
    %5342 = vmatprep.subr.mxu0 0.0
    %5343 = vmatpush1.msra.mxu0 %v5303
    %5344 = vmatprep.subr.mxu0 0.0
    %5345 = vmatpush1.msra.mxu0 %v5302
    %5346 = vmatprep.subr.mxu0 0.0
    %5347 = vmatpush1.msra.mxu0 %v5301
    %5348 = vmatprep.subr.mxu0 0.0
    %5349 = vmatpush2.msra.mxu0 0.0
    %5350 = vmatprep.subr.mxu0 0.0
    %5351 = vmatpush2.msra.mxu0 0.0
    %5352 = vmatprep.subr.mxu0 0.0
    %5353 = vmatpush2.msra.mxu0 0.0
    %5354 = vmatprep.subr.mxu0 0.0
    %5355 = vmatpush2.msra.mxu0 0.0
    %5356 = vmatprep.subr.mxu0 0.0
    %5357 = vmatpush2.msra.mxu0 0.0
    %5358 = vmatprep.subr.mxu0 0.0
    %5359 = vmatpush2.msra.mxu0 0.0
    %5360 = vmatprep.subr.mxu0 0.0
    %5361 = vmatpush2.msra.mxu0 0.0
    %5362 = vmatprep.subr.mxu0 0.0
    %5363 = vmatpush2.msra.mxu0 0.0
    %5364 = vmatprep.subr.mxu0 0.0
    %5365 = vmatpush2.msra.mxu0 0.0
    %5366 = vmatprep.subr.mxu0 0.0
    %5367 = vmatpush2.msra.mxu0 0.0
    %5368 = vmatprep.subr.mxu0 0.0
    %5369 = vmatpush2.msra.mxu0 0.0
    %5370 = vmatprep.subr.mxu0 0.0
    %5371 = vmatpush2.msra.mxu0 0.0
    %5372 = vmatprep.subr.mxu0 0.0
    %5373 = vmatpush2.msra.mxu0 0.0
    %5374 = vmatprep.subr.mxu0 0.0
    %5375 = vmatpush2.msra.mxu0 0.0
    %5376 = vmatprep.subr.mxu0 0.0
    %5377 = vmatpush2.msra.mxu0 0.0
    %5378 = vmatprep.subr.mxu0 0.0
    %5379 = vmatpush2.msra.mxu0 0.0
    %5380 = vmatprep.mubr.f32.mxu0 0.0
    %5381 = vmatmul.mubr.f32.gmra.mxu0 %v5311
    %v5382 = vpop.f32.mrf.mxu0
    %v5383 = vadd.f32 %v5309, %v5382
    %v5384 = vpop.f32.mrf.mxu0
    %5385 = vmatprep.mubr.f32.mxu0 0.0
    %5386 = vmatmul.mubr.f32.gmra.mxu0 %v5314
    %v5387 = vpop.f32.mrf.mxu0
    %v5388 = vadd.f32 %v5309, %v5387
    %v5389 = vpop.f32.mrf.mxu0
    %5390 = vdwg.mxu0
    %v5391 = vld [vmem:[%s4 + $0x9] sm:$0x1]
    %v5392 = vlaneseq
    %v5393 = vshrl.u32 %v5392, 7
    %v5394 = vsub.s32 0, %v5393
    %v5395 = vrot.slane %v5391, %v5394
    %5400 = vrot.lane.b32.xlu0 %v5301, 96
    %v5401 = vpop.permute.xlu0 %5400
    %5402 = vrot.lane.b32.xlu0 %v5302, 96
    %v5403 = vpop.permute.xlu0 %5402
    %5404 = vrot.lane.b32.xlu0 %v5303, 96
    %v5405 = vpop.permute.xlu0 %5404
    %5406 = vrot.lane.b32.xlu0 %v5304, 96
    %v5407 = vpop.permute.xlu0 %5406
    %v5413 = vsel %vm30, %v5299, 0
    %v5416 = vsel %vm30, %v5300, 0
    %5418 = vmatprep.subr.mxu0 0.0
    %5419 = vmatpush1.msra.mxu0 0.0
    %5420 = vmatprep.subr.mxu0 0.0
    %5421 = vmatpush1.msra.mxu0 0.0
    %5422 = vmatprep.subr.mxu0 0.0
    %5423 = vmatpush1.msra.mxu0 0.0
    %5424 = vmatprep.subr.mxu0 0.0
    %5425 = vmatpush1.msra.mxu0 0.0
    %5426 = vmatprep.subr.mxu0 0.0
    %5427 = vmatpush1.msra.mxu0 0.0
    %5428 = vmatprep.subr.mxu0 0.0
    %5429 = vmatpush1.msra.mxu0 0.0
    %5430 = vmatprep.subr.mxu0 0.0
    %5431 = vmatpush1.msra.mxu0 0.0
    %5432 = vmatprep.subr.mxu0 0.0
    %5433 = vmatpush1.msra.mxu0 0.0
    %5434 = vmatprep.subr.mxu0 0.0
    %5435 = vmatpush1.msra.mxu0 0.0
    %5436 = vmatprep.subr.mxu0 0.0
    %5437 = vmatpush1.msra.mxu0 0.0
    %5438 = vmatprep.subr.mxu0 0.0
    %5439 = vmatpush1.msra.mxu0 0.0
    %5440 = vmatprep.subr.mxu0 0.0
    %5441 = vmatpush1.msra.mxu0 0.0
    %5442 = vmatprep.subr.mxu0 0.0
    %5443 = vmatpush1.msra.mxu0 %v5407
    %5444 = vmatprep.subr.mxu0 0.0
    %5445 = vmatpush1.msra.mxu0 %v5405
    %5446 = vmatprep.subr.mxu0 0.0
    %5447 = vmatpush1.msra.mxu0 %v5403
    %5448 = vmatprep.subr.mxu0 0.0
    %5449 = vmatpush1.msra.mxu0 %v5401
    %5450 = vmatprep.subr.mxu0 0.0
    %5451 = vmatpush2.msra.mxu0 0.0
    %5452 = vmatprep.subr.mxu0 0.0
    %5453 = vmatpush2.msra.mxu0 0.0
    %5454 = vmatprep.subr.mxu0 0.0
    %5455 = vmatpush2.msra.mxu0 0.0
    %5456 = vmatprep.subr.mxu0 0.0
    %5457 = vmatpush2.msra.mxu0 0.0
    %5458 = vmatprep.subr.mxu0 0.0
    %5459 = vmatpush2.msra.mxu0 0.0
    %5460 = vmatprep.subr.mxu0 0.0
    %5461 = vmatpush2.msra.mxu0 0.0
    %5462 = vmatprep.subr.mxu0 0.0
    %5463 = vmatpush2.msra.mxu0 0.0
    %5464 = vmatprep.subr.mxu0 0.0
    %5465 = vmatpush2.msra.mxu0 0.0
    %5466 = vmatprep.subr.mxu0 0.0
    %5467 = vmatpush2.msra.mxu0 0.0
    %5468 = vmatprep.subr.mxu0 0.0
    %5469 = vmatpush2.msra.mxu0 0.0
    %5470 = vmatprep.subr.mxu0 0.0
    %5471 = vmatpush2.msra.mxu0 0.0
    %5472 = vmatprep.subr.mxu0 0.0
    %5473 = vmatpush2.msra.mxu0 0.0
    %5474 = vmatprep.subr.mxu0 0.0
    %5475 = vmatpush2.msra.mxu0 0.0
    %5476 = vmatprep.subr.mxu0 0.0
    %5477 = vmatpush2.msra.mxu0 0.0
    %5478 = vmatprep.subr.mxu0 0.0
    %5479 = vmatpush2.msra.mxu0 0.0
    %5480 = vmatprep.subr.mxu0 0.0
    %5481 = vmatpush2.msra.mxu0 0.0
    %5482 = vmatprep.mubr.f32.mxu0 0.0
    %5483 = vmatmul.mubr.f32.gmra.mxu0 %v5413
    %v5484 = vpop.f32.mrf.mxu0
    %v5485 = vadd.f32 %v5395, %v5484
    %v5486 = vpop.f32.mrf.mxu0
    %5487 = vmatprep.mubr.f32.mxu0 0.0
    %5488 = vmatmul.mubr.f32.gmra.mxu0 %v5416
    %v5489 = vpop.f32.mrf.mxu0
    %v5490 = vadd.f32 %v5395, %v5489
    %v5491 = vpop.f32.mrf.mxu0
    %5492 = vdwg.mxu0
    %5494 = vrot.lane.b32.xlu0 %v5383, 124
    %v5495 = vpop.permute.xlu0 %5494
    %5497 = vrot.lane.b32.xlu0 %v5383, 120
    %v5498 = vpop.permute.xlu0 %5497
    %5500 = vrot.lane.b32.xlu0 %v5383, 116
    %v5501 = vpop.permute.xlu0 %5500
    %5503 = vrot.lane.b32.xlu0 %v5383, 112
    %v5504 = vpop.permute.xlu0 %5503
    %5506 = vrot.lane.b32.xlu0 %v5383, 108
    %v5507 = vpop.permute.xlu0 %5506
    %5509 = vrot.lane.b32.xlu0 %v5383, 104
    %v5510 = vpop.permute.xlu0 %5509
    %5512 = vrot.lane.b32.xlu0 %v5383, 100
    %v5513 = vpop.permute.xlu0 %5512
    %v5515 = vcombine.low %v5383, %v5498
    %v5516 = vcombine.high %v5383, %v5498
    %v5518 = vunpack.c.l.s4 1983009808
    %v5519 = vunpack.c.0.s8 %v5518
    %v5520 = vlaneseq
    %v5521 = vshrl.u32 %v5520, 7
    %v5522 = vsub.s32 %v5519, %v5521
    %v5523 = vrot.slane %v5515, %v5522
    %v5525 = vunpack.c.l.s4 1983009808
    %v5526 = vunpack.c.0.s8 %v5525
    %v5527 = vlaneseq
    %v5528 = vshrl.u32 %v5527, 7
    %v5529 = vsub.s32 %v5526, %v5528
    %v5530 = vrot.slane %v5516, %v5529
    %v5531 = vcombine.low %v5495, %v5501
    %v5532 = vcombine.high %v5495, %v5501
    %v5534 = vunpack.c.l.s4 1983009808
    %v5535 = vunpack.c.0.s8 %v5534
    %v5536 = vlaneseq
    %v5537 = vshrl.u32 %v5536, 7
    %v5538 = vsub.s32 %v5535, %v5537
    %v5539 = vrot.slane %v5531, %v5538
    %v5541 = vunpack.c.l.s4 1983009808
    %v5542 = vunpack.c.0.s8 %v5541
    %v5543 = vlaneseq
    %v5544 = vshrl.u32 %v5543, 7
    %v5545 = vsub.s32 %v5542, %v5544
    %v5546 = vrot.slane %v5532, %v5545
    %v5547 = vcombine.low %v5504, %v5510
    %v5548 = vcombine.high %v5504, %v5510
    %v5550 = vunpack.c.l.s4 1983009808
    %v5551 = vunpack.c.0.s8 %v5550
    %v5552 = vlaneseq
    %v5553 = vshrl.u32 %v5552, 7
    %v5554 = vsub.s32 %v5551, %v5553
    %v5555 = vrot.slane %v5547, %v5554
    %v5557 = vunpack.c.l.s4 1983009808
    %v5558 = vunpack.c.0.s8 %v5557
    %v5559 = vlaneseq
    %v5560 = vshrl.u32 %v5559, 7
    %v5561 = vsub.s32 %v5558, %v5560
    %v5562 = vrot.slane %v5548, %v5561
    %v5563 = vcombine.low %v5507, %v5513
    %v5564 = vcombine.high %v5507, %v5513
    %v5566 = vunpack.c.l.s4 1983009808
    %v5567 = vunpack.c.0.s8 %v5566
    %v5568 = vlaneseq
    %v5569 = vshrl.u32 %v5568, 7
    %v5570 = vsub.s32 %v5567, %v5569
    %v5571 = vrot.slane %v5563, %v5570
    %v5573 = vunpack.c.l.s4 1983009808
    %v5574 = vunpack.c.0.s8 %v5573
    %v5575 = vlaneseq
    %v5576 = vshrl.u32 %v5575, 7
    %v5577 = vsub.s32 %v5574, %v5576
    %v5578 = vrot.slane %v5564, %v5577
    %v5579 = vcombine.low %v5523, %v5539
    %v5580 = vcombine.high %v5523, %v5539
    %v5582 = vunpack.c.l.s4 1934713408
    %v5583 = vunpack.c.0.s8 %v5582
    %v5584 = vlaneseq
    %v5585 = vshrl.u32 %v5584, 7
    %v5586 = vsub.s32 %v5583, %v5585
    %v5587 = vrot.slane %v5579, %v5586
    %v5589 = vunpack.c.l.s4 1934713408
    %v5590 = vunpack.c.0.s8 %v5589
    %v5591 = vlaneseq
    %v5592 = vshrl.u32 %v5591, 7
    %v5593 = vsub.s32 %v5590, %v5592
    %v5594 = vrot.slane %v5580, %v5593
    %v5595 = vcombine.low %v5530, %v5546
    %v5596 = vcombine.high %v5530, %v5546
    %v5598 = vunpack.c.l.s4 1934713408
    %v5599 = vunpack.c.0.s8 %v5598
    %v5600 = vlaneseq
    %v5601 = vshrl.u32 %v5600, 7
    %v5602 = vsub.s32 %v5599, %v5601
    %v5603 = vrot.slane %v5595, %v5602
    %v5605 = vunpack.c.l.s4 1934713408
    %v5606 = vunpack.c.0.s8 %v5605
    %v5607 = vlaneseq
    %v5608 = vshrl.u32 %v5607, 7
    %v5609 = vsub.s32 %v5606, %v5608
    %v5610 = vrot.slane %v5596, %v5609
    %v5611 = vcombine.low %v5555, %v5571
    %v5612 = vcombine.high %v5555, %v5571
    %v5614 = vunpack.c.l.s4 1934713408
    %v5615 = vunpack.c.0.s8 %v5614
    %v5616 = vlaneseq
    %v5617 = vshrl.u32 %v5616, 7
    %v5618 = vsub.s32 %v5615, %v5617
    %v5619 = vrot.slane %v5611, %v5618
    %v5621 = vunpack.c.l.s4 1934713408
    %v5622 = vunpack.c.0.s8 %v5621
    %v5623 = vlaneseq
    %v5624 = vshrl.u32 %v5623, 7
    %v5625 = vsub.s32 %v5622, %v5624
    %v5626 = vrot.slane %v5612, %v5625
    %v5627 = vcombine.low %v5562, %v5578
    %v5628 = vcombine.high %v5562, %v5578
    %v5630 = vunpack.c.l.s4 1934713408
    %v5631 = vunpack.c.0.s8 %v5630
    %v5632 = vlaneseq
    %v5633 = vshrl.u32 %v5632, 7
    %v5634 = vsub.s32 %v5631, %v5633
    %v5635 = vrot.slane %v5627, %v5634
    %v5637 = vunpack.c.l.s4 1934713408
    %v5638 = vunpack.c.0.s8 %v5637
    %v5639 = vlaneseq
    %v5640 = vshrl.u32 %v5639, 7
    %v5641 = vsub.s32 %v5638, %v5640
    %v5642 = vrot.slane %v5628, %v5641
    %v5643 = vcombine.low %v5587, %v5619
    %v5644 = vcombine.high %v5587, %v5619
    %v5645 = vcombine.low %v5594, %v5626
    %v5646 = vcombine.high %v5594, %v5626
    %v5647 = vcombine.low %v5603, %v5635
    %v5648 = vcombine.high %v5603, %v5635
    %v5649 = vcombine.low %v5610, %v5642
    %v5650 = vcombine.high %v5610, %v5642
    %v5651 = vcombine.low %v5643, %v5645
    %v5652 = vcombine.high %v5643, %v5645
    %v5654 = vunpack.c.l.s4 1983009808
    %v5655 = vunpack.c.0.s8 %v5654
    %v5656 = vlaneseq
    %v5657 = vshrl.u32 %v5656, 7
    %v5658 = vsub.s32 %v5655, %v5657
    %v5659 = vrot.slane %v5651, %v5658
    %v5661 = vunpack.c.l.s4 1983009808
    %v5662 = vunpack.c.0.s8 %v5661
    %v5663 = vlaneseq
    %v5664 = vshrl.u32 %v5663, 7
    %v5665 = vsub.s32 %v5662, %v5664
    %v5666 = vrot.slane %v5652, %v5665
    %v5667 = vcombine.low %v5644, %v5646
    %v5668 = vcombine.high %v5644, %v5646
    %v5670 = vunpack.c.l.s4 1983009808
    %v5671 = vunpack.c.0.s8 %v5670
    %v5672 = vlaneseq
    %v5673 = vshrl.u32 %v5672, 7
    %v5674 = vsub.s32 %v5671, %v5673
    %v5675 = vrot.slane %v5667, %v5674
    %v5677 = vunpack.c.l.s4 1983009808
    %v5678 = vunpack.c.0.s8 %v5677
    %v5679 = vlaneseq
    %v5680 = vshrl.u32 %v5679, 7
    %v5681 = vsub.s32 %v5678, %v5680
    %v5682 = vrot.slane %v5668, %v5681
    %v5683 = vcombine.low %v5647, %v5649
    %v5684 = vcombine.high %v5647, %v5649
    %v5686 = vunpack.c.l.s4 1983009808
    %v5687 = vunpack.c.0.s8 %v5686
    %v5688 = vlaneseq
    %v5689 = vshrl.u32 %v5688, 7
    %v5690 = vsub.s32 %v5687, %v5689
    %v5691 = vrot.slane %v5683, %v5690
    %v5693 = vunpack.c.l.s4 1983009808
    %v5694 = vunpack.c.0.s8 %v5693
    %v5695 = vlaneseq
    %v5696 = vshrl.u32 %v5695, 7
    %v5697 = vsub.s32 %v5694, %v5696
    %v5698 = vrot.slane %v5684, %v5697
    %v5699 = vcombine.low %v5648, %v5650
    %v5700 = vcombine.high %v5648, %v5650
    %v5702 = vunpack.c.l.s4 1983009808
    %v5703 = vunpack.c.0.s8 %v5702
    %v5704 = vlaneseq
    %v5705 = vshrl.u32 %v5704, 7
    %v5706 = vsub.s32 %v5703, %v5705
    %v5707 = vrot.slane %v5699, %v5706
    %v5709 = vunpack.c.l.s4 1983009808
    %v5710 = vunpack.c.0.s8 %v5709
    %v5711 = vlaneseq
    %v5712 = vshrl.u32 %v5711, 7
    %v5713 = vsub.s32 %v5710, %v5712
    %v5714 = vrot.slane %v5700, %v5713
    %v5715 = vcombine.low %v5659, %v5675
    %v5716 = vcombine.high %v5659, %v5675
    %v5718 = vunpack.c.l.s4 1934713408
    %v5719 = vunpack.c.0.s8 %v5718
    %v5720 = vlaneseq
    %v5721 = vshrl.u32 %v5720, 7
    %v5722 = vsub.s32 %v5719, %v5721
    %v5723 = vrot.slane %v5715, %v5722
    %v5725 = vunpack.c.l.s4 1934713408
    %v5726 = vunpack.c.0.s8 %v5725
    %v5727 = vlaneseq
    %v5728 = vshrl.u32 %v5727, 7
    %v5729 = vsub.s32 %v5726, %v5728
    %v5730 = vrot.slane %v5716, %v5729
    %v5731 = vcombine.low %v5666, %v5682
    %v5732 = vcombine.high %v5666, %v5682
    %v5734 = vunpack.c.l.s4 1934713408
    %v5735 = vunpack.c.0.s8 %v5734
    %v5736 = vlaneseq
    %v5737 = vshrl.u32 %v5736, 7
    %v5738 = vsub.s32 %v5735, %v5737
    %v5739 = vrot.slane %v5731, %v5738
    %v5741 = vunpack.c.l.s4 1934713408
    %v5742 = vunpack.c.0.s8 %v5741
    %v5743 = vlaneseq
    %v5744 = vshrl.u32 %v5743, 7
    %v5745 = vsub.s32 %v5742, %v5744
    %v5746 = vrot.slane %v5732, %v5745
    %v5747 = vcombine.low %v5691, %v5707
    %v5748 = vcombine.high %v5691, %v5707
    %v5750 = vunpack.c.l.s4 1934713408
    %v5751 = vunpack.c.0.s8 %v5750
    %v5752 = vlaneseq
    %v5753 = vshrl.u32 %v5752, 7
    %v5754 = vsub.s32 %v5751, %v5753
    %v5755 = vrot.slane %v5747, %v5754
    %v5757 = vunpack.c.l.s4 1934713408
    %v5758 = vunpack.c.0.s8 %v5757
    %v5759 = vlaneseq
    %v5760 = vshrl.u32 %v5759, 7
    %v5761 = vsub.s32 %v5758, %v5760
    %v5762 = vrot.slane %v5748, %v5761
    %v5763 = vcombine.low %v5698, %v5714
    %v5764 = vcombine.high %v5698, %v5714
    %v5766 = vunpack.c.l.s4 1934713408
    %v5767 = vunpack.c.0.s8 %v5766
    %v5768 = vlaneseq
    %v5769 = vshrl.u32 %v5768, 7
    %v5770 = vsub.s32 %v5767, %v5769
    %v5771 = vrot.slane %v5763, %v5770
    %v5773 = vunpack.c.l.s4 1934713408
    %v5774 = vunpack.c.0.s8 %v5773
    %v5775 = vlaneseq
    %v5776 = vshrl.u32 %v5775, 7
    %v5777 = vsub.s32 %v5774, %v5776
    %v5778 = vrot.slane %v5764, %v5777
    %v5779 = vcombine.low %v5723, %v5755
    %v5780 = vcombine.high %v5723, %v5755
    %v5781 = vcombine.low %v5730, %v5762
    %v5782 = vcombine.high %v5730, %v5762
    %v5783 = vcombine.low %v5739, %v5771
    %v5784 = vcombine.high %v5739, %v5771
    %v5785 = vcombine.low %v5746, %v5778
    %v5786 = vcombine.high %v5746, %v5778
    %5788 = vrot.lane.b32.xlu0 %v5485, 124
    %v5789 = vpop.permute.xlu0 %5788
    %5791 = vrot.lane.b32.xlu0 %v5485, 120
    %v5792 = vpop.permute.xlu0 %5791
    %5794 = vrot.lane.b32.xlu0 %v5485, 116
    %v5795 = vpop.permute.xlu0 %5794
    %5797 = vrot.lane.b32.xlu0 %v5485, 112
    %v5798 = vpop.permute.xlu0 %5797
    %5800 = vrot.lane.b32.xlu0 %v5485, 108
    %v5801 = vpop.permute.xlu0 %5800
    %5803 = vrot.lane.b32.xlu0 %v5485, 104
    %v5804 = vpop.permute.xlu0 %5803
    %5806 = vrot.lane.b32.xlu0 %v5485, 100
    %v5807 = vpop.permute.xlu0 %5806
    %5809 = vrot.lane.b32.xlu0 %v5485, 96
    %v5810 = vpop.permute.xlu0 %5809
    %5812 = vrot.lane.b32.xlu0 %v5485, 92
    %v5813 = vpop.permute.xlu0 %5812
    %5815 = vrot.lane.b32.xlu0 %v5485, 88
    %v5816 = vpop.permute.xlu0 %5815
    %5818 = vrot.lane.b32.xlu0 %v5485, 84
    %v5819 = vpop.permute.xlu0 %5818
    %5821 = vrot.lane.b32.xlu0 %v5485, 80
    %v5822 = vpop.permute.xlu0 %5821
    %5824 = vrot.lane.b32.xlu0 %v5485, 76
    %v5825 = vpop.permute.xlu0 %5824
    %5827 = vrot.lane.b32.xlu0 %v5485, 72
    %v5828 = vpop.permute.xlu0 %5827
    %5830 = vrot.lane.b32.xlu0 %v5485, 68
    %v5831 = vpop.permute.xlu0 %5830
    %v5833 = vcombine.low %v5485, %v5792
    %v5834 = vcombine.high %v5485, %v5792
    %v5836 = vunpack.c.l.s4 1983009808
    %v5837 = vunpack.c.0.s8 %v5836
    %v5838 = vlaneseq
    %v5839 = vshrl.u32 %v5838, 7
    %v5840 = vsub.s32 %v5837, %v5839
    %v5841 = vrot.slane %v5833, %v5840
    %v5843 = vunpack.c.l.s4 1983009808
    %v5844 = vunpack.c.0.s8 %v5843
    %v5845 = vlaneseq
    %v5846 = vshrl.u32 %v5845, 7
    %v5847 = vsub.s32 %v5844, %v5846
    %v5848 = vrot.slane %v5834, %v5847
    %v5849 = vcombine.low %v5789, %v5795
    %v5850 = vcombine.high %v5789, %v5795
    %v5852 = vunpack.c.l.s4 1983009808
    %v5853 = vunpack.c.0.s8 %v5852
    %v5854 = vlaneseq
    %v5855 = vshrl.u32 %v5854, 7
    %v5856 = vsub.s32 %v5853, %v5855
    %v5857 = vrot.slane %v5849, %v5856
    %v5859 = vunpack.c.l.s4 1983009808
    %v5860 = vunpack.c.0.s8 %v5859
    %v5861 = vlaneseq
    %v5862 = vshrl.u32 %v5861, 7
    %v5863 = vsub.s32 %v5860, %v5862
    %v5864 = vrot.slane %v5850, %v5863
    %v5865 = vcombine.low %v5798, %v5804
    %v5866 = vcombine.high %v5798, %v5804
    %v5868 = vunpack.c.l.s4 1983009808
    %v5869 = vunpack.c.0.s8 %v5868
    %v5870 = vlaneseq
    %v5871 = vshrl.u32 %v5870, 7
    %v5872 = vsub.s32 %v5869, %v5871
    %v5873 = vrot.slane %v5865, %v5872
    %v5875 = vunpack.c.l.s4 1983009808
    %v5876 = vunpack.c.0.s8 %v5875
    %v5877 = vlaneseq
    %v5878 = vshrl.u32 %v5877, 7
    %v5879 = vsub.s32 %v5876, %v5878
    %v5880 = vrot.slane %v5866, %v5879
    %v5881 = vcombine.low %v5801, %v5807
    %v5882 = vcombine.high %v5801, %v5807
    %v5884 = vunpack.c.l.s4 1983009808
    %v5885 = vunpack.c.0.s8 %v5884
    %v5886 = vlaneseq
    %v5887 = vshrl.u32 %v5886, 7
    %v5888 = vsub.s32 %v5885, %v5887
    %v5889 = vrot.slane %v5881, %v5888
    %v5891 = vunpack.c.l.s4 1983009808
    %v5892 = vunpack.c.0.s8 %v5891
    %v5893 = vlaneseq
    %v5894 = vshrl.u32 %v5893, 7
    %v5895 = vsub.s32 %v5892, %v5894
    %v5896 = vrot.slane %v5882, %v5895
    %v5897 = vcombine.low %v5841, %v5857
    %v5898 = vcombine.high %v5841, %v5857
    %v5900 = vunpack.c.l.s4 1934713408
    %v5901 = vunpack.c.0.s8 %v5900
    %v5902 = vlaneseq
    %v5903 = vshrl.u32 %v5902, 7
    %v5904 = vsub.s32 %v5901, %v5903
    %v5905 = vrot.slane %v5897, %v5904
    %v5907 = vunpack.c.l.s4 1934713408
    %v5908 = vunpack.c.0.s8 %v5907
    %v5909 = vlaneseq
    %v5910 = vshrl.u32 %v5909, 7
    %v5911 = vsub.s32 %v5908, %v5910
    %v5912 = vrot.slane %v5898, %v5911
    %v5913 = vcombine.low %v5848, %v5864
    %v5914 = vcombine.high %v5848, %v5864
    %v5916 = vunpack.c.l.s4 1934713408
    %v5917 = vunpack.c.0.s8 %v5916
    %v5918 = vlaneseq
    %v5919 = vshrl.u32 %v5918, 7
    %v5920 = vsub.s32 %v5917, %v5919
    %v5921 = vrot.slane %v5913, %v5920
    %v5923 = vunpack.c.l.s4 1934713408
    %v5924 = vunpack.c.0.s8 %v5923
    %v5925 = vlaneseq
    %v5926 = vshrl.u32 %v5925, 7
    %v5927 = vsub.s32 %v5924, %v5926
    %v5928 = vrot.slane %v5914, %v5927
    %v5929 = vcombine.low %v5873, %v5889
    %v5930 = vcombine.high %v5873, %v5889
    %v5932 = vunpack.c.l.s4 1934713408
    %v5933 = vunpack.c.0.s8 %v5932
    %v5934 = vlaneseq
    %v5935 = vshrl.u32 %v5934, 7
    %v5936 = vsub.s32 %v5933, %v5935
    %v5937 = vrot.slane %v5929, %v5936
    %v5939 = vunpack.c.l.s4 1934713408
    %v5940 = vunpack.c.0.s8 %v5939
    %v5941 = vlaneseq
    %v5942 = vshrl.u32 %v5941, 7
    %v5943 = vsub.s32 %v5940, %v5942
    %v5944 = vrot.slane %v5930, %v5943
    %v5945 = vcombine.low %v5880, %v5896
    %v5946 = vcombine.high %v5880, %v5896
    %v5948 = vunpack.c.l.s4 1934713408
    %v5949 = vunpack.c.0.s8 %v5948
    %v5950 = vlaneseq
    %v5951 = vshrl.u32 %v5950, 7
    %v5952 = vsub.s32 %v5949, %v5951
    %v5953 = vrot.slane %v5945, %v5952
    %v5955 = vunpack.c.l.s4 1934713408
    %v5956 = vunpack.c.0.s8 %v5955
    %v5957 = vlaneseq
    %v5958 = vshrl.u32 %v5957, 7
    %v5959 = vsub.s32 %v5956, %v5958
    %v5960 = vrot.slane %v5946, %v5959
    %v5961 = vcombine.low %v5905, %v5937
    %v5962 = vcombine.high %v5905, %v5937
    %v5963 = vcombine.low %v5912, %v5944
    %v5964 = vcombine.high %v5912, %v5944
    %v5965 = vcombine.low %v5921, %v5953
    %v5966 = vcombine.high %v5921, %v5953
    %v5967 = vcombine.low %v5928, %v5960
    %v5968 = vcombine.high %v5928, %v5960
    %v5969 = vcombine.low %v5810, %v5816
    %v5970 = vcombine.high %v5810, %v5816
    %v5972 = vunpack.c.l.s4 1983009808
    %v5973 = vunpack.c.0.s8 %v5972
    %v5974 = vlaneseq
    %v5975 = vshrl.u32 %v5974, 7
    %v5976 = vsub.s32 %v5973, %v5975
    %v5977 = vrot.slane %v5969, %v5976
    %v5979 = vunpack.c.l.s4 1983009808
    %v5980 = vunpack.c.0.s8 %v5979
    %v5981 = vlaneseq
    %v5982 = vshrl.u32 %v5981, 7
    %v5983 = vsub.s32 %v5980, %v5982
    %v5984 = vrot.slane %v5970, %v5983
    %v5985 = vcombine.low %v5813, %v5819
    %v5986 = vcombine.high %v5813, %v5819
    %v5988 = vunpack.c.l.s4 1983009808
    %v5989 = vunpack.c.0.s8 %v5988
    %v5990 = vlaneseq
    %v5991 = vshrl.u32 %v5990, 7
    %v5992 = vsub.s32 %v5989, %v5991
    %v5993 = vrot.slane %v5985, %v5992
    %v5995 = vunpack.c.l.s4 1983009808
    %v5996 = vunpack.c.0.s8 %v5995
    %v5997 = vlaneseq
    %v5998 = vshrl.u32 %v5997, 7
    %v5999 = vsub.s32 %v5996, %v5998
    %v6000 = vrot.slane %v5986, %v5999
    %v6001 = vcombine.low %v5822, %v5828
    %v6002 = vcombine.high %v5822, %v5828
    %v6004 = vunpack.c.l.s4 1983009808
    %v6005 = vunpack.c.0.s8 %v6004
    %v6006 = vlaneseq
    %v6007 = vshrl.u32 %v6006, 7
    %v6008 = vsub.s32 %v6005, %v6007
    %v6009 = vrot.slane %v6001, %v6008
    %v6011 = vunpack.c.l.s4 1983009808
    %v6012 = vunpack.c.0.s8 %v6011
    %v6013 = vlaneseq
    %v6014 = vshrl.u32 %v6013, 7
    %v6015 = vsub.s32 %v6012, %v6014
    %v6016 = vrot.slane %v6002, %v6015
    %v6017 = vcombine.low %v5825, %v5831
    %v6018 = vcombine.high %v5825, %v5831
    %v6020 = vunpack.c.l.s4 1983009808
    %v6021 = vunpack.c.0.s8 %v6020
    %v6022 = vlaneseq
    %v6023 = vshrl.u32 %v6022, 7
    %v6024 = vsub.s32 %v6021, %v6023
    %v6025 = vrot.slane %v6017, %v6024
    %v6027 = vunpack.c.l.s4 1983009808
    %v6028 = vunpack.c.0.s8 %v6027
    %v6029 = vlaneseq
    %v6030 = vshrl.u32 %v6029, 7
    %v6031 = vsub.s32 %v6028, %v6030
    %v6032 = vrot.slane %v6018, %v6031
    %v6033 = vcombine.low %v5977, %v5993
    %v6034 = vcombine.high %v5977, %v5993
    %v6036 = vunpack.c.l.s4 1934713408
    %v6037 = vunpack.c.0.s8 %v6036
    %v6038 = vlaneseq
    %v6039 = vshrl.u32 %v6038, 7
    %v6040 = vsub.s32 %v6037, %v6039
    %v6041 = vrot.slane %v6033, %v6040
    %v6043 = vunpack.c.l.s4 1934713408
    %v6044 = vunpack.c.0.s8 %v6043
    %v6045 = vlaneseq
    %v6046 = vshrl.u32 %v6045, 7
    %v6047 = vsub.s32 %v6044, %v6046
    %v6048 = vrot.slane %v6034, %v6047
    %v6049 = vcombine.low %v5984, %v6000
    %v6050 = vcombine.high %v5984, %v6000
    %v6052 = vunpack.c.l.s4 1934713408
    %v6053 = vunpack.c.0.s8 %v6052
    %v6054 = vlaneseq
    %v6055 = vshrl.u32 %v6054, 7
    %v6056 = vsub.s32 %v6053, %v6055
    %v6057 = vrot.slane %v6049, %v6056
    %v6059 = vunpack.c.l.s4 1934713408
    %v6060 = vunpack.c.0.s8 %v6059
    %v6061 = vlaneseq
    %v6062 = vshrl.u32 %v6061, 7
    %v6063 = vsub.s32 %v6060, %v6062
    %v6064 = vrot.slane %v6050, %v6063
    %v6065 = vcombine.low %v6009, %v6025
    %v6066 = vcombine.high %v6009, %v6025
    %v6068 = vunpack.c.l.s4 1934713408
    %v6069 = vunpack.c.0.s8 %v6068
    %v6070 = vlaneseq
    %v6071 = vshrl.u32 %v6070, 7
    %v6072 = vsub.s32 %v6069, %v6071
    %v6073 = vrot.slane %v6065, %v6072
    %v6075 = vunpack.c.l.s4 1934713408
    %v6076 = vunpack.c.0.s8 %v6075
    %v6077 = vlaneseq
    %v6078 = vshrl.u32 %v6077, 7
    %v6079 = vsub.s32 %v6076, %v6078
    %v6080 = vrot.slane %v6066, %v6079
    %v6081 = vcombine.low %v6016, %v6032
    %v6082 = vcombine.high %v6016, %v6032
    %v6084 = vunpack.c.l.s4 1934713408
    %v6085 = vunpack.c.0.s8 %v6084
    %v6086 = vlaneseq
    %v6087 = vshrl.u32 %v6086, 7
    %v6088 = vsub.s32 %v6085, %v6087
    %v6089 = vrot.slane %v6081, %v6088
    %v6091 = vunpack.c.l.s4 1934713408
    %v6092 = vunpack.c.0.s8 %v6091
    %v6093 = vlaneseq
    %v6094 = vshrl.u32 %v6093, 7
    %v6095 = vsub.s32 %v6092, %v6094
    %v6096 = vrot.slane %v6082, %v6095
    %v6097 = vcombine.low %v6041, %v6073
    %v6098 = vcombine.high %v6041, %v6073
    %v6099 = vcombine.low %v6048, %v6080
    %v6100 = vcombine.high %v6048, %v6080
    %v6101 = vcombine.low %v6057, %v6089
    %v6102 = vcombine.high %v6057, %v6089
    %v6103 = vcombine.low %v6064, %v6096
    %v6104 = vcombine.high %v6064, %v6096
    %v6105 = vcombine.low %v5961, %v5963
    %v6106 = vcombine.high %v5961, %v5963
    %v6108 = vunpack.c.l.s4 1983009808
    %v6109 = vunpack.c.0.s8 %v6108
    %v6110 = vlaneseq
    %v6111 = vshrl.u32 %v6110, 7
    %v6112 = vsub.s32 %v6109, %v6111
    %v6113 = vrot.slane %v6105, %v6112
    %v6115 = vunpack.c.l.s4 1983009808
    %v6116 = vunpack.c.0.s8 %v6115
    %v6117 = vlaneseq
    %v6118 = vshrl.u32 %v6117, 7
    %v6119 = vsub.s32 %v6116, %v6118
    %v6120 = vrot.slane %v6106, %v6119
    %v6121 = vcombine.low %v5962, %v5964
    %v6122 = vcombine.high %v5962, %v5964
    %v6124 = vunpack.c.l.s4 1983009808
    %v6125 = vunpack.c.0.s8 %v6124
    %v6126 = vlaneseq
    %v6127 = vshrl.u32 %v6126, 7
    %v6128 = vsub.s32 %v6125, %v6127
    %v6129 = vrot.slane %v6121, %v6128
    %v6131 = vunpack.c.l.s4 1983009808
    %v6132 = vunpack.c.0.s8 %v6131
    %v6133 = vlaneseq
    %v6134 = vshrl.u32 %v6133, 7
    %v6135 = vsub.s32 %v6132, %v6134
    %v6136 = vrot.slane %v6122, %v6135
    %v6137 = vcombine.low %v5965, %v5967
    %v6138 = vcombine.high %v5965, %v5967
    %v6140 = vunpack.c.l.s4 1983009808
    %v6141 = vunpack.c.0.s8 %v6140
    %v6142 = vlaneseq
    %v6143 = vshrl.u32 %v6142, 7
    %v6144 = vsub.s32 %v6141, %v6143
    %v6145 = vrot.slane %v6137, %v6144
    %v6147 = vunpack.c.l.s4 1983009808
    %v6148 = vunpack.c.0.s8 %v6147
    %v6149 = vlaneseq
    %v6150 = vshrl.u32 %v6149, 7
    %v6151 = vsub.s32 %v6148, %v6150
    %v6152 = vrot.slane %v6138, %v6151
    %v6153 = vcombine.low %v5966, %v5968
    %v6154 = vcombine.high %v5966, %v5968
    %v6156 = vunpack.c.l.s4 1983009808
    %v6157 = vunpack.c.0.s8 %v6156
    %v6158 = vlaneseq
    %v6159 = vshrl.u32 %v6158, 7
    %v6160 = vsub.s32 %v6157, %v6159
    %v6161 = vrot.slane %v6153, %v6160
    %v6163 = vunpack.c.l.s4 1983009808
    %v6164 = vunpack.c.0.s8 %v6163
    %v6165 = vlaneseq
    %v6166 = vshrl.u32 %v6165, 7
    %v6167 = vsub.s32 %v6164, %v6166
    %v6168 = vrot.slane %v6154, %v6167
    %v6169 = vcombine.low %v6113, %v6129
    %v6170 = vcombine.high %v6113, %v6129
    %v6172 = vunpack.c.l.s4 1934713408
    %v6173 = vunpack.c.0.s8 %v6172
    %v6174 = vlaneseq
    %v6175 = vshrl.u32 %v6174, 7
    %v6176 = vsub.s32 %v6173, %v6175
    %v6177 = vrot.slane %v6169, %v6176
    %v6179 = vunpack.c.l.s4 1934713408
    %v6180 = vunpack.c.0.s8 %v6179
    %v6181 = vlaneseq
    %v6182 = vshrl.u32 %v6181, 7
    %v6183 = vsub.s32 %v6180, %v6182
    %v6184 = vrot.slane %v6170, %v6183
    %v6185 = vcombine.low %v6120, %v6136
    %v6186 = vcombine.high %v6120, %v6136
    %v6188 = vunpack.c.l.s4 1934713408
    %v6189 = vunpack.c.0.s8 %v6188
    %v6190 = vlaneseq
    %v6191 = vshrl.u32 %v6190, 7
    %v6192 = vsub.s32 %v6189, %v6191
    %v6193 = vrot.slane %v6185, %v6192
    %v6195 = vunpack.c.l.s4 1934713408
    %v6196 = vunpack.c.0.s8 %v6195
    %v6197 = vlaneseq
    %v6198 = vshrl.u32 %v6197, 7
    %v6199 = vsub.s32 %v6196, %v6198
    %v6200 = vrot.slane %v6186, %v6199
    %v6201 = vcombine.low %v6145, %v6161
    %v6202 = vcombine.high %v6145, %v6161
    %v6204 = vunpack.c.l.s4 1934713408
    %v6205 = vunpack.c.0.s8 %v6204
    %v6206 = vlaneseq
    %v6207 = vshrl.u32 %v6206, 7
    %v6208 = vsub.s32 %v6205, %v6207
    %v6209 = vrot.slane %v6201, %v6208
    %v6211 = vunpack.c.l.s4 1934713408
    %v6212 = vunpack.c.0.s8 %v6211
    %v6213 = vlaneseq
    %v6214 = vshrl.u32 %v6213, 7
    %v6215 = vsub.s32 %v6212, %v6214
    %v6216 = vrot.slane %v6202, %v6215
    %v6217 = vcombine.low %v6152, %v6168
    %v6218 = vcombine.high %v6152, %v6168
    %v6220 = vunpack.c.l.s4 1934713408
    %v6221 = vunpack.c.0.s8 %v6220
    %v6222 = vlaneseq
    %v6223 = vshrl.u32 %v6222, 7
    %v6224 = vsub.s32 %v6221, %v6223
    %v6225 = vrot.slane %v6217, %v6224
    %v6227 = vunpack.c.l.s4 1934713408
    %v6228 = vunpack.c.0.s8 %v6227
    %v6229 = vlaneseq
    %v6230 = vshrl.u32 %v6229, 7
    %v6231 = vsub.s32 %v6228, %v6230
    %v6232 = vrot.slane %v6218, %v6231
    %v6233 = vcombine.low %v6177, %v6209
    %v6234 = vcombine.high %v6177, %v6209
    %v6235 = vcombine.low %v6184, %v6216
    %v6236 = vcombine.high %v6184, %v6216
    %v6237 = vcombine.low %v6193, %v6225
    %v6238 = vcombine.high %v6193, %v6225
    %v6239 = vcombine.low %v6200, %v6232
    %v6240 = vcombine.high %v6200, %v6232
    %v6241 = vcombine.low %v6097, %v6099
    %v6242 = vcombine.high %v6097, %v6099
    %v6244 = vunpack.c.l.s4 1983009808
    %v6245 = vunpack.c.0.s8 %v6244
    %v6246 = vlaneseq
    %v6247 = vshrl.u32 %v6246, 7
    %v6248 = vsub.s32 %v6245, %v6247
    %v6249 = vrot.slane %v6241, %v6248
    %v6251 = vunpack.c.l.s4 1983009808
    %v6252 = vunpack.c.0.s8 %v6251
    %v6253 = vlaneseq
    %v6254 = vshrl.u32 %v6253, 7
    %v6255 = vsub.s32 %v6252, %v6254
    %v6256 = vrot.slane %v6242, %v6255
    %v6257 = vcombine.low %v6098, %v6100
    %v6258 = vcombine.high %v6098, %v6100
    %v6260 = vunpack.c.l.s4 1983009808
    %v6261 = vunpack.c.0.s8 %v6260
    %v6262 = vlaneseq
    %v6263 = vshrl.u32 %v6262, 7
    %v6264 = vsub.s32 %v6261, %v6263
    %v6265 = vrot.slane %v6257, %v6264
    %v6267 = vunpack.c.l.s4 1983009808
    %v6268 = vunpack.c.0.s8 %v6267
    %v6269 = vlaneseq
    %v6270 = vshrl.u32 %v6269, 7
    %v6271 = vsub.s32 %v6268, %v6270
    %v6272 = vrot.slane %v6258, %v6271
    %v6273 = vcombine.low %v6101, %v6103
    %v6274 = vcombine.high %v6101, %v6103
    %v6276 = vunpack.c.l.s4 1983009808
    %v6277 = vunpack.c.0.s8 %v6276
    %v6278 = vlaneseq
    %v6279 = vshrl.u32 %v6278, 7
    %v6280 = vsub.s32 %v6277, %v6279
    %v6281 = vrot.slane %v6273, %v6280
    %v6283 = vunpack.c.l.s4 1983009808
    %v6284 = vunpack.c.0.s8 %v6283
    %v6285 = vlaneseq
    %v6286 = vshrl.u32 %v6285, 7
    %v6287 = vsub.s32 %v6284, %v6286
    %v6288 = vrot.slane %v6274, %v6287
    %v6289 = vcombine.low %v6102, %v6104
    %v6290 = vcombine.high %v6102, %v6104
    %v6292 = vunpack.c.l.s4 1983009808
    %v6293 = vunpack.c.0.s8 %v6292
    %v6294 = vlaneseq
    %v6295 = vshrl.u32 %v6294, 7
    %v6296 = vsub.s32 %v6293, %v6295
    %v6297 = vrot.slane %v6289, %v6296
    %v6299 = vunpack.c.l.s4 1983009808
    %v6300 = vunpack.c.0.s8 %v6299
    %v6301 = vlaneseq
    %v6302 = vshrl.u32 %v6301, 7
    %v6303 = vsub.s32 %v6300, %v6302
    %v6304 = vrot.slane %v6290, %v6303
    %v6305 = vcombine.low %v6249, %v6265
    %v6306 = vcombine.high %v6249, %v6265
    %v6308 = vunpack.c.l.s4 1934713408
    %v6309 = vunpack.c.0.s8 %v6308
    %v6310 = vlaneseq
    %v6311 = vshrl.u32 %v6310, 7
    %v6312 = vsub.s32 %v6309, %v6311
    %v6313 = vrot.slane %v6305, %v6312
    %v6315 = vunpack.c.l.s4 1934713408
    %v6316 = vunpack.c.0.s8 %v6315
    %v6317 = vlaneseq
    %v6318 = vshrl.u32 %v6317, 7
    %v6319 = vsub.s32 %v6316, %v6318
    %v6320 = vrot.slane %v6306, %v6319
    %v6321 = vcombine.low %v6256, %v6272
    %v6322 = vcombine.high %v6256, %v6272
    %v6324 = vunpack.c.l.s4 1934713408
    %v6325 = vunpack.c.0.s8 %v6324
    %v6326 = vlaneseq
    %v6327 = vshrl.u32 %v6326, 7
    %v6328 = vsub.s32 %v6325, %v6327
    %v6329 = vrot.slane %v6321, %v6328
    %v6331 = vunpack.c.l.s4 1934713408
    %v6332 = vunpack.c.0.s8 %v6331
    %v6333 = vlaneseq
    %v6334 = vshrl.u32 %v6333, 7
    %v6335 = vsub.s32 %v6332, %v6334
    %v6336 = vrot.slane %v6322, %v6335
    %v6337 = vcombine.low %v6281, %v6297
    %v6338 = vcombine.high %v6281, %v6297
    %v6340 = vunpack.c.l.s4 1934713408
    %v6341 = vunpack.c.0.s8 %v6340
    %v6342 = vlaneseq
    %v6343 = vshrl.u32 %v6342, 7
    %v6344 = vsub.s32 %v6341, %v6343
    %v6345 = vrot.slane %v6337, %v6344
    %v6347 = vunpack.c.l.s4 1934713408
    %v6348 = vunpack.c.0.s8 %v6347
    %v6349 = vlaneseq
    %v6350 = vshrl.u32 %v6349, 7
    %v6351 = vsub.s32 %v6348, %v6350
    %v6352 = vrot.slane %v6338, %v6351
    %v6353 = vcombine.low %v6288, %v6304
    %v6354 = vcombine.high %v6288, %v6304
    %v6356 = vunpack.c.l.s4 1934713408
    %v6357 = vunpack.c.0.s8 %v6356
    %v6358 = vlaneseq
    %v6359 = vshrl.u32 %v6358, 7
    %v6360 = vsub.s32 %v6357, %v6359
    %v6361 = vrot.slane %v6353, %v6360
    %v6363 = vunpack.c.l.s4 1934713408
    %v6364 = vunpack.c.0.s8 %v6363
    %v6365 = vlaneseq
    %v6366 = vshrl.u32 %v6365, 7
    %v6367 = vsub.s32 %v6364, %v6366
    %v6368 = vrot.slane %v6354, %v6367
    %v6369 = vcombine.low %v6313, %v6345
    %v6370 = vcombine.high %v6313, %v6345
    %v6371 = vcombine.low %v6320, %v6352
    %v6372 = vcombine.high %v6320, %v6352
    %v6373 = vcombine.low %v6329, %v6361
    %v6374 = vcombine.high %v6329, %v6361
    %v6375 = vcombine.low %v6336, %v6368
    %v6376 = vcombine.high %v6336, %v6368
    %v6378 = vsel %vm1046, %v5779, 0
    %v6381 = vsel %vm1046, %v6233, 0
    %6383 = vmatprep.subr.mxu0 0.0
    %6384 = vmatpush1.xpose.msra.mxu0 0.0
    %6385 = vmatprep.subr.mxu0 0.0
    %6386 = vmatpush1.xpose.msra.mxu0 0.0
    %6387 = vmatprep.subr.mxu0 0.0
    %6388 = vmatpush1.xpose.msra.mxu0 0.0
    %6389 = vmatprep.subr.mxu0 0.0
    %6390 = vmatpush1.xpose.msra.mxu0 0.0
    %6391 = vmatprep.subr.mxu0 0.0
    %6392 = vmatpush1.xpose.msra.mxu0 0.0
    %6393 = vmatprep.subr.mxu0 0.0
    %6394 = vmatpush1.xpose.msra.mxu0 0.0
    %6395 = vmatprep.subr.mxu0 0.0
    %6396 = vmatpush1.xpose.msra.mxu0 0.0
    %6397 = vmatprep.subr.mxu0 0.0
    %6398 = vmatpush1.xpose.msra.mxu0 0.0
    %6399 = vmatprep.subr.mxu0 0.0
    %6400 = vmatpush1.xpose.msra.mxu0 0.0
    %6401 = vmatprep.subr.mxu0 0.0
    %6402 = vmatpush1.xpose.msra.mxu0 0.0
    %6403 = vmatprep.subr.mxu0 0.0
    %6404 = vmatpush1.xpose.msra.mxu0 0.0
    %6405 = vmatprep.subr.mxu0 0.0
    %6406 = vmatpush1.xpose.msra.mxu0 0.0
    %6407 = vmatprep.subr.mxu0 0.0
    %6408 = vmatpush1.xpose.msra.mxu0 0.0
    %6409 = vmatprep.subr.mxu0 0.0
    %6410 = vmatpush1.xpose.msra.mxu0 0.0
    %6411 = vmatprep.subr.mxu0 0.0
    %6412 = vmatpush1.xpose.msra.mxu0 0.0
    %6413 = vmatprep.subr.mxu0 0.0
    %6414 = vmatpush1.xpose.msra.mxu0 %v6381
    %6415 = vmatprep.subr.mxu0 0.0
    %6416 = vmatpush2.xpose.msra.mxu0 0.0
    %6417 = vmatprep.subr.mxu0 0.0
    %6418 = vmatpush2.xpose.msra.mxu0 0.0
    %6419 = vmatprep.subr.mxu0 0.0
    %6420 = vmatpush2.xpose.msra.mxu0 0.0
    %6421 = vmatprep.subr.mxu0 0.0
    %6422 = vmatpush2.xpose.msra.mxu0 0.0
    %6423 = vmatprep.subr.mxu0 0.0
    %6424 = vmatpush2.xpose.msra.mxu0 0.0
    %6425 = vmatprep.subr.mxu0 0.0
    %6426 = vmatpush2.xpose.msra.mxu0 0.0
    %6427 = vmatprep.subr.mxu0 0.0
    %6428 = vmatpush2.xpose.msra.mxu0 0.0
    %6429 = vmatprep.subr.mxu0 0.0
    %6430 = vmatpush2.xpose.msra.mxu0 0.0
    %6431 = vmatprep.subr.mxu0 0.0
    %6432 = vmatpush2.xpose.msra.mxu0 0.0
    %6433 = vmatprep.subr.mxu0 0.0
    %6434 = vmatpush2.xpose.msra.mxu0 0.0
    %6435 = vmatprep.subr.mxu0 0.0
    %6436 = vmatpush2.xpose.msra.mxu0 0.0
    %6437 = vmatprep.subr.mxu0 0.0
    %6438 = vmatpush2.xpose.msra.mxu0 0.0
    %6439 = vmatprep.subr.mxu0 0.0
    %6440 = vmatpush2.xpose.msra.mxu0 0.0
    %6441 = vmatprep.subr.mxu0 0.0
    %6442 = vmatpush2.xpose.msra.mxu0 0.0
    %6443 = vmatprep.subr.mxu0 0.0
    %6444 = vmatpush2.xpose.msra.mxu0 0.0
    %6445 = vmatprep.subr.mxu0 0.0
    %6446 = vmatpush2.xpose.msra.mxu0 0.0
    %6447 = vmatprep.mubr.f32.mxu0 0.0
    %6448 = vmatmul.mubr.f32.gmra.mxu0 %v6378
    %v6449 = vpop.f32.mrf.mxu0
    %v6450 = vadd.f32 0.0, %v6449
    %v6451 = vpop.f32.mrf.mxu0
    %6452 = vdwg.mxu0
    %v6454 = vsel %vm1046, %v5780, 0
    %v6457 = vsel %vm1046, %v6234, 0
    %6459 = vmatprep.subr.mxu0 0.0
    %6460 = vmatpush1.xpose.msra.mxu0 0.0
    %6461 = vmatprep.subr.mxu0 0.0
    %6462 = vmatpush1.xpose.msra.mxu0 0.0
    %6463 = vmatprep.subr.mxu0 0.0
    %6464 = vmatpush1.xpose.msra.mxu0 0.0
    %6465 = vmatprep.subr.mxu0 0.0
    %6466 = vmatpush1.xpose.msra.mxu0 0.0
    %6467 = vmatprep.subr.mxu0 0.0
    %6468 = vmatpush1.xpose.msra.mxu0 0.0
    %6469 = vmatprep.subr.mxu0 0.0
    %6470 = vmatpush1.xpose.msra.mxu0 0.0
    %6471 = vmatprep.subr.mxu0 0.0
    %6472 = vmatpush1.xpose.msra.mxu0 0.0
    %6473 = vmatprep.subr.mxu0 0.0
    %6474 = vmatpush1.xpose.msra.mxu0 0.0
    %6475 = vmatprep.subr.mxu0 0.0
    %6476 = vmatpush1.xpose.msra.mxu0 0.0
    %6477 = vmatprep.subr.mxu0 0.0
    %6478 = vmatpush1.xpose.msra.mxu0 0.0
    %6479 = vmatprep.subr.mxu0 0.0
    %6480 = vmatpush1.xpose.msra.mxu0 0.0
    %6481 = vmatprep.subr.mxu0 0.0
    %6482 = vmatpush1.xpose.msra.mxu0 0.0
    %6483 = vmatprep.subr.mxu0 0.0
    %6484 = vmatpush1.xpose.msra.mxu0 0.0
    %6485 = vmatprep.subr.mxu0 0.0
    %6486 = vmatpush1.xpose.msra.mxu0 0.0
    %6487 = vmatprep.subr.mxu0 0.0
    %6488 = vmatpush1.xpose.msra.mxu0 0.0
    %6489 = vmatprep.subr.mxu0 0.0
    %6490 = vmatpush1.xpose.msra.mxu0 %v6457
    %6491 = vmatprep.subr.mxu0 0.0
    %6492 = vmatpush2.xpose.msra.mxu0 0.0
    %6493 = vmatprep.subr.mxu0 0.0
    %6494 = vmatpush2.xpose.msra.mxu0 0.0
    %6495 = vmatprep.subr.mxu0 0.0
    %6496 = vmatpush2.xpose.msra.mxu0 0.0
    %6497 = vmatprep.subr.mxu0 0.0
    %6498 = vmatpush2.xpose.msra.mxu0 0.0
    %6499 = vmatprep.subr.mxu0 0.0
    %6500 = vmatpush2.xpose.msra.mxu0 0.0
    %6501 = vmatprep.subr.mxu0 0.0
    %6502 = vmatpush2.xpose.msra.mxu0 0.0
    %6503 = vmatprep.subr.mxu0 0.0
    %6504 = vmatpush2.xpose.msra.mxu0 0.0
    %6505 = vmatprep.subr.mxu0 0.0
    %6506 = vmatpush2.xpose.msra.mxu0 0.0
    %6507 = vmatprep.subr.mxu0 0.0
    %6508 = vmatpush2.xpose.msra.mxu0 0.0
    %6509 = vmatprep.subr.mxu0 0.0
    %6510 = vmatpush2.xpose.msra.mxu0 0.0
    %6511 = vmatprep.subr.mxu0 0.0
    %6512 = vmatpush2.xpose.msra.mxu0 0.0
    %6513 = vmatprep.subr.mxu0 0.0
    %6514 = vmatpush2.xpose.msra.mxu0 0.0
    %6515 = vmatprep.subr.mxu0 0.0
    %6516 = vmatpush2.xpose.msra.mxu0 0.0
    %6517 = vmatprep.subr.mxu0 0.0
    %6518 = vmatpush2.xpose.msra.mxu0 0.0
    %6519 = vmatprep.subr.mxu0 0.0
    %6520 = vmatpush2.xpose.msra.mxu0 0.0
    %6521 = vmatprep.subr.mxu0 0.0
    %6522 = vmatpush2.xpose.msra.mxu0 0.0
    %6523 = vmatprep.mubr.f32.mxu0 0.0
    %6524 = vmatmul.mubr.f32.gmra.mxu0 %v6454
    %v6525 = vpop.f32.mrf.mxu0
    %v6526 = vadd.f32 0.0, %v6525
    %v6527 = vpop.f32.mrf.mxu0
    %6528 = vdwg.mxu0
    %v6530 = vsel %vm1046, %v5781, 0
    %v6533 = vsel %vm1046, %v6235, 0
    %6535 = vmatprep.subr.mxu0 0.0
    %6536 = vmatpush1.xpose.msra.mxu0 0.0
    %6537 = vmatprep.subr.mxu0 0.0
    %6538 = vmatpush1.xpose.msra.mxu0 0.0
    %6539 = vmatprep.subr.mxu0 0.0
    %6540 = vmatpush1.xpose.msra.mxu0 0.0
    %6541 = vmatprep.subr.mxu0 0.0
    %6542 = vmatpush1.xpose.msra.mxu0 0.0
    %6543 = vmatprep.subr.mxu0 0.0
    %6544 = vmatpush1.xpose.msra.mxu0 0.0
    %6545 = vmatprep.subr.mxu0 0.0
    %6546 = vmatpush1.xpose.msra.mxu0 0.0
    %6547 = vmatprep.subr.mxu0 0.0
    %6548 = vmatpush1.xpose.msra.mxu0 0.0
    %6549 = vmatprep.subr.mxu0 0.0
    %6550 = vmatpush1.xpose.msra.mxu0 0.0
    %6551 = vmatprep.subr.mxu0 0.0
    %6552 = vmatpush1.xpose.msra.mxu0 0.0
    %6553 = vmatprep.subr.mxu0 0.0
    %6554 = vmatpush1.xpose.msra.mxu0 0.0
    %6555 = vmatprep.subr.mxu0 0.0
    %6556 = vmatpush1.xpose.msra.mxu0 0.0
    %6557 = vmatprep.subr.mxu0 0.0
    %6558 = vmatpush1.xpose.msra.mxu0 0.0
    %6559 = vmatprep.subr.mxu0 0.0
    %6560 = vmatpush1.xpose.msra.mxu0 0.0
    %6561 = vmatprep.subr.mxu0 0.0
    %6562 = vmatpush1.xpose.msra.mxu0 0.0
    %6563 = vmatprep.subr.mxu0 0.0
    %6564 = vmatpush1.xpose.msra.mxu0 0.0
    %6565 = vmatprep.subr.mxu0 0.0
    %6566 = vmatpush1.xpose.msra.mxu0 %v6533
    %6567 = vmatprep.subr.mxu0 0.0
    %6568 = vmatpush2.xpose.msra.mxu0 0.0
    %6569 = vmatprep.subr.mxu0 0.0
    %6570 = vmatpush2.xpose.msra.mxu0 0.0
    %6571 = vmatprep.subr.mxu0 0.0
    %6572 = vmatpush2.xpose.msra.mxu0 0.0
    %6573 = vmatprep.subr.mxu0 0.0
    %6574 = vmatpush2.xpose.msra.mxu0 0.0
    %6575 = vmatprep.subr.mxu0 0.0
    %6576 = vmatpush2.xpose.msra.mxu0 0.0
    %6577 = vmatprep.subr.mxu0 0.0
    %6578 = vmatpush2.xpose.msra.mxu0 0.0
    %6579 = vmatprep.subr.mxu0 0.0
    %6580 = vmatpush2.xpose.msra.mxu0 0.0
    %6581 = vmatprep.subr.mxu0 0.0
    %6582 = vmatpush2.xpose.msra.mxu0 0.0
    %6583 = vmatprep.subr.mxu0 0.0
    %6584 = vmatpush2.xpose.msra.mxu0 0.0
    %6585 = vmatprep.subr.mxu0 0.0
    %6586 = vmatpush2.xpose.msra.mxu0 0.0
    %6587 = vmatprep.subr.mxu0 0.0
    %6588 = vmatpush2.xpose.msra.mxu0 0.0
    %6589 = vmatprep.subr.mxu0 0.0
    %6590 = vmatpush2.xpose.msra.mxu0 0.0
    %6591 = vmatprep.subr.mxu0 0.0
    %6592 = vmatpush2.xpose.msra.mxu0 0.0
    %6593 = vmatprep.subr.mxu0 0.0
    %6594 = vmatpush2.xpose.msra.mxu0 0.0
    %6595 = vmatprep.subr.mxu0 0.0
    %6596 = vmatpush2.xpose.msra.mxu0 0.0
    %6597 = vmatprep.subr.mxu0 0.0
    %6598 = vmatpush2.xpose.msra.mxu0 0.0
    %6599 = vmatprep.mubr.f32.mxu0 0.0
    %6600 = vmatmul.mubr.f32.gmra.mxu0 %v6530
    %v6601 = vpop.f32.mrf.mxu0
    %v6602 = vadd.f32 0.0, %v6601
    %v6603 = vpop.f32.mrf.mxu0
    %6604 = vdwg.mxu0
    %v6606 = vsel %vm1046, %v5782, 0
    %v6609 = vsel %vm1046, %v6236, 0
    %6611 = vmatprep.subr.mxu0 0.0
    %6612 = vmatpush1.xpose.msra.mxu0 0.0
    %6613 = vmatprep.subr.mxu0 0.0
    %6614 = vmatpush1.xpose.msra.mxu0 0.0
    %6615 = vmatprep.subr.mxu0 0.0
    %6616 = vmatpush1.xpose.msra.mxu0 0.0
    %6617 = vmatprep.subr.mxu0 0.0
    %6618 = vmatpush1.xpose.msra.mxu0 0.0
    %6619 = vmatprep.subr.mxu0 0.0
    %6620 = vmatpush1.xpose.msra.mxu0 0.0
    %6621 = vmatprep.subr.mxu0 0.0
    %6622 = vmatpush1.xpose.msra.mxu0 0.0
    %6623 = vmatprep.subr.mxu0 0.0
    %6624 = vmatpush1.xpose.msra.mxu0 0.0
    %6625 = vmatprep.subr.mxu0 0.0
    %6626 = vmatpush1.xpose.msra.mxu0 0.0
    %6627 = vmatprep.subr.mxu0 0.0
    %6628 = vmatpush1.xpose.msra.mxu0 0.0
    %6629 = vmatprep.subr.mxu0 0.0
    %6630 = vmatpush1.xpose.msra.mxu0 0.0
    %6631 = vmatprep.subr.mxu0 0.0
    %6632 = vmatpush1.xpose.msra.mxu0 0.0
    %6633 = vmatprep.subr.mxu0 0.0
    %6634 = vmatpush1.xpose.msra.mxu0 0.0
    %6635 = vmatprep.subr.mxu0 0.0
    %6636 = vmatpush1.xpose.msra.mxu0 0.0
    %6637 = vmatprep.subr.mxu0 0.0
    %6638 = vmatpush1.xpose.msra.mxu0 0.0
    %6639 = vmatprep.subr.mxu0 0.0
    %6640 = vmatpush1.xpose.msra.mxu0 0.0
    %6641 = vmatprep.subr.mxu0 0.0
    %6642 = vmatpush1.xpose.msra.mxu0 %v6609
    %6643 = vmatprep.subr.mxu0 0.0
    %6644 = vmatpush2.xpose.msra.mxu0 0.0
    %6645 = vmatprep.subr.mxu0 0.0
    %6646 = vmatpush2.xpose.msra.mxu0 0.0
    %6647 = vmatprep.subr.mxu0 0.0
    %6648 = vmatpush2.xpose.msra.mxu0 0.0
    %6649 = vmatprep.subr.mxu0 0.0
    %6650 = vmatpush2.xpose.msra.mxu0 0.0
    %6651 = vmatprep.subr.mxu0 0.0
    %6652 = vmatpush2.xpose.msra.mxu0 0.0
    %6653 = vmatprep.subr.mxu0 0.0
    %6654 = vmatpush2.xpose.msra.mxu0 0.0
    %6655 = vmatprep.subr.mxu0 0.0
    %6656 = vmatpush2.xpose.msra.mxu0 0.0
    %6657 = vmatprep.subr.mxu0 0.0
    %6658 = vmatpush2.xpose.msra.mxu0 0.0
    %6659 = vmatprep.subr.mxu0 0.0
    %6660 = vmatpush2.xpose.msra.mxu0 0.0
    %6661 = vmatprep.subr.mxu0 0.0
    %6662 = vmatpush2.xpose.msra.mxu0 0.0
    %6663 = vmatprep.subr.mxu0 0.0
    %6664 = vmatpush2.xpose.msra.mxu0 0.0
    %6665 = vmatprep.subr.mxu0 0.0
    %6666 = vmatpush2.xpose.msra.mxu0 0.0
    %6667 = vmatprep.subr.mxu0 0.0
    %6668 = vmatpush2.xpose.msra.mxu0 0.0
    %6669 = vmatprep.subr.mxu0 0.0
    %6670 = vmatpush2.xpose.msra.mxu0 0.0
    %6671 = vmatprep.subr.mxu0 0.0
    %6672 = vmatpush2.xpose.msra.mxu0 0.0
    %6673 = vmatprep.subr.mxu0 0.0
    %6674 = vmatpush2.xpose.msra.mxu0 0.0
    %6675 = vmatprep.mubr.f32.mxu0 0.0
    %6676 = vmatmul.mubr.f32.gmra.mxu0 %v6606
    %v6677 = vpop.f32.mrf.mxu0
    %v6678 = vadd.f32 0.0, %v6677
    %v6679 = vpop.f32.mrf.mxu0
    %6680 = vdwg.mxu0
    %v6682 = vsel %vm1046, %v5783, 0
    %v6685 = vsel %vm1046, %v6237, 0
    %6687 = vmatprep.subr.mxu0 0.0
    %6688 = vmatpush1.xpose.msra.mxu0 0.0
    %6689 = vmatprep.subr.mxu0 0.0
    %6690 = vmatpush1.xpose.msra.mxu0 0.0
    %6691 = vmatprep.subr.mxu0 0.0
    %6692 = vmatpush1.xpose.msra.mxu0 0.0
    %6693 = vmatprep.subr.mxu0 0.0
    %6694 = vmatpush1.xpose.msra.mxu0 0.0
    %6695 = vmatprep.subr.mxu0 0.0
    %6696 = vmatpush1.xpose.msra.mxu0 0.0
    %6697 = vmatprep.subr.mxu0 0.0
    %6698 = vmatpush1.xpose.msra.mxu0 0.0
    %6699 = vmatprep.subr.mxu0 0.0
    %6700 = vmatpush1.xpose.msra.mxu0 0.0
    %6701 = vmatprep.subr.mxu0 0.0
    %6702 = vmatpush1.xpose.msra.mxu0 0.0
    %6703 = vmatprep.subr.mxu0 0.0
    %6704 = vmatpush1.xpose.msra.mxu0 0.0
    %6705 = vmatprep.subr.mxu0 0.0
    %6706 = vmatpush1.xpose.msra.mxu0 0.0
    %6707 = vmatprep.subr.mxu0 0.0
    %6708 = vmatpush1.xpose.msra.mxu0 0.0
    %6709 = vmatprep.subr.mxu0 0.0
    %6710 = vmatpush1.xpose.msra.mxu0 0.0
    %6711 = vmatprep.subr.mxu0 0.0
    %6712 = vmatpush1.xpose.msra.mxu0 0.0
    %6713 = vmatprep.subr.mxu0 0.0
    %6714 = vmatpush1.xpose.msra.mxu0 0.0
    %6715 = vmatprep.subr.mxu0 0.0
    %6716 = vmatpush1.xpose.msra.mxu0 0.0
    %6717 = vmatprep.subr.mxu0 0.0
    %6718 = vmatpush1.xpose.msra.mxu0 %v6685
    %6719 = vmatprep.subr.mxu0 0.0
    %6720 = vmatpush2.xpose.msra.mxu0 0.0
    %6721 = vmatprep.subr.mxu0 0.0
    %6722 = vmatpush2.xpose.msra.mxu0 0.0
    %6723 = vmatprep.subr.mxu0 0.0
    %6724 = vmatpush2.xpose.msra.mxu0 0.0
    %6725 = vmatprep.subr.mxu0 0.0
    %6726 = vmatpush2.xpose.msra.mxu0 0.0
    %6727 = vmatprep.subr.mxu0 0.0
    %6728 = vmatpush2.xpose.msra.mxu0 0.0
    %6729 = vmatprep.subr.mxu0 0.0
    %6730 = vmatpush2.xpose.msra.mxu0 0.0
    %6731 = vmatprep.subr.mxu0 0.0
    %6732 = vmatpush2.xpose.msra.mxu0 0.0
    %6733 = vmatprep.subr.mxu0 0.0
    %6734 = vmatpush2.xpose.msra.mxu0 0.0
    %6735 = vmatprep.subr.mxu0 0.0
    %6736 = vmatpush2.xpose.msra.mxu0 0.0
    %6737 = vmatprep.subr.mxu0 0.0
    %6738 = vmatpush2.xpose.msra.mxu0 0.0
    %6739 = vmatprep.subr.mxu0 0.0
    %6740 = vmatpush2.xpose.msra.mxu0 0.0
    %6741 = vmatprep.subr.mxu0 0.0
    %6742 = vmatpush2.xpose.msra.mxu0 0.0
    %6743 = vmatprep.subr.mxu0 0.0
    %6744 = vmatpush2.xpose.msra.mxu0 0.0
    %6745 = vmatprep.subr.mxu0 0.0
    %6746 = vmatpush2.xpose.msra.mxu0 0.0
    %6747 = vmatprep.subr.mxu0 0.0
    %6748 = vmatpush2.xpose.msra.mxu0 0.0
    %6749 = vmatprep.subr.mxu0 0.0
    %6750 = vmatpush2.xpose.msra.mxu0 0.0
    %6751 = vmatprep.mubr.f32.mxu0 0.0
    %6752 = vmatmul.mubr.f32.gmra.mxu0 %v6682
    %v6753 = vpop.f32.mrf.mxu0
    %v6754 = vadd.f32 0.0, %v6753
    %v6755 = vpop.f32.mrf.mxu0
    %6756 = vdwg.mxu0
    %v6758 = vsel %vm1046, %v5784, 0
    %v6761 = vsel %vm1046, %v6238, 0
    %6763 = vmatprep.subr.mxu0 0.0
    %6764 = vmatpush1.xpose.msra.mxu0 0.0
    %6765 = vmatprep.subr.mxu0 0.0
    %6766 = vmatpush1.xpose.msra.mxu0 0.0
    %6767 = vmatprep.subr.mxu0 0.0
    %6768 = vmatpush1.xpose.msra.mxu0 0.0
    %6769 = vmatprep.subr.mxu0 0.0
    %6770 = vmatpush1.xpose.msra.mxu0 0.0
    %6771 = vmatprep.subr.mxu0 0.0
    %6772 = vmatpush1.xpose.msra.mxu0 0.0
    %6773 = vmatprep.subr.mxu0 0.0
    %6774 = vmatpush1.xpose.msra.mxu0 0.0
    %6775 = vmatprep.subr.mxu0 0.0
    %6776 = vmatpush1.xpose.msra.mxu0 0.0
    %6777 = vmatprep.subr.mxu0 0.0
    %6778 = vmatpush1.xpose.msra.mxu0 0.0
    %6779 = vmatprep.subr.mxu0 0.0
    %6780 = vmatpush1.xpose.msra.mxu0 0.0
    %6781 = vmatprep.subr.mxu0 0.0
    %6782 = vmatpush1.xpose.msra.mxu0 0.0
    %6783 = vmatprep.subr.mxu0 0.0
    %6784 = vmatpush1.xpose.msra.mxu0 0.0
    %6785 = vmatprep.subr.mxu0 0.0
    %6786 = vmatpush1.xpose.msra.mxu0 0.0
    %6787 = vmatprep.subr.mxu0 0.0
    %6788 = vmatpush1.xpose.msra.mxu0 0.0
    %6789 = vmatprep.subr.mxu0 0.0
    %6790 = vmatpush1.xpose.msra.mxu0 0.0
    %6791 = vmatprep.subr.mxu0 0.0
    %6792 = vmatpush1.xpose.msra.mxu0 0.0
    %6793 = vmatprep.subr.mxu0 0.0
    %6794 = vmatpush1.xpose.msra.mxu0 %v6761
    %6795 = vmatprep.subr.mxu0 0.0
    %6796 = vmatpush2.xpose.msra.mxu0 0.0
    %6797 = vmatprep.subr.mxu0 0.0
    %6798 = vmatpush2.xpose.msra.mxu0 0.0
    %6799 = vmatprep.subr.mxu0 0.0
    %6800 = vmatpush2.xpose.msra.mxu0 0.0
    %6801 = vmatprep.subr.mxu0 0.0
    %6802 = vmatpush2.xpose.msra.mxu0 0.0
    %6803 = vmatprep.subr.mxu0 0.0
    %6804 = vmatpush2.xpose.msra.mxu0 0.0
    %6805 = vmatprep.subr.mxu0 0.0
    %6806 = vmatpush2.xpose.msra.mxu0 0.0
    %6807 = vmatprep.subr.mxu0 0.0
    %6808 = vmatpush2.xpose.msra.mxu0 0.0
    %6809 = vmatprep.subr.mxu0 0.0
    %6810 = vmatpush2.xpose.msra.mxu0 0.0
    %6811 = vmatprep.subr.mxu0 0.0
    %6812 = vmatpush2.xpose.msra.mxu0 0.0
    %6813 = vmatprep.subr.mxu0 0.0
    %6814 = vmatpush2.xpose.msra.mxu0 0.0
    %6815 = vmatprep.subr.mxu0 0.0
    %6816 = vmatpush2.xpose.msra.mxu0 0.0
    %6817 = vmatprep.subr.mxu0 0.0
    %6818 = vmatpush2.xpose.msra.mxu0 0.0
    %6819 = vmatprep.subr.mxu0 0.0
    %6820 = vmatpush2.xpose.msra.mxu0 0.0
    %6821 = vmatprep.subr.mxu0 0.0
    %6822 = vmatpush2.xpose.msra.mxu0 0.0
    %6823 = vmatprep.subr.mxu0 0.0
    %6824 = vmatpush2.xpose.msra.mxu0 0.0
    %6825 = vmatprep.subr.mxu0 0.0
    %6826 = vmatpush2.xpose.msra.mxu0 0.0
    %6827 = vmatprep.mubr.f32.mxu0 0.0
    %6828 = vmatmul.mubr.f32.gmra.mxu0 %v6758
    %v6829 = vpop.f32.mrf.mxu0
    %v6830 = vadd.f32 0.0, %v6829
    %v6831 = vpop.f32.mrf.mxu0
    %6832 = vdwg.mxu0
    %v6834 = vsel %vm1046, %v5785, 0
    %v6837 = vsel %vm1046, %v6239, 0
    %6839 = vmatprep.subr.mxu0 0.0
    %6840 = vmatpush1.xpose.msra.mxu0 0.0
    %6841 = vmatprep.subr.mxu0 0.0
    %6842 = vmatpush1.xpose.msra.mxu0 0.0
    %6843 = vmatprep.subr.mxu0 0.0
    %6844 = vmatpush1.xpose.msra.mxu0 0.0
    %6845 = vmatprep.subr.mxu0 0.0
    %6846 = vmatpush1.xpose.msra.mxu0 0.0
    %6847 = vmatprep.subr.mxu0 0.0
    %6848 = vmatpush1.xpose.msra.mxu0 0.0
    %6849 = vmatprep.subr.mxu0 0.0
    %6850 = vmatpush1.xpose.msra.mxu0 0.0
    %6851 = vmatprep.subr.mxu0 0.0
    %6852 = vmatpush1.xpose.msra.mxu0 0.0
    %6853 = vmatprep.subr.mxu0 0.0
    %6854 = vmatpush1.xpose.msra.mxu0 0.0
    %6855 = vmatprep.subr.mxu0 0.0
    %6856 = vmatpush1.xpose.msra.mxu0 0.0
    %6857 = vmatprep.subr.mxu0 0.0
    %6858 = vmatpush1.xpose.msra.mxu0 0.0
    %6859 = vmatprep.subr.mxu0 0.0
    %6860 = vmatpush1.xpose.msra.mxu0 0.0
    %6861 = vmatprep.subr.mxu0 0.0
    %6862 = vmatpush1.xpose.msra.mxu0 0.0
    %6863 = vmatprep.subr.mxu0 0.0
    %6864 = vmatpush1.xpose.msra.mxu0 0.0
    %6865 = vmatprep.subr.mxu0 0.0
    %6866 = vmatpush1.xpose.msra.mxu0 0.0
    %6867 = vmatprep.subr.mxu0 0.0
    %6868 = vmatpush1.xpose.msra.mxu0 0.0
    %6869 = vmatprep.subr.mxu0 0.0
    %6870 = vmatpush1.xpose.msra.mxu0 %v6837
    %6871 = vmatprep.subr.mxu0 0.0
    %6872 = vmatpush2.xpose.msra.mxu0 0.0
    %6873 = vmatprep.subr.mxu0 0.0
    %6874 = vmatpush2.xpose.msra.mxu0 0.0
    %6875 = vmatprep.subr.mxu0 0.0
    %6876 = vmatpush2.xpose.msra.mxu0 0.0
    %6877 = vmatprep.subr.mxu0 0.0
    %6878 = vmatpush2.xpose.msra.mxu0 0.0
    %6879 = vmatprep.subr.mxu0 0.0
    %6880 = vmatpush2.xpose.msra.mxu0 0.0
    %6881 = vmatprep.subr.mxu0 0.0
    %6882 = vmatpush2.xpose.msra.mxu0 0.0
    %6883 = vmatprep.subr.mxu0 0.0
    %6884 = vmatpush2.xpose.msra.mxu0 0.0
    %6885 = vmatprep.subr.mxu0 0.0
    %6886 = vmatpush2.xpose.msra.mxu0 0.0
    %6887 = vmatprep.subr.mxu0 0.0
    %6888 = vmatpush2.xpose.msra.mxu0 0.0
    %6889 = vmatprep.subr.mxu0 0.0
    %6890 = vmatpush2.xpose.msra.mxu0 0.0
    %6891 = vmatprep.subr.mxu0 0.0
    %6892 = vmatpush2.xpose.msra.mxu0 0.0
    %6893 = vmatprep.subr.mxu0 0.0
    %6894 = vmatpush2.xpose.msra.mxu0 0.0
    %6895 = vmatprep.subr.mxu0 0.0
    %6896 = vmatpush2.xpose.msra.mxu0 0.0
    %6897 = vmatprep.subr.mxu0 0.0
    %6898 = vmatpush2.xpose.msra.mxu0 0.0
    %6899 = vmatprep.subr.mxu0 0.0
    %6900 = vmatpush2.xpose.msra.mxu0 0.0
    %6901 = vmatprep.subr.mxu0 0.0
    %6902 = vmatpush2.xpose.msra.mxu0 0.0
    %6903 = vmatprep.mubr.f32.mxu0 0.0
    %6904 = vmatmul.mubr.f32.gmra.mxu0 %v6834
    %v6905 = vpop.f32.mrf.mxu0
    %v6906 = vadd.f32 0.0, %v6905
    %v6907 = vpop.f32.mrf.mxu0
    %6908 = vdwg.mxu0
    %v6910 = vsel %vm1046, %v5786, 0
    %v6913 = vsel %vm1046, %v6240, 0
    %6915 = vmatprep.subr.mxu0 0.0
    %6916 = vmatpush1.xpose.msra.mxu0 0.0
    %6917 = vmatprep.subr.mxu0 0.0
    %6918 = vmatpush1.xpose.msra.mxu0 0.0
    %6919 = vmatprep.subr.mxu0 0.0
    %6920 = vmatpush1.xpose.msra.mxu0 0.0
    %6921 = vmatprep.subr.mxu0 0.0
    %6922 = vmatpush1.xpose.msra.mxu0 0.0
    %6923 = vmatprep.subr.mxu0 0.0
    %6924 = vmatpush1.xpose.msra.mxu0 0.0
    %6925 = vmatprep.subr.mxu0 0.0
    %6926 = vmatpush1.xpose.msra.mxu0 0.0
    %6927 = vmatprep.subr.mxu0 0.0
    %6928 = vmatpush1.xpose.msra.mxu0 0.0
    %6929 = vmatprep.subr.mxu0 0.0
    %6930 = vmatpush1.xpose.msra.mxu0 0.0
    %6931 = vmatprep.subr.mxu0 0.0
    %6932 = vmatpush1.xpose.msra.mxu0 0.0
    %6933 = vmatprep.subr.mxu0 0.0
    %6934 = vmatpush1.xpose.msra.mxu0 0.0
    %6935 = vmatprep.subr.mxu0 0.0
    %6936 = vmatpush1.xpose.msra.mxu0 0.0
    %6937 = vmatprep.subr.mxu0 0.0
    %6938 = vmatpush1.xpose.msra.mxu0 0.0
    %6939 = vmatprep.subr.mxu0 0.0
    %6940 = vmatpush1.xpose.msra.mxu0 0.0
    %6941 = vmatprep.subr.mxu0 0.0
    %6942 = vmatpush1.xpose.msra.mxu0 0.0
    %6943 = vmatprep.subr.mxu0 0.0
    %6944 = vmatpush1.xpose.msra.mxu0 0.0
    %6945 = vmatprep.subr.mxu0 0.0
    %6946 = vmatpush1.xpose.msra.mxu0 %v6913
    %6947 = vmatprep.subr.mxu0 0.0
    %6948 = vmatpush2.xpose.msra.mxu0 0.0
    %6949 = vmatprep.subr.mxu0 0.0
    %6950 = vmatpush2.xpose.msra.mxu0 0.0
    %6951 = vmatprep.subr.mxu0 0.0
    %6952 = vmatpush2.xpose.msra.mxu0 0.0
    %6953 = vmatprep.subr.mxu0 0.0
    %6954 = vmatpush2.xpose.msra.mxu0 0.0
    %6955 = vmatprep.subr.mxu0 0.0
    %6956 = vmatpush2.xpose.msra.mxu0 0.0
    %6957 = vmatprep.subr.mxu0 0.0
    %6958 = vmatpush2.xpose.msra.mxu0 0.0
    %6959 = vmatprep.subr.mxu0 0.0
    %6960 = vmatpush2.xpose.msra.mxu0 0.0
    %6961 = vmatprep.subr.mxu0 0.0
    %6962 = vmatpush2.xpose.msra.mxu0 0.0
    %6963 = vmatprep.subr.mxu0 0.0
    %6964 = vmatpush2.xpose.msra.mxu0 0.0
    %6965 = vmatprep.subr.mxu0 0.0
    %6966 = vmatpush2.xpose.msra.mxu0 0.0
    %6967 = vmatprep.subr.mxu0 0.0
    %6968 = vmatpush2.xpose.msra.mxu0 0.0
    %6969 = vmatprep.subr.mxu0 0.0
    %6970 = vmatpush2.xpose.msra.mxu0 0.0
    %6971 = vmatprep.subr.mxu0 0.0
    %6972 = vmatpush2.xpose.msra.mxu0 0.0
    %6973 = vmatprep.subr.mxu0 0.0
    %6974 = vmatpush2.xpose.msra.mxu0 0.0
    %6975 = vmatprep.subr.mxu0 0.0
    %6976 = vmatpush2.xpose.msra.mxu0 0.0
    %6977 = vmatprep.subr.mxu0 0.0
    %6978 = vmatpush2.xpose.msra.mxu0 0.0
    %6979 = vmatprep.mubr.f32.mxu0 0.0
    %6980 = vmatmul.mubr.f32.gmra.mxu0 %v6910
    %v6981 = vpop.f32.mrf.mxu0
    %v6982 = vadd.f32 0.0, %v6981
    %v6983 = vpop.f32.mrf.mxu0
    %6984 = vdwg.mxu0
    %v6985 = vsel %vm1655, %v6450, -inf
    %6986 = vmax.xlane.f32.xlu0 %v6985
    %v6987 = vpop.xlane.xlu0 %6986
    %v6988 = vsel %vm1655, %v6526, -inf
    %6989 = vmax.xlane.f32.xlu0 %v6988
    %v6990 = vpop.xlane.xlu0 %6989
    %v6991 = vsel %vm1655, %v6602, -inf
    %6992 = vmax.xlane.f32.xlu0 %v6991
    %v6993 = vpop.xlane.xlu0 %6992
    %v6994 = vsel %vm1655, %v6678, -inf
    %6995 = vmax.xlane.f32.xlu0 %v6994
    %v6996 = vpop.xlane.xlu0 %6995
    %v6997 = vsel %vm1655, %v6754, -inf
    %6998 = vmax.xlane.f32.xlu0 %v6997
    %v6999 = vpop.xlane.xlu0 %6998
    %v7000 = vsel %vm1655, %v6830, -inf
    %7001 = vmax.xlane.f32.xlu0 %v7000
    %v7002 = vpop.xlane.xlu0 %7001
    %v7003 = vsel %vm1655, %v6906, -inf
    %7004 = vmax.xlane.f32.xlu0 %v7003
    %v7005 = vpop.xlane.xlu0 %7004
    %v7006 = vsel %vm1655, %v6982, -inf
    %7007 = vmax.xlane.f32.xlu0 %v7006
    %v7008 = vpop.xlane.xlu0 %7007
    %v7009 = vsub.f32 %v6450, %v6987
    %v7010 = vsub.f32 %v6526, %v6990
    %v7011 = vsub.f32 %v6602, %v6993
    %v7012 = vsub.f32 %v6678, %v6996
    %v7013 = vsub.f32 %v6754, %v6999
    %v7014 = vsub.f32 %v6830, %v7002
    %v7015 = vsub.f32 %v6906, %v7005
    %v7016 = vsub.f32 %v6982, %v7008
    %v7017 = vmul.f32 %v7009, 1.442695
    %v7018 = vpow.pop %v7017
    %v7019 = vmul.f32 %v7010, 1.442695
    %v7020 = vpow.pop %v7019
    %v7021 = vmul.f32 %v7011, 1.442695
    %v7022 = vpow.pop %v7021
    %v7023 = vmul.f32 %v7012, 1.442695
    %v7024 = vpow.pop %v7023
    %v7025 = vmul.f32 %v7013, 1.442695
    %v7026 = vpow.pop %v7025
    %v7027 = vmul.f32 %v7014, 1.442695
    %v7028 = vpow.pop %v7027
    %v7029 = vmul.f32 %v7015, 1.442695
    %v7030 = vpow.pop %v7029
    %v7031 = vmul.f32 %v7016, 1.442695
    %v7032 = vpow.pop %v7031
    %v7033 = vsel %vm1655, %v7018, 0.0
    %7034 = vadd.xlane.f32.xlu0 %v7033
    %v7035 = vpop.xlane.xlu0 %7034
    %v7036 = vsel %vm1655, %v7020, 0.0
    %7037 = vadd.xlane.f32.xlu0 %v7036
    %v7038 = vpop.xlane.xlu0 %7037
    %v7039 = vsel %vm1655, %v7022, 0.0
    %7040 = vadd.xlane.f32.xlu0 %v7039
    %v7041 = vpop.xlane.xlu0 %7040
    %v7042 = vsel %vm1655, %v7024, 0.0
    %7043 = vadd.xlane.f32.xlu0 %v7042
    %v7044 = vpop.xlane.xlu0 %7043
    %v7045 = vsel %vm1655, %v7026, 0.0
    %7046 = vadd.xlane.f32.xlu0 %v7045
    %v7047 = vpop.xlane.xlu0 %7046
    %v7048 = vsel %vm1655, %v7028, 0.0
    %7049 = vadd.xlane.f32.xlu0 %v7048
    %v7050 = vpop.xlane.xlu0 %7049
    %v7051 = vsel %vm1655, %v7030, 0.0
    %7052 = vadd.xlane.f32.xlu0 %v7051
    %v7053 = vpop.xlane.xlu0 %7052
    %v7054 = vsel %vm1655, %v7032, 0.0
    %7055 = vadd.xlane.f32.xlu0 %v7054
    %v7056 = vpop.xlane.xlu0 %7055
    %v7057 = vrcp.pop %v7035
    %v7058 = vrcp.pop %v7038
    %v7059 = vrcp.pop %v7041
    %v7060 = vrcp.pop %v7044
    %v7061 = vrcp.pop %v7047
    %v7062 = vrcp.pop %v7050
    %v7063 = vrcp.pop %v7053
    %v7064 = vrcp.pop %v7056
    %v7065 = vmul.f32 %v7018, %v7057
    %v7066 = vmul.f32 %v7020, %v7058
    %v7067 = vmul.f32 %v7022, %v7059
    %v7068 = vmul.f32 %v7024, %v7060
    %v7069 = vmul.f32 %v7026, %v7061
    %v7070 = vmul.f32 %v7028, %v7062
    %v7071 = vmul.f32 %v7030, %v7063
    %v7072 = vmul.f32 %v7032, %v7064
    %v7074 = vsel %vm1655, %v7065, 0
    %7076 = vmatprep.subr.mxu0 0.0
    %7077 = vmatpush1.msra.mxu0 0.0
    %7078 = vmatprep.subr.mxu0 0.0
    %7079 = vmatpush1.msra.mxu0 0.0
    %7080 = vmatprep.subr.mxu0 0.0
    %7081 = vmatpush1.msra.mxu0 0.0
    %7082 = vmatprep.subr.mxu0 0.0
    %7083 = vmatpush1.msra.mxu0 0.0
    %7084 = vmatprep.subr.mxu0 0.0
    %7085 = vmatpush1.msra.mxu0 0.0
    %7086 = vmatprep.subr.mxu0 0.0
    %7087 = vmatpush1.msra.mxu0 0.0
    %7088 = vmatprep.subr.mxu0 0.0
    %7089 = vmatpush1.msra.mxu0 0.0
    %7090 = vmatprep.subr.mxu0 0.0
    %7091 = vmatpush1.msra.mxu0 0.0
    %7092 = vmatprep.subr.mxu0 0.0
    %7093 = vmatpush1.msra.mxu0 0.0
    %7094 = vmatprep.subr.mxu0 0.0
    %7095 = vmatpush1.msra.mxu0 0.0
    %7096 = vmatprep.subr.mxu0 0.0
    %7097 = vmatpush1.msra.mxu0 0.0
    %7098 = vmatprep.subr.mxu0 0.0
    %7099 = vmatpush1.msra.mxu0 0.0
    %7100 = vmatprep.subr.mxu0 0.0
    %7101 = vmatpush1.msra.mxu0 0.0
    %7102 = vmatprep.subr.mxu0 0.0
    %7103 = vmatpush1.msra.mxu0 0.0
    %7104 = vmatprep.subr.mxu0 0.0
    %7105 = vmatpush1.msra.mxu0 0.0
    %7106 = vmatprep.subr.mxu0 0.0
    %7107 = vmatpush1.msra.mxu0 %v6369
    %7108 = vmatprep.subr.mxu0 0.0
    %7109 = vmatpush2.msra.mxu0 0.0
    %7110 = vmatprep.subr.mxu0 0.0
    %7111 = vmatpush2.msra.mxu0 0.0
    %7112 = vmatprep.subr.mxu0 0.0
    %7113 = vmatpush2.msra.mxu0 0.0
    %7114 = vmatprep.subr.mxu0 0.0
    %7115 = vmatpush2.msra.mxu0 0.0
    %7116 = vmatprep.subr.mxu0 0.0
    %7117 = vmatpush2.msra.mxu0 0.0
    %7118 = vmatprep.subr.mxu0 0.0
    %7119 = vmatpush2.msra.mxu0 0.0
    %7120 = vmatprep.subr.mxu0 0.0
    %7121 = vmatpush2.msra.mxu0 0.0
    %7122 = vmatprep.subr.mxu0 0.0
    %7123 = vmatpush2.msra.mxu0 0.0
    %7124 = vmatprep.subr.mxu0 0.0
    %7125 = vmatpush2.msra.mxu0 0.0
    %7126 = vmatprep.subr.mxu0 0.0
    %7127 = vmatpush2.msra.mxu0 0.0
    %7128 = vmatprep.subr.mxu0 0.0
    %7129 = vmatpush2.msra.mxu0 0.0
    %7130 = vmatprep.subr.mxu0 0.0
    %7131 = vmatpush2.msra.mxu0 0.0
    %7132 = vmatprep.subr.mxu0 0.0
    %7133 = vmatpush2.msra.mxu0 0.0
    %7134 = vmatprep.subr.mxu0 0.0
    %7135 = vmatpush2.msra.mxu0 0.0
    %7136 = vmatprep.subr.mxu0 0.0
    %7137 = vmatpush2.msra.mxu0 0.0
    %7138 = vmatprep.subr.mxu0 0.0
    %7139 = vmatpush2.msra.mxu0 0.0
    %7140 = vmatprep.mubr.f32.mxu0 0.0
    %7141 = vmatmul.mubr.f32.gmra.mxu0 %v7074
    %v7142 = vpop.f32.mrf.mxu0
    %v7143 = vadd.f32 0.0, %v7142
    %v7144 = vpop.f32.mrf.mxu0
    %7145 = vdwg.mxu0
    %v7147 = vsel %vm1655, %v7066, 0
    %7149 = vmatprep.subr.mxu0 0.0
    %7150 = vmatpush1.msra.mxu0 0.0
    %7151 = vmatprep.subr.mxu0 0.0
    %7152 = vmatpush1.msra.mxu0 0.0
    %7153 = vmatprep.subr.mxu0 0.0
    %7154 = vmatpush1.msra.mxu0 0.0
    %7155 = vmatprep.subr.mxu0 0.0
    %7156 = vmatpush1.msra.mxu0 0.0
    %7157 = vmatprep.subr.mxu0 0.0
    %7158 = vmatpush1.msra.mxu0 0.0
    %7159 = vmatprep.subr.mxu0 0.0
    %7160 = vmatpush1.msra.mxu0 0.0
    %7161 = vmatprep.subr.mxu0 0.0
    %7162 = vmatpush1.msra.mxu0 0.0
    %7163 = vmatprep.subr.mxu0 0.0
    %7164 = vmatpush1.msra.mxu0 0.0
    %7165 = vmatprep.subr.mxu0 0.0
    %7166 = vmatpush1.msra.mxu0 0.0
    %7167 = vmatprep.subr.mxu0 0.0
    %7168 = vmatpush1.msra.mxu0 0.0
    %7169 = vmatprep.subr.mxu0 0.0
    %7170 = vmatpush1.msra.mxu0 0.0
    %7171 = vmatprep.subr.mxu0 0.0
    %7172 = vmatpush1.msra.mxu0 0.0
    %7173 = vmatprep.subr.mxu0 0.0
    %7174 = vmatpush1.msra.mxu0 0.0
    %7175 = vmatprep.subr.mxu0 0.0
    %7176 = vmatpush1.msra.mxu0 0.0
    %7177 = vmatprep.subr.mxu0 0.0
    %7178 = vmatpush1.msra.mxu0 0.0
    %7179 = vmatprep.subr.mxu0 0.0
    %7180 = vmatpush1.msra.mxu0 %v6370
    %7181 = vmatprep.subr.mxu0 0.0
    %7182 = vmatpush2.msra.mxu0 0.0
    %7183 = vmatprep.subr.mxu0 0.0
    %7184 = vmatpush2.msra.mxu0 0.0
    %7185 = vmatprep.subr.mxu0 0.0
    %7186 = vmatpush2.msra.mxu0 0.0
    %7187 = vmatprep.subr.mxu0 0.0
    %7188 = vmatpush2.msra.mxu0 0.0
    %7189 = vmatprep.subr.mxu0 0.0
    %7190 = vmatpush2.msra.mxu0 0.0
    %7191 = vmatprep.subr.mxu0 0.0
    %7192 = vmatpush2.msra.mxu0 0.0
    %7193 = vmatprep.subr.mxu0 0.0
    %7194 = vmatpush2.msra.mxu0 0.0
    %7195 = vmatprep.subr.mxu0 0.0
    %7196 = vmatpush2.msra.mxu0 0.0
    %7197 = vmatprep.subr.mxu0 0.0
    %7198 = vmatpush2.msra.mxu0 0.0
    %7199 = vmatprep.subr.mxu0 0.0
    %7200 = vmatpush2.msra.mxu0 0.0
    %7201 = vmatprep.subr.mxu0 0.0
    %7202 = vmatpush2.msra.mxu0 0.0
    %7203 = vmatprep.subr.mxu0 0.0
    %7204 = vmatpush2.msra.mxu0 0.0
    %7205 = vmatprep.subr.mxu0 0.0
    %7206 = vmatpush2.msra.mxu0 0.0
    %7207 = vmatprep.subr.mxu0 0.0
    %7208 = vmatpush2.msra.mxu0 0.0
    %7209 = vmatprep.subr.mxu0 0.0
    %7210 = vmatpush2.msra.mxu0 0.0
    %7211 = vmatprep.subr.mxu0 0.0
    %7212 = vmatpush2.msra.mxu0 0.0
    %7213 = vmatprep.mubr.f32.mxu0 0.0
    %7214 = vmatmul.mubr.f32.gmra.mxu0 %v7147
    %v7215 = vpop.f32.mrf.mxu0
    %v7216 = vadd.f32 0.0, %v7215
    %v7217 = vpop.f32.mrf.mxu0
    %7218 = vdwg.mxu0
    %v7220 = vsel %vm1655, %v7067, 0
    %7222 = vmatprep.subr.mxu0 0.0
    %7223 = vmatpush1.msra.mxu0 0.0
    %7224 = vmatprep.subr.mxu0 0.0
    %7225 = vmatpush1.msra.mxu0 0.0
    %7226 = vmatprep.subr.mxu0 0.0
    %7227 = vmatpush1.msra.mxu0 0.0
    %7228 = vmatprep.subr.mxu0 0.0
    %7229 = vmatpush1.msra.mxu0 0.0
    %7230 = vmatprep.subr.mxu0 0.0
    %7231 = vmatpush1.msra.mxu0 0.0
    %7232 = vmatprep.subr.mxu0 0.0
    %7233 = vmatpush1.msra.mxu0 0.0
    %7234 = vmatprep.subr.mxu0 0.0
    %7235 = vmatpush1.msra.mxu0 0.0
    %7236 = vmatprep.subr.mxu0 0.0
    %7237 = vmatpush1.msra.mxu0 0.0
    %7238 = vmatprep.subr.mxu0 0.0
    %7239 = vmatpush1.msra.mxu0 0.0
    %7240 = vmatprep.subr.mxu0 0.0
    %7241 = vmatpush1.msra.mxu0 0.0
    %7242 = vmatprep.subr.mxu0 0.0
    %7243 = vmatpush1.msra.mxu0 0.0
    %7244 = vmatprep.subr.mxu0 0.0
    %7245 = vmatpush1.msra.mxu0 0.0
    %7246 = vmatprep.subr.mxu0 0.0
    %7247 = vmatpush1.msra.mxu0 0.0
    %7248 = vmatprep.subr.mxu0 0.0
    %7249 = vmatpush1.msra.mxu0 0.0
    %7250 = vmatprep.subr.mxu0 0.0
    %7251 = vmatpush1.msra.mxu0 0.0
    %7252 = vmatprep.subr.mxu0 0.0
    %7253 = vmatpush1.msra.mxu0 %v6371
    %7254 = vmatprep.subr.mxu0 0.0
    %7255 = vmatpush2.msra.mxu0 0.0
    %7256 = vmatprep.subr.mxu0 0.0
    %7257 = vmatpush2.msra.mxu0 0.0
    %7258 = vmatprep.subr.mxu0 0.0
    %7259 = vmatpush2.msra.mxu0 0.0
    %7260 = vmatprep.subr.mxu0 0.0
    %7261 = vmatpush2.msra.mxu0 0.0
    %7262 = vmatprep.subr.mxu0 0.0
    %7263 = vmatpush2.msra.mxu0 0.0
    %7264 = vmatprep.subr.mxu0 0.0
    %7265 = vmatpush2.msra.mxu0 0.0
    %7266 = vmatprep.subr.mxu0 0.0
    %7267 = vmatpush2.msra.mxu0 0.0
    %7268 = vmatprep.subr.mxu0 0.0
    %7269 = vmatpush2.msra.mxu0 0.0
    %7270 = vmatprep.subr.mxu0 0.0
    %7271 = vmatpush2.msra.mxu0 0.0
    %7272 = vmatprep.subr.mxu0 0.0
    %7273 = vmatpush2.msra.mxu0 0.0
    %7274 = vmatprep.subr.mxu0 0.0
    %7275 = vmatpush2.msra.mxu0 0.0
    %7276 = vmatprep.subr.mxu0 0.0
    %7277 = vmatpush2.msra.mxu0 0.0
    %7278 = vmatprep.subr.mxu0 0.0
    %7279 = vmatpush2.msra.mxu0 0.0
    %7280 = vmatprep.subr.mxu0 0.0
    %7281 = vmatpush2.msra.mxu0 0.0
    %7282 = vmatprep.subr.mxu0 0.0
    %7283 = vmatpush2.msra.mxu0 0.0
    %7284 = vmatprep.subr.mxu0 0.0
    %7285 = vmatpush2.msra.mxu0 0.0
    %7286 = vmatprep.mubr.f32.mxu0 0.0
    %7287 = vmatmul.mubr.f32.gmra.mxu0 %v7220
    %v7288 = vpop.f32.mrf.mxu0
    %v7289 = vadd.f32 0.0, %v7288
    %v7290 = vpop.f32.mrf.mxu0
    %7291 = vdwg.mxu0
    %v7293 = vsel %vm1655, %v7068, 0
    %7295 = vmatprep.subr.mxu0 0.0
    %7296 = vmatpush1.msra.mxu0 0.0
    %7297 = vmatprep.subr.mxu0 0.0
    %7298 = vmatpush1.msra.mxu0 0.0
    %7299 = vmatprep.subr.mxu0 0.0
    %7300 = vmatpush1.msra.mxu0 0.0
    %7301 = vmatprep.subr.mxu0 0.0
    %7302 = vmatpush1.msra.mxu0 0.0
    %7303 = vmatprep.subr.mxu0 0.0
    %7304 = vmatpush1.msra.mxu0 0.0
    %7305 = vmatprep.subr.mxu0 0.0
    %7306 = vmatpush1.msra.mxu0 0.0
    %7307 = vmatprep.subr.mxu0 0.0
    %7308 = vmatpush1.msra.mxu0 0.0
    %7309 = vmatprep.subr.mxu0 0.0
    %7310 = vmatpush1.msra.mxu0 0.0
    %7311 = vmatprep.subr.mxu0 0.0
    %7312 = vmatpush1.msra.mxu0 0.0
    %7313 = vmatprep.subr.mxu0 0.0
    %7314 = vmatpush1.msra.mxu0 0.0
    %7315 = vmatprep.subr.mxu0 0.0
    %7316 = vmatpush1.msra.mxu0 0.0
    %7317 = vmatprep.subr.mxu0 0.0
    %7318 = vmatpush1.msra.mxu0 0.0
    %7319 = vmatprep.subr.mxu0 0.0
    %7320 = vmatpush1.msra.mxu0 0.0
    %7321 = vmatprep.subr.mxu0 0.0
    %7322 = vmatpush1.msra.mxu0 0.0
    %7323 = vmatprep.subr.mxu0 0.0
    %7324 = vmatpush1.msra.mxu0 0.0
    %7325 = vmatprep.subr.mxu0 0.0
    %7326 = vmatpush1.msra.mxu0 %v6372
    %7327 = vmatprep.subr.mxu0 0.0
    %7328 = vmatpush2.msra.mxu0 0.0
    %7329 = vmatprep.subr.mxu0 0.0
    %7330 = vmatpush2.msra.mxu0 0.0
    %7331 = vmatprep.subr.mxu0 0.0
    %7332 = vmatpush2.msra.mxu0 0.0
    %7333 = vmatprep.subr.mxu0 0.0
    %7334 = vmatpush2.msra.mxu0 0.0
    %7335 = vmatprep.subr.mxu0 0.0
    %7336 = vmatpush2.msra.mxu0 0.0
    %7337 = vmatprep.subr.mxu0 0.0
    %7338 = vmatpush2.msra.mxu0 0.0
    %7339 = vmatprep.subr.mxu0 0.0
    %7340 = vmatpush2.msra.mxu0 0.0
    %7341 = vmatprep.subr.mxu0 0.0
    %7342 = vmatpush2.msra.mxu0 0.0
    %7343 = vmatprep.subr.mxu0 0.0
    %7344 = vmatpush2.msra.mxu0 0.0
    %7345 = vmatprep.subr.mxu0 0.0
    %7346 = vmatpush2.msra.mxu0 0.0
    %7347 = vmatprep.subr.mxu0 0.0
    %7348 = vmatpush2.msra.mxu0 0.0
    %7349 = vmatprep.subr.mxu0 0.0
    %7350 = vmatpush2.msra.mxu0 0.0
    %7351 = vmatprep.subr.mxu0 0.0
    %7352 = vmatpush2.msra.mxu0 0.0
    %7353 = vmatprep.subr.mxu0 0.0
    %7354 = vmatpush2.msra.mxu0 0.0
    %7355 = vmatprep.subr.mxu0 0.0
    %7356 = vmatpush2.msra.mxu0 0.0
    %7357 = vmatprep.subr.mxu0 0.0
    %7358 = vmatpush2.msra.mxu0 0.0
    %7359 = vmatprep.mubr.f32.mxu0 0.0
    %7360 = vmatmul.mubr.f32.gmra.mxu0 %v7293
    %v7361 = vpop.f32.mrf.mxu0
    %v7362 = vadd.f32 0.0, %v7361
    %v7363 = vpop.f32.mrf.mxu0
    %7364 = vdwg.mxu0
    %v7366 = vsel %vm1655, %v7069, 0
    %7368 = vmatprep.subr.mxu0 0.0
    %7369 = vmatpush1.msra.mxu0 0.0
    %7370 = vmatprep.subr.mxu0 0.0
    %7371 = vmatpush1.msra.mxu0 0.0
    %7372 = vmatprep.subr.mxu0 0.0
    %7373 = vmatpush1.msra.mxu0 0.0
    %7374 = vmatprep.subr.mxu0 0.0
    %7375 = vmatpush1.msra.mxu0 0.0
    %7376 = vmatprep.subr.mxu0 0.0
    %7377 = vmatpush1.msra.mxu0 0.0
    %7378 = vmatprep.subr.mxu0 0.0
    %7379 = vmatpush1.msra.mxu0 0.0
    %7380 = vmatprep.subr.mxu0 0.0
    %7381 = vmatpush1.msra.mxu0 0.0
    %7382 = vmatprep.subr.mxu0 0.0
    %7383 = vmatpush1.msra.mxu0 0.0
    %7384 = vmatprep.subr.mxu0 0.0
    %7385 = vmatpush1.msra.mxu0 0.0
    %7386 = vmatprep.subr.mxu0 0.0
    %7387 = vmatpush1.msra.mxu0 0.0
    %7388 = vmatprep.subr.mxu0 0.0
    %7389 = vmatpush1.msra.mxu0 0.0
    %7390 = vmatprep.subr.mxu0 0.0
    %7391 = vmatpush1.msra.mxu0 0.0
    %7392 = vmatprep.subr.mxu0 0.0
    %7393 = vmatpush1.msra.mxu0 0.0
    %7394 = vmatprep.subr.mxu0 0.0
    %7395 = vmatpush1.msra.mxu0 0.0
    %7396 = vmatprep.subr.mxu0 0.0
    %7397 = vmatpush1.msra.mxu0 0.0
    %7398 = vmatprep.subr.mxu0 0.0
    %7399 = vmatpush1.msra.mxu0 %v6373
    %7400 = vmatprep.subr.mxu0 0.0
    %7401 = vmatpush2.msra.mxu0 0.0
    %7402 = vmatprep.subr.mxu0 0.0
    %7403 = vmatpush2.msra.mxu0 0.0
    %7404 = vmatprep.subr.mxu0 0.0
    %7405 = vmatpush2.msra.mxu0 0.0
    %7406 = vmatprep.subr.mxu0 0.0
    %7407 = vmatpush2.msra.mxu0 0.0
    %7408 = vmatprep.subr.mxu0 0.0
    %7409 = vmatpush2.msra.mxu0 0.0
    %7410 = vmatprep.subr.mxu0 0.0
    %7411 = vmatpush2.msra.mxu0 0.0
    %7412 = vmatprep.subr.mxu0 0.0
    %7413 = vmatpush2.msra.mxu0 0.0
    %7414 = vmatprep.subr.mxu0 0.0
    %7415 = vmatpush2.msra.mxu0 0.0
    %7416 = vmatprep.subr.mxu0 0.0
    %7417 = vmatpush2.msra.mxu0 0.0
    %7418 = vmatprep.subr.mxu0 0.0
    %7419 = vmatpush2.msra.mxu0 0.0
    %7420 = vmatprep.subr.mxu0 0.0
    %7421 = vmatpush2.msra.mxu0 0.0
    %7422 = vmatprep.subr.mxu0 0.0
    %7423 = vmatpush2.msra.mxu0 0.0
    %7424 = vmatprep.subr.mxu0 0.0
    %7425 = vmatpush2.msra.mxu0 0.0
    %7426 = vmatprep.subr.mxu0 0.0
    %7427 = vmatpush2.msra.mxu0 0.0
    %7428 = vmatprep.subr.mxu0 0.0
    %7429 = vmatpush2.msra.mxu0 0.0
    %7430 = vmatprep.subr.mxu0 0.0
    %7431 = vmatpush2.msra.mxu0 0.0
    %7432 = vmatprep.mubr.f32.mxu0 0.0
    %7433 = vmatmul.mubr.f32.gmra.mxu0 %v7366
    %v7434 = vpop.f32.mrf.mxu0
    %v7435 = vadd.f32 0.0, %v7434
    %v7436 = vpop.f32.mrf.mxu0
    %7437 = vdwg.mxu0
    %v7439 = vsel %vm1655, %v7070, 0
    %7441 = vmatprep.subr.mxu0 0.0
    %7442 = vmatpush1.msra.mxu0 0.0
    %7443 = vmatprep.subr.mxu0 0.0
    %7444 = vmatpush1.msra.mxu0 0.0
    %7445 = vmatprep.subr.mxu0 0.0
    %7446 = vmatpush1.msra.mxu0 0.0
    %7447 = vmatprep.subr.mxu0 0.0
    %7448 = vmatpush1.msra.mxu0 0.0
    %7449 = vmatprep.subr.mxu0 0.0
    %7450 = vmatpush1.msra.mxu0 0.0
    %7451 = vmatprep.subr.mxu0 0.0
    %7452 = vmatpush1.msra.mxu0 0.0
    %7453 = vmatprep.subr.mxu0 0.0
    %7454 = vmatpush1.msra.mxu0 0.0
    %7455 = vmatprep.subr.mxu0 0.0
    %7456 = vmatpush1.msra.mxu0 0.0
    %7457 = vmatprep.subr.mxu0 0.0
    %7458 = vmatpush1.msra.mxu0 0.0
    %7459 = vmatprep.subr.mxu0 0.0
    %7460 = vmatpush1.msra.mxu0 0.0
    %7461 = vmatprep.subr.mxu0 0.0
    %7462 = vmatpush1.msra.mxu0 0.0
    %7463 = vmatprep.subr.mxu0 0.0
    %7464 = vmatpush1.msra.mxu0 0.0
    %7465 = vmatprep.subr.mxu0 0.0
    %7466 = vmatpush1.msra.mxu0 0.0
    %7467 = vmatprep.subr.mxu0 0.0
    %7468 = vmatpush1.msra.mxu0 0.0
    %7469 = vmatprep.subr.mxu0 0.0
    %7470 = vmatpush1.msra.mxu0 0.0
    %7471 = vmatprep.subr.mxu0 0.0
    %7472 = vmatpush1.msra.mxu0 %v6374
    %7473 = vmatprep.subr.mxu0 0.0
    %7474 = vmatpush2.msra.mxu0 0.0
    %7475 = vmatprep.subr.mxu0 0.0
    %7476 = vmatpush2.msra.mxu0 0.0
    %7477 = vmatprep.subr.mxu0 0.0
    %7478 = vmatpush2.msra.mxu0 0.0
    %7479 = vmatprep.subr.mxu0 0.0
    %7480 = vmatpush2.msra.mxu0 0.0
    %7481 = vmatprep.subr.mxu0 0.0
    %7482 = vmatpush2.msra.mxu0 0.0
    %7483 = vmatprep.subr.mxu0 0.0
    %7484 = vmatpush2.msra.mxu0 0.0
    %7485 = vmatprep.subr.mxu0 0.0
    %7486 = vmatpush2.msra.mxu0 0.0
    %7487 = vmatprep.subr.mxu0 0.0
    %7488 = vmatpush2.msra.mxu0 0.0
    %7489 = vmatprep.subr.mxu0 0.0
    %7490 = vmatpush2.msra.mxu0 0.0
    %7491 = vmatprep.subr.mxu0 0.0
    %7492 = vmatpush2.msra.mxu0 0.0
    %7493 = vmatprep.subr.mxu0 0.0
    %7494 = vmatpush2.msra.mxu0 0.0
    %7495 = vmatprep.subr.mxu0 0.0
    %7496 = vmatpush2.msra.mxu0 0.0
    %7497 = vmatprep.subr.mxu0 0.0
    %7498 = vmatpush2.msra.mxu0 0.0
    %7499 = vmatprep.subr.mxu0 0.0
    %7500 = vmatpush2.msra.mxu0 0.0
    %7501 = vmatprep.subr.mxu0 0.0
    %7502 = vmatpush2.msra.mxu0 0.0
    %7503 = vmatprep.subr.mxu0 0.0
    %7504 = vmatpush2.msra.mxu0 0.0
    %7505 = vmatprep.mubr.f32.mxu0 0.0
    %7506 = vmatmul.mubr.f32.gmra.mxu0 %v7439
    %v7507 = vpop.f32.mrf.mxu0
    %v7508 = vadd.f32 0.0, %v7507
    %v7509 = vpop.f32.mrf.mxu0
    %7510 = vdwg.mxu0
    %v7512 = vsel %vm1655, %v7071, 0
    %7514 = vmatprep.subr.mxu0 0.0
    %7515 = vmatpush1.msra.mxu0 0.0
    %7516 = vmatprep.subr.mxu0 0.0
    %7517 = vmatpush1.msra.mxu0 0.0
    %7518 = vmatprep.subr.mxu0 0.0
    %7519 = vmatpush1.msra.mxu0 0.0
    %7520 = vmatprep.subr.mxu0 0.0
    %7521 = vmatpush1.msra.mxu0 0.0
    %7522 = vmatprep.subr.mxu0 0.0
    %7523 = vmatpush1.msra.mxu0 0.0
    %7524 = vmatprep.subr.mxu0 0.0
    %7525 = vmatpush1.msra.mxu0 0.0
    %7526 = vmatprep.subr.mxu0 0.0
    %7527 = vmatpush1.msra.mxu0 0.0
    %7528 = vmatprep.subr.mxu0 0.0
    %7529 = vmatpush1.msra.mxu0 0.0
    %7530 = vmatprep.subr.mxu0 0.0
    %7531 = vmatpush1.msra.mxu0 0.0
    %7532 = vmatprep.subr.mxu0 0.0
    %7533 = vmatpush1.msra.mxu0 0.0
    %7534 = vmatprep.subr.mxu0 0.0
    %7535 = vmatpush1.msra.mxu0 0.0
    %7536 = vmatprep.subr.mxu0 0.0
    %7537 = vmatpush1.msra.mxu0 0.0
    %7538 = vmatprep.subr.mxu0 0.0
    %7539 = vmatpush1.msra.mxu0 0.0
    %7540 = vmatprep.subr.mxu0 0.0
    %7541 = vmatpush1.msra.mxu0 0.0
    %7542 = vmatprep.subr.mxu0 0.0
    %7543 = vmatpush1.msra.mxu0 0.0
    %7544 = vmatprep.subr.mxu0 0.0
    %7545 = vmatpush1.msra.mxu0 %v6375
    %7546 = vmatprep.subr.mxu0 0.0
    %7547 = vmatpush2.msra.mxu0 0.0
    %7548 = vmatprep.subr.mxu0 0.0
    %7549 = vmatpush2.msra.mxu0 0.0
    %7550 = vmatprep.subr.mxu0 0.0
    %7551 = vmatpush2.msra.mxu0 0.0
    %7552 = vmatprep.subr.mxu0 0.0
    %7553 = vmatpush2.msra.mxu0 0.0
    %7554 = vmatprep.subr.mxu0 0.0
    %7555 = vmatpush2.msra.mxu0 0.0
    %7556 = vmatprep.subr.mxu0 0.0
    %7557 = vmatpush2.msra.mxu0 0.0
    %7558 = vmatprep.subr.mxu0 0.0
    %7559 = vmatpush2.msra.mxu0 0.0
    %7560 = vmatprep.subr.mxu0 0.0
    %7561 = vmatpush2.msra.mxu0 0.0
    %7562 = vmatprep.subr.mxu0 0.0
    %7563 = vmatpush2.msra.mxu0 0.0
    %7564 = vmatprep.subr.mxu0 0.0
    %7565 = vmatpush2.msra.mxu0 0.0
    %7566 = vmatprep.subr.mxu0 0.0
    %7567 = vmatpush2.msra.mxu0 0.0
    %7568 = vmatprep.subr.mxu0 0.0
    %7569 = vmatpush2.msra.mxu0 0.0
    %7570 = vmatprep.subr.mxu0 0.0
    %7571 = vmatpush2.msra.mxu0 0.0
    %7572 = vmatprep.subr.mxu0 0.0
    %7573 = vmatpush2.msra.mxu0 0.0
    %7574 = vmatprep.subr.mxu0 0.0
    %7575 = vmatpush2.msra.mxu0 0.0
    %7576 = vmatprep.subr.mxu0 0.0
    %7577 = vmatpush2.msra.mxu0 0.0
    %7578 = vmatprep.mubr.f32.mxu0 0.0
    %7579 = vmatmul.mubr.f32.gmra.mxu0 %v7512
    %v7580 = vpop.f32.mrf.mxu0
    %v7581 = vadd.f32 0.0, %v7580
    %v7582 = vpop.f32.mrf.mxu0
    %7583 = vdwg.mxu0
    %v7585 = vsel %vm1655, %v7072, 0
    %7587 = vmatprep.subr.mxu0 0.0
    %7588 = vmatpush1.msra.mxu0 0.0
    %7589 = vmatprep.subr.mxu0 0.0
    %7590 = vmatpush1.msra.mxu0 0.0
    %7591 = vmatprep.subr.mxu0 0.0
    %7592 = vmatpush1.msra.mxu0 0.0
    %7593 = vmatprep.subr.mxu0 0.0
    %7594 = vmatpush1.msra.mxu0 0.0
    %7595 = vmatprep.subr.mxu0 0.0
    %7596 = vmatpush1.msra.mxu0 0.0
    %7597 = vmatprep.subr.mxu0 0.0
    %7598 = vmatpush1.msra.mxu0 0.0
    %7599 = vmatprep.subr.mxu0 0.0
    %7600 = vmatpush1.msra.mxu0 0.0
    %7601 = vmatprep.subr.mxu0 0.0
    %7602 = vmatpush1.msra.mxu0 0.0
    %7603 = vmatprep.subr.mxu0 0.0
    %7604 = vmatpush1.msra.mxu0 0.0
    %7605 = vmatprep.subr.mxu0 0.0
    %7606 = vmatpush1.msra.mxu0 0.0
    %7607 = vmatprep.subr.mxu0 0.0
    %7608 = vmatpush1.msra.mxu0 0.0
    %7609 = vmatprep.subr.mxu0 0.0
    %7610 = vmatpush1.msra.mxu0 0.0
    %7611 = vmatprep.subr.mxu0 0.0
    %7612 = vmatpush1.msra.mxu0 0.0
    %7613 = vmatprep.subr.mxu0 0.0
    %7614 = vmatpush1.msra.mxu0 0.0
    %7615 = vmatprep.subr.mxu0 0.0
    %7616 = vmatpush1.msra.mxu0 0.0
    %7617 = vmatprep.subr.mxu0 0.0
    %7618 = vmatpush1.msra.mxu0 %v6376
    %7619 = vmatprep.subr.mxu0 0.0
    %7620 = vmatpush2.msra.mxu0 0.0
    %7621 = vmatprep.subr.mxu0 0.0
    %7622 = vmatpush2.msra.mxu0 0.0
    %7623 = vmatprep.subr.mxu0 0.0
    %7624 = vmatpush2.msra.mxu0 0.0
    %7625 = vmatprep.subr.mxu0 0.0
    %7626 = vmatpush2.msra.mxu0 0.0
    %7627 = vmatprep.subr.mxu0 0.0
    %7628 = vmatpush2.msra.mxu0 0.0
    %7629 = vmatprep.subr.mxu0 0.0
    %7630 = vmatpush2.msra.mxu0 0.0
    %7631 = vmatprep.subr.mxu0 0.0
    %7632 = vmatpush2.msra.mxu0 0.0
    %7633 = vmatprep.subr.mxu0 0.0
    %7634 = vmatpush2.msra.mxu0 0.0
    %7635 = vmatprep.subr.mxu0 0.0
    %7636 = vmatpush2.msra.mxu0 0.0
    %7637 = vmatprep.subr.mxu0 0.0
    %7638 = vmatpush2.msra.mxu0 0.0
    %7639 = vmatprep.subr.mxu0 0.0
    %7640 = vmatpush2.msra.mxu0 0.0
    %7641 = vmatprep.subr.mxu0 0.0
    %7642 = vmatpush2.msra.mxu0 0.0
    %7643 = vmatprep.subr.mxu0 0.0
    %7644 = vmatpush2.msra.mxu0 0.0
    %7645 = vmatprep.subr.mxu0 0.0
    %7646 = vmatpush2.msra.mxu0 0.0
    %7647 = vmatprep.subr.mxu0 0.0
    %7648 = vmatpush2.msra.mxu0 0.0
    %7649 = vmatprep.subr.mxu0 0.0
    %7650 = vmatpush2.msra.mxu0 0.0
    %7651 = vmatprep.mubr.f32.mxu0 0.0
    %7652 = vmatmul.mubr.f32.gmra.mxu0 %v7585
    %v7653 = vpop.f32.mrf.mxu0
    %v7654 = vadd.f32 0.0, %v7653
    %v7655 = vpop.f32.mrf.mxu0
    %7656 = vdwg.mxu0
    %v7657 = vcombine.low %v7143, %v7289
    %v7658 = vcombine.high %v7143, %v7289
    %v7660 = vunpack.c.l.s4 1983009808
    %v7661 = vunpack.c.0.s8 %v7660
    %v7662 = vlaneseq
    %v7663 = vshrl.u32 %v7662, 7
    %v7664 = vsub.s32 %v7661, %v7663
    %v7665 = vrot.slane %v7657, %v7664
    %v7667 = vunpack.c.l.s4 1983009808
    %v7668 = vunpack.c.0.s8 %v7667
    %v7669 = vlaneseq
    %v7670 = vshrl.u32 %v7669, 7
    %v7671 = vsub.s32 %v7668, %v7670
    %v7672 = vrot.slane %v7658, %v7671
    %v7673 = vcombine.low %v7216, %v7362
    %v7674 = vcombine.high %v7216, %v7362
    %v7676 = vunpack.c.l.s4 1983009808
    %v7677 = vunpack.c.0.s8 %v7676
    %v7678 = vlaneseq
    %v7679 = vshrl.u32 %v7678, 7
    %v7680 = vsub.s32 %v7677, %v7679
    %v7681 = vrot.slane %v7673, %v7680
    %v7683 = vunpack.c.l.s4 1983009808
    %v7684 = vunpack.c.0.s8 %v7683
    %v7685 = vlaneseq
    %v7686 = vshrl.u32 %v7685, 7
    %v7687 = vsub.s32 %v7684, %v7686
    %v7688 = vrot.slane %v7674, %v7687
    %v7689 = vcombine.low %v7435, %v7581
    %v7690 = vcombine.high %v7435, %v7581
    %v7692 = vunpack.c.l.s4 1983009808
    %v7693 = vunpack.c.0.s8 %v7692
    %v7694 = vlaneseq
    %v7695 = vshrl.u32 %v7694, 7
    %v7696 = vsub.s32 %v7693, %v7695
    %v7697 = vrot.slane %v7689, %v7696
    %v7699 = vunpack.c.l.s4 1983009808
    %v7700 = vunpack.c.0.s8 %v7699
    %v7701 = vlaneseq
    %v7702 = vshrl.u32 %v7701, 7
    %v7703 = vsub.s32 %v7700, %v7702
    %v7704 = vrot.slane %v7690, %v7703
    %v7705 = vcombine.low %v7508, %v7654
    %v7706 = vcombine.high %v7508, %v7654
    %v7708 = vunpack.c.l.s4 1983009808
    %v7709 = vunpack.c.0.s8 %v7708
    %v7710 = vlaneseq
    %v7711 = vshrl.u32 %v7710, 7
    %v7712 = vsub.s32 %v7709, %v7711
    %v7713 = vrot.slane %v7705, %v7712
    %v7715 = vunpack.c.l.s4 1983009808
    %v7716 = vunpack.c.0.s8 %v7715
    %v7717 = vlaneseq
    %v7718 = vshrl.u32 %v7717, 7
    %v7719 = vsub.s32 %v7716, %v7718
    %v7720 = vrot.slane %v7706, %v7719
    %v7721 = vcombine.low %v7665, %v7681
    %v7722 = vcombine.high %v7665, %v7681
    %v7724 = vunpack.c.l.s4 1934713408
    %v7725 = vunpack.c.0.s8 %v7724
    %v7726 = vlaneseq
    %v7727 = vshrl.u32 %v7726, 7
    %v7728 = vsub.s32 %v7725, %v7727
    %v7729 = vrot.slane %v7721, %v7728
    %v7731 = vunpack.c.l.s4 1934713408
    %v7732 = vunpack.c.0.s8 %v7731
    %v7733 = vlaneseq
    %v7734 = vshrl.u32 %v7733, 7
    %v7735 = vsub.s32 %v7732, %v7734
    %v7736 = vrot.slane %v7722, %v7735
    %v7737 = vcombine.low %v7672, %v7688
    %v7738 = vcombine.high %v7672, %v7688
    %v7740 = vunpack.c.l.s4 1934713408
    %v7741 = vunpack.c.0.s8 %v7740
    %v7742 = vlaneseq
    %v7743 = vshrl.u32 %v7742, 7
    %v7744 = vsub.s32 %v7741, %v7743
    %v7745 = vrot.slane %v7737, %v7744
    %v7747 = vunpack.c.l.s4 1934713408
    %v7748 = vunpack.c.0.s8 %v7747
    %v7749 = vlaneseq
    %v7750 = vshrl.u32 %v7749, 7
    %v7751 = vsub.s32 %v7748, %v7750
    %v7752 = vrot.slane %v7738, %v7751
    %v7753 = vcombine.low %v7697, %v7713
    %v7754 = vcombine.high %v7697, %v7713
    %v7756 = vunpack.c.l.s4 1934713408
    %v7757 = vunpack.c.0.s8 %v7756
    %v7758 = vlaneseq
    %v7759 = vshrl.u32 %v7758, 7
    %v7760 = vsub.s32 %v7757, %v7759
    %v7761 = vrot.slane %v7753, %v7760
    %v7763 = vunpack.c.l.s4 1934713408
    %v7764 = vunpack.c.0.s8 %v7763
    %v7765 = vlaneseq
    %v7766 = vshrl.u32 %v7765, 7
    %v7767 = vsub.s32 %v7764, %v7766
    %v7768 = vrot.slane %v7754, %v7767
    %v7769 = vcombine.low %v7704, %v7720
    %v7770 = vcombine.high %v7704, %v7720
    %v7772 = vunpack.c.l.s4 1934713408
    %v7773 = vunpack.c.0.s8 %v7772
    %v7774 = vlaneseq
    %v7775 = vshrl.u32 %v7774, 7
    %v7776 = vsub.s32 %v7773, %v7775
    %v7777 = vrot.slane %v7769, %v7776
    %v7779 = vunpack.c.l.s4 1934713408
    %v7780 = vunpack.c.0.s8 %v7779
    %v7781 = vlaneseq
    %v7782 = vshrl.u32 %v7781, 7
    %v7783 = vsub.s32 %v7780, %v7782
    %v7784 = vrot.slane %v7770, %v7783
    %v7785 = vcombine.low %v7729, %v7761
    %v7786 = vcombine.high %v7729, %v7761
    %v7787 = vcombine.low %v7736, %v7768
    %v7788 = vcombine.high %v7736, %v7768
    %v7789 = vcombine.low %v7745, %v7777
    %v7790 = vcombine.high %v7745, %v7777
    %v7791 = vcombine.low %v7752, %v7784
    %v7792 = vcombine.high %v7752, %v7784
    %v7793 = vcombine.low %v7785, %v7787
    %v7794 = vcombine.high %v7785, %v7787
    %v7796 = vunpack.c.l.s4 1983009808
    %v7797 = vunpack.c.0.s8 %v7796
    %v7798 = vlaneseq
    %v7799 = vshrl.u32 %v7798, 7
    %v7800 = vsub.s32 %v7797, %v7799
    %v7801 = vrot.slane %v7793, %v7800
    %v7803 = vunpack.c.l.s4 1983009808
    %v7804 = vunpack.c.0.s8 %v7803
    %v7805 = vlaneseq
    %v7806 = vshrl.u32 %v7805, 7
    %v7807 = vsub.s32 %v7804, %v7806
    %v7808 = vrot.slane %v7794, %v7807
    %v7809 = vcombine.low %v7786, %v7788
    %v7810 = vcombine.high %v7786, %v7788
    %v7812 = vunpack.c.l.s4 1983009808
    %v7813 = vunpack.c.0.s8 %v7812
    %v7814 = vlaneseq
    %v7815 = vshrl.u32 %v7814, 7
    %v7816 = vsub.s32 %v7813, %v7815
    %v7817 = vrot.slane %v7809, %v7816
    %v7819 = vunpack.c.l.s4 1983009808
    %v7820 = vunpack.c.0.s8 %v7819
    %v7821 = vlaneseq
    %v7822 = vshrl.u32 %v7821, 7
    %v7823 = vsub.s32 %v7820, %v7822
    %v7824 = vrot.slane %v7810, %v7823
    %v7825 = vcombine.low %v7789, %v7791
    %v7826 = vcombine.high %v7789, %v7791
    %v7828 = vunpack.c.l.s4 1983009808
    %v7829 = vunpack.c.0.s8 %v7828
    %v7830 = vlaneseq
    %v7831 = vshrl.u32 %v7830, 7
    %v7832 = vsub.s32 %v7829, %v7831
    %v7833 = vrot.slane %v7825, %v7832
    %v7835 = vunpack.c.l.s4 1983009808
    %v7836 = vunpack.c.0.s8 %v7835
    %v7837 = vlaneseq
    %v7838 = vshrl.u32 %v7837, 7
    %v7839 = vsub.s32 %v7836, %v7838
    %v7840 = vrot.slane %v7826, %v7839
    %v7841 = vcombine.low %v7790, %v7792
    %v7842 = vcombine.high %v7790, %v7792
    %v7844 = vunpack.c.l.s4 1983009808
    %v7845 = vunpack.c.0.s8 %v7844
    %v7846 = vlaneseq
    %v7847 = vshrl.u32 %v7846, 7
    %v7848 = vsub.s32 %v7845, %v7847
    %v7849 = vrot.slane %v7841, %v7848
    %v7851 = vunpack.c.l.s4 1983009808
    %v7852 = vunpack.c.0.s8 %v7851
    %v7853 = vlaneseq
    %v7854 = vshrl.u32 %v7853, 7
    %v7855 = vsub.s32 %v7852, %v7854
    %v7856 = vrot.slane %v7842, %v7855
    %v7857 = vcombine.low %v7801, %v7817
    %v7858 = vcombine.high %v7801, %v7817
    %v7860 = vunpack.c.l.s4 1934713408
    %v7861 = vunpack.c.0.s8 %v7860
    %v7862 = vlaneseq
    %v7863 = vshrl.u32 %v7862, 7
    %v7864 = vsub.s32 %v7861, %v7863
    %v7865 = vrot.slane %v7857, %v7864
    %v7867 = vunpack.c.l.s4 1934713408
    %v7868 = vunpack.c.0.s8 %v7867
    %v7869 = vlaneseq
    %v7870 = vshrl.u32 %v7869, 7
    %v7871 = vsub.s32 %v7868, %v7870
    %v7872 = vrot.slane %v7858, %v7871
    %v7873 = vcombine.low %v7808, %v7824
    %v7874 = vcombine.high %v7808, %v7824
    %v7876 = vunpack.c.l.s4 1934713408
    %v7877 = vunpack.c.0.s8 %v7876
    %v7878 = vlaneseq
    %v7879 = vshrl.u32 %v7878, 7
    %v7880 = vsub.s32 %v7877, %v7879
    %v7881 = vrot.slane %v7873, %v7880
    %v7883 = vunpack.c.l.s4 1934713408
    %v7884 = vunpack.c.0.s8 %v7883
    %v7885 = vlaneseq
    %v7886 = vshrl.u32 %v7885, 7
    %v7887 = vsub.s32 %v7884, %v7886
    %v7888 = vrot.slane %v7874, %v7887
    %v7889 = vcombine.low %v7833, %v7849
    %v7890 = vcombine.high %v7833, %v7849
    %v7892 = vunpack.c.l.s4 1934713408
    %v7893 = vunpack.c.0.s8 %v7892
    %v7894 = vlaneseq
    %v7895 = vshrl.u32 %v7894, 7
    %v7896 = vsub.s32 %v7893, %v7895
    %v7897 = vrot.slane %v7889, %v7896
    %v7899 = vunpack.c.l.s4 1934713408
    %v7900 = vunpack.c.0.s8 %v7899
    %v7901 = vlaneseq
    %v7902 = vshrl.u32 %v7901, 7
    %v7903 = vsub.s32 %v7900, %v7902
    %v7904 = vrot.slane %v7890, %v7903
    %v7905 = vcombine.low %v7840, %v7856
    %v7906 = vcombine.high %v7840, %v7856
    %v7908 = vunpack.c.l.s4 1934713408
    %v7909 = vunpack.c.0.s8 %v7908
    %v7910 = vlaneseq
    %v7911 = vshrl.u32 %v7910, 7
    %v7912 = vsub.s32 %v7909, %v7911
    %v7913 = vrot.slane %v7905, %v7912
    %v7915 = vunpack.c.l.s4 1934713408
    %v7916 = vunpack.c.0.s8 %v7915
    %v7917 = vlaneseq
    %v7918 = vshrl.u32 %v7917, 7
    %v7919 = vsub.s32 %v7916, %v7918
    %v7920 = vrot.slane %v7906, %v7919
    %v7921 = vcombine.low %v7865, %v7897
    %v7922 = vcombine.high %v7865, %v7897
    %v7923 = vcombine.low %v7872, %v7904
    %v7924 = vcombine.high %v7872, %v7904
    %v7925 = vcombine.low %v7881, %v7913
    %v7926 = vcombine.high %v7881, %v7913
    %v7927 = vcombine.low %v7888, %v7920
    %v7928 = vcombine.high %v7888, %v7920
    %7930 = vrot.lane.b32.xlu0 %v7922, 4
    %v7931 = vpop.permute.xlu0 %7930
    %7934 = vrot.lane.b32.xlu0 %v7923, 8
    %v7935 = vpop.permute.xlu0 %7934
    %7938 = vrot.lane.b32.xlu0 %v7924, 12
    %v7939 = vpop.permute.xlu0 %7938
    %7942 = vrot.lane.b32.xlu0 %v7925, 16
    %v7943 = vpop.permute.xlu0 %7942
    %7946 = vrot.lane.b32.xlu0 %v7926, 20
    %v7947 = vpop.permute.xlu0 %7946
    %7950 = vrot.lane.b32.xlu0 %v7927, 24
    %v7951 = vpop.permute.xlu0 %7950
    %7954 = vrot.lane.b32.xlu0 %v7928, 28
    %v7955 = vpop.permute.xlu0 %7954
    %v7957 = vsel %vm1046, %v7921, %v7931
    %v7958 = vsel %vm1655, %v7957, %v7935
    %v7959 = vsel %vm2630, %v7958, %v7939
    %v7960 = vsel %vm2632, %v7959, %v7943
    %v7961 = vsel %vm2634, %v7960, %v7947
    %v7962 = vsel %vm2636, %v7961, %v7951
    %v7963 = vsel %vm2638, %v7962, %v7955
    %7965 = vrot.lane.b32.xlu0 %v5388, 124
    %v7966 = vpop.permute.xlu0 %7965
    %7968 = vrot.lane.b32.xlu0 %v5388, 120
    %v7969 = vpop.permute.xlu0 %7968
    %7971 = vrot.lane.b32.xlu0 %v5388, 116
    %v7972 = vpop.permute.xlu0 %7971
    %7974 = vrot.lane.b32.xlu0 %v5388, 112
    %v7975 = vpop.permute.xlu0 %7974
    %7977 = vrot.lane.b32.xlu0 %v5388, 108
    %v7978 = vpop.permute.xlu0 %7977
    %7980 = vrot.lane.b32.xlu0 %v5388, 104
    %v7981 = vpop.permute.xlu0 %7980
    %7983 = vrot.lane.b32.xlu0 %v5388, 100
    %v7984 = vpop.permute.xlu0 %7983
    %v7986 = vcombine.low %v5388, %v7969
    %v7987 = vcombine.high %v5388, %v7969
    %v7989 = vunpack.c.l.s4 1983009808
    %v7990 = vunpack.c.0.s8 %v7989
    %v7991 = vlaneseq
    %v7992 = vshrl.u32 %v7991, 7
    %v7993 = vsub.s32 %v7990, %v7992
    %v7994 = vrot.slane %v7986, %v7993
    %v7996 = vunpack.c.l.s4 1983009808
    %v7997 = vunpack.c.0.s8 %v7996
    %v7998 = vlaneseq
    %v7999 = vshrl.u32 %v7998, 7
    %v8000 = vsub.s32 %v7997, %v7999
    %v8001 = vrot.slane %v7987, %v8000
    %v8002 = vcombine.low %v7966, %v7972
    %v8003 = vcombine.high %v7966, %v7972
    %v8005 = vunpack.c.l.s4 1983009808
    %v8006 = vunpack.c.0.s8 %v8005
    %v8007 = vlaneseq
    %v8008 = vshrl.u32 %v8007, 7
    %v8009 = vsub.s32 %v8006, %v8008
    %v8010 = vrot.slane %v8002, %v8009
    %v8012 = vunpack.c.l.s4 1983009808
    %v8013 = vunpack.c.0.s8 %v8012
    %v8014 = vlaneseq
    %v8015 = vshrl.u32 %v8014, 7
    %v8016 = vsub.s32 %v8013, %v8015
    %v8017 = vrot.slane %v8003, %v8016
    %v8018 = vcombine.low %v7975, %v7981
    %v8019 = vcombine.high %v7975, %v7981
    %v8021 = vunpack.c.l.s4 1983009808
    %v8022 = vunpack.c.0.s8 %v8021
    %v8023 = vlaneseq
    %v8024 = vshrl.u32 %v8023, 7
    %v8025 = vsub.s32 %v8022, %v8024
    %v8026 = vrot.slane %v8018, %v8025
    %v8028 = vunpack.c.l.s4 1983009808
    %v8029 = vunpack.c.0.s8 %v8028
    %v8030 = vlaneseq
    %v8031 = vshrl.u32 %v8030, 7
    %v8032 = vsub.s32 %v8029, %v8031
    %v8033 = vrot.slane %v8019, %v8032
    %v8034 = vcombine.low %v7978, %v7984
    %v8035 = vcombine.high %v7978, %v7984
    %v8037 = vunpack.c.l.s4 1983009808
    %v8038 = vunpack.c.0.s8 %v8037
    %v8039 = vlaneseq
    %v8040 = vshrl.u32 %v8039, 7
    %v8041 = vsub.s32 %v8038, %v8040
    %v8042 = vrot.slane %v8034, %v8041
    %v8044 = vunpack.c.l.s4 1983009808
    %v8045 = vunpack.c.0.s8 %v8044
    %v8046 = vlaneseq
    %v8047 = vshrl.u32 %v8046, 7
    %v8048 = vsub.s32 %v8045, %v8047
    %v8049 = vrot.slane %v8035, %v8048
    %v8050 = vcombine.low %v7994, %v8010
    %v8051 = vcombine.high %v7994, %v8010
    %v8053 = vunpack.c.l.s4 1934713408
    %v8054 = vunpack.c.0.s8 %v8053
    %v8055 = vlaneseq
    %v8056 = vshrl.u32 %v8055, 7
    %v8057 = vsub.s32 %v8054, %v8056
    %v8058 = vrot.slane %v8050, %v8057
    %v8060 = vunpack.c.l.s4 1934713408
    %v8061 = vunpack.c.0.s8 %v8060
    %v8062 = vlaneseq
    %v8063 = vshrl.u32 %v8062, 7
    %v8064 = vsub.s32 %v8061, %v8063
    %v8065 = vrot.slane %v8051, %v8064
    %v8066 = vcombine.low %v8001, %v8017
    %v8067 = vcombine.high %v8001, %v8017
    %v8069 = vunpack.c.l.s4 1934713408
    %v8070 = vunpack.c.0.s8 %v8069
    %v8071 = vlaneseq
    %v8072 = vshrl.u32 %v8071, 7
    %v8073 = vsub.s32 %v8070, %v8072
    %v8074 = vrot.slane %v8066, %v8073
    %v8076 = vunpack.c.l.s4 1934713408
    %v8077 = vunpack.c.0.s8 %v8076
    %v8078 = vlaneseq
    %v8079 = vshrl.u32 %v8078, 7
    %v8080 = vsub.s32 %v8077, %v8079
    %v8081 = vrot.slane %v8067, %v8080
    %v8082 = vcombine.low %v8026, %v8042
    %v8083 = vcombine.high %v8026, %v8042
    %v8085 = vunpack.c.l.s4 1934713408
    %v8086 = vunpack.c.0.s8 %v8085
    %v8087 = vlaneseq
    %v8088 = vshrl.u32 %v8087, 7
    %v8089 = vsub.s32 %v8086, %v8088
    %v8090 = vrot.slane %v8082, %v8089
    %v8092 = vunpack.c.l.s4 1934713408
    %v8093 = vunpack.c.0.s8 %v8092
    %v8094 = vlaneseq
    %v8095 = vshrl.u32 %v8094, 7
    %v8096 = vsub.s32 %v8093, %v8095
    %v8097 = vrot.slane %v8083, %v8096
    %v8098 = vcombine.low %v8033, %v8049
    %v8099 = vcombine.high %v8033, %v8049
    %v8101 = vunpack.c.l.s4 1934713408
    %v8102 = vunpack.c.0.s8 %v8101
    %v8103 = vlaneseq
    %v8104 = vshrl.u32 %v8103, 7
    %v8105 = vsub.s32 %v8102, %v8104
    %v8106 = vrot.slane %v8098, %v8105
    %v8108 = vunpack.c.l.s4 1934713408
    %v8109 = vunpack.c.0.s8 %v8108
    %v8110 = vlaneseq
    %v8111 = vshrl.u32 %v8110, 7
    %v8112 = vsub.s32 %v8109, %v8111
    %v8113 = vrot.slane %v8099, %v8112
    %v8114 = vcombine.low %v8058, %v8090
    %v8115 = vcombine.high %v8058, %v8090
    %v8116 = vcombine.low %v8065, %v8097
    %v8117 = vcombine.high %v8065, %v8097
    %v8118 = vcombine.low %v8074, %v8106
    %v8119 = vcombine.high %v8074, %v8106
    %v8120 = vcombine.low %v8081, %v8113
    %v8121 = vcombine.high %v8081, %v8113
    %v8122 = vcombine.low %v8114, %v8116
    %v8123 = vcombine.high %v8114, %v8116
    %v8125 = vunpack.c.l.s4 1983009808
    %v8126 = vunpack.c.0.s8 %v8125
    %v8127 = vlaneseq
    %v8128 = vshrl.u32 %v8127, 7
    %v8129 = vsub.s32 %v8126, %v8128
    %v8130 = vrot.slane %v8122, %v8129
    %v8132 = vunpack.c.l.s4 1983009808
    %v8133 = vunpack.c.0.s8 %v8132
    %v8134 = vlaneseq
    %v8135 = vshrl.u32 %v8134, 7
    %v8136 = vsub.s32 %v8133, %v8135
    %v8137 = vrot.slane %v8123, %v8136
    %v8138 = vcombine.low %v8115, %v8117
    %v8139 = vcombine.high %v8115, %v8117
    %v8141 = vunpack.c.l.s4 1983009808
    %v8142 = vunpack.c.0.s8 %v8141
    %v8143 = vlaneseq
    %v8144 = vshrl.u32 %v8143, 7
    %v8145 = vsub.s32 %v8142, %v8144
    %v8146 = vrot.slane %v8138, %v8145
    %v8148 = vunpack.c.l.s4 1983009808
    %v8149 = vunpack.c.0.s8 %v8148
    %v8150 = vlaneseq
    %v8151 = vshrl.u32 %v8150, 7
    %v8152 = vsub.s32 %v8149, %v8151
    %v8153 = vrot.slane %v8139, %v8152
    %v8154 = vcombine.low %v8118, %v8120
    %v8155 = vcombine.high %v8118, %v8120
    %v8157 = vunpack.c.l.s4 1983009808
    %v8158 = vunpack.c.0.s8 %v8157
    %v8159 = vlaneseq
    %v8160 = vshrl.u32 %v8159, 7
    %v8161 = vsub.s32 %v8158, %v8160
    %v8162 = vrot.slane %v8154, %v8161
    %v8164 = vunpack.c.l.s4 1983009808
    %v8165 = vunpack.c.0.s8 %v8164
    %v8166 = vlaneseq
    %v8167 = vshrl.u32 %v8166, 7
    %v8168 = vsub.s32 %v8165, %v8167
    %v8169 = vrot.slane %v8155, %v8168
    %v8170 = vcombine.low %v8119, %v8121
    %v8171 = vcombine.high %v8119, %v8121
    %v8173 = vunpack.c.l.s4 1983009808
    %v8174 = vunpack.c.0.s8 %v8173
    %v8175 = vlaneseq
    %v8176 = vshrl.u32 %v8175, 7
    %v8177 = vsub.s32 %v8174, %v8176
    %v8178 = vrot.slane %v8170, %v8177
    %v8180 = vunpack.c.l.s4 1983009808
    %v8181 = vunpack.c.0.s8 %v8180
    %v8182 = vlaneseq
    %v8183 = vshrl.u32 %v8182, 7
    %v8184 = vsub.s32 %v8181, %v8183
    %v8185 = vrot.slane %v8171, %v8184
    %v8186 = vcombine.low %v8130, %v8146
    %v8187 = vcombine.high %v8130, %v8146
    %v8189 = vunpack.c.l.s4 1934713408
    %v8190 = vunpack.c.0.s8 %v8189
    %v8191 = vlaneseq
    %v8192 = vshrl.u32 %v8191, 7
    %v8193 = vsub.s32 %v8190, %v8192
    %v8194 = vrot.slane %v8186, %v8193
    %v8196 = vunpack.c.l.s4 1934713408
    %v8197 = vunpack.c.0.s8 %v8196
    %v8198 = vlaneseq
    %v8199 = vshrl.u32 %v8198, 7
    %v8200 = vsub.s32 %v8197, %v8199
    %v8201 = vrot.slane %v8187, %v8200
    %v8202 = vcombine.low %v8137, %v8153
    %v8203 = vcombine.high %v8137, %v8153
    %v8205 = vunpack.c.l.s4 1934713408
    %v8206 = vunpack.c.0.s8 %v8205
    %v8207 = vlaneseq
    %v8208 = vshrl.u32 %v8207, 7
    %v8209 = vsub.s32 %v8206, %v8208
    %v8210 = vrot.slane %v8202, %v8209
    %v8212 = vunpack.c.l.s4 1934713408
    %v8213 = vunpack.c.0.s8 %v8212
    %v8214 = vlaneseq
    %v8215 = vshrl.u32 %v8214, 7
    %v8216 = vsub.s32 %v8213, %v8215
    %v8217 = vrot.slane %v8203, %v8216
    %v8218 = vcombine.low %v8162, %v8178
    %v8219 = vcombine.high %v8162, %v8178
    %v8221 = vunpack.c.l.s4 1934713408
    %v8222 = vunpack.c.0.s8 %v8221
    %v8223 = vlaneseq
    %v8224 = vshrl.u32 %v8223, 7
    %v8225 = vsub.s32 %v8222, %v8224
    %v8226 = vrot.slane %v8218, %v8225
    %v8228 = vunpack.c.l.s4 1934713408
    %v8229 = vunpack.c.0.s8 %v8228
    %v8230 = vlaneseq
    %v8231 = vshrl.u32 %v8230, 7
    %v8232 = vsub.s32 %v8229, %v8231
    %v8233 = vrot.slane %v8219, %v8232
    %v8234 = vcombine.low %v8169, %v8185
    %v8235 = vcombine.high %v8169, %v8185
    %v8237 = vunpack.c.l.s4 1934713408
    %v8238 = vunpack.c.0.s8 %v8237
    %v8239 = vlaneseq
    %v8240 = vshrl.u32 %v8239, 7
    %v8241 = vsub.s32 %v8238, %v8240
    %v8242 = vrot.slane %v8234, %v8241
    %v8244 = vunpack.c.l.s4 1934713408
    %v8245 = vunpack.c.0.s8 %v8244
    %v8246 = vlaneseq
    %v8247 = vshrl.u32 %v8246, 7
    %v8248 = vsub.s32 %v8245, %v8247
    %v8249 = vrot.slane %v8235, %v8248
    %v8250 = vcombine.low %v8194, %v8226
    %v8251 = vcombine.high %v8194, %v8226
    %v8252 = vcombine.low %v8201, %v8233
    %v8253 = vcombine.high %v8201, %v8233
    %v8254 = vcombine.low %v8210, %v8242
    %v8255 = vcombine.high %v8210, %v8242
    %v8256 = vcombine.low %v8217, %v8249
    %v8257 = vcombine.high %v8217, %v8249
    %8259 = vrot.lane.b32.xlu0 %v5490, 124
    %v8260 = vpop.permute.xlu0 %8259
    %8262 = vrot.lane.b32.xlu0 %v5490, 120
    %v8263 = vpop.permute.xlu0 %8262
    %8265 = vrot.lane.b32.xlu0 %v5490, 116
    %v8266 = vpop.permute.xlu0 %8265
    %8268 = vrot.lane.b32.xlu0 %v5490, 112
    %v8269 = vpop.permute.xlu0 %8268
    %8271 = vrot.lane.b32.xlu0 %v5490, 108
    %v8272 = vpop.permute.xlu0 %8271
    %8274 = vrot.lane.b32.xlu0 %v5490, 104
    %v8275 = vpop.permute.xlu0 %8274
    %8277 = vrot.lane.b32.xlu0 %v5490, 100
    %v8278 = vpop.permute.xlu0 %8277
    %8280 = vrot.lane.b32.xlu0 %v5490, 96
    %v8281 = vpop.permute.xlu0 %8280
    %8283 = vrot.lane.b32.xlu0 %v5490, 92
    %v8284 = vpop.permute.xlu0 %8283
    %8286 = vrot.lane.b32.xlu0 %v5490, 88
    %v8287 = vpop.permute.xlu0 %8286
    %8289 = vrot.lane.b32.xlu0 %v5490, 84
    %v8290 = vpop.permute.xlu0 %8289
    %8292 = vrot.lane.b32.xlu0 %v5490, 80
    %v8293 = vpop.permute.xlu0 %8292
    %8295 = vrot.lane.b32.xlu0 %v5490, 76
    %v8296 = vpop.permute.xlu0 %8295
    %8298 = vrot.lane.b32.xlu0 %v5490, 72
    %v8299 = vpop.permute.xlu0 %8298
    %8301 = vrot.lane.b32.xlu0 %v5490, 68
    %v8302 = vpop.permute.xlu0 %8301
    %v8304 = vcombine.low %v5490, %v8263
    %v8305 = vcombine.high %v5490, %v8263
    %v8307 = vunpack.c.l.s4 1983009808
    %v8308 = vunpack.c.0.s8 %v8307
    %v8309 = vlaneseq
    %v8310 = vshrl.u32 %v8309, 7
    %v8311 = vsub.s32 %v8308, %v8310
    %v8312 = vrot.slane %v8304, %v8311
    %v8314 = vunpack.c.l.s4 1983009808
    %v8315 = vunpack.c.0.s8 %v8314
    %v8316 = vlaneseq
    %v8317 = vshrl.u32 %v8316, 7
    %v8318 = vsub.s32 %v8315, %v8317
    %v8319 = vrot.slane %v8305, %v8318
    %v8320 = vcombine.low %v8260, %v8266
    %v8321 = vcombine.high %v8260, %v8266
    %v8323 = vunpack.c.l.s4 1983009808
    %v8324 = vunpack.c.0.s8 %v8323
    %v8325 = vlaneseq
    %v8326 = vshrl.u32 %v8325, 7
    %v8327 = vsub.s32 %v8324, %v8326
    %v8328 = vrot.slane %v8320, %v8327
    %v8330 = vunpack.c.l.s4 1983009808
    %v8331 = vunpack.c.0.s8 %v8330
    %v8332 = vlaneseq
    %v8333 = vshrl.u32 %v8332, 7
    %v8334 = vsub.s32 %v8331, %v8333
    %v8335 = vrot.slane %v8321, %v8334
    %v8336 = vcombine.low %v8269, %v8275
    %v8337 = vcombine.high %v8269, %v8275
    %v8339 = vunpack.c.l.s4 1983009808
    %v8340 = vunpack.c.0.s8 %v8339
    %v8341 = vlaneseq
    %v8342 = vshrl.u32 %v8341, 7
    %v8343 = vsub.s32 %v8340, %v8342
    %v8344 = vrot.slane %v8336, %v8343
    %v8346 = vunpack.c.l.s4 1983009808
    %v8347 = vunpack.c.0.s8 %v8346
    %v8348 = vlaneseq
    %v8349 = vshrl.u32 %v8348, 7
    %v8350 = vsub.s32 %v8347, %v8349
    %v8351 = vrot.slane %v8337, %v8350
    %v8352 = vcombine.low %v8272, %v8278
    %v8353 = vcombine.high %v8272, %v8278
    %v8355 = vunpack.c.l.s4 1983009808
    %v8356 = vunpack.c.0.s8 %v8355
    %v8357 = vlaneseq
    %v8358 = vshrl.u32 %v8357, 7
    %v8359 = vsub.s32 %v8356, %v8358
    %v8360 = vrot.slane %v8352, %v8359
    %v8362 = vunpack.c.l.s4 1983009808
    %v8363 = vunpack.c.0.s8 %v8362
    %v8364 = vlaneseq
    %v8365 = vshrl.u32 %v8364, 7
    %v8366 = vsub.s32 %v8363, %v8365
    %v8367 = vrot.slane %v8353, %v8366
    %v8368 = vcombine.low %v8312, %v8328
    %v8369 = vcombine.high %v8312, %v8328
    %v8371 = vunpack.c.l.s4 1934713408
    %v8372 = vunpack.c.0.s8 %v8371
    %v8373 = vlaneseq
    %v8374 = vshrl.u32 %v8373, 7
    %v8375 = vsub.s32 %v8372, %v8374
    %v8376 = vrot.slane %v8368, %v8375
    %v8378 = vunpack.c.l.s4 1934713408
    %v8379 = vunpack.c.0.s8 %v8378
    %v8380 = vlaneseq
    %v8381 = vshrl.u32 %v8380, 7
    %v8382 = vsub.s32 %v8379, %v8381
    %v8383 = vrot.slane %v8369, %v8382
    %v8384 = vcombine.low %v8319, %v8335
    %v8385 = vcombine.high %v8319, %v8335
    %v8387 = vunpack.c.l.s4 1934713408
    %v8388 = vunpack.c.0.s8 %v8387
    %v8389 = vlaneseq
    %v8390 = vshrl.u32 %v8389, 7
    %v8391 = vsub.s32 %v8388, %v8390
    %v8392 = vrot.slane %v8384, %v8391
    %v8394 = vunpack.c.l.s4 1934713408
    %v8395 = vunpack.c.0.s8 %v8394
    %v8396 = vlaneseq
    %v8397 = vshrl.u32 %v8396, 7
    %v8398 = vsub.s32 %v8395, %v8397
    %v8399 = vrot.slane %v8385, %v8398
    %v8400 = vcombine.low %v8344, %v8360
    %v8401 = vcombine.high %v8344, %v8360
    %v8403 = vunpack.c.l.s4 1934713408
    %v8404 = vunpack.c.0.s8 %v8403
    %v8405 = vlaneseq
    %v8406 = vshrl.u32 %v8405, 7
    %v8407 = vsub.s32 %v8404, %v8406
    %v8408 = vrot.slane %v8400, %v8407
    %v8410 = vunpack.c.l.s4 1934713408
    %v8411 = vunpack.c.0.s8 %v8410
    %v8412 = vlaneseq
    %v8413 = vshrl.u32 %v8412, 7
    %v8414 = vsub.s32 %v8411, %v8413
    %v8415 = vrot.slane %v8401, %v8414
    %v8416 = vcombine.low %v8351, %v8367
    %v8417 = vcombine.high %v8351, %v8367
    %v8419 = vunpack.c.l.s4 1934713408
    %v8420 = vunpack.c.0.s8 %v8419
    %v8421 = vlaneseq
    %v8422 = vshrl.u32 %v8421, 7
    %v8423 = vsub.s32 %v8420, %v8422
    %v8424 = vrot.slane %v8416, %v8423
    %v8426 = vunpack.c.l.s4 1934713408
    %v8427 = vunpack.c.0.s8 %v8426
    %v8428 = vlaneseq
    %v8429 = vshrl.u32 %v8428, 7
    %v8430 = vsub.s32 %v8427, %v8429
    %v8431 = vrot.slane %v8417, %v8430
    %v8432 = vcombine.low %v8376, %v8408
    %v8433 = vcombine.high %v8376, %v8408
    %v8434 = vcombine.low %v8383, %v8415
    %v8435 = vcombine.high %v8383, %v8415
    %v8436 = vcombine.low %v8392, %v8424
    %v8437 = vcombine.high %v8392, %v8424
    %v8438 = vcombine.low %v8399, %v8431
    %v8439 = vcombine.high %v8399, %v8431
    %v8440 = vcombine.low %v8281, %v8287
    %v8441 = vcombine.high %v8281, %v8287
    %v8443 = vunpack.c.l.s4 1983009808
    %v8444 = vunpack.c.0.s8 %v8443
    %v8445 = vlaneseq
    %v8446 = vshrl.u32 %v8445, 7
    %v8447 = vsub.s32 %v8444, %v8446
    %v8448 = vrot.slane %v8440, %v8447
    %v8450 = vunpack.c.l.s4 1983009808
    %v8451 = vunpack.c.0.s8 %v8450
    %v8452 = vlaneseq
    %v8453 = vshrl.u32 %v8452, 7
    %v8454 = vsub.s32 %v8451, %v8453
    %v8455 = vrot.slane %v8441, %v8454
    %v8456 = vcombine.low %v8284, %v8290
    %v8457 = vcombine.high %v8284, %v8290
    %v8459 = vunpack.c.l.s4 1983009808
    %v8460 = vunpack.c.0.s8 %v8459
    %v8461 = vlaneseq
    %v8462 = vshrl.u32 %v8461, 7
    %v8463 = vsub.s32 %v8460, %v8462
    %v8464 = vrot.slane %v8456, %v8463
    %v8466 = vunpack.c.l.s4 1983009808
    %v8467 = vunpack.c.0.s8 %v8466
    %v8468 = vlaneseq
    %v8469 = vshrl.u32 %v8468, 7
    %v8470 = vsub.s32 %v8467, %v8469
    %v8471 = vrot.slane %v8457, %v8470
    %v8472 = vcombine.low %v8293, %v8299
    %v8473 = vcombine.high %v8293, %v8299
    %v8475 = vunpack.c.l.s4 1983009808
    %v8476 = vunpack.c.0.s8 %v8475
    %v8477 = vlaneseq
    %v8478 = vshrl.u32 %v8477, 7
    %v8479 = vsub.s32 %v8476, %v8478
    %v8480 = vrot.slane %v8472, %v8479
    %v8482 = vunpack.c.l.s4 1983009808
    %v8483 = vunpack.c.0.s8 %v8482
    %v8484 = vlaneseq
    %v8485 = vshrl.u32 %v8484, 7
    %v8486 = vsub.s32 %v8483, %v8485
    %v8487 = vrot.slane %v8473, %v8486
    %v8488 = vcombine.low %v8296, %v8302
    %v8489 = vcombine.high %v8296, %v8302
    %v8491 = vunpack.c.l.s4 1983009808
    %v8492 = vunpack.c.0.s8 %v8491
    %v8493 = vlaneseq
    %v8494 = vshrl.u32 %v8493, 7
    %v8495 = vsub.s32 %v8492, %v8494
    %v8496 = vrot.slane %v8488, %v8495
    %v8498 = vunpack.c.l.s4 1983009808
    %v8499 = vunpack.c.0.s8 %v8498
    %v8500 = vlaneseq
    %v8501 = vshrl.u32 %v8500, 7
    %v8502 = vsub.s32 %v8499, %v8501
    %v8503 = vrot.slane %v8489, %v8502
    %v8504 = vcombine.low %v8448, %v8464
    %v8505 = vcombine.high %v8448, %v8464
    %v8507 = vunpack.c.l.s4 1934713408
    %v8508 = vunpack.c.0.s8 %v8507
    %v8509 = vlaneseq
    %v8510 = vshrl.u32 %v8509, 7
    %v8511 = vsub.s32 %v8508, %v8510
    %v8512 = vrot.slane %v8504, %v8511
    %v8514 = vunpack.c.l.s4 1934713408
    %v8515 = vunpack.c.0.s8 %v8514
    %v8516 = vlaneseq
    %v8517 = vshrl.u32 %v8516, 7
    %v8518 = vsub.s32 %v8515, %v8517
    %v8519 = vrot.slane %v8505, %v8518
    %v8520 = vcombine.low %v8455, %v8471
    %v8521 = vcombine.high %v8455, %v8471
    %v8523 = vunpack.c.l.s4 1934713408
    %v8524 = vunpack.c.0.s8 %v8523
    %v8525 = vlaneseq
    %v8526 = vshrl.u32 %v8525, 7
    %v8527 = vsub.s32 %v8524, %v8526
    %v8528 = vrot.slane %v8520, %v8527
    %v8530 = vunpack.c.l.s4 1934713408
    %v8531 = vunpack.c.0.s8 %v8530
    %v8532 = vlaneseq
    %v8533 = vshrl.u32 %v8532, 7
    %v8534 = vsub.s32 %v8531, %v8533
    %v8535 = vrot.slane %v8521, %v8534
    %v8536 = vcombine.low %v8480, %v8496
    %v8537 = vcombine.high %v8480, %v8496
    %v8539 = vunpack.c.l.s4 1934713408
    %v8540 = vunpack.c.0.s8 %v8539
    %v8541 = vlaneseq
    %v8542 = vshrl.u32 %v8541, 7
    %v8543 = vsub.s32 %v8540, %v8542
    %v8544 = vrot.slane %v8536, %v8543
    %v8546 = vunpack.c.l.s4 1934713408
    %v8547 = vunpack.c.0.s8 %v8546
    %v8548 = vlaneseq
    %v8549 = vshrl.u32 %v8548, 7
    %v8550 = vsub.s32 %v8547, %v8549
    %v8551 = vrot.slane %v8537, %v8550
    %v8552 = vcombine.low %v8487, %v8503
    %v8553 = vcombine.high %v8487, %v8503
    %v8555 = vunpack.c.l.s4 1934713408
    %v8556 = vunpack.c.0.s8 %v8555
    %v8557 = vlaneseq
    %v8558 = vshrl.u32 %v8557, 7
    %v8559 = vsub.s32 %v8556, %v8558
    %v8560 = vrot.slane %v8552, %v8559
    %v8562 = vunpack.c.l.s4 1934713408
    %v8563 = vunpack.c.0.s8 %v8562
    %v8564 = vlaneseq
    %v8565 = vshrl.u32 %v8564, 7
    %v8566 = vsub.s32 %v8563, %v8565
    %v8567 = vrot.slane %v8553, %v8566
    %v8568 = vcombine.low %v8512, %v8544
    %v8569 = vcombine.high %v8512, %v8544
    %v8570 = vcombine.low %v8519, %v8551
    %v8571 = vcombine.high %v8519, %v8551
    %v8572 = vcombine.low %v8528, %v8560
    %v8573 = vcombine.high %v8528, %v8560
    %v8574 = vcombine.low %v8535, %v8567
    %v8575 = vcombine.high %v8535, %v8567
    %v8576 = vcombine.low %v8432, %v8434
    %v8577 = vcombine.high %v8432, %v8434
    %v8579 = vunpack.c.l.s4 1983009808
    %v8580 = vunpack.c.0.s8 %v8579
    %v8581 = vlaneseq
    %v8582 = vshrl.u32 %v8581, 7
    %v8583 = vsub.s32 %v8580, %v8582
    %v8584 = vrot.slane %v8576, %v8583
    %v8586 = vunpack.c.l.s4 1983009808
    %v8587 = vunpack.c.0.s8 %v8586
    %v8588 = vlaneseq
    %v8589 = vshrl.u32 %v8588, 7
    %v8590 = vsub.s32 %v8587, %v8589
    %v8591 = vrot.slane %v8577, %v8590
    %v8592 = vcombine.low %v8433, %v8435
    %v8593 = vcombine.high %v8433, %v8435
    %v8595 = vunpack.c.l.s4 1983009808
    %v8596 = vunpack.c.0.s8 %v8595
    %v8597 = vlaneseq
    %v8598 = vshrl.u32 %v8597, 7
    %v8599 = vsub.s32 %v8596, %v8598
    %v8600 = vrot.slane %v8592, %v8599
    %v8602 = vunpack.c.l.s4 1983009808
    %v8603 = vunpack.c.0.s8 %v8602
    %v8604 = vlaneseq
    %v8605 = vshrl.u32 %v8604, 7
    %v8606 = vsub.s32 %v8603, %v8605
    %v8607 = vrot.slane %v8593, %v8606
    %v8608 = vcombine.low %v8436, %v8438
    %v8609 = vcombine.high %v8436, %v8438
    %v8611 = vunpack.c.l.s4 1983009808
    %v8612 = vunpack.c.0.s8 %v8611
    %v8613 = vlaneseq
    %v8614 = vshrl.u32 %v8613, 7
    %v8615 = vsub.s32 %v8612, %v8614
    %v8616 = vrot.slane %v8608, %v8615
    %v8618 = vunpack.c.l.s4 1983009808
    %v8619 = vunpack.c.0.s8 %v8618
    %v8620 = vlaneseq
    %v8621 = vshrl.u32 %v8620, 7
    %v8622 = vsub.s32 %v8619, %v8621
    %v8623 = vrot.slane %v8609, %v8622
    %v8624 = vcombine.low %v8437, %v8439
    %v8625 = vcombine.high %v8437, %v8439
    %v8627 = vunpack.c.l.s4 1983009808
    %v8628 = vunpack.c.0.s8 %v8627
    %v8629 = vlaneseq
    %v8630 = vshrl.u32 %v8629, 7
    %v8631 = vsub.s32 %v8628, %v8630
    %v8632 = vrot.slane %v8624, %v8631
    %v8634 = vunpack.c.l.s4 1983009808
    %v8635 = vunpack.c.0.s8 %v8634
    %v8636 = vlaneseq
    %v8637 = vshrl.u32 %v8636, 7
    %v8638 = vsub.s32 %v8635, %v8637
    %v8639 = vrot.slane %v8625, %v8638
    %v8640 = vcombine.low %v8584, %v8600
    %v8641 = vcombine.high %v8584, %v8600
    %v8643 = vunpack.c.l.s4 1934713408
    %v8644 = vunpack.c.0.s8 %v8643
    %v8645 = vlaneseq
    %v8646 = vshrl.u32 %v8645, 7
    %v8647 = vsub.s32 %v8644, %v8646
    %v8648 = vrot.slane %v8640, %v8647
    %v8650 = vunpack.c.l.s4 1934713408
    %v8651 = vunpack.c.0.s8 %v8650
    %v8652 = vlaneseq
    %v8653 = vshrl.u32 %v8652, 7
    %v8654 = vsub.s32 %v8651, %v8653
    %v8655 = vrot.slane %v8641, %v8654
    %v8656 = vcombine.low %v8591, %v8607
    %v8657 = vcombine.high %v8591, %v8607
    %v8659 = vunpack.c.l.s4 1934713408
    %v8660 = vunpack.c.0.s8 %v8659
    %v8661 = vlaneseq
    %v8662 = vshrl.u32 %v8661, 7
    %v8663 = vsub.s32 %v8660, %v8662
    %v8664 = vrot.slane %v8656, %v8663
    %v8666 = vunpack.c.l.s4 1934713408
    %v8667 = vunpack.c.0.s8 %v8666
    %v8668 = vlaneseq
    %v8669 = vshrl.u32 %v8668, 7
    %v8670 = vsub.s32 %v8667, %v8669
    %v8671 = vrot.slane %v8657, %v8670
    %v8672 = vcombine.low %v8616, %v8632
    %v8673 = vcombine.high %v8616, %v8632
    %v8675 = vunpack.c.l.s4 1934713408
    %v8676 = vunpack.c.0.s8 %v8675
    %v8677 = vlaneseq
    %v8678 = vshrl.u32 %v8677, 7
    %v8679 = vsub.s32 %v8676, %v8678
    %v8680 = vrot.slane %v8672, %v8679
    %v8682 = vunpack.c.l.s4 1934713408
    %v8683 = vunpack.c.0.s8 %v8682
    %v8684 = vlaneseq
    %v8685 = vshrl.u32 %v8684, 7
    %v8686 = vsub.s32 %v8683, %v8685
    %v8687 = vrot.slane %v8673, %v8686
    %v8688 = vcombine.low %v8623, %v8639
    %v8689 = vcombine.high %v8623, %v8639
    %v8691 = vunpack.c.l.s4 1934713408
    %v8692 = vunpack.c.0.s8 %v8691
    %v8693 = vlaneseq
    %v8694 = vshrl.u32 %v8693, 7
    %v8695 = vsub.s32 %v8692, %v8694
    %v8696 = vrot.slane %v8688, %v8695
    %v8698 = vunpack.c.l.s4 1934713408
    %v8699 = vunpack.c.0.s8 %v8698
    %v8700 = vlaneseq
    %v8701 = vshrl.u32 %v8700, 7
    %v8702 = vsub.s32 %v8699, %v8701
    %v8703 = vrot.slane %v8689, %v8702
    %v8704 = vcombine.low %v8648, %v8680
    %v8705 = vcombine.high %v8648, %v8680
    %v8706 = vcombine.low %v8655, %v8687
    %v8707 = vcombine.high %v8655, %v8687
    %v8708 = vcombine.low %v8664, %v8696
    %v8709 = vcombine.high %v8664, %v8696
    %v8710 = vcombine.low %v8671, %v8703
    %v8711 = vcombine.high %v8671, %v8703
    %v8712 = vcombine.low %v8568, %v8570
    %v8713 = vcombine.high %v8568, %v8570
    %v8715 = vunpack.c.l.s4 1983009808
    %v8716 = vunpack.c.0.s8 %v8715
    %v8717 = vlaneseq
    %v8718 = vshrl.u32 %v8717, 7
    %v8719 = vsub.s32 %v8716, %v8718
    %v8720 = vrot.slane %v8712, %v8719
    %v8722 = vunpack.c.l.s4 1983009808
    %v8723 = vunpack.c.0.s8 %v8722
    %v8724 = vlaneseq
    %v8725 = vshrl.u32 %v8724, 7
    %v8726 = vsub.s32 %v8723, %v8725
    %v8727 = vrot.slane %v8713, %v8726
    %v8728 = vcombine.low %v8569, %v8571
    %v8729 = vcombine.high %v8569, %v8571
    %v8731 = vunpack.c.l.s4 1983009808
    %v8732 = vunpack.c.0.s8 %v8731
    %v8733 = vlaneseq
    %v8734 = vshrl.u32 %v8733, 7
    %v8735 = vsub.s32 %v8732, %v8734
    %v8736 = vrot.slane %v8728, %v8735
    %v8738 = vunpack.c.l.s4 1983009808
    %v8739 = vunpack.c.0.s8 %v8738
    %v8740 = vlaneseq
    %v8741 = vshrl.u32 %v8740, 7
    %v8742 = vsub.s32 %v8739, %v8741
    %v8743 = vrot.slane %v8729, %v8742
    %v8744 = vcombine.low %v8572, %v8574
    %v8745 = vcombine.high %v8572, %v8574
    %v8747 = vunpack.c.l.s4 1983009808
    %v8748 = vunpack.c.0.s8 %v8747
    %v8749 = vlaneseq
    %v8750 = vshrl.u32 %v8749, 7
    %v8751 = vsub.s32 %v8748, %v8750
    %v8752 = vrot.slane %v8744, %v8751
    %v8754 = vunpack.c.l.s4 1983009808
    %v8755 = vunpack.c.0.s8 %v8754
    %v8756 = vlaneseq
    %v8757 = vshrl.u32 %v8756, 7
    %v8758 = vsub.s32 %v8755, %v8757
    %v8759 = vrot.slane %v8745, %v8758
    %v8760 = vcombine.low %v8573, %v8575
    %v8761 = vcombine.high %v8573, %v8575
    %v8763 = vunpack.c.l.s4 1983009808
    %v8764 = vunpack.c.0.s8 %v8763
    %v8765 = vlaneseq
    %v8766 = vshrl.u32 %v8765, 7
    %v8767 = vsub.s32 %v8764, %v8766
    %v8768 = vrot.slane %v8760, %v8767
    %v8770 = vunpack.c.l.s4 1983009808
    %v8771 = vunpack.c.0.s8 %v8770
    %v8772 = vlaneseq
    %v8773 = vshrl.u32 %v8772, 7
    %v8774 = vsub.s32 %v8771, %v8773
    %v8775 = vrot.slane %v8761, %v8774
    %v8776 = vcombine.low %v8720, %v8736
    %v8777 = vcombine.high %v8720, %v8736
    %v8779 = vunpack.c.l.s4 1934713408
    %v8780 = vunpack.c.0.s8 %v8779
    %v8781 = vlaneseq
    %v8782 = vshrl.u32 %v8781, 7
    %v8783 = vsub.s32 %v8780, %v8782
    %v8784 = vrot.slane %v8776, %v8783
    %v8786 = vunpack.c.l.s4 1934713408
    %v8787 = vunpack.c.0.s8 %v8786
    %v8788 = vlaneseq
    %v8789 = vshrl.u32 %v8788, 7
    %v8790 = vsub.s32 %v8787, %v8789
    %v8791 = vrot.slane %v8777, %v8790
    %v8792 = vcombine.low %v8727, %v8743
    %v8793 = vcombine.high %v8727, %v8743
    %v8795 = vunpack.c.l.s4 1934713408
    %v8796 = vunpack.c.0.s8 %v8795
    %v8797 = vlaneseq
    %v8798 = vshrl.u32 %v8797, 7
    %v8799 = vsub.s32 %v8796, %v8798
    %v8800 = vrot.slane %v8792, %v8799
    %v8802 = vunpack.c.l.s4 1934713408
    %v8803 = vunpack.c.0.s8 %v8802
    %v8804 = vlaneseq
    %v8805 = vshrl.u32 %v8804, 7
    %v8806 = vsub.s32 %v8803, %v8805
    %v8807 = vrot.slane %v8793, %v8806
    %v8808 = vcombine.low %v8752, %v8768
    %v8809 = vcombine.high %v8752, %v8768
    %v8811 = vunpack.c.l.s4 1934713408
    %v8812 = vunpack.c.0.s8 %v8811
    %v8813 = vlaneseq
    %v8814 = vshrl.u32 %v8813, 7
    %v8815 = vsub.s32 %v8812, %v8814
    %v8816 = vrot.slane %v8808, %v8815
    %v8818 = vunpack.c.l.s4 1934713408
    %v8819 = vunpack.c.0.s8 %v8818
    %v8820 = vlaneseq
    %v8821 = vshrl.u32 %v8820, 7
    %v8822 = vsub.s32 %v8819, %v8821
    %v8823 = vrot.slane %v8809, %v8822
    %v8824 = vcombine.low %v8759, %v8775
    %v8825 = vcombine.high %v8759, %v8775
    %v8827 = vunpack.c.l.s4 1934713408
    %v8828 = vunpack.c.0.s8 %v8827
    %v8829 = vlaneseq
    %v8830 = vshrl.u32 %v8829, 7
    %v8831 = vsub.s32 %v8828, %v8830
    %v8832 = vrot.slane %v8824, %v8831
    %v8834 = vunpack.c.l.s4 1934713408
    %v8835 = vunpack.c.0.s8 %v8834
    %v8836 = vlaneseq
    %v8837 = vshrl.u32 %v8836, 7
    %v8838 = vsub.s32 %v8835, %v8837
    %v8839 = vrot.slane %v8825, %v8838
    %v8840 = vcombine.low %v8784, %v8816
    %v8841 = vcombine.high %v8784, %v8816
    %v8842 = vcombine.low %v8791, %v8823
    %v8843 = vcombine.high %v8791, %v8823
    %v8844 = vcombine.low %v8800, %v8832
    %v8845 = vcombine.high %v8800, %v8832
    %v8846 = vcombine.low %v8807, %v8839
    %v8847 = vcombine.high %v8807, %v8839
    %v8849 = vsel %vm1046, %v8250, 0
    %v8852 = vsel %vm1046, %v8704, 0
    %8854 = vmatprep.subr.mxu0 0.0
    %8855 = vmatpush1.xpose.msra.mxu0 0.0
    %8856 = vmatprep.subr.mxu0 0.0
    %8857 = vmatpush1.xpose.msra.mxu0 0.0
    %8858 = vmatprep.subr.mxu0 0.0
    %8859 = vmatpush1.xpose.msra.mxu0 0.0
    %8860 = vmatprep.subr.mxu0 0.0
    %8861 = vmatpush1.xpose.msra.mxu0 0.0
    %8862 = vmatprep.subr.mxu0 0.0
    %8863 = vmatpush1.xpose.msra.mxu0 0.0
    %8864 = vmatprep.subr.mxu0 0.0
    %8865 = vmatpush1.xpose.msra.mxu0 0.0
    %8866 = vmatprep.subr.mxu0 0.0
    %8867 = vmatpush1.xpose.msra.mxu0 0.0
    %8868 = vmatprep.subr.mxu0 0.0
    %8869 = vmatpush1.xpose.msra.mxu0 0.0
    %8870 = vmatprep.subr.mxu0 0.0
    %8871 = vmatpush1.xpose.msra.mxu0 0.0
    %8872 = vmatprep.subr.mxu0 0.0
    %8873 = vmatpush1.xpose.msra.mxu0 0.0
    %8874 = vmatprep.subr.mxu0 0.0
    %8875 = vmatpush1.xpose.msra.mxu0 0.0
    %8876 = vmatprep.subr.mxu0 0.0
    %8877 = vmatpush1.xpose.msra.mxu0 0.0
    %8878 = vmatprep.subr.mxu0 0.0
    %8879 = vmatpush1.xpose.msra.mxu0 0.0
    %8880 = vmatprep.subr.mxu0 0.0
    %8881 = vmatpush1.xpose.msra.mxu0 0.0
    %8882 = vmatprep.subr.mxu0 0.0
    %8883 = vmatpush1.xpose.msra.mxu0 0.0
    %8884 = vmatprep.subr.mxu0 0.0
    %8885 = vmatpush1.xpose.msra.mxu0 %v8852
    %8886 = vmatprep.subr.mxu0 0.0
    %8887 = vmatpush2.xpose.msra.mxu0 0.0
    %8888 = vmatprep.subr.mxu0 0.0
    %8889 = vmatpush2.xpose.msra.mxu0 0.0
    %8890 = vmatprep.subr.mxu0 0.0
    %8891 = vmatpush2.xpose.msra.mxu0 0.0
    %8892 = vmatprep.subr.mxu0 0.0
    %8893 = vmatpush2.xpose.msra.mxu0 0.0
    %8894 = vmatprep.subr.mxu0 0.0
    %8895 = vmatpush2.xpose.msra.mxu0 0.0
    %8896 = vmatprep.subr.mxu0 0.0
    %8897 = vmatpush2.xpose.msra.mxu0 0.0
    %8898 = vmatprep.subr.mxu0 0.0
    %8899 = vmatpush2.xpose.msra.mxu0 0.0
    %8900 = vmatprep.subr.mxu0 0.0
    %8901 = vmatpush2.xpose.msra.mxu0 0.0
    %8902 = vmatprep.subr.mxu0 0.0
    %8903 = vmatpush2.xpose.msra.mxu0 0.0
    %8904 = vmatprep.subr.mxu0 0.0
    %8905 = vmatpush2.xpose.msra.mxu0 0.0
    %8906 = vmatprep.subr.mxu0 0.0
    %8907 = vmatpush2.xpose.msra.mxu0 0.0
    %8908 = vmatprep.subr.mxu0 0.0
    %8909 = vmatpush2.xpose.msra.mxu0 0.0
    %8910 = vmatprep.subr.mxu0 0.0
    %8911 = vmatpush2.xpose.msra.mxu0 0.0
    %8912 = vmatprep.subr.mxu0 0.0
    %8913 = vmatpush2.xpose.msra.mxu0 0.0
    %8914 = vmatprep.subr.mxu0 0.0
    %8915 = vmatpush2.xpose.msra.mxu0 0.0
    %8916 = vmatprep.subr.mxu0 0.0
    %8917 = vmatpush2.xpose.msra.mxu0 0.0
    %8918 = vmatprep.mubr.f32.mxu0 0.0
    %8919 = vmatmul.mubr.f32.gmra.mxu0 %v8849
    %v8920 = vpop.f32.mrf.mxu0
    %v8921 = vadd.f32 0.0, %v8920
    %v8922 = vpop.f32.mrf.mxu0
    %8923 = vdwg.mxu0
    %v8925 = vsel %vm1046, %v8251, 0
    %v8928 = vsel %vm1046, %v8705, 0
    %8930 = vmatprep.subr.mxu0 0.0
    %8931 = vmatpush1.xpose.msra.mxu0 0.0
    %8932 = vmatprep.subr.mxu0 0.0
    %8933 = vmatpush1.xpose.msra.mxu0 0.0
    %8934 = vmatprep.subr.mxu0 0.0
    %8935 = vmatpush1.xpose.msra.mxu0 0.0
    %8936 = vmatprep.subr.mxu0 0.0
    %8937 = vmatpush1.xpose.msra.mxu0 0.0
    %8938 = vmatprep.subr.mxu0 0.0
    %8939 = vmatpush1.xpose.msra.mxu0 0.0
    %8940 = vmatprep.subr.mxu0 0.0
    %8941 = vmatpush1.xpose.msra.mxu0 0.0
    %8942 = vmatprep.subr.mxu0 0.0
    %8943 = vmatpush1.xpose.msra.mxu0 0.0
    %8944 = vmatprep.subr.mxu0 0.0
    %8945 = vmatpush1.xpose.msra.mxu0 0.0
    %8946 = vmatprep.subr.mxu0 0.0
    %8947 = vmatpush1.xpose.msra.mxu0 0.0
    %8948 = vmatprep.subr.mxu0 0.0
    %8949 = vmatpush1.xpose.msra.mxu0 0.0
    %8950 = vmatprep.subr.mxu0 0.0
    %8951 = vmatpush1.xpose.msra.mxu0 0.0
    %8952 = vmatprep.subr.mxu0 0.0
    %8953 = vmatpush1.xpose.msra.mxu0 0.0
    %8954 = vmatprep.subr.mxu0 0.0
    %8955 = vmatpush1.xpose.msra.mxu0 0.0
    %8956 = vmatprep.subr.mxu0 0.0
    %8957 = vmatpush1.xpose.msra.mxu0 0.0
    %8958 = vmatprep.subr.mxu0 0.0
    %8959 = vmatpush1.xpose.msra.mxu0 0.0
    %8960 = vmatprep.subr.mxu0 0.0
    %8961 = vmatpush1.xpose.msra.mxu0 %v8928
    %8962 = vmatprep.subr.mxu0 0.0
    %8963 = vmatpush2.xpose.msra.mxu0 0.0
    %8964 = vmatprep.subr.mxu0 0.0
    %8965 = vmatpush2.xpose.msra.mxu0 0.0
    %8966 = vmatprep.subr.mxu0 0.0
    %8967 = vmatpush2.xpose.msra.mxu0 0.0
    %8968 = vmatprep.subr.mxu0 0.0
    %8969 = vmatpush2.xpose.msra.mxu0 0.0
    %8970 = vmatprep.subr.mxu0 0.0
    %8971 = vmatpush2.xpose.msra.mxu0 0.0
    %8972 = vmatprep.subr.mxu0 0.0
    %8973 = vmatpush2.xpose.msra.mxu0 0.0
    %8974 = vmatprep.subr.mxu0 0.0
    %8975 = vmatpush2.xpose.msra.mxu0 0.0
    %8976 = vmatprep.subr.mxu0 0.0
    %8977 = vmatpush2.xpose.msra.mxu0 0.0
    %8978 = vmatprep.subr.mxu0 0.0
    %8979 = vmatpush2.xpose.msra.mxu0 0.0
    %8980 = vmatprep.subr.mxu0 0.0
    %8981 = vmatpush2.xpose.msra.mxu0 0.0
    %8982 = vmatprep.subr.mxu0 0.0
    %8983 = vmatpush2.xpose.msra.mxu0 0.0
    %8984 = vmatprep.subr.mxu0 0.0
    %8985 = vmatpush2.xpose.msra.mxu0 0.0
    %8986 = vmatprep.subr.mxu0 0.0
    %8987 = vmatpush2.xpose.msra.mxu0 0.0
    %8988 = vmatprep.subr.mxu0 0.0
    %8989 = vmatpush2.xpose.msra.mxu0 0.0
    %8990 = vmatprep.subr.mxu0 0.0
    %8991 = vmatpush2.xpose.msra.mxu0 0.0
    %8992 = vmatprep.subr.mxu0 0.0
    %8993 = vmatpush2.xpose.msra.mxu0 0.0
    %8994 = vmatprep.mubr.f32.mxu0 0.0
    %8995 = vmatmul.mubr.f32.gmra.mxu0 %v8925
    %v8996 = vpop.f32.mrf.mxu0
    %v8997 = vadd.f32 0.0, %v8996
    %v8998 = vpop.f32.mrf.mxu0
    %8999 = vdwg.mxu0
    %v9001 = vsel %vm1046, %v8252, 0
    %v9004 = vsel %vm1046, %v8706, 0
    %9006 = vmatprep.subr.mxu0 0.0
    %9007 = vmatpush1.xpose.msra.mxu0 0.0
    %9008 = vmatprep.subr.mxu0 0.0
    %9009 = vmatpush1.xpose.msra.mxu0 0.0
    %9010 = vmatprep.subr.mxu0 0.0
    %9011 = vmatpush1.xpose.msra.mxu0 0.0
    %9012 = vmatprep.subr.mxu0 0.0
    %9013 = vmatpush1.xpose.msra.mxu0 0.0
    %9014 = vmatprep.subr.mxu0 0.0
    %9015 = vmatpush1.xpose.msra.mxu0 0.0
    %9016 = vmatprep.subr.mxu0 0.0
    %9017 = vmatpush1.xpose.msra.mxu0 0.0
    %9018 = vmatprep.subr.mxu0 0.0
    %9019 = vmatpush1.xpose.msra.mxu0 0.0
    %9020 = vmatprep.subr.mxu0 0.0
    %9021 = vmatpush1.xpose.msra.mxu0 0.0
    %9022 = vmatprep.subr.mxu0 0.0
    %9023 = vmatpush1.xpose.msra.mxu0 0.0
    %9024 = vmatprep.subr.mxu0 0.0
    %9025 = vmatpush1.xpose.msra.mxu0 0.0
    %9026 = vmatprep.subr.mxu0 0.0
    %9027 = vmatpush1.xpose.msra.mxu0 0.0
    %9028 = vmatprep.subr.mxu0 0.0
    %9029 = vmatpush1.xpose.msra.mxu0 0.0
    %9030 = vmatprep.subr.mxu0 0.0
    %9031 = vmatpush1.xpose.msra.mxu0 0.0
    %9032 = vmatprep.subr.mxu0 0.0
    %9033 = vmatpush1.xpose.msra.mxu0 0.0
    %9034 = vmatprep.subr.mxu0 0.0
    %9035 = vmatpush1.xpose.msra.mxu0 0.0
    %9036 = vmatprep.subr.mxu0 0.0
    %9037 = vmatpush1.xpose.msra.mxu0 %v9004
    %9038 = vmatprep.subr.mxu0 0.0
    %9039 = vmatpush2.xpose.msra.mxu0 0.0
    %9040 = vmatprep.subr.mxu0 0.0
    %9041 = vmatpush2.xpose.msra.mxu0 0.0
    %9042 = vmatprep.subr.mxu0 0.0
    %9043 = vmatpush2.xpose.msra.mxu0 0.0
    %9044 = vmatprep.subr.mxu0 0.0
    %9045 = vmatpush2.xpose.msra.mxu0 0.0
    %9046 = vmatprep.subr.mxu0 0.0
    %9047 = vmatpush2.xpose.msra.mxu0 0.0
    %9048 = vmatprep.subr.mxu0 0.0
    %9049 = vmatpush2.xpose.msra.mxu0 0.0
    %9050 = vmatprep.subr.mxu0 0.0
    %9051 = vmatpush2.xpose.msra.mxu0 0.0
    %9052 = vmatprep.subr.mxu0 0.0
    %9053 = vmatpush2.xpose.msra.mxu0 0.0
    %9054 = vmatprep.subr.mxu0 0.0
    %9055 = vmatpush2.xpose.msra.mxu0 0.0
    %9056 = vmatprep.subr.mxu0 0.0
    %9057 = vmatpush2.xpose.msra.mxu0 0.0
    %9058 = vmatprep.subr.mxu0 0.0
    %9059 = vmatpush2.xpose.msra.mxu0 0.0
    %9060 = vmatprep.subr.mxu0 0.0
    %9061 = vmatpush2.xpose.msra.mxu0 0.0
    %9062 = vmatprep.subr.mxu0 0.0
    %9063 = vmatpush2.xpose.msra.mxu0 0.0
    %9064 = vmatprep.subr.mxu0 0.0
    %9065 = vmatpush2.xpose.msra.mxu0 0.0
    %9066 = vmatprep.subr.mxu0 0.0
    %9067 = vmatpush2.xpose.msra.mxu0 0.0
    %9068 = vmatprep.subr.mxu0 0.0
    %9069 = vmatpush2.xpose.msra.mxu0 0.0
    %9070 = vmatprep.mubr.f32.mxu0 0.0
    %9071 = vmatmul.mubr.f32.gmra.mxu0 %v9001
    %v9072 = vpop.f32.mrf.mxu0
    %v9073 = vadd.f32 0.0, %v9072
    %v9074 = vpop.f32.mrf.mxu0
    %9075 = vdwg.mxu0
    %v9077 = vsel %vm1046, %v8253, 0
    %v9080 = vsel %vm1046, %v8707, 0
    %9082 = vmatprep.subr.mxu0 0.0
    %9083 = vmatpush1.xpose.msra.mxu0 0.0
    %9084 = vmatprep.subr.mxu0 0.0
    %9085 = vmatpush1.xpose.msra.mxu0 0.0
    %9086 = vmatprep.subr.mxu0 0.0
    %9087 = vmatpush1.xpose.msra.mxu0 0.0
    %9088 = vmatprep.subr.mxu0 0.0
    %9089 = vmatpush1.xpose.msra.mxu0 0.0
    %9090 = vmatprep.subr.mxu0 0.0
    %9091 = vmatpush1.xpose.msra.mxu0 0.0
    %9092 = vmatprep.subr.mxu0 0.0
    %9093 = vmatpush1.xpose.msra.mxu0 0.0
    %9094 = vmatprep.subr.mxu0 0.0
    %9095 = vmatpush1.xpose.msra.mxu0 0.0
    %9096 = vmatprep.subr.mxu0 0.0
    %9097 = vmatpush1.xpose.msra.mxu0 0.0
    %9098 = vmatprep.subr.mxu0 0.0
    %9099 = vmatpush1.xpose.msra.mxu0 0.0
    %9100 = vmatprep.subr.mxu0 0.0
    %9101 = vmatpush1.xpose.msra.mxu0 0.0
    %9102 = vmatprep.subr.mxu0 0.0
    %9103 = vmatpush1.xpose.msra.mxu0 0.0
    %9104 = vmatprep.subr.mxu0 0.0
    %9105 = vmatpush1.xpose.msra.mxu0 0.0
    %9106 = vmatprep.subr.mxu0 0.0
    %9107 = vmatpush1.xpose.msra.mxu0 0.0
    %9108 = vmatprep.subr.mxu0 0.0
    %9109 = vmatpush1.xpose.msra.mxu0 0.0
    %9110 = vmatprep.subr.mxu0 0.0
    %9111 = vmatpush1.xpose.msra.mxu0 0.0
    %9112 = vmatprep.subr.mxu0 0.0
    %9113 = vmatpush1.xpose.msra.mxu0 %v9080
    %9114 = vmatprep.subr.mxu0 0.0
    %9115 = vmatpush2.xpose.msra.mxu0 0.0
    %9116 = vmatprep.subr.mxu0 0.0
    %9117 = vmatpush2.xpose.msra.mxu0 0.0
    %9118 = vmatprep.subr.mxu0 0.0
    %9119 = vmatpush2.xpose.msra.mxu0 0.0
    %9120 = vmatprep.subr.mxu0 0.0
    %9121 = vmatpush2.xpose.msra.mxu0 0.0
    %9122 = vmatprep.subr.mxu0 0.0
    %9123 = vmatpush2.xpose.msra.mxu0 0.0
    %9124 = vmatprep.subr.mxu0 0.0
    %9125 = vmatpush2.xpose.msra.mxu0 0.0
    %9126 = vmatprep.subr.mxu0 0.0
    %9127 = vmatpush2.xpose.msra.mxu0 0.0
    %9128 = vmatprep.subr.mxu0 0.0
    %9129 = vmatpush2.xpose.msra.mxu0 0.0
    %9130 = vmatprep.subr.mxu0 0.0
    %9131 = vmatpush2.xpose.msra.mxu0 0.0
    %9132 = vmatprep.subr.mxu0 0.0
    %9133 = vmatpush2.xpose.msra.mxu0 0.0
    %9134 = vmatprep.subr.mxu0 0.0
    %9135 = vmatpush2.xpose.msra.mxu0 0.0
    %9136 = vmatprep.subr.mxu0 0.0
    %9137 = vmatpush2.xpose.msra.mxu0 0.0
    %9138 = vmatprep.subr.mxu0 0.0
    %9139 = vmatpush2.xpose.msra.mxu0 0.0
    %9140 = vmatprep.subr.mxu0 0.0
    %9141 = vmatpush2.xpose.msra.mxu0 0.0
    %9142 = vmatprep.subr.mxu0 0.0
    %9143 = vmatpush2.xpose.msra.mxu0 0.0
    %9144 = vmatprep.subr.mxu0 0.0
    %9145 = vmatpush2.xpose.msra.mxu0 0.0
    %9146 = vmatprep.mubr.f32.mxu0 0.0
    %9147 = vmatmul.mubr.f32.gmra.mxu0 %v9077
    %v9148 = vpop.f32.mrf.mxu0
    %v9149 = vadd.f32 0.0, %v9148
    %v9150 = vpop.f32.mrf.mxu0
    %9151 = vdwg.mxu0
    %v9153 = vsel %vm1046, %v8254, 0
    %v9156 = vsel %vm1046, %v8708, 0
    %9158 = vmatprep.subr.mxu0 0.0
    %9159 = vmatpush1.xpose.msra.mxu0 0.0
    %9160 = vmatprep.subr.mxu0 0.0
    %9161 = vmatpush1.xpose.msra.mxu0 0.0
    %9162 = vmatprep.subr.mxu0 0.0
    %9163 = vmatpush1.xpose.msra.mxu0 0.0
    %9164 = vmatprep.subr.mxu0 0.0
    %9165 = vmatpush1.xpose.msra.mxu0 0.0
    %9166 = vmatprep.subr.mxu0 0.0
    %9167 = vmatpush1.xpose.msra.mxu0 0.0
    %9168 = vmatprep.subr.mxu0 0.0
    %9169 = vmatpush1.xpose.msra.mxu0 0.0
    %9170 = vmatprep.subr.mxu0 0.0
    %9171 = vmatpush1.xpose.msra.mxu0 0.0
    %9172 = vmatprep.subr.mxu0 0.0
    %9173 = vmatpush1.xpose.msra.mxu0 0.0
    %9174 = vmatprep.subr.mxu0 0.0
    %9175 = vmatpush1.xpose.msra.mxu0 0.0
    %9176 = vmatprep.subr.mxu0 0.0
    %9177 = vmatpush1.xpose.msra.mxu0 0.0
    %9178 = vmatprep.subr.mxu0 0.0
    %9179 = vmatpush1.xpose.msra.mxu0 0.0
    %9180 = vmatprep.subr.mxu0 0.0
    %9181 = vmatpush1.xpose.msra.mxu0 0.0
    %9182 = vmatprep.subr.mxu0 0.0
    %9183 = vmatpush1.xpose.msra.mxu0 0.0
    %9184 = vmatprep.subr.mxu0 0.0
    %9185 = vmatpush1.xpose.msra.mxu0 0.0
    %9186 = vmatprep.subr.mxu0 0.0
    %9187 = vmatpush1.xpose.msra.mxu0 0.0
    %9188 = vmatprep.subr.mxu0 0.0
    %9189 = vmatpush1.xpose.msra.mxu0 %v9156
    %9190 = vmatprep.subr.mxu0 0.0
    %9191 = vmatpush2.xpose.msra.mxu0 0.0
    %9192 = vmatprep.subr.mxu0 0.0
    %9193 = vmatpush2.xpose.msra.mxu0 0.0
    %9194 = vmatprep.subr.mxu0 0.0
    %9195 = vmatpush2.xpose.msra.mxu0 0.0
    %9196 = vmatprep.subr.mxu0 0.0
    %9197 = vmatpush2.xpose.msra.mxu0 0.0
    %9198 = vmatprep.subr.mxu0 0.0
    %9199 = vmatpush2.xpose.msra.mxu0 0.0
    %9200 = vmatprep.subr.mxu0 0.0
    %9201 = vmatpush2.xpose.msra.mxu0 0.0
    %9202 = vmatprep.subr.mxu0 0.0
    %9203 = vmatpush2.xpose.msra.mxu0 0.0
    %9204 = vmatprep.subr.mxu0 0.0
    %9205 = vmatpush2.xpose.msra.mxu0 0.0
    %9206 = vmatprep.subr.mxu0 0.0
    %9207 = vmatpush2.xpose.msra.mxu0 0.0
    %9208 = vmatprep.subr.mxu0 0.0
    %9209 = vmatpush2.xpose.msra.mxu0 0.0
    %9210 = vmatprep.subr.mxu0 0.0
    %9211 = vmatpush2.xpose.msra.mxu0 0.0
    %9212 = vmatprep.subr.mxu0 0.0
    %9213 = vmatpush2.xpose.msra.mxu0 0.0
    %9214 = vmatprep.subr.mxu0 0.0
    %9215 = vmatpush2.xpose.msra.mxu0 0.0
    %9216 = vmatprep.subr.mxu0 0.0
    %9217 = vmatpush2.xpose.msra.mxu0 0.0
    %9218 = vmatprep.subr.mxu0 0.0
    %9219 = vmatpush2.xpose.msra.mxu0 0.0
    %9220 = vmatprep.subr.mxu0 0.0
    %9221 = vmatpush2.xpose.msra.mxu0 0.0
    %9222 = vmatprep.mubr.f32.mxu0 0.0
    %9223 = vmatmul.mubr.f32.gmra.mxu0 %v9153
    %v9224 = vpop.f32.mrf.mxu0
    %v9225 = vadd.f32 0.0, %v9224
    %v9226 = vpop.f32.mrf.mxu0
    %9227 = vdwg.mxu0
    %v9229 = vsel %vm1046, %v8255, 0
    %v9232 = vsel %vm1046, %v8709, 0
    %9234 = vmatprep.subr.mxu0 0.0
    %9235 = vmatpush1.xpose.msra.mxu0 0.0
    %9236 = vmatprep.subr.mxu0 0.0
    %9237 = vmatpush1.xpose.msra.mxu0 0.0
    %9238 = vmatprep.subr.mxu0 0.0
    %9239 = vmatpush1.xpose.msra.mxu0 0.0
    %9240 = vmatprep.subr.mxu0 0.0
    %9241 = vmatpush1.xpose.msra.mxu0 0.0
    %9242 = vmatprep.subr.mxu0 0.0
    %9243 = vmatpush1.xpose.msra.mxu0 0.0
    %9244 = vmatprep.subr.mxu0 0.0
    %9245 = vmatpush1.xpose.msra.mxu0 0.0
    %9246 = vmatprep.subr.mxu0 0.0
    %9247 = vmatpush1.xpose.msra.mxu0 0.0
    %9248 = vmatprep.subr.mxu0 0.0
    %9249 = vmatpush1.xpose.msra.mxu0 0.0
    %9250 = vmatprep.subr.mxu0 0.0
    %9251 = vmatpush1.xpose.msra.mxu0 0.0
    %9252 = vmatprep.subr.mxu0 0.0
    %9253 = vmatpush1.xpose.msra.mxu0 0.0
    %9254 = vmatprep.subr.mxu0 0.0
    %9255 = vmatpush1.xpose.msra.mxu0 0.0
    %9256 = vmatprep.subr.mxu0 0.0
    %9257 = vmatpush1.xpose.msra.mxu0 0.0
    %9258 = vmatprep.subr.mxu0 0.0
    %9259 = vmatpush1.xpose.msra.mxu0 0.0
    %9260 = vmatprep.subr.mxu0 0.0
    %9261 = vmatpush1.xpose.msra.mxu0 0.0
    %9262 = vmatprep.subr.mxu0 0.0
    %9263 = vmatpush1.xpose.msra.mxu0 0.0
    %9264 = vmatprep.subr.mxu0 0.0
    %9265 = vmatpush1.xpose.msra.mxu0 %v9232
    %9266 = vmatprep.subr.mxu0 0.0
    %9267 = vmatpush2.xpose.msra.mxu0 0.0
    %9268 = vmatprep.subr.mxu0 0.0
    %9269 = vmatpush2.xpose.msra.mxu0 0.0
    %9270 = vmatprep.subr.mxu0 0.0
    %9271 = vmatpush2.xpose.msra.mxu0 0.0
    %9272 = vmatprep.subr.mxu0 0.0
    %9273 = vmatpush2.xpose.msra.mxu0 0.0
    %9274 = vmatprep.subr.mxu0 0.0
    %9275 = vmatpush2.xpose.msra.mxu0 0.0
    %9276 = vmatprep.subr.mxu0 0.0
    %9277 = vmatpush2.xpose.msra.mxu0 0.0
    %9278 = vmatprep.subr.mxu0 0.0
    %9279 = vmatpush2.xpose.msra.mxu0 0.0
    %9280 = vmatprep.subr.mxu0 0.0
    %9281 = vmatpush2.xpose.msra.mxu0 0.0
    %9282 = vmatprep.subr.mxu0 0.0
    %9283 = vmatpush2.xpose.msra.mxu0 0.0
    %9284 = vmatprep.subr.mxu0 0.0
    %9285 = vmatpush2.xpose.msra.mxu0 0.0
    %9286 = vmatprep.subr.mxu0 0.0
    %9287 = vmatpush2.xpose.msra.mxu0 0.0
    %9288 = vmatprep.subr.mxu0 0.0
    %9289 = vmatpush2.xpose.msra.mxu0 0.0
    %9290 = vmatprep.subr.mxu0 0.0
    %9291 = vmatpush2.xpose.msra.mxu0 0.0
    %9292 = vmatprep.subr.mxu0 0.0
    %9293 = vmatpush2.xpose.msra.mxu0 0.0
    %9294 = vmatprep.subr.mxu0 0.0
    %9295 = vmatpush2.xpose.msra.mxu0 0.0
    %9296 = vmatprep.subr.mxu0 0.0
    %9297 = vmatpush2.xpose.msra.mxu0 0.0
    %9298 = vmatprep.mubr.f32.mxu0 0.0
    %9299 = vmatmul.mubr.f32.gmra.mxu0 %v9229
    %v9300 = vpop.f32.mrf.mxu0
    %v9301 = vadd.f32 0.0, %v9300
    %v9302 = vpop.f32.mrf.mxu0
    %9303 = vdwg.mxu0
    %v9305 = vsel %vm1046, %v8256, 0
    %v9308 = vsel %vm1046, %v8710, 0
    %9310 = vmatprep.subr.mxu0 0.0
    %9311 = vmatpush1.xpose.msra.mxu0 0.0
    %9312 = vmatprep.subr.mxu0 0.0
    %9313 = vmatpush1.xpose.msra.mxu0 0.0
    %9314 = vmatprep.subr.mxu0 0.0
    %9315 = vmatpush1.xpose.msra.mxu0 0.0
    %9316 = vmatprep.subr.mxu0 0.0
    %9317 = vmatpush1.xpose.msra.mxu0 0.0
    %9318 = vmatprep.subr.mxu0 0.0
    %9319 = vmatpush1.xpose.msra.mxu0 0.0
    %9320 = vmatprep.subr.mxu0 0.0
    %9321 = vmatpush1.xpose.msra.mxu0 0.0
    %9322 = vmatprep.subr.mxu0 0.0
    %9323 = vmatpush1.xpose.msra.mxu0 0.0
    %9324 = vmatprep.subr.mxu0 0.0
    %9325 = vmatpush1.xpose.msra.mxu0 0.0
    %9326 = vmatprep.subr.mxu0 0.0
    %9327 = vmatpush1.xpose.msra.mxu0 0.0
    %9328 = vmatprep.subr.mxu0 0.0
    %9329 = vmatpush1.xpose.msra.mxu0 0.0
    %9330 = vmatprep.subr.mxu0 0.0
    %9331 = vmatpush1.xpose.msra.mxu0 0.0
    %9332 = vmatprep.subr.mxu0 0.0
    %9333 = vmatpush1.xpose.msra.mxu0 0.0
    %9334 = vmatprep.subr.mxu0 0.0
    %9335 = vmatpush1.xpose.msra.mxu0 0.0
    %9336 = vmatprep.subr.mxu0 0.0
    %9337 = vmatpush1.xpose.msra.mxu0 0.0
    %9338 = vmatprep.subr.mxu0 0.0
    %9339 = vmatpush1.xpose.msra.mxu0 0.0
    %9340 = vmatprep.subr.mxu0 0.0
    %9341 = vmatpush1.xpose.msra.mxu0 %v9308
    %9342 = vmatprep.subr.mxu0 0.0
    %9343 = vmatpush2.xpose.msra.mxu0 0.0
    %9344 = vmatprep.subr.mxu0 0.0
    %9345 = vmatpush2.xpose.msra.mxu0 0.0
    %9346 = vmatprep.subr.mxu0 0.0
    %9347 = vmatpush2.xpose.msra.mxu0 0.0
    %9348 = vmatprep.subr.mxu0 0.0
    %9349 = vmatpush2.xpose.msra.mxu0 0.0
    %9350 = vmatprep.subr.mxu0 0.0
    %9351 = vmatpush2.xpose.msra.mxu0 0.0
    %9352 = vmatprep.subr.mxu0 0.0
    %9353 = vmatpush2.xpose.msra.mxu0 0.0
    %9354 = vmatprep.subr.mxu0 0.0
    %9355 = vmatpush2.xpose.msra.mxu0 0.0
    %9356 = vmatprep.subr.mxu0 0.0
    %9357 = vmatpush2.xpose.msra.mxu0 0.0
    %9358 = vmatprep.subr.mxu0 0.0
    %9359 = vmatpush2.xpose.msra.mxu0 0.0
    %9360 = vmatprep.subr.mxu0 0.0
    %9361 = vmatpush2.xpose.msra.mxu0 0.0
    %9362 = vmatprep.subr.mxu0 0.0
    %9363 = vmatpush2.xpose.msra.mxu0 0.0
    %9364 = vmatprep.subr.mxu0 0.0
    %9365 = vmatpush2.xpose.msra.mxu0 0.0
    %9366 = vmatprep.subr.mxu0 0.0
    %9367 = vmatpush2.xpose.msra.mxu0 0.0
    %9368 = vmatprep.subr.mxu0 0.0
    %9369 = vmatpush2.xpose.msra.mxu0 0.0
    %9370 = vmatprep.subr.mxu0 0.0
    %9371 = vmatpush2.xpose.msra.mxu0 0.0
    %9372 = vmatprep.subr.mxu0 0.0
    %9373 = vmatpush2.xpose.msra.mxu0 0.0
    %9374 = vmatprep.mubr.f32.mxu0 0.0
    %9375 = vmatmul.mubr.f32.gmra.mxu0 %v9305
    %v9376 = vpop.f32.mrf.mxu0
    %v9377 = vadd.f32 0.0, %v9376
    %v9378 = vpop.f32.mrf.mxu0
    %9379 = vdwg.mxu0
    %v9381 = vsel %vm1046, %v8257, 0
    %v9384 = vsel %vm1046, %v8711, 0
    %9386 = vmatprep.subr.mxu0 0.0
    %9387 = vmatpush1.xpose.msra.mxu0 0.0
    %9388 = vmatprep.subr.mxu0 0.0
    %9389 = vmatpush1.xpose.msra.mxu0 0.0
    %9390 = vmatprep.subr.mxu0 0.0
    %9391 = vmatpush1.xpose.msra.mxu0 0.0
    %9392 = vmatprep.subr.mxu0 0.0
    %9393 = vmatpush1.xpose.msra.mxu0 0.0
    %9394 = vmatprep.subr.mxu0 0.0
    %9395 = vmatpush1.xpose.msra.mxu0 0.0
    %9396 = vmatprep.subr.mxu0 0.0
    %9397 = vmatpush1.xpose.msra.mxu0 0.0
    %9398 = vmatprep.subr.mxu0 0.0
    %9399 = vmatpush1.xpose.msra.mxu0 0.0
    %9400 = vmatprep.subr.mxu0 0.0
    %9401 = vmatpush1.xpose.msra.mxu0 0.0
    %9402 = vmatprep.subr.mxu0 0.0
    %9403 = vmatpush1.xpose.msra.mxu0 0.0
    %9404 = vmatprep.subr.mxu0 0.0
    %9405 = vmatpush1.xpose.msra.mxu0 0.0
    %9406 = vmatprep.subr.mxu0 0.0
    %9407 = vmatpush1.xpose.msra.mxu0 0.0
    %9408 = vmatprep.subr.mxu0 0.0
    %9409 = vmatpush1.xpose.msra.mxu0 0.0
    %9410 = vmatprep.subr.mxu0 0.0
    %9411 = vmatpush1.xpose.msra.mxu0 0.0
    %9412 = vmatprep.subr.mxu0 0.0
    %9413 = vmatpush1.xpose.msra.mxu0 0.0
    %9414 = vmatprep.subr.mxu0 0.0
    %9415 = vmatpush1.xpose.msra.mxu0 0.0
    %9416 = vmatprep.subr.mxu0 0.0
    %9417 = vmatpush1.xpose.msra.mxu0 %v9384
    %9418 = vmatprep.subr.mxu0 0.0
    %9419 = vmatpush2.xpose.msra.mxu0 0.0
    %9420 = vmatprep.subr.mxu0 0.0
    %9421 = vmatpush2.xpose.msra.mxu0 0.0
    %9422 = vmatprep.subr.mxu0 0.0
    %9423 = vmatpush2.xpose.msra.mxu0 0.0
    %9424 = vmatprep.subr.mxu0 0.0
    %9425 = vmatpush2.xpose.msra.mxu0 0.0
    %9426 = vmatprep.subr.mxu0 0.0
    %9427 = vmatpush2.xpose.msra.mxu0 0.0
    %9428 = vmatprep.subr.mxu0 0.0
    %9429 = vmatpush2.xpose.msra.mxu0 0.0
    %9430 = vmatprep.subr.mxu0 0.0
    %9431 = vmatpush2.xpose.msra.mxu0 0.0
    %9432 = vmatprep.subr.mxu0 0.0
    %9433 = vmatpush2.xpose.msra.mxu0 0.0
    %9434 = vmatprep.subr.mxu0 0.0
    %9435 = vmatpush2.xpose.msra.mxu0 0.0
    %9436 = vmatprep.subr.mxu0 0.0
    %9437 = vmatpush2.xpose.msra.mxu0 0.0
    %9438 = vmatprep.subr.mxu0 0.0
    %9439 = vmatpush2.xpose.msra.mxu0 0.0
    %9440 = vmatprep.subr.mxu0 0.0
    %9441 = vmatpush2.xpose.msra.mxu0 0.0
    %9442 = vmatprep.subr.mxu0 0.0
    %9443 = vmatpush2.xpose.msra.mxu0 0.0
    %9444 = vmatprep.subr.mxu0 0.0
    %9445 = vmatpush2.xpose.msra.mxu0 0.0
    %9446 = vmatprep.subr.mxu0 0.0
    %9447 = vmatpush2.xpose.msra.mxu0 0.0
    %9448 = vmatprep.subr.mxu0 0.0
    %9449 = vmatpush2.xpose.msra.mxu0 0.0
    %9450 = vmatprep.mubr.f32.mxu0 0.0
    %9451 = vmatmul.mubr.f32.gmra.mxu0 %v9381
    %v9452 = vpop.f32.mrf.mxu0
    %v9453 = vadd.f32 0.0, %v9452
    %v9454 = vpop.f32.mrf.mxu0
    %9455 = vdwg.mxu0
    %v9456 = vsel %vm1655, %v8921, -inf
    %9457 = vmax.xlane.f32.xlu0 %v9456
    %v9458 = vpop.xlane.xlu0 %9457
    %v9459 = vsel %vm1655, %v8997, -inf
    %9460 = vmax.xlane.f32.xlu0 %v9459
    %v9461 = vpop.xlane.xlu0 %9460
    %v9462 = vsel %vm1655, %v9073, -inf
    %9463 = vmax.xlane.f32.xlu0 %v9462
    %v9464 = vpop.xlane.xlu0 %9463
    %v9465 = vsel %vm1655, %v9149, -inf
    %9466 = vmax.xlane.f32.xlu0 %v9465
    %v9467 = vpop.xlane.xlu0 %9466
    %v9468 = vsel %vm1655, %v9225, -inf
    %9469 = vmax.xlane.f32.xlu0 %v9468
    %v9470 = vpop.xlane.xlu0 %9469
    %v9471 = vsel %vm1655, %v9301, -inf
    %9472 = vmax.xlane.f32.xlu0 %v9471
    %v9473 = vpop.xlane.xlu0 %9472
    %v9474 = vsel %vm1655, %v9377, -inf
    %9475 = vmax.xlane.f32.xlu0 %v9474
    %v9476 = vpop.xlane.xlu0 %9475
    %v9477 = vsel %vm1655, %v9453, -inf
    %9478 = vmax.xlane.f32.xlu0 %v9477
    %v9479 = vpop.xlane.xlu0 %9478
    %v9480 = vsub.f32 %v8921, %v9458
    %v9481 = vsub.f32 %v8997, %v9461
    %v9482 = vsub.f32 %v9073, %v9464
    %v9483 = vsub.f32 %v9149, %v9467
    %v9484 = vsub.f32 %v9225, %v9470
    %v9485 = vsub.f32 %v9301, %v9473
    %v9486 = vsub.f32 %v9377, %v9476
    %v9487 = vsub.f32 %v9453, %v9479
    %v9488 = vmul.f32 %v9480, 1.442695
    %v9489 = vpow.pop %v9488
    %v9490 = vmul.f32 %v9481, 1.442695
    %v9491 = vpow.pop %v9490
    %v9492 = vmul.f32 %v9482, 1.442695
    %v9493 = vpow.pop %v9492
    %v9494 = vmul.f32 %v9483, 1.442695
    %v9495 = vpow.pop %v9494
    %v9496 = vmul.f32 %v9484, 1.442695
    %v9497 = vpow.pop %v9496
    %v9498 = vmul.f32 %v9485, 1.442695
    %v9499 = vpow.pop %v9498
    %v9500 = vmul.f32 %v9486, 1.442695
    %v9501 = vpow.pop %v9500
    %v9502 = vmul.f32 %v9487, 1.442695
    %v9503 = vpow.pop %v9502
    %v9504 = vsel %vm1655, %v9489, 0.0
    %9505 = vadd.xlane.f32.xlu0 %v9504
    %v9506 = vpop.xlane.xlu0 %9505
    %v9507 = vsel %vm1655, %v9491, 0.0
    %9508 = vadd.xlane.f32.xlu0 %v9507
    %v9509 = vpop.xlane.xlu0 %9508
    %v9510 = vsel %vm1655, %v9493, 0.0
    %9511 = vadd.xlane.f32.xlu0 %v9510
    %v9512 = vpop.xlane.xlu0 %9511
    %v9513 = vsel %vm1655, %v9495, 0.0
    %9514 = vadd.xlane.f32.xlu0 %v9513
    %v9515 = vpop.xlane.xlu0 %9514
    %v9516 = vsel %vm1655, %v9497, 0.0
    %9517 = vadd.xlane.f32.xlu0 %v9516
    %v9518 = vpop.xlane.xlu0 %9517
    %v9519 = vsel %vm1655, %v9499, 0.0
    %9520 = vadd.xlane.f32.xlu0 %v9519
    %v9521 = vpop.xlane.xlu0 %9520
    %v9522 = vsel %vm1655, %v9501, 0.0
    %9523 = vadd.xlane.f32.xlu0 %v9522
    %v9524 = vpop.xlane.xlu0 %9523
    %v9525 = vsel %vm1655, %v9503, 0.0
    %9526 = vadd.xlane.f32.xlu0 %v9525
    %v9527 = vpop.xlane.xlu0 %9526
    %v9528 = vrcp.pop %v9506
    %v9529 = vrcp.pop %v9509
    %v9530 = vrcp.pop %v9512
    %v9531 = vrcp.pop %v9515
    %v9532 = vrcp.pop %v9518
    %v9533 = vrcp.pop %v9521
    %v9534 = vrcp.pop %v9524
    %v9535 = vrcp.pop %v9527
    %v9536 = vmul.f32 %v9489, %v9528
    %v9537 = vmul.f32 %v9491, %v9529
    %v9538 = vmul.f32 %v9493, %v9530
    %v9539 = vmul.f32 %v9495, %v9531
    %v9540 = vmul.f32 %v9497, %v9532
    %v9541 = vmul.f32 %v9499, %v9533
    %v9542 = vmul.f32 %v9501, %v9534
    %v9543 = vmul.f32 %v9503, %v9535
    %v9545 = vsel %vm1655, %v9536, 0
    %9547 = vmatprep.subr.mxu0 0.0
    %9548 = vmatpush1.msra.mxu0 0.0
    %9549 = vmatprep.subr.mxu0 0.0
    %9550 = vmatpush1.msra.mxu0 0.0
    %9551 = vmatprep.subr.mxu0 0.0
    %9552 = vmatpush1.msra.mxu0 0.0
    %9553 = vmatprep.subr.mxu0 0.0
    %9554 = vmatpush1.msra.mxu0 0.0
    %9555 = vmatprep.subr.mxu0 0.0
    %9556 = vmatpush1.msra.mxu0 0.0
    %9557 = vmatprep.subr.mxu0 0.0
    %9558 = vmatpush1.msra.mxu0 0.0
    %9559 = vmatprep.subr.mxu0 0.0
    %9560 = vmatpush1.msra.mxu0 0.0
    %9561 = vmatprep.subr.mxu0 0.0
    %9562 = vmatpush1.msra.mxu0 0.0
    %9563 = vmatprep.subr.mxu0 0.0
    %9564 = vmatpush1.msra.mxu0 0.0
    %9565 = vmatprep.subr.mxu0 0.0
    %9566 = vmatpush1.msra.mxu0 0.0
    %9567 = vmatprep.subr.mxu0 0.0
    %9568 = vmatpush1.msra.mxu0 0.0
    %9569 = vmatprep.subr.mxu0 0.0
    %9570 = vmatpush1.msra.mxu0 0.0
    %9571 = vmatprep.subr.mxu0 0.0
    %9572 = vmatpush1.msra.mxu0 0.0
    %9573 = vmatprep.subr.mxu0 0.0
    %9574 = vmatpush1.msra.mxu0 0.0
    %9575 = vmatprep.subr.mxu0 0.0
    %9576 = vmatpush1.msra.mxu0 0.0
    %9577 = vmatprep.subr.mxu0 0.0
    %9578 = vmatpush1.msra.mxu0 %v8840
    %9579 = vmatprep.subr.mxu0 0.0
    %9580 = vmatpush2.msra.mxu0 0.0
    %9581 = vmatprep.subr.mxu0 0.0
    %9582 = vmatpush2.msra.mxu0 0.0
    %9583 = vmatprep.subr.mxu0 0.0
    %9584 = vmatpush2.msra.mxu0 0.0
    %9585 = vmatprep.subr.mxu0 0.0
    %9586 = vmatpush2.msra.mxu0 0.0
    %9587 = vmatprep.subr.mxu0 0.0
    %9588 = vmatpush2.msra.mxu0 0.0
    %9589 = vmatprep.subr.mxu0 0.0
    %9590 = vmatpush2.msra.mxu0 0.0
    %9591 = vmatprep.subr.mxu0 0.0
    %9592 = vmatpush2.msra.mxu0 0.0
    %9593 = vmatprep.subr.mxu0 0.0
    %9594 = vmatpush2.msra.mxu0 0.0
    %9595 = vmatprep.subr.mxu0 0.0
    %9596 = vmatpush2.msra.mxu0 0.0
    %9597 = vmatprep.subr.mxu0 0.0
    %9598 = vmatpush2.msra.mxu0 0.0
    %9599 = vmatprep.subr.mxu0 0.0
    %9600 = vmatpush2.msra.mxu0 0.0
    %9601 = vmatprep.subr.mxu0 0.0
    %9602 = vmatpush2.msra.mxu0 0.0
    %9603 = vmatprep.subr.mxu0 0.0
    %9604 = vmatpush2.msra.mxu0 0.0
    %9605 = vmatprep.subr.mxu0 0.0
    %9606 = vmatpush2.msra.mxu0 0.0
    %9607 = vmatprep.subr.mxu0 0.0
    %9608 = vmatpush2.msra.mxu0 0.0
    %9609 = vmatprep.subr.mxu0 0.0
    %9610 = vmatpush2.msra.mxu0 0.0
    %9611 = vmatprep.mubr.f32.mxu0 0.0
    %9612 = vmatmul.mubr.f32.gmra.mxu0 %v9545
    %v9613 = vpop.f32.mrf.mxu0
    %v9614 = vadd.f32 0.0, %v9613
    %v9615 = vpop.f32.mrf.mxu0
    %9616 = vdwg.mxu0
    %v9618 = vsel %vm1655, %v9537, 0
    %9620 = vmatprep.subr.mxu0 0.0
    %9621 = vmatpush1.msra.mxu0 0.0
    %9622 = vmatprep.subr.mxu0 0.0
    %9623 = vmatpush1.msra.mxu0 0.0
    %9624 = vmatprep.subr.mxu0 0.0
    %9625 = vmatpush1.msra.mxu0 0.0
    %9626 = vmatprep.subr.mxu0 0.0
    %9627 = vmatpush1.msra.mxu0 0.0
    %9628 = vmatprep.subr.mxu0 0.0
    %9629 = vmatpush1.msra.mxu0 0.0
    %9630 = vmatprep.subr.mxu0 0.0
    %9631 = vmatpush1.msra.mxu0 0.0
    %9632 = vmatprep.subr.mxu0 0.0
    %9633 = vmatpush1.msra.mxu0 0.0
    %9634 = vmatprep.subr.mxu0 0.0
    %9635 = vmatpush1.msra.mxu0 0.0
    %9636 = vmatprep.subr.mxu0 0.0
    %9637 = vmatpush1.msra.mxu0 0.0
    %9638 = vmatprep.subr.mxu0 0.0
    %9639 = vmatpush1.msra.mxu0 0.0
    %9640 = vmatprep.subr.mxu0 0.0
    %9641 = vmatpush1.msra.mxu0 0.0
    %9642 = vmatprep.subr.mxu0 0.0
    %9643 = vmatpush1.msra.mxu0 0.0
    %9644 = vmatprep.subr.mxu0 0.0
    %9645 = vmatpush1.msra.mxu0 0.0
    %9646 = vmatprep.subr.mxu0 0.0
    %9647 = vmatpush1.msra.mxu0 0.0
    %9648 = vmatprep.subr.mxu0 0.0
    %9649 = vmatpush1.msra.mxu0 0.0
    %9650 = vmatprep.subr.mxu0 0.0
    %9651 = vmatpush1.msra.mxu0 %v8841
    %9652 = vmatprep.subr.mxu0 0.0
    %9653 = vmatpush2.msra.mxu0 0.0
    %9654 = vmatprep.subr.mxu0 0.0
    %9655 = vmatpush2.msra.mxu0 0.0
    %9656 = vmatprep.subr.mxu0 0.0
    %9657 = vmatpush2.msra.mxu0 0.0
    %9658 = vmatprep.subr.mxu0 0.0
    %9659 = vmatpush2.msra.mxu0 0.0
    %9660 = vmatprep.subr.mxu0 0.0
    %9661 = vmatpush2.msra.mxu0 0.0
    %9662 = vmatprep.subr.mxu0 0.0
    %9663 = vmatpush2.msra.mxu0 0.0
    %9664 = vmatprep.subr.mxu0 0.0
    %9665 = vmatpush2.msra.mxu0 0.0
    %9666 = vmatprep.subr.mxu0 0.0
    %9667 = vmatpush2.msra.mxu0 0.0
    %9668 = vmatprep.subr.mxu0 0.0
    %9669 = vmatpush2.msra.mxu0 0.0
    %9670 = vmatprep.subr.mxu0 0.0
    %9671 = vmatpush2.msra.mxu0 0.0
    %9672 = vmatprep.subr.mxu0 0.0
    %9673 = vmatpush2.msra.mxu0 0.0
    %9674 = vmatprep.subr.mxu0 0.0
    %9675 = vmatpush2.msra.mxu0 0.0
    %9676 = vmatprep.subr.mxu0 0.0
    %9677 = vmatpush2.msra.mxu0 0.0
    %9678 = vmatprep.subr.mxu0 0.0
    %9679 = vmatpush2.msra.mxu0 0.0
    %9680 = vmatprep.subr.mxu0 0.0
    %9681 = vmatpush2.msra.mxu0 0.0
    %9682 = vmatprep.subr.mxu0 0.0
    %9683 = vmatpush2.msra.mxu0 0.0
    %9684 = vmatprep.mubr.f32.mxu0 0.0
    %9685 = vmatmul.mubr.f32.gmra.mxu0 %v9618
    %v9686 = vpop.f32.mrf.mxu0
    %v9687 = vadd.f32 0.0, %v9686
    %v9688 = vpop.f32.mrf.mxu0
    %9689 = vdwg.mxu0
    %v9691 = vsel %vm1655, %v9538, 0
    %9693 = vmatprep.subr.mxu0 0.0
    %9694 = vmatpush1.msra.mxu0 0.0
    %9695 = vmatprep.subr.mxu0 0.0
    %9696 = vmatpush1.msra.mxu0 0.0
    %9697 = vmatprep.subr.mxu0 0.0
    %9698 = vmatpush1.msra.mxu0 0.0
    %9699 = vmatprep.subr.mxu0 0.0
    %9700 = vmatpush1.msra.mxu0 0.0
    %9701 = vmatprep.subr.mxu0 0.0
    %9702 = vmatpush1.msra.mxu0 0.0
    %9703 = vmatprep.subr.mxu0 0.0
    %9704 = vmatpush1.msra.mxu0 0.0
    %9705 = vmatprep.subr.mxu0 0.0
    %9706 = vmatpush1.msra.mxu0 0.0
    %9707 = vmatprep.subr.mxu0 0.0
    %9708 = vmatpush1.msra.mxu0 0.0
    %9709 = vmatprep.subr.mxu0 0.0
    %9710 = vmatpush1.msra.mxu0 0.0
    %9711 = vmatprep.subr.mxu0 0.0
    %9712 = vmatpush1.msra.mxu0 0.0
    %9713 = vmatprep.subr.mxu0 0.0
    %9714 = vmatpush1.msra.mxu0 0.0
    %9715 = vmatprep.subr.mxu0 0.0
    %9716 = vmatpush1.msra.mxu0 0.0
    %9717 = vmatprep.subr.mxu0 0.0
    %9718 = vmatpush1.msra.mxu0 0.0
    %9719 = vmatprep.subr.mxu0 0.0
    %9720 = vmatpush1.msra.mxu0 0.0
    %9721 = vmatprep.subr.mxu0 0.0
    %9722 = vmatpush1.msra.mxu0 0.0
    %9723 = vmatprep.subr.mxu0 0.0
    %9724 = vmatpush1.msra.mxu0 %v8842
    %9725 = vmatprep.subr.mxu0 0.0
    %9726 = vmatpush2.msra.mxu0 0.0
    %9727 = vmatprep.subr.mxu0 0.0
    %9728 = vmatpush2.msra.mxu0 0.0
    %9729 = vmatprep.subr.mxu0 0.0
    %9730 = vmatpush2.msra.mxu0 0.0
    %9731 = vmatprep.subr.mxu0 0.0
    %9732 = vmatpush2.msra.mxu0 0.0
    %9733 = vmatprep.subr.mxu0 0.0
    %9734 = vmatpush2.msra.mxu0 0.0
    %9735 = vmatprep.subr.mxu0 0.0
    %9736 = vmatpush2.msra.mxu0 0.0
    %9737 = vmatprep.subr.mxu0 0.0
    %9738 = vmatpush2.msra.mxu0 0.0
    %9739 = vmatprep.subr.mxu0 0.0
    %9740 = vmatpush2.msra.mxu0 0.0
    %9741 = vmatprep.subr.mxu0 0.0
    %9742 = vmatpush2.msra.mxu0 0.0
    %9743 = vmatprep.subr.mxu0 0.0
    %9744 = vmatpush2.msra.mxu0 0.0
    %9745 = vmatprep.subr.mxu0 0.0
    %9746 = vmatpush2.msra.mxu0 0.0
    %9747 = vmatprep.subr.mxu0 0.0
    %9748 = vmatpush2.msra.mxu0 0.0
    %9749 = vmatprep.subr.mxu0 0.0
    %9750 = vmatpush2.msra.mxu0 0.0
    %9751 = vmatprep.subr.mxu0 0.0
    %9752 = vmatpush2.msra.mxu0 0.0
    %9753 = vmatprep.subr.mxu0 0.0
    %9754 = vmatpush2.msra.mxu0 0.0
    %9755 = vmatprep.subr.mxu0 0.0
    %9756 = vmatpush2.msra.mxu0 0.0
    %9757 = vmatprep.mubr.f32.mxu0 0.0
    %9758 = vmatmul.mubr.f32.gmra.mxu0 %v9691
    %v9759 = vpop.f32.mrf.mxu0
    %v9760 = vadd.f32 0.0, %v9759
    %v9761 = vpop.f32.mrf.mxu0
    %9762 = vdwg.mxu0
    %v9764 = vsel %vm1655, %v9539, 0
    %9766 = vmatprep.subr.mxu0 0.0
    %9767 = vmatpush1.msra.mxu0 0.0
    %9768 = vmatprep.subr.mxu0 0.0
    %9769 = vmatpush1.msra.mxu0 0.0
    %9770 = vmatprep.subr.mxu0 0.0
    %9771 = vmatpush1.msra.mxu0 0.0
    %9772 = vmatprep.subr.mxu0 0.0
    %9773 = vmatpush1.msra.mxu0 0.0
    %9774 = vmatprep.subr.mxu0 0.0
    %9775 = vmatpush1.msra.mxu0 0.0
    %9776 = vmatprep.subr.mxu0 0.0
    %9777 = vmatpush1.msra.mxu0 0.0
    %9778 = vmatprep.subr.mxu0 0.0
    %9779 = vmatpush1.msra.mxu0 0.0
    %9780 = vmatprep.subr.mxu0 0.0
    %9781 = vmatpush1.msra.mxu0 0.0
    %9782 = vmatprep.subr.mxu0 0.0
    %9783 = vmatpush1.msra.mxu0 0.0
    %9784 = vmatprep.subr.mxu0 0.0
    %9785 = vmatpush1.msra.mxu0 0.0
    %9786 = vmatprep.subr.mxu0 0.0
    %9787 = vmatpush1.msra.mxu0 0.0
    %9788 = vmatprep.subr.mxu0 0.0
    %9789 = vmatpush1.msra.mxu0 0.0
    %9790 = vmatprep.subr.mxu0 0.0
    %9791 = vmatpush1.msra.mxu0 0.0
    %9792 = vmatprep.subr.mxu0 0.0
    %9793 = vmatpush1.msra.mxu0 0.0
    %9794 = vmatprep.subr.mxu0 0.0
    %9795 = vmatpush1.msra.mxu0 0.0
    %9796 = vmatprep.subr.mxu0 0.0
    %9797 = vmatpush1.msra.mxu0 %v8843
    %9798 = vmatprep.subr.mxu0 0.0
    %9799 = vmatpush2.msra.mxu0 0.0
    %9800 = vmatprep.subr.mxu0 0.0
    %9801 = vmatpush2.msra.mxu0 0.0
    %9802 = vmatprep.subr.mxu0 0.0
    %9803 = vmatpush2.msra.mxu0 0.0
    %9804 = vmatprep.subr.mxu0 0.0
    %9805 = vmatpush2.msra.mxu0 0.0
    %9806 = vmatprep.subr.mxu0 0.0
    %9807 = vmatpush2.msra.mxu0 0.0
    %9808 = vmatprep.subr.mxu0 0.0
    %9809 = vmatpush2.msra.mxu0 0.0
    %9810 = vmatprep.subr.mxu0 0.0
    %9811 = vmatpush2.msra.mxu0 0.0
    %9812 = vmatprep.subr.mxu0 0.0
    %9813 = vmatpush2.msra.mxu0 0.0
    %9814 = vmatprep.subr.mxu0 0.0
    %9815 = vmatpush2.msra.mxu0 0.0
    %9816 = vmatprep.subr.mxu0 0.0
    %9817 = vmatpush2.msra.mxu0 0.0
    %9818 = vmatprep.subr.mxu0 0.0
    %9819 = vmatpush2.msra.mxu0 0.0
    %9820 = vmatprep.subr.mxu0 0.0
    %9821 = vmatpush2.msra.mxu0 0.0
    %9822 = vmatprep.subr.mxu0 0.0
    %9823 = vmatpush2.msra.mxu0 0.0
    %9824 = vmatprep.subr.mxu0 0.0
    %9825 = vmatpush2.msra.mxu0 0.0
    %9826 = vmatprep.subr.mxu0 0.0
    %9827 = vmatpush2.msra.mxu0 0.0
    %9828 = vmatprep.subr.mxu0 0.0
    %9829 = vmatpush2.msra.mxu0 0.0
    %9830 = vmatprep.mubr.f32.mxu0 0.0
    %9831 = vmatmul.mubr.f32.gmra.mxu0 %v9764
    %v9832 = vpop.f32.mrf.mxu0
    %v9833 = vadd.f32 0.0, %v9832
    %v9834 = vpop.f32.mrf.mxu0
    %9835 = vdwg.mxu0
    %v9837 = vsel %vm1655, %v9540, 0
    %9839 = vmatprep.subr.mxu0 0.0
    %9840 = vmatpush1.msra.mxu0 0.0
    %9841 = vmatprep.subr.mxu0 0.0
    %9842 = vmatpush1.msra.mxu0 0.0
    %9843 = vmatprep.subr.mxu0 0.0
    %9844 = vmatpush1.msra.mxu0 0.0
    %9845 = vmatprep.subr.mxu0 0.0
    %9846 = vmatpush1.msra.mxu0 0.0
    %9847 = vmatprep.subr.mxu0 0.0
    %9848 = vmatpush1.msra.mxu0 0.0
    %9849 = vmatprep.subr.mxu0 0.0
    %9850 = vmatpush1.msra.mxu0 0.0
    %9851 = vmatprep.subr.mxu0 0.0
    %9852 = vmatpush1.msra.mxu0 0.0
    %9853 = vmatprep.subr.mxu0 0.0
    %9854 = vmatpush1.msra.mxu0 0.0
    %9855 = vmatprep.subr.mxu0 0.0
    %9856 = vmatpush1.msra.mxu0 0.0
    %9857 = vmatprep.subr.mxu0 0.0
    %9858 = vmatpush1.msra.mxu0 0.0
    %9859 = vmatprep.subr.mxu0 0.0
    %9860 = vmatpush1.msra.mxu0 0.0
    %9861 = vmatprep.subr.mxu0 0.0
    %9862 = vmatpush1.msra.mxu0 0.0
    %9863 = vmatprep.subr.mxu0 0.0
    %9864 = vmatpush1.msra.mxu0 0.0
    %9865 = vmatprep.subr.mxu0 0.0
    %9866 = vmatpush1.msra.mxu0 0.0
    %9867 = vmatprep.subr.mxu0 0.0
    %9868 = vmatpush1.msra.mxu0 0.0
    %9869 = vmatprep.subr.mxu0 0.0
    %9870 = vmatpush1.msra.mxu0 %v8844
    %9871 = vmatprep.subr.mxu0 0.0
    %9872 = vmatpush2.msra.mxu0 0.0
    %9873 = vmatprep.subr.mxu0 0.0
    %9874 = vmatpush2.msra.mxu0 0.0
    %9875 = vmatprep.subr.mxu0 0.0
    %9876 = vmatpush2.msra.mxu0 0.0
    %9877 = vmatprep.subr.mxu0 0.0
    %9878 = vmatpush2.msra.mxu0 0.0
    %9879 = vmatprep.subr.mxu0 0.0
    %9880 = vmatpush2.msra.mxu0 0.0
    %9881 = vmatprep.subr.mxu0 0.0
    %9882 = vmatpush2.msra.mxu0 0.0
    %9883 = vmatprep.subr.mxu0 0.0
    %9884 = vmatpush2.msra.mxu0 0.0
    %9885 = vmatprep.subr.mxu0 0.0
    %9886 = vmatpush2.msra.mxu0 0.0
    %9887 = vmatprep.subr.mxu0 0.0
    %9888 = vmatpush2.msra.mxu0 0.0
    %9889 = vmatprep.subr.mxu0 0.0
    %9890 = vmatpush2.msra.mxu0 0.0
    %9891 = vmatprep.subr.mxu0 0.0
    %9892 = vmatpush2.msra.mxu0 0.0
    %9893 = vmatprep.subr.mxu0 0.0
    %9894 = vmatpush2.msra.mxu0 0.0
    %9895 = vmatprep.subr.mxu0 0.0
    %9896 = vmatpush2.msra.mxu0 0.0
    %9897 = vmatprep.subr.mxu0 0.0
    %9898 = vmatpush2.msra.mxu0 0.0
    %9899 = vmatprep.subr.mxu0 0.0
    %9900 = vmatpush2.msra.mxu0 0.0
    %9901 = vmatprep.subr.mxu0 0.0
    %9902 = vmatpush2.msra.mxu0 0.0
    %9903 = vmatprep.mubr.f32.mxu0 0.0
    %9904 = vmatmul.mubr.f32.gmra.mxu0 %v9837
    %v9905 = vpop.f32.mrf.mxu0
    %v9906 = vadd.f32 0.0, %v9905
    %v9907 = vpop.f32.mrf.mxu0
    %9908 = vdwg.mxu0
    %v9910 = vsel %vm1655, %v9541, 0
    %9912 = vmatprep.subr.mxu0 0.0
    %9913 = vmatpush1.msra.mxu0 0.0
    %9914 = vmatprep.subr.mxu0 0.0
    %9915 = vmatpush1.msra.mxu0 0.0
    %9916 = vmatprep.subr.mxu0 0.0
    %9917 = vmatpush1.msra.mxu0 0.0
    %9918 = vmatprep.subr.mxu0 0.0
    %9919 = vmatpush1.msra.mxu0 0.0
    %9920 = vmatprep.subr.mxu0 0.0
    %9921 = vmatpush1.msra.mxu0 0.0
    %9922 = vmatprep.subr.mxu0 0.0
    %9923 = vmatpush1.msra.mxu0 0.0
    %9924 = vmatprep.subr.mxu0 0.0
    %9925 = vmatpush1.msra.mxu0 0.0
    %9926 = vmatprep.subr.mxu0 0.0
    %9927 = vmatpush1.msra.mxu0 0.0
    %9928 = vmatprep.subr.mxu0 0.0
    %9929 = vmatpush1.msra.mxu0 0.0
    %9930 = vmatprep.subr.mxu0 0.0
    %9931 = vmatpush1.msra.mxu0 0.0
    %9932 = vmatprep.subr.mxu0 0.0
    %9933 = vmatpush1.msra.mxu0 0.0
    %9934 = vmatprep.subr.mxu0 0.0
    %9935 = vmatpush1.msra.mxu0 0.0
    %9936 = vmatprep.subr.mxu0 0.0
    %9937 = vmatpush1.msra.mxu0 0.0
    %9938 = vmatprep.subr.mxu0 0.0
    %9939 = vmatpush1.msra.mxu0 0.0
    %9940 = vmatprep.subr.mxu0 0.0
    %9941 = vmatpush1.msra.mxu0 0.0
    %9942 = vmatprep.subr.mxu0 0.0
    %9943 = vmatpush1.msra.mxu0 %v8845
    %9944 = vmatprep.subr.mxu0 0.0
    %9945 = vmatpush2.msra.mxu0 0.0
    %9946 = vmatprep.subr.mxu0 0.0
    %9947 = vmatpush2.msra.mxu0 0.0
    %9948 = vmatprep.subr.mxu0 0.0
    %9949 = vmatpush2.msra.mxu0 0.0
    %9950 = vmatprep.subr.mxu0 0.0
    %9951 = vmatpush2.msra.mxu0 0.0
    %9952 = vmatprep.subr.mxu0 0.0
    %9953 = vmatpush2.msra.mxu0 0.0
    %9954 = vmatprep.subr.mxu0 0.0
    %9955 = vmatpush2.msra.mxu0 0.0
    %9956 = vmatprep.subr.mxu0 0.0
    %9957 = vmatpush2.msra.mxu0 0.0
    %9958 = vmatprep.subr.mxu0 0.0
    %9959 = vmatpush2.msra.mxu0 0.0
    %9960 = vmatprep.subr.mxu0 0.0
    %9961 = vmatpush2.msra.mxu0 0.0
    %9962 = vmatprep.subr.mxu0 0.0
    %9963 = vmatpush2.msra.mxu0 0.0
    %9964 = vmatprep.subr.mxu0 0.0
    %9965 = vmatpush2.msra.mxu0 0.0
    %9966 = vmatprep.subr.mxu0 0.0
    %9967 = vmatpush2.msra.mxu0 0.0
    %9968 = vmatprep.subr.mxu0 0.0
    %9969 = vmatpush2.msra.mxu0 0.0
    %9970 = vmatprep.subr.mxu0 0.0
    %9971 = vmatpush2.msra.mxu0 0.0
    %9972 = vmatprep.subr.mxu0 0.0
    %9973 = vmatpush2.msra.mxu0 0.0
    %9974 = vmatprep.subr.mxu0 0.0
    %9975 = vmatpush2.msra.mxu0 0.0
    %9976 = vmatprep.mubr.f32.mxu0 0.0
    %9977 = vmatmul.mubr.f32.gmra.mxu0 %v9910
    %v9978 = vpop.f32.mrf.mxu0
    %v9979 = vadd.f32 0.0, %v9978
    %v9980 = vpop.f32.mrf.mxu0
    %9981 = vdwg.mxu0
    %v9983 = vsel %vm1655, %v9542, 0
    %9985 = vmatprep.subr.mxu0 0.0
    %9986 = vmatpush1.msra.mxu0 0.0
    %9987 = vmatprep.subr.mxu0 0.0
    %9988 = vmatpush1.msra.mxu0 0.0
    %9989 = vmatprep.subr.mxu0 0.0
    %9990 = vmatpush1.msra.mxu0 0.0
    %9991 = vmatprep.subr.mxu0 0.0
    %9992 = vmatpush1.msra.mxu0 0.0
    %9993 = vmatprep.subr.mxu0 0.0
    %9994 = vmatpush1.msra.mxu0 0.0
    %9995 = vmatprep.subr.mxu0 0.0
    %9996 = vmatpush1.msra.mxu0 0.0
    %9997 = vmatprep.subr.mxu0 0.0
    %9998 = vmatpush1.msra.mxu0 0.0
    %9999 = vmatprep.subr.mxu0 0.0
    %10000 = vmatpush1.msra.mxu0 0.0
    %10001 = vmatprep.subr.mxu0 0.0
    %10002 = vmatpush1.msra.mxu0 0.0
    %10003 = vmatprep.subr.mxu0 0.0
    %10004 = vmatpush1.msra.mxu0 0.0
    %10005 = vmatprep.subr.mxu0 0.0
    %10006 = vmatpush1.msra.mxu0 0.0
    %10007 = vmatprep.subr.mxu0 0.0
    %10008 = vmatpush1.msra.mxu0 0.0
    %10009 = vmatprep.subr.mxu0 0.0
    %10010 = vmatpush1.msra.mxu0 0.0
    %10011 = vmatprep.subr.mxu0 0.0
    %10012 = vmatpush1.msra.mxu0 0.0
    %10013 = vmatprep.subr.mxu0 0.0
    %10014 = vmatpush1.msra.mxu0 0.0
    %10015 = vmatprep.subr.mxu0 0.0
    %10016 = vmatpush1.msra.mxu0 %v8846
    %10017 = vmatprep.subr.mxu0 0.0
    %10018 = vmatpush2.msra.mxu0 0.0
    %10019 = vmatprep.subr.mxu0 0.0
    %10020 = vmatpush2.msra.mxu0 0.0
    %10021 = vmatprep.subr.mxu0 0.0
    %10022 = vmatpush2.msra.mxu0 0.0
    %10023 = vmatprep.subr.mxu0 0.0
    %10024 = vmatpush2.msra.mxu0 0.0
    %10025 = vmatprep.subr.mxu0 0.0
    %10026 = vmatpush2.msra.mxu0 0.0
    %10027 = vmatprep.subr.mxu0 0.0
    %10028 = vmatpush2.msra.mxu0 0.0
    %10029 = vmatprep.subr.mxu0 0.0
    %10030 = vmatpush2.msra.mxu0 0.0
    %10031 = vmatprep.subr.mxu0 0.0
    %10032 = vmatpush2.msra.mxu0 0.0
    %10033 = vmatprep.subr.mxu0 0.0
    %10034 = vmatpush2.msra.mxu0 0.0
    %10035 = vmatprep.subr.mxu0 0.0
    %10036 = vmatpush2.msra.mxu0 0.0
    %10037 = vmatprep.subr.mxu0 0.0
    %10038 = vmatpush2.msra.mxu0 0.0
    %10039 = vmatprep.subr.mxu0 0.0
    %10040 = vmatpush2.msra.mxu0 0.0
    %10041 = vmatprep.subr.mxu0 0.0
    %10042 = vmatpush2.msra.mxu0 0.0
    %10043 = vmatprep.subr.mxu0 0.0
    %10044 = vmatpush2.msra.mxu0 0.0
    %10045 = vmatprep.subr.mxu0 0.0
    %10046 = vmatpush2.msra.mxu0 0.0
    %10047 = vmatprep.subr.mxu0 0.0
    %10048 = vmatpush2.msra.mxu0 0.0
    %10049 = vmatprep.mubr.f32.mxu0 0.0
    %10050 = vmatmul.mubr.f32.gmra.mxu0 %v9983
    %v10051 = vpop.f32.mrf.mxu0
    %v10052 = vadd.f32 0.0, %v10051
    %v10053 = vpop.f32.mrf.mxu0
    %10054 = vdwg.mxu0
    %v10056 = vsel %vm1655, %v9543, 0
    %10058 = vmatprep.subr.mxu0 0.0
    %10059 = vmatpush1.msra.mxu0 0.0
    %10060 = vmatprep.subr.mxu0 0.0
    %10061 = vmatpush1.msra.mxu0 0.0
    %10062 = vmatprep.subr.mxu0 0.0
    %10063 = vmatpush1.msra.mxu0 0.0
    %10064 = vmatprep.subr.mxu0 0.0
    %10065 = vmatpush1.msra.mxu0 0.0
    %10066 = vmatprep.subr.mxu0 0.0
    %10067 = vmatpush1.msra.mxu0 0.0
    %10068 = vmatprep.subr.mxu0 0.0
    %10069 = vmatpush1.msra.mxu0 0.0
    %10070 = vmatprep.subr.mxu0 0.0
    %10071 = vmatpush1.msra.mxu0 0.0
    %10072 = vmatprep.subr.mxu0 0.0
    %10073 = vmatpush1.msra.mxu0 0.0
    %10074 = vmatprep.subr.mxu0 0.0
    %10075 = vmatpush1.msra.mxu0 0.0
    %10076 = vmatprep.subr.mxu0 0.0
    %10077 = vmatpush1.msra.mxu0 0.0
    %10078 = vmatprep.subr.mxu0 0.0
    %10079 = vmatpush1.msra.mxu0 0.0
    %10080 = vmatprep.subr.mxu0 0.0
    %10081 = vmatpush1.msra.mxu0 0.0
    %10082 = vmatprep.subr.mxu0 0.0
    %10083 = vmatpush1.msra.mxu0 0.0
    %10084 = vmatprep.subr.mxu0 0.0
    %10085 = vmatpush1.msra.mxu0 0.0
    %10086 = vmatprep.subr.mxu0 0.0
    %10087 = vmatpush1.msra.mxu0 0.0
    %10088 = vmatprep.subr.mxu0 0.0
    %10089 = vmatpush1.msra.mxu0 %v8847
    %10090 = vmatprep.subr.mxu0 0.0
    %10091 = vmatpush2.msra.mxu0 0.0
    %10092 = vmatprep.subr.mxu0 0.0
    %10093 = vmatpush2.msra.mxu0 0.0
    %10094 = vmatprep.subr.mxu0 0.0
    %10095 = vmatpush2.msra.mxu0 0.0
    %10096 = vmatprep.subr.mxu0 0.0
    %10097 = vmatpush2.msra.mxu0 0.0
    %10098 = vmatprep.subr.mxu0 0.0
    %10099 = vmatpush2.msra.mxu0 0.0
    %10100 = vmatprep.subr.mxu0 0.0
    %10101 = vmatpush2.msra.mxu0 0.0
    %10102 = vmatprep.subr.mxu0 0.0
    %10103 = vmatpush2.msra.mxu0 0.0
    %10104 = vmatprep.subr.mxu0 0.0
    %10105 = vmatpush2.msra.mxu0 0.0
    %10106 = vmatprep.subr.mxu0 0.0
    %10107 = vmatpush2.msra.mxu0 0.0
    %10108 = vmatprep.subr.mxu0 0.0
    %10109 = vmatpush2.msra.mxu0 0.0
    %10110 = vmatprep.subr.mxu0 0.0
    %10111 = vmatpush2.msra.mxu0 0.0
    %10112 = vmatprep.subr.mxu0 0.0
    %10113 = vmatpush2.msra.mxu0 0.0
    %10114 = vmatprep.subr.mxu0 0.0
    %10115 = vmatpush2.msra.mxu0 0.0
    %10116 = vmatprep.subr.mxu0 0.0
    %10117 = vmatpush2.msra.mxu0 0.0
    %10118 = vmatprep.subr.mxu0 0.0
    %10119 = vmatpush2.msra.mxu0 0.0
    %10120 = vmatprep.subr.mxu0 0.0
    %10121 = vmatpush2.msra.mxu0 0.0
    %10122 = vmatprep.mubr.f32.mxu0 0.0
    %10123 = vmatmul.mubr.f32.gmra.mxu0 %v10056
    %v10124 = vpop.f32.mrf.mxu0
    %v10125 = vadd.f32 0.0, %v10124
    %v10126 = vpop.f32.mrf.mxu0
    %10127 = vdwg.mxu0
    %v10128 = vcombine.low %v9614, %v9760
    %v10129 = vcombine.high %v9614, %v9760
    %v10131 = vunpack.c.l.s4 1983009808
    %v10132 = vunpack.c.0.s8 %v10131
    %v10133 = vlaneseq
    %v10134 = vshrl.u32 %v10133, 7
    %v10135 = vsub.s32 %v10132, %v10134
    %v10136 = vrot.slane %v10128, %v10135
    %v10138 = vunpack.c.l.s4 1983009808
    %v10139 = vunpack.c.0.s8 %v10138
    %v10140 = vlaneseq
    %v10141 = vshrl.u32 %v10140, 7
    %v10142 = vsub.s32 %v10139, %v10141
    %v10143 = vrot.slane %v10129, %v10142
    %v10144 = vcombine.low %v9687, %v9833
    %v10145 = vcombine.high %v9687, %v9833
    %v10147 = vunpack.c.l.s4 1983009808
    %v10148 = vunpack.c.0.s8 %v10147
    %v10149 = vlaneseq
    %v10150 = vshrl.u32 %v10149, 7
    %v10151 = vsub.s32 %v10148, %v10150
    %v10152 = vrot.slane %v10144, %v10151
    %v10154 = vunpack.c.l.s4 1983009808
    %v10155 = vunpack.c.0.s8 %v10154
    %v10156 = vlaneseq
    %v10157 = vshrl.u32 %v10156, 7
    %v10158 = vsub.s32 %v10155, %v10157
    %v10159 = vrot.slane %v10145, %v10158
    %v10160 = vcombine.low %v9906, %v10052
    %v10161 = vcombine.high %v9906, %v10052
    %v10163 = vunpack.c.l.s4 1983009808
    %v10164 = vunpack.c.0.s8 %v10163
    %v10165 = vlaneseq
    %v10166 = vshrl.u32 %v10165, 7
    %v10167 = vsub.s32 %v10164, %v10166
    %v10168 = vrot.slane %v10160, %v10167
    %v10170 = vunpack.c.l.s4 1983009808
    %v10171 = vunpack.c.0.s8 %v10170
    %v10172 = vlaneseq
    %v10173 = vshrl.u32 %v10172, 7
    %v10174 = vsub.s32 %v10171, %v10173
    %v10175 = vrot.slane %v10161, %v10174
    %v10176 = vcombine.low %v9979, %v10125
    %v10177 = vcombine.high %v9979, %v10125
    %v10179 = vunpack.c.l.s4 1983009808
    %v10180 = vunpack.c.0.s8 %v10179
    %v10181 = vlaneseq
    %v10182 = vshrl.u32 %v10181, 7
    %v10183 = vsub.s32 %v10180, %v10182
    %v10184 = vrot.slane %v10176, %v10183
    %v10186 = vunpack.c.l.s4 1983009808
    %v10187 = vunpack.c.0.s8 %v10186
    %v10188 = vlaneseq
    %v10189 = vshrl.u32 %v10188, 7
    %v10190 = vsub.s32 %v10187, %v10189
    %v10191 = vrot.slane %v10177, %v10190
    %v10192 = vcombine.low %v10136, %v10152
    %v10193 = vcombine.high %v10136, %v10152
    %v10195 = vunpack.c.l.s4 1934713408
    %v10196 = vunpack.c.0.s8 %v10195
    %v10197 = vlaneseq
    %v10198 = vshrl.u32 %v10197, 7
    %v10199 = vsub.s32 %v10196, %v10198
    %v10200 = vrot.slane %v10192, %v10199
    %v10202 = vunpack.c.l.s4 1934713408
    %v10203 = vunpack.c.0.s8 %v10202
    %v10204 = vlaneseq
    %v10205 = vshrl.u32 %v10204, 7
    %v10206 = vsub.s32 %v10203, %v10205
    %v10207 = vrot.slane %v10193, %v10206
    %v10208 = vcombine.low %v10143, %v10159
    %v10209 = vcombine.high %v10143, %v10159
    %v10211 = vunpack.c.l.s4 1934713408
    %v10212 = vunpack.c.0.s8 %v10211
    %v10213 = vlaneseq
    %v10214 = vshrl.u32 %v10213, 7
    %v10215 = vsub.s32 %v10212, %v10214
    %v10216 = vrot.slane %v10208, %v10215
    %v10218 = vunpack.c.l.s4 1934713408
    %v10219 = vunpack.c.0.s8 %v10218
    %v10220 = vlaneseq
    %v10221 = vshrl.u32 %v10220, 7
    %v10222 = vsub.s32 %v10219, %v10221
    %v10223 = vrot.slane %v10209, %v10222
    %v10224 = vcombine.low %v10168, %v10184
    %v10225 = vcombine.high %v10168, %v10184
    %v10227 = vunpack.c.l.s4 1934713408
    %v10228 = vunpack.c.0.s8 %v10227
    %v10229 = vlaneseq
    %v10230 = vshrl.u32 %v10229, 7
    %v10231 = vsub.s32 %v10228, %v10230
    %v10232 = vrot.slane %v10224, %v10231
    %v10234 = vunpack.c.l.s4 1934713408
    %v10235 = vunpack.c.0.s8 %v10234
    %v10236 = vlaneseq
    %v10237 = vshrl.u32 %v10236, 7
    %v10238 = vsub.s32 %v10235, %v10237
    %v10239 = vrot.slane %v10225, %v10238
    %v10240 = vcombine.low %v10175, %v10191
    %v10241 = vcombine.high %v10175, %v10191
    %v10243 = vunpack.c.l.s4 1934713408
    %v10244 = vunpack.c.0.s8 %v10243
    %v10245 = vlaneseq
    %v10246 = vshrl.u32 %v10245, 7
    %v10247 = vsub.s32 %v10244, %v10246
    %v10248 = vrot.slane %v10240, %v10247
    %v10250 = vunpack.c.l.s4 1934713408
    %v10251 = vunpack.c.0.s8 %v10250
    %v10252 = vlaneseq
    %v10253 = vshrl.u32 %v10252, 7
    %v10254 = vsub.s32 %v10251, %v10253
    %v10255 = vrot.slane %v10241, %v10254
    %v10256 = vcombine.low %v10200, %v10232
    %v10257 = vcombine.high %v10200, %v10232
    %v10258 = vcombine.low %v10207, %v10239
    %v10259 = vcombine.high %v10207, %v10239
    %v10260 = vcombine.low %v10216, %v10248
    %v10261 = vcombine.high %v10216, %v10248
    %v10262 = vcombine.low %v10223, %v10255
    %v10263 = vcombine.high %v10223, %v10255
    %v10264 = vcombine.low %v10256, %v10258
    %v10265 = vcombine.high %v10256, %v10258
    %v10267 = vunpack.c.l.s4 1983009808
    %v10268 = vunpack.c.0.s8 %v10267
    %v10269 = vlaneseq
    %v10270 = vshrl.u32 %v10269, 7
    %v10271 = vsub.s32 %v10268, %v10270
    %v10272 = vrot.slane %v10264, %v10271
    %v10274 = vunpack.c.l.s4 1983009808
    %v10275 = vunpack.c.0.s8 %v10274
    %v10276 = vlaneseq
    %v10277 = vshrl.u32 %v10276, 7
    %v10278 = vsub.s32 %v10275, %v10277
    %v10279 = vrot.slane %v10265, %v10278
    %v10280 = vcombine.low %v10257, %v10259
    %v10281 = vcombine.high %v10257, %v10259
    %v10283 = vunpack.c.l.s4 1983009808
    %v10284 = vunpack.c.0.s8 %v10283
    %v10285 = vlaneseq
    %v10286 = vshrl.u32 %v10285, 7
    %v10287 = vsub.s32 %v10284, %v10286
    %v10288 = vrot.slane %v10280, %v10287
    %v10290 = vunpack.c.l.s4 1983009808
    %v10291 = vunpack.c.0.s8 %v10290
    %v10292 = vlaneseq
    %v10293 = vshrl.u32 %v10292, 7
    %v10294 = vsub.s32 %v10291, %v10293
    %v10295 = vrot.slane %v10281, %v10294
    %v10296 = vcombine.low %v10260, %v10262
    %v10297 = vcombine.high %v10260, %v10262
    %v10299 = vunpack.c.l.s4 1983009808
    %v10300 = vunpack.c.0.s8 %v10299
    %v10301 = vlaneseq
    %v10302 = vshrl.u32 %v10301, 7
    %v10303 = vsub.s32 %v10300, %v10302
    %v10304 = vrot.slane %v10296, %v10303
    %v10306 = vunpack.c.l.s4 1983009808
    %v10307 = vunpack.c.0.s8 %v10306
    %v10308 = vlaneseq
    %v10309 = vshrl.u32 %v10308, 7
    %v10310 = vsub.s32 %v10307, %v10309
    %v10311 = vrot.slane %v10297, %v10310
    %v10312 = vcombine.low %v10261, %v10263
    %v10313 = vcombine.high %v10261, %v10263
    %v10315 = vunpack.c.l.s4 1983009808
    %v10316 = vunpack.c.0.s8 %v10315
    %v10317 = vlaneseq
    %v10318 = vshrl.u32 %v10317, 7
    %v10319 = vsub.s32 %v10316, %v10318
    %v10320 = vrot.slane %v10312, %v10319
    %v10322 = vunpack.c.l.s4 1983009808
    %v10323 = vunpack.c.0.s8 %v10322
    %v10324 = vlaneseq
    %v10325 = vshrl.u32 %v10324, 7
    %v10326 = vsub.s32 %v10323, %v10325
    %v10327 = vrot.slane %v10313, %v10326
    %v10328 = vcombine.low %v10272, %v10288
    %v10329 = vcombine.high %v10272, %v10288
    %v10331 = vunpack.c.l.s4 1934713408
    %v10332 = vunpack.c.0.s8 %v10331
    %v10333 = vlaneseq
    %v10334 = vshrl.u32 %v10333, 7
    %v10335 = vsub.s32 %v10332, %v10334
    %v10336 = vrot.slane %v10328, %v10335
    %v10338 = vunpack.c.l.s4 1934713408
    %v10339 = vunpack.c.0.s8 %v10338
    %v10340 = vlaneseq
    %v10341 = vshrl.u32 %v10340, 7
    %v10342 = vsub.s32 %v10339, %v10341
    %v10343 = vrot.slane %v10329, %v10342
    %v10344 = vcombine.low %v10279, %v10295
    %v10345 = vcombine.high %v10279, %v10295
    %v10347 = vunpack.c.l.s4 1934713408
    %v10348 = vunpack.c.0.s8 %v10347
    %v10349 = vlaneseq
    %v10350 = vshrl.u32 %v10349, 7
    %v10351 = vsub.s32 %v10348, %v10350
    %v10352 = vrot.slane %v10344, %v10351
    %v10354 = vunpack.c.l.s4 1934713408
    %v10355 = vunpack.c.0.s8 %v10354
    %v10356 = vlaneseq
    %v10357 = vshrl.u32 %v10356, 7
    %v10358 = vsub.s32 %v10355, %v10357
    %v10359 = vrot.slane %v10345, %v10358
    %v10360 = vcombine.low %v10304, %v10320
    %v10361 = vcombine.high %v10304, %v10320
    %v10363 = vunpack.c.l.s4 1934713408
    %v10364 = vunpack.c.0.s8 %v10363
    %v10365 = vlaneseq
    %v10366 = vshrl.u32 %v10365, 7
    %v10367 = vsub.s32 %v10364, %v10366
    %v10368 = vrot.slane %v10360, %v10367
    %v10370 = vunpack.c.l.s4 1934713408
    %v10371 = vunpack.c.0.s8 %v10370
    %v10372 = vlaneseq
    %v10373 = vshrl.u32 %v10372, 7
    %v10374 = vsub.s32 %v10371, %v10373
    %v10375 = vrot.slane %v10361, %v10374
    %v10376 = vcombine.low %v10311, %v10327
    %v10377 = vcombine.high %v10311, %v10327
    %v10379 = vunpack.c.l.s4 1934713408
    %v10380 = vunpack.c.0.s8 %v10379
    %v10381 = vlaneseq
    %v10382 = vshrl.u32 %v10381, 7
    %v10383 = vsub.s32 %v10380, %v10382
    %v10384 = vrot.slane %v10376, %v10383
    %v10386 = vunpack.c.l.s4 1934713408
    %v10387 = vunpack.c.0.s8 %v10386
    %v10388 = vlaneseq
    %v10389 = vshrl.u32 %v10388, 7
    %v10390 = vsub.s32 %v10387, %v10389
    %v10391 = vrot.slane %v10377, %v10390
    %v10392 = vcombine.low %v10336, %v10368
    %v10393 = vcombine.high %v10336, %v10368
    %v10394 = vcombine.low %v10343, %v10375
    %v10395 = vcombine.high %v10343, %v10375
    %v10396 = vcombine.low %v10352, %v10384
    %v10397 = vcombine.high %v10352, %v10384
    %v10398 = vcombine.low %v10359, %v10391
    %v10399 = vcombine.high %v10359, %v10391
    %10401 = vrot.lane.b32.xlu0 %v10393, 4
    %v10402 = vpop.permute.xlu0 %10401
    %10405 = vrot.lane.b32.xlu0 %v10394, 8
    %v10406 = vpop.permute.xlu0 %10405
    %10409 = vrot.lane.b32.xlu0 %v10395, 12
    %v10410 = vpop.permute.xlu0 %10409
    %10413 = vrot.lane.b32.xlu0 %v10396, 16
    %v10414 = vpop.permute.xlu0 %10413
    %10417 = vrot.lane.b32.xlu0 %v10397, 20
    %v10418 = vpop.permute.xlu0 %10417
    %10421 = vrot.lane.b32.xlu0 %v10398, 24
    %v10422 = vpop.permute.xlu0 %10421
    %10425 = vrot.lane.b32.xlu0 %v10399, 28
    %v10426 = vpop.permute.xlu0 %10425
    %v10428 = vsel %vm1046, %v10392, %v10402
    %v10429 = vsel %vm1655, %v10428, %v10406
    %v10430 = vsel %vm2630, %v10429, %v10410
    %v10431 = vsel %vm2632, %v10430, %v10414
    %v10432 = vsel %vm2634, %v10431, %v10418
    %v10433 = vsel %vm2636, %v10432, %v10422
    %v10434 = vsel %vm2638, %v10433, %v10426
    %v10435 = vld [vmem:[%s2 + $0x8] sm:$0xff]
    %v10436 = vld [vmem:[%s2 + $0x20] sm:$0xff]
    %v10437 = vld [vmem:[%s2 + $0x38] sm:$0xff]
    %v10438 = vld [vmem:[%s2 + $0x50] sm:$0xff]
    %v10439 = vld [vmem:[%s4 + $0xa] sm:$0x1]
    %v10440 = vlaneseq
    %v10441 = vshrl.u32 %v10440, 7
    %v10442 = vsub.s32 0, %v10441
    %v10443 = vrot.slane %v10439, %v10442
    %10448 = vrot.lane.b32.xlu0 %v10435, 32
    %v10449 = vpop.permute.xlu0 %10448
    %10450 = vrot.lane.b32.xlu0 %v10436, 32
    %v10451 = vpop.permute.xlu0 %10450
    %10452 = vrot.lane.b32.xlu0 %v10437, 32
    %v10453 = vpop.permute.xlu0 %10452
    %10454 = vrot.lane.b32.xlu0 %v10438, 32
    %v10455 = vpop.permute.xlu0 %10454
    %v10461 = vsel %vm30, %v7963, 0
    %v10464 = vsel %vm30, %v10434, 0
    %10466 = vmatprep.subr.mxu0 0.0
    %10467 = vmatpush1.msra.mxu0 0.0
    %10468 = vmatprep.subr.mxu0 0.0
    %10469 = vmatpush1.msra.mxu0 0.0
    %10470 = vmatprep.subr.mxu0 0.0
    %10471 = vmatpush1.msra.mxu0 0.0
    %10472 = vmatprep.subr.mxu0 0.0
    %10473 = vmatpush1.msra.mxu0 0.0
    %10474 = vmatprep.subr.mxu0 0.0
    %10475 = vmatpush1.msra.mxu0 0.0
    %10476 = vmatprep.subr.mxu0 0.0
    %10477 = vmatpush1.msra.mxu0 0.0
    %10478 = vmatprep.subr.mxu0 0.0
    %10479 = vmatpush1.msra.mxu0 0.0
    %10480 = vmatprep.subr.mxu0 0.0
    %10481 = vmatpush1.msra.mxu0 0.0
    %10482 = vmatprep.subr.mxu0 0.0
    %10483 = vmatpush1.msra.mxu0 0.0
    %10484 = vmatprep.subr.mxu0 0.0
    %10485 = vmatpush1.msra.mxu0 0.0
    %10486 = vmatprep.subr.mxu0 0.0
    %10487 = vmatpush1.msra.mxu0 0.0
    %10488 = vmatprep.subr.mxu0 0.0
    %10489 = vmatpush1.msra.mxu0 0.0
    %10490 = vmatprep.subr.mxu0 0.0
    %10491 = vmatpush1.msra.mxu0 %v10455
    %10492 = vmatprep.subr.mxu0 0.0
    %10493 = vmatpush1.msra.mxu0 %v10453
    %10494 = vmatprep.subr.mxu0 0.0
    %10495 = vmatpush1.msra.mxu0 %v10451
    %10496 = vmatprep.subr.mxu0 0.0
    %10497 = vmatpush1.msra.mxu0 %v10449
    %10498 = vmatprep.subr.mxu0 0.0
    %10499 = vmatpush2.msra.mxu0 0.0
    %10500 = vmatprep.subr.mxu0 0.0
    %10501 = vmatpush2.msra.mxu0 0.0
    %10502 = vmatprep.subr.mxu0 0.0
    %10503 = vmatpush2.msra.mxu0 0.0
    %10504 = vmatprep.subr.mxu0 0.0
    %10505 = vmatpush2.msra.mxu0 0.0
    %10506 = vmatprep.subr.mxu0 0.0
    %10507 = vmatpush2.msra.mxu0 0.0
    %10508 = vmatprep.subr.mxu0 0.0
    %10509 = vmatpush2.msra.mxu0 0.0
    %10510 = vmatprep.subr.mxu0 0.0
    %10511 = vmatpush2.msra.mxu0 0.0
    %10512 = vmatprep.subr.mxu0 0.0
    %10513 = vmatpush2.msra.mxu0 0.0
    %10514 = vmatprep.subr.mxu0 0.0
    %10515 = vmatpush2.msra.mxu0 0.0
    %10516 = vmatprep.subr.mxu0 0.0
    %10517 = vmatpush2.msra.mxu0 0.0
    %10518 = vmatprep.subr.mxu0 0.0
    %10519 = vmatpush2.msra.mxu0 0.0
    %10520 = vmatprep.subr.mxu0 0.0
    %10521 = vmatpush2.msra.mxu0 0.0
    %10522 = vmatprep.subr.mxu0 0.0
    %10523 = vmatpush2.msra.mxu0 0.0
    %10524 = vmatprep.subr.mxu0 0.0
    %10525 = vmatpush2.msra.mxu0 0.0
    %10526 = vmatprep.subr.mxu0 0.0
    %10527 = vmatpush2.msra.mxu0 0.0
    %10528 = vmatprep.subr.mxu0 0.0
    %10529 = vmatpush2.msra.mxu0 0.0
    %10530 = vmatprep.mubr.f32.mxu0 0.0
    %10531 = vmatmul.mubr.f32.gmra.mxu0 %v10461
    %v10532 = vpop.f32.mrf.mxu0
    %v10533 = vadd.f32 %v10443, %v10532
    %v10534 = vpop.f32.mrf.mxu0
    %10535 = vmatprep.mubr.f32.mxu0 0.0
    %10536 = vmatmul.mubr.f32.gmra.mxu0 %v10464
    %v10537 = vpop.f32.mrf.mxu0
    %v10538 = vadd.f32 %v10443, %v10537
    %v10539 = vpop.f32.mrf.mxu0
    %10540 = vdwg.mxu0
    %v10541 = vadd.f32 %v10533, %v24
    %v10542 = vadd.f32 %v10538, %v25
    %v10543 = vld [vmem:[%s2 + $0x10] sm:$0xff]
    %v10544 = vld [vmem:[%s2 + $0x28] sm:$0xff]
    %v10545 = vld [vmem:[%s2 + $0x40] sm:$0xff]
    %v10546 = vld [vmem:[%s2 + $0x58] sm:$0xff]
    %v10547 = vld [vmem:[%s4 + $0xb] sm:$0x1]
    %v10548 = vlaneseq
    %v10549 = vshrl.u32 %v10548, 7
    %v10550 = vsub.s32 0, %v10549
    %v10551 = vrot.slane %v10547, %v10550
    %v10553 = vsel %vm30, %v10541, 0
    %v10556 = vsel %vm30, %v10542, 0
    %10558 = vmatprep.subr.mxu0 0.0
    %10559 = vmatpush1.msra.mxu0 0.0
    %10560 = vmatprep.subr.mxu0 0.0
    %10561 = vmatpush1.msra.mxu0 0.0
    %10562 = vmatprep.subr.mxu0 0.0
    %10563 = vmatpush1.msra.mxu0 0.0
    %10564 = vmatprep.subr.mxu0 0.0
    %10565 = vmatpush1.msra.mxu0 0.0
    %10566 = vmatprep.subr.mxu0 0.0
    %10567 = vmatpush1.msra.mxu0 0.0
    %10568 = vmatprep.subr.mxu0 0.0
    %10569 = vmatpush1.msra.mxu0 0.0
    %10570 = vmatprep.subr.mxu0 0.0
    %10571 = vmatpush1.msra.mxu0 0.0
    %10572 = vmatprep.subr.mxu0 0.0
    %10573 = vmatpush1.msra.mxu0 0.0
    %10574 = vmatprep.subr.mxu0 0.0
    %10575 = vmatpush1.msra.mxu0 0.0
    %10576 = vmatprep.subr.mxu0 0.0
    %10577 = vmatpush1.msra.mxu0 0.0
    %10578 = vmatprep.subr.mxu0 0.0
    %10579 = vmatpush1.msra.mxu0 0.0
    %10580 = vmatprep.subr.mxu0 0.0
    %10581 = vmatpush1.msra.mxu0 0.0
    %10582 = vmatprep.subr.mxu0 0.0
    %10583 = vmatpush1.msra.mxu0 %v10546
    %10584 = vmatprep.subr.mxu0 0.0
    %10585 = vmatpush1.msra.mxu0 %v10545
    %10586 = vmatprep.subr.mxu0 0.0
    %10587 = vmatpush1.msra.mxu0 %v10544
    %10588 = vmatprep.subr.mxu0 0.0
    %10589 = vmatpush1.msra.mxu0 %v10543
    %10590 = vmatprep.subr.mxu0 0.0
    %10591 = vmatpush2.msra.mxu0 0.0
    %10592 = vmatprep.subr.mxu0 0.0
    %10593 = vmatpush2.msra.mxu0 0.0
    %10594 = vmatprep.subr.mxu0 0.0
    %10595 = vmatpush2.msra.mxu0 0.0
    %10596 = vmatprep.subr.mxu0 0.0
    %10597 = vmatpush2.msra.mxu0 0.0
    %10598 = vmatprep.subr.mxu0 0.0
    %10599 = vmatpush2.msra.mxu0 0.0
    %10600 = vmatprep.subr.mxu0 0.0
    %10601 = vmatpush2.msra.mxu0 0.0
    %10602 = vmatprep.subr.mxu0 0.0
    %10603 = vmatpush2.msra.mxu0 0.0
    %10604 = vmatprep.subr.mxu0 0.0
    %10605 = vmatpush2.msra.mxu0 0.0
    %10606 = vmatprep.subr.mxu0 0.0
    %10607 = vmatpush2.msra.mxu0 0.0
    %10608 = vmatprep.subr.mxu0 0.0
    %10609 = vmatpush2.msra.mxu0 0.0
    %10610 = vmatprep.subr.mxu0 0.0
    %10611 = vmatpush2.msra.mxu0 0.0
    %10612 = vmatprep.subr.mxu0 0.0
    %10613 = vmatpush2.msra.mxu0 0.0
    %10614 = vmatprep.subr.mxu0 0.0
    %10615 = vmatpush2.msra.mxu0 0.0
    %10616 = vmatprep.subr.mxu0 0.0
    %10617 = vmatpush2.msra.mxu0 0.0
    %10618 = vmatprep.subr.mxu0 0.0
    %10619 = vmatpush2.msra.mxu0 0.0
    %10620 = vmatprep.subr.mxu0 0.0
    %10621 = vmatpush2.msra.mxu0 0.0
    %10622 = vmatprep.mubr.f32.mxu0 0.0
    %10623 = vmatmul.mubr.f32.gmra.mxu0 %v10553
    %v10624 = vpop.f32.mrf.mxu0
    %v10625 = vadd.f32 %v10551, %v10624
    %v10626 = vpop.f32.mrf.mxu0
    %10627 = vmatprep.mubr.f32.mxu0 0.0
    %10628 = vmatmul.mubr.f32.gmra.mxu0 %v10556
    %v10629 = vpop.f32.mrf.mxu0
    %v10630 = vadd.f32 %v10551, %v10629
    %v10631 = vpop.f32.mrf.mxu0
    %10632 = vdwg.mxu0
    %v10633 = vmul.f32 %v10625, %v10625
    %v10634 = vmul.f32 %v10630, %v10630
    %v10635 = vmul.f32 %v10625, %v10633
    %v10636 = vmul.f32 %v10630, %v10634
    %v10637 = vmul.f32 %v10635, 0.044715
    %v10638 = vmul.f32 %v10636, 0.044715
    %v10639 = vadd.f32 %v10625, %v10637
    %v10640 = vadd.f32 %v10630, %v10638
    %v10641 = vmul.f32 %v10639, 0.7978846
    %v10642 = vmul.f32 %v10640, 0.7978846
    %v10643 = vtanh.pop %v10641
    %v10644 = vtanh.pop %v10642
    %v10645 = vadd.f32 %v10643, 1.0
    %v10646 = vadd.f32 %v10644, 1.0
    %v10647 = vmul.f32 %v10645, 0.5
    %v10648 = vmul.f32 %v10646, 0.5
    %v10649 = vmul.f32 %v10625, %v10647
    %v10650 = vmul.f32 %v10630, %v10648
    %v10651 = vld [vmem:[%s3] sm:$0xff]
    %v10652 = vld [vmem:[%s3 + $0x8] sm:$0xff]
    %v10653 = vld [vmem:[%s3 + $0x10] sm:$0xff]
    %v10654 = vld [vmem:[%s3 + $0x18] sm:$0xff]
    %v10655 = vld [vmem:[%s3 + $0x20] sm:$0xff]
    %v10656 = vld [vmem:[%s3 + $0x28] sm:$0xff]
    %v10657 = vld [vmem:[%s3 + $0x30] sm:$0xff]
    %v10658 = vld [vmem:[%s3 + $0x38] sm:$0xff]
    %v10659 = vld [vmem:[%s3 + $0x40] sm:$0xff]
    %v10660 = vld [vmem:[%s3 + $0x48] sm:$0xff]
    %v10661 = vld [vmem:[%s3 + $0x50] sm:$0xff]
    %v10662 = vld [vmem:[%s3 + $0x58] sm:$0xff]
    %v10663 = vld [vmem:[%s3 + $0x60] sm:$0xff]
    %v10664 = vld [vmem:[%s3 + $0x68] sm:$0xff]
    %v10665 = vld [vmem:[%s3 + $0x70] sm:$0xff]
    %v10666 = vld [vmem:[%s3 + $0x78] sm:$0xff]
    %v10667 = vld [vmem:[%s4 + $0xc] sm:$0x1]
    %v10668 = vlaneseq
    %v10669 = vshrl.u32 %v10668, 7
    %v10670 = vsub.s32 0, %v10669
    %v10671 = vrot.slane %v10667, %v10670
    %10672 = vmatprep.subr.mxu0 0.0
    %10673 = vmatpush1.msra.mxu0 %v10666
    %10674 = vmatprep.subr.mxu0 0.0
    %10675 = vmatpush1.msra.mxu0 %v10665
    %10676 = vmatprep.subr.mxu0 0.0
    %10677 = vmatpush1.msra.mxu0 %v10664
    %10678 = vmatprep.subr.mxu0 0.0
    %10679 = vmatpush1.msra.mxu0 %v10663
    %10680 = vmatprep.subr.mxu0 0.0
    %10681 = vmatpush1.msra.mxu0 %v10662
    %10682 = vmatprep.subr.mxu0 0.0
    %10683 = vmatpush1.msra.mxu0 %v10661
    %10684 = vmatprep.subr.mxu0 0.0
    %10685 = vmatpush1.msra.mxu0 %v10660
    %10686 = vmatprep.subr.mxu0 0.0
    %10687 = vmatpush1.msra.mxu0 %v10659
    %10688 = vmatprep.subr.mxu0 0.0
    %10689 = vmatpush1.msra.mxu0 %v10658
    %10690 = vmatprep.subr.mxu0 0.0
    %10691 = vmatpush1.msra.mxu0 %v10657
    %10692 = vmatprep.subr.mxu0 0.0
    %10693 = vmatpush1.msra.mxu0 %v10656
    %10694 = vmatprep.subr.mxu0 0.0
    %10695 = vmatpush1.msra.mxu0 %v10655
    %10696 = vmatprep.subr.mxu0 0.0
    %10697 = vmatpush1.msra.mxu0 %v10654
    %10698 = vmatprep.subr.mxu0 0.0
    %10699 = vmatpush1.msra.mxu0 %v10653
    %10700 = vmatprep.subr.mxu0 0.0
    %10701 = vmatpush1.msra.mxu0 %v10652
    %10702 = vmatprep.subr.mxu0 0.0
    %10703 = vmatpush1.msra.mxu0 %v10651
    %10704 = vmatprep.subr.mxu0 0.0
    %10705 = vmatpush2.msra.mxu0 0.0
    %10706 = vmatprep.subr.mxu0 0.0
    %10707 = vmatpush2.msra.mxu0 0.0
    %10708 = vmatprep.subr.mxu0 0.0
    %10709 = vmatpush2.msra.mxu0 0.0
    %10710 = vmatprep.subr.mxu0 0.0
    %10711 = vmatpush2.msra.mxu0 0.0
    %10712 = vmatprep.subr.mxu0 0.0
    %10713 = vmatpush2.msra.mxu0 0.0
    %10714 = vmatprep.subr.mxu0 0.0
    %10715 = vmatpush2.msra.mxu0 0.0
    %10716 = vmatprep.subr.mxu0 0.0
    %10717 = vmatpush2.msra.mxu0 0.0
    %10718 = vmatprep.subr.mxu0 0.0
    %10719 = vmatpush2.msra.mxu0 0.0
    %10720 = vmatprep.subr.mxu0 0.0
    %10721 = vmatpush2.msra.mxu0 0.0
    %10722 = vmatprep.subr.mxu0 0.0
    %10723 = vmatpush2.msra.mxu0 0.0
    %10724 = vmatprep.subr.mxu0 0.0
    %10725 = vmatpush2.msra.mxu0 0.0
    %10726 = vmatprep.subr.mxu0 0.0
    %10727 = vmatpush2.msra.mxu0 0.0
    %10728 = vmatprep.subr.mxu0 0.0
    %10729 = vmatpush2.msra.mxu0 0.0
    %10730 = vmatprep.subr.mxu0 0.0
    %10731 = vmatpush2.msra.mxu0 0.0
    %10732 = vmatprep.subr.mxu0 0.0
    %10733 = vmatpush2.msra.mxu0 0.0
    %10734 = vmatprep.subr.mxu0 0.0
    %10735 = vmatpush2.msra.mxu0 0.0
    %10736 = vmatprep.mubr.f32.mxu0 0.0
    %10737 = vmatmul.mubr.f32.gmra.mxu0 %v10649
    %v10738 = vpop.f32.mrf.mxu0
    %v10739 = vadd.f32 %v10671, %v10738
    %v10740 = vpop.f32.mrf.mxu0
    %10741 = vmatprep.mubr.f32.mxu0 0.0
    %10742 = vmatmul.mubr.f32.gmra.mxu0 %v10650
    %v10743 = vpop.f32.mrf.mxu0
    %v10744 = vadd.f32 %v10671, %v10743
    %v10745 = vpop.f32.mrf.mxu0
    %10746 = vdwg.mxu0
    %10747 = vst.msk [vmem:[#allocation2] sm:$0xff] %vm30, %v10739
    %10748 = vst.msk [vmem:[#allocation2 + $0x8] sm:$0xff] %vm30, %v10744
    %10749 = vst.msk [vmem:[#allocation4] sm:$0xff] %vm1655, %v7065
    %10750 = vst.msk [vmem:[#allocation4 + $0x8] sm:$0xff] %vm1655, %v7066
    %10751 = vst.msk [vmem:[#allocation4 + $0x10] sm:$0xff] %vm1655, %v7067
    %10752 = vst.msk [vmem:[#allocation4 + $0x18] sm:$0xff] %vm1655, %v7068
    %10753 = vst.msk [vmem:[#allocation4 + $0x20] sm:$0xff] %vm1655, %v7069
    %10754 = vst.msk [vmem:[#allocation4 + $0x28] sm:$0xff] %vm1655, %v7070
    %10755 = vst.msk [vmem:[#allocation4 + $0x30] sm:$0xff] %vm1655, %v7071
    %10756 = vst.msk [vmem:[#allocation4 + $0x38] sm:$0xff] %vm1655, %v7072
    %10757 = vst.msk [vmem:[#allocation4 + $0x40] sm:$0xff] %vm1655, %v9536
    %10758 = vst.msk [vmem:[#allocation4 + $0x48] sm:$0xff] %vm1655, %v9537
    %10759 = vst.msk [vmem:[#allocation4 + $0x50] sm:$0xff] %vm1655, %v9538
    %10760 = vst.msk [vmem:[#allocation4 + $0x58] sm:$0xff] %vm1655, %v9539
    %10761 = vst.msk [vmem:[#allocation4 + $0x60] sm:$0xff] %vm1655, %v9540
    %10762 = vst.msk [vmem:[#allocation4 + $0x68] sm:$0xff] %vm1655, %v9541
    %10763 = vst.msk [vmem:[#allocation4 + $0x70] sm:$0xff] %vm1655, %v9542
    %10764 = vst.msk [vmem:[#allocation4 + $0x78] sm:$0xff] %vm1655, %v9543
    // Predicated region
    $region22: #{tpu_custom_call.1} parent=1 // pred_check
      _
    $region23: #{tpu_custom_call.1} parent=1 // pred_check_branch
      %10766 = sbr.rel (0) target = $region25
    $region24: #{tpu_custom_call.1} parent=1 // pred_region
      %s10768 = ssub.s32 256, 256
      %10769 = vsyncadd [#allocation3], %s10768
      %s10770 = sshll.u32 [#allocation2], 4
      %s10771 = int_to_ptr.vmem [resolvable:$true] %s10770
      %10776 = dma.vmem_to_hbm [thread:$0]  %s10771, 256, %s5, [#allocation3], 128, 128, 8
    $region25: #{tpu_custom_call.1} parent=1 // pred_fallthru
      _
    // Predicated region
    $region26: #{tpu_custom_call.1} parent=1 // pred_check
      _
    $region27: #{tpu_custom_call.1} parent=1 // pred_check_branch
      %10778 = sbr.rel (0) target = $region29
    $region28: #{tpu_custom_call.1} parent=1 // pred_region
      %s10780 = ssub.s32 2048, 2048
      %10781 = vsyncadd [#allocation5], %s10780
      %s10782 = sshll.u32 [#allocation4], 4
      %s10783 = int_to_ptr.vmem [resolvable:$true] %s10782
      %10788 = dma.vmem_to_hbm [thread:$0]  %s10783, 2048, %s6, [#allocation5], 128, 128, 8
    $region29: #{tpu_custom_call.1} parent=1 // pred_fallthru
      _
    // Predicated region
    $region30: #{tpu_custom_call.1} parent=1 // pred_check
      _
    $region31: #{tpu_custom_call.1} parent=1 // pred_check_branch
      %10790 = sbr.rel (0) target = $region33
    $region32: #{tpu_custom_call.1} parent=1 // pred_region
      %10791 = dma.done [#allocation3], 256
    $region33: #{tpu_custom_call.1} parent=1 // pred_fallthru
      _
    // Predicated region
    $region34: #{tpu_custom_call.1} parent=1 // pred_check
      _
    $region35: #{tpu_custom_call.1} parent=1 // pred_check_branch
      %10793 = sbr.rel (0) target = $region37
    $region36: #{tpu_custom_call.1} parent=1 // pred_region
      %10794 = dma.done [#allocation5], 2048
    $region37: #{tpu_custom_call.1} parent=1 // pred_fallthru
      _
    %10795 = vsyncpa [#allocation3], 1
    %10796 = vsyncpa [#allocation5], 1

</llo_original>
